<compile_context>
chip_gen: v7x
topology: tpu7x:2x2x1
jax: 0.10.0
libtpu: 0.0.40
codegen_flags: <defaults>
</compile_context>

<pallas_src>
import math

import jax
import jax.numpy as jnp
from jax.experimental import pallas as pl
from jax.experimental.pallas import tpu as pltpu

# ----------------------- model hyper-parameters (small) -----------------------
B, S = 2, 8                   # batch, sequence length
VOCAB = 100                   # vocab size
D = 128                       # embedding_dim (module default)
NHEAD = 8                     # nn.TransformerEncoderLayer(nhead=8)
DH = D // NHEAD               # head dim = 16
DFF = 2048                    # PyTorch default dim_feedforward
NUM_LAYERS = 2
NUM_CLASSES = 2
MAX_LEN = 250
EPS = 1e-5                    # PyTorch LayerNorm default eps


# =============================== Pallas kernel ================================

def _ln(x, g, b):
    """LayerNorm over the last dim; g/b are (1, N) rows that broadcast."""
    mu = jnp.mean(x, axis=-1, keepdims=True)
    var = jnp.mean(jnp.square(x - mu), axis=-1, keepdims=True)
    return (x - mu) * jax.lax.rsqrt(var + EPS) * g + b


def _model_kernel(emb_ref, pe_ref,
                  w_in_ref, b_in_ref, w_out_ref, b_out_ref,
                  ln1_g_ref, ln1_b_ref, w_ff1_ref, b_ff1_ref,
                  w_ff2_ref, b_ff2_ref, ln2_g_ref, ln2_b_ref,
                  fc_g_ref, fc_b_ref, fc_w_ref, fc_bias_ref,
                  o_ref, x_sc):
    layer = pl.program_id(0)

    # ---- first grid step: fold the positional add (2*emb + pe) into the kernel ----
    @pl.when(layer == 0)
    def _():
        pe = pe_ref[...]                                        # (S, D)
        x_sc[...] = 2.0 * emb_ref[...] + jnp.concatenate([pe] * B, axis=0)

    x = x_sc[...]                                               # (B*S, D), VMEM resident

    # ------------- self-attention: all batches & heads, entirely in VMEM -----------
    qkv = jnp.dot(x, w_in_ref[...], preferred_element_type=jnp.float32) + b_in_ref[...]
    q = qkv[:, 0:D]
    k = qkv[:, D:2 * D]
    v = qkv[:, 2 * D:3 * D]

    scale = 1.0 / math.sqrt(DH)
    batch_rows = []
    for b in range(B):                       # static unroll: B*NHEAD tiny MXU matmuls
        r0 = b * S
        head_outs = []
        for h in range(NHEAD):
            c0 = h * DH
            qh = q[r0:r0 + S, c0:c0 + DH]    # (S, DH) static slices of in-VMEM values
            kh = k[r0:r0 + S, c0:c0 + DH]
            vh = v[r0:r0 + S, c0:c0 + DH]
            # contract head dim directly (q @ k^T without a materialized transpose)
            s = jax.lax.dot_general(qh, kh, (((1,), (1,)), ((), ())),
                                    preferred_element_type=jnp.float32) * scale
            s = s - jnp.max(s, axis=-1, keepdims=True)
            p = jnp.exp(s)
            p = p / jnp.sum(p, axis=-1, keepdims=True)
            head_outs.append(jnp.dot(p, vh, preferred_element_type=jnp.float32))
        batch_rows.append(jnp.concatenate(head_outs, axis=1))   # (S, D): lane-dense
    attn = jnp.concatenate(batch_rows, axis=0)                  # (B*S, D)

    attn_out = (jnp.dot(attn, w_out_ref[...], preferred_element_type=jnp.float32)
                + b_out_ref[...])
    h1 = _ln(x + attn_out, ln1_g_ref[...], ln1_b_ref[...])      # norm1(x + attn)

    # ------------- fused FFN: (B*S, DFF) intermediate never leaves VMEM ------------
    ff = jnp.dot(h1, w_ff1_ref[...], preferred_element_type=jnp.float32) + b_ff1_ref[...]
    ff = jnp.maximum(ff, 0.0)
    ff = jnp.dot(ff, w_ff2_ref[...], preferred_element_type=jnp.float32) + b_ff2_ref[...]
    h2 = _ln(h1 + ff, ln2_g_ref[...], ln2_b_ref[...])           # norm2(h1 + ffn)

    x_sc[...] = h2                                              # carry to next layer

    # ---- last grid step: mean over sequence -> LayerNorm -> Linear classifier -----
    @pl.when(layer == pl.num_programs(0) - 1)
    def _():
        rows = [jnp.mean(h2[b * S:(b + 1) * S, :], axis=0, keepdims=True)
                for b in range(B)]
        m = jnp.concatenate(rows, axis=0)                       # (B, D)
        hm = _ln(m, fc_g_ref[...], fc_b_ref[...])
        y = (jnp.dot(hm, fc_w_ref[...], preferred_element_type=jnp.float32)
             + fc_bias_ref[...])
        o_ref[...] = y.astype(o_ref.dtype)


# ============================== pallas_call wrapper ============================

def _layer_spec(shape):
    """Per-layer weight: leading layer dim squeezed, block index = grid step."""
    n = len(shape)
    return pl.BlockSpec((None,) + tuple(shape), lambda l, _n=n: (l,) + (0,) * _n)


def _full_spec(shape):
    n = len(shape)
    return pl.BlockSpec(tuple(shape), lambda l, _n=n: (0,) * _n)


@jax.jit
def forward(input_ids, emb_table, packed):
    # Embedding gather stays in XLA glue (no clean/cheap Pallas equivalent at 16 rows).
    emb = jnp.take(emb_table, input_ids, axis=0).reshape(B * S, D)

    grid_spec = pltpu.PrefetchScalarGridSpec(
        num_scalar_prefetch=0,
        grid=(NUM_LAYERS,),
        in_specs=[
            _full_spec((B * S, D)),            # emb
            _full_spec((S, D)),                # pe
            _layer_spec((D, 3 * D)),           # w_in
            _layer_spec((1, 3 * D)),           # b_in
            _layer_spec((D, D)),               # w_out
            _layer_spec((1, D)),               # b_out
            _layer_spec((1, D)),               # ln1_g
            _layer_spec((1, D)),               # ln1_b
            _layer_spec((D, DFF)),             # w_ff1
            _layer_spec((1, DFF)),             # b_ff1
            _layer_spec((DFF, D)),             # w_ff2
            _layer_spec((1, D)),               # b_ff2
            _layer_spec((1, D)),               # ln2_g
            _layer_spec((1, D)),               # ln2_b
            _full_spec((1, D)),                # fc_ln_g
            _full_spec((1, D)),                # fc_ln_b
            _full_spec((D, NUM_CLASSES)),      # fc_w
            _full_spec((1, NUM_CLASSES)),      # fc_b
        ],
        out_specs=pl.BlockSpec((B, NUM_CLASSES), lambda l: (0, 0)),
        scratch_shapes=[pltpu.VMEM((B * S, D), jnp.float32)],    # activation carry
    )
    return pl.pallas_call(
        _model_kernel,
        grid_spec=grid_spec,
        out_shape=jax.ShapeDtypeStruct((B, NUM_CLASSES), jnp.float32),
        compiler_params=pltpu.CompilerParams(
            dimension_semantics=("arbitrary",)),   # layer axis carries state
    )(emb, packed["pe"],
      packed["w_in"], packed["b_in"], packed["w_out"], packed["b_out"],
      packed["ln1_g"], packed["ln1_b"], packed["w_ff1"], packed["b_ff1"],
      packed["w_ff2"], packed["b_ff2"], packed["ln2_g"], packed["ln2_b"],
      packed["fc_ln_g"], packed["fc_ln_b"], packed["fc_w"], packed["fc_b"])


def pack_params(params):
    """Stack per-layer weights along a leading layer axis (done once)."""
    L = params["layers"]
    stk = lambda name: jnp.stack([lp[name] for lp in L])                  # (NL, R, C)
    row = lambda name: jnp.stack([lp[name].reshape(1, -1) for lp in L])   # (NL, 1, N)
    return dict(
        w_in=stk("w_in"), b_in=row("b_in"),
        w_out=stk("w_out"), b_out=row("b_out"),
        ln1_g=row("ln1_g"), ln1_b=row("ln1_b"),
        w_ff1=stk("w_ff1"), b_ff1=row("b_ff1"),
        w_ff2=stk("w_ff2"), b_ff2=row("b_ff2"),
        ln2_g=row("ln2_g"), ln2_b=row("ln2_b"),
        fc_ln_g=params["fc_ln_g"].reshape(1, D),
        fc_ln_b=params["fc_ln_b"].reshape(1, D),
        fc_w=params["fc_w"],
        fc_b=params["fc_b"].reshape(1, NUM_CLASSES),
        pe=params["pe"][0, :S, :],
    )


# ============================= pure-JAX reference ==============================

def _ref_ln(x, g, b):
    mu = x.mean(-1, keepdims=True)
    var = jnp.mean(jnp.square(x - mu), -1, keepdims=True)
    return (x - mu) * jax.lax.rsqrt(var + EPS) * g + b


def ref_forward(input_ids, params):
    emb = jnp.take(params["emb"], input_ids, axis=0)
    x = 2.0 * emb + params["pe"][:, :S, :]
    for p in params["layers"]:
        xf = x.reshape(B * S, D)
        qkv = xf @ p["w_in"] + p["b_in"]
        q, k, v = jnp.split(qkv, 3, axis=-1)
        def to_heads(t):
            return t.reshape(B, S, NHEAD, DH).transpose(0, 2, 1, 3)
        q, k, v = to_heads(q), to_heads(k), to_heads(v)
        s = jnp.einsum("bhqd,bhkd->bhqk", q, k) / math.sqrt(DH)
        a = jax.nn.softmax(s, axis=-1)
        o = jnp.einsum("bhqk,bhkd->bhqd", a, v)
        o = o.transpose(0, 2, 1, 3).reshape(B * S, D)
        attn_out = o @ p["w_out"] + p["b_out"]
        h1 = _ref_ln(xf + attn_out, p["ln1_g"], p["ln1_b"])
        ff = jnp.maximum(h1 @ p["w_ff1"] + p["b_ff1"], 0.0) @ p["w_ff2"] + p["b_ff2"]
        x = _ref_ln(h1 + ff, p["ln2_g"], p["ln2_b"]).reshape(B, S, D)
    m = x.mean(axis=1)
    h = _ref_ln(m, params["fc_ln_g"], params["fc_ln_b"])
    return h @ params["fc_w"] + params["fc_b"]


# ================================ parameters ==================================

def make_pe(max_len, d):
    pos = jnp.arange(max_len, dtype=jnp.float32)[:, None]
    div = jnp.exp(jnp.arange(0, d, 2, dtype=jnp.float32) * (-math.log(10000.0) / d))
    pe = jnp.zeros((max_len, d), dtype=jnp.float32)
    pe = pe.at[:, 0::2].set(jnp.sin(pos * div))
    pe = pe.at[:, 1::2].set(jnp.cos(pos * div))
    return pe[None]                                           # (1, max_len, d)


def init_params(key):
    def nrm(k, shape, scale=0.02):
        return scale * jax.random.normal(k, shape, dtype=jnp.float32)

    keys = iter(jax.random.split(key, 64))
    emb = nrm(next(keys), (VOCAB, D), 1.0)
    emb = emb.at[0].set(0.0)                                  # padding_idx=0
    layers = []
    for _ in range(NUM_LAYERS):
        layers.append(dict(
            w_in=nrm(next(keys), (D, 3 * D)),  b_in=nrm(next(keys), (3 * D,), 0.01),
            w_out=nrm(next(keys), (D, D)),     b_out=nrm(next(keys), (D,), 0.01),
            ln1_g=jnp.ones((D,), jnp.float32), ln1_b=jnp.zeros((D,), jnp.float32),
            w_ff1=nrm(next(keys), (D, DFF)),   b_ff1=nrm(next(keys), (DFF,), 0.01),
            w_ff2=nrm(next(keys), (DFF, D)),   b_ff2=nrm(next(keys), (D,), 0.01),
            ln2_g=jnp.ones((D,), jnp.float32), ln2_b=jnp.zeros((D,), jnp.float32),
        ))
    return dict(
        emb=emb,
        pe=make_pe(MAX_LEN, D),
        layers=layers,
        fc_ln_g=jnp.ones((D,), jnp.float32), fc_ln_b=jnp.zeros((D,), jnp.float32),
        fc_w=nrm(next(keys), (D, NUM_CLASSES)), fc_b=jnp.zeros((NUM_CLASSES,), jnp.float32),
    )


# =================================== main =====================================

if __name__ == "__main__":
    key = jax.random.PRNGKey(0)
    k_ids, k_par = jax.random.split(key)
    input_ids = jax.random.randint(k_ids, (B, S), 0, VOCAB, dtype=jnp.int32)
    params = init_params(k_par)
    packed = pack_params(params)

    logits = forward(input_ids, params["emb"], packed)
    logits = jax.block_until_ready(logits)
    assert logits.shape == (B, NUM_CLASSES) and logits.dtype == jnp.float32

    ref = jax.block_until_ready(ref_forward(input_ids, params))
    assert jnp.allclose(logits, ref, rtol=2e-2, atol=2e-2), (logits, ref)

    # dropout layers are identity in eval/inference mode; no stochastic masking applied
    print("KERNEL_OK")
</pallas_src>

<mosaic_0001>
module attributes {stable_mosaic.version = 11 : i64} {
  func.func @_model_kernel(%arg0: i32, %arg1: memref<16x128xf32, #tpu.memory_space<vmem>>, %arg2: memref<8x128xf32, #tpu.memory_space<vmem>>, %arg3: memref<1x128x384xf32, #tpu.memory_space<vmem>>, %arg4: memref<1x1x384xf32, #tpu.memory_space<vmem>>, %arg5: memref<1x128x128xf32, #tpu.memory_space<vmem>>, %arg6: memref<1x1x128xf32, #tpu.memory_space<vmem>>, %arg7: memref<1x1x128xf32, #tpu.memory_space<vmem>>, %arg8: memref<1x1x128xf32, #tpu.memory_space<vmem>>, %arg9: memref<1x128x2048xf32, #tpu.memory_space<vmem>>, %arg10: memref<1x1x2048xf32, #tpu.memory_space<vmem>>, %arg11: memref<1x2048x128xf32, #tpu.memory_space<vmem>>, %arg12: memref<1x1x128xf32, #tpu.memory_space<vmem>>, %arg13: memref<1x1x128xf32, #tpu.memory_space<vmem>>, %arg14: memref<1x1x128xf32, #tpu.memory_space<vmem>>, %arg15: memref<1x128xf32, #tpu.memory_space<vmem>>, %arg16: memref<1x128xf32, #tpu.memory_space<vmem>>, %arg17: memref<128x2xf32, #tpu.memory_space<vmem>>, %arg18: memref<1x2xf32, #tpu.memory_space<vmem>>, %arg19: memref<2x2xf32, #tpu.memory_space<vmem>>, %arg20: memref<16x128xf32, #tpu.memory_space<vmem>>) attributes {dimension_semantics = [#tpu.dimension_semantics<arbitrary>], iteration_bounds = array<i64: 2>, scalar_prefetch = 0 : i64, scratch_operands = 1 : i64, tpu.core_type = #tpu.core_type<tc>, window_params = [{pipeline_mode = #tpu.pipeline_mode<synchronous>, transform_indices = @transform_0, window_bounds = array<i64: 16, 128>}, {pipeline_mode = #tpu.pipeline_mode<synchronous>, transform_indices = @transform_1, window_bounds = array<i64: 8, 128>}, {transform_indices = @transform_2, window_bounds = array<i64: 1, 128, 384>}, {transform_indices = @transform_3, window_bounds = array<i64: 1, 1, 384>}, {transform_indices = @transform_4, window_bounds = array<i64: 1, 128, 128>}, {transform_indices = @transform_5, window_bounds = array<i64: 1, 1, 128>}, {transform_indices = @transform_6, window_bounds = array<i64: 1, 1, 128>}, {transform_indices = @transform_7, window_bounds = array<i64: 1, 1, 128>}, {transform_indices = @transform_8, window_bounds = array<i64: 1, 128, 2048>}, {transform_indices = @transform_9, window_bounds = array<i64: 1, 1, 2048>}, {transform_indices = @transform_10, window_bounds = array<i64: 1, 2048, 128>}, {transform_indices = @transform_11, window_bounds = array<i64: 1, 1, 128>}, {transform_indices = @transform_12, window_bounds = array<i64: 1, 1, 128>}, {transform_indices = @transform_13, window_bounds = array<i64: 1, 1, 128>}, {pipeline_mode = #tpu.pipeline_mode<synchronous>, transform_indices = @transform_14, window_bounds = array<i64: 1, 128>}, {pipeline_mode = #tpu.pipeline_mode<synchronous>, transform_indices = @transform_15, window_bounds = array<i64: 1, 128>}, {pipeline_mode = #tpu.pipeline_mode<synchronous>, transform_indices = @transform_16, window_bounds = array<i64: 128, 2>}, {pipeline_mode = #tpu.pipeline_mode<synchronous>, transform_indices = @transform_17, window_bounds = array<i64: 1, 2>}, {pipeline_mode = #tpu.pipeline_mode<synchronous>, transform_indices = @transform_18, window_bounds = array<i64: 2, 2>}]} {
    %c0_i32 = arith.constant 0 : i32
    %0 = arith.cmpi eq, %arg0, %c0_i32 : i32
    %1 = arith.extui %0 : i1 to i32
    %c0_i32_0 = arith.constant 0 : i32
    %2 = arith.cmpi ne, %1, %c0_i32_0 : i32
    scf.if %2 {
      %c0_135 = arith.constant 0 : index
      %c0_136 = arith.constant 0 : index
      %354 = vector.load %arg2[%c0_135, %c0_136] : memref<8x128xf32, #tpu.memory_space<vmem>>, vector<8x128xf32>
      %c0_137 = arith.constant 0 : index
      %c0_138 = arith.constant 0 : index
      %355 = vector.load %arg1[%c0_137, %c0_138] : memref<16x128xf32, #tpu.memory_space<vmem>>, vector<16x128xf32>
      %cst_139 = arith.constant 2.000000e+00 : f32
      %356 = vector.broadcast %cst_139 : f32 to vector<16x128xf32>
      %357 = arith.mulf %356, %355 : vector<16x128xf32>
      %358 = tpu.concatenate %354, %354 in 0 : vector<8x128xf32>, vector<8x128xf32> -> vector<16x128xf32>
      %359 = arith.addf %357, %358 : vector<16x128xf32>
      %c0_140 = arith.constant 0 : index
      %c0_141 = arith.constant 0 : index
      %360 = vector.load %arg20[%c0_140, %c0_141] : memref<16x128xf32, #tpu.memory_space<vmem>>, vector<16x128xf32>
      tpu.vector_store %arg20[%c0_140, %c0_141], %359 {strides = array<i32>} : memref<16x128xf32, #tpu.memory_space<vmem>>, vector<16x128xf32>,
    } else {
    }
    %c0 = arith.constant 0 : index
    %c0_1 = arith.constant 0 : index
    %3 = vector.load %arg20[%c0, %c0_1] : memref<16x128xf32, #tpu.memory_space<vmem>>, vector<16x128xf32>
    %c0_2 = arith.constant 0 : index
    %c0_3 = arith.constant 0 : index
    %c0_4 = arith.constant 0 : index
    %4 = vector.load %arg3[%c0_2, %c0_3, %c0_4] : memref<1x128x384xf32, #tpu.memory_space<vmem>>, vector<1x128x384xf32>
    %5 = vector.shape_cast %4 : vector<1x128x384xf32> to vector<128x384xf32>
    %cst = arith.constant dense<0.000000e+00> : vector<16x384xf32>
    %6 = tpu.matmul %3, %5, %cst {dimension_numbers = #tpu.dot_dimension_numbers<[1], [0], [0], [1], [0, 0, 1, 1], [], []>} : vector<16x128xf32>, vector<128x384xf32>, vector<16x384xf32> -> vector<16x384xf32>
    %c0_5 = arith.constant 0 : index
    %c0_6 = arith.constant 0 : index
    %c0_7 = arith.constant 0 : index
    %7 = vector.load %arg4[%c0_5, %c0_6, %c0_7] : memref<1x1x384xf32, #tpu.memory_space<vmem>>, vector<1x1x384xf32>
    %8 = vector.shape_cast %7 : vector<1x1x384xf32> to vector<1x384xf32>
    %9 = vector.broadcast %8 : vector<1x384xf32> to vector<16x384xf32>
    %10 = arith.addf %6, %9 : vector<16x384xf32>
    %11 = vector.extract_strided_slice %10 {offsets = [0, 0], sizes = [16, 128], strides = [1, 1]} : vector<16x384xf32> to vector<16x128xf32>
    %12 = vector.extract_strided_slice %10 {offsets = [0, 128], sizes = [16, 128], strides = [1, 1]} : vector<16x384xf32> to vector<16x128xf32>
    %13 = vector.extract_strided_slice %10 {offsets = [0, 256], sizes = [16, 128], strides = [1, 1]} : vector<16x384xf32> to vector<16x128xf32>
    %14 = vector.extract_strided_slice %11 {offsets = [0, 0], sizes = [8, 16], strides = [1, 1]} : vector<16x128xf32> to vector<8x16xf32>
    %15 = vector.extract_strided_slice %12 {offsets = [0, 0], sizes = [8, 16], strides = [1, 1]} : vector<16x128xf32> to vector<8x16xf32>
    %16 = vector.extract_strided_slice %13 {offsets = [0, 0], sizes = [8, 16], strides = [1, 1]} : vector<16x128xf32> to vector<8x16xf32>
    %cst_8 = arith.constant dense<0.000000e+00> : vector<8x8xf32>
    %17 = tpu.matmul %14, %15, %cst_8 {dimension_numbers = #tpu.dot_dimension_numbers<[1], [1], [0], [0], [0, 0, 1, 0], [], []>} : vector<8x16xf32>, vector<8x16xf32>, vector<8x8xf32> -> vector<8x8xf32>
    %cst_9 = arith.constant 2.500000e-01 : f32
    %18 = vector.broadcast %cst_9 : f32 to vector<8x8xf32>
    %19 = arith.mulf %17, %18 : vector<8x8xf32>
    %cst_10 = arith.constant dense<0xFF800000> : vector<8xf32>
    %20 = vector.multi_reduction <maximumf>, %19, %cst_10 [1] : vector<8x8xf32> to vector<8xf32>
    %21 = vector.shape_cast %20 : vector<8xf32> to vector<8x1xf32>
    %22 = vector.broadcast %21 : vector<8x1xf32> to vector<8x8xf32>
    %23 = arith.subf %19, %22 : vector<8x8xf32>
    %24 = math.exp %23 : vector<8x8xf32>
    %cst_11 = arith.constant dense<0.000000e+00> : vector<8xf32>
    %25 = vector.multi_reduction <add>, %24, %cst_11 [1] : vector<8x8xf32> to vector<8xf32>
    %26 = vector.shape_cast %25 : vector<8xf32> to vector<8x1xf32>
    %27 = vector.broadcast %26 : vector<8x1xf32> to vector<8x8xf32>
    %28 = arith.divf %24, %27 : vector<8x8xf32>
    %cst_12 = arith.constant dense<0.000000e+00> : vector<8x16xf32>
    %29 = tpu.matmul %28, %16, %cst_12 {dimension_numbers = #tpu.dot_dimension_numbers<[1], [0], [0], [1], [0, 0, 1, 1], [], []>} : vector<8x8xf32>, vector<8x16xf32>, vector<8x16xf32> -> vector<8x16xf32>
    %30 = vector.extract_strided_slice %11 {offsets = [0, 16], sizes = [8, 16], strides = [1, 1]} : vector<16x128xf32> to vector<8x16xf32>
    %31 = vector.extract_strided_slice %12 {offsets = [0, 16], sizes = [8, 16], strides = [1, 1]} : vector<16x128xf32> to vector<8x16xf32>
    %32 = vector.extract_strided_slice %13 {offsets = [0, 16], sizes = [8, 16], strides = [1, 1]} : vector<16x128xf32> to vector<8x16xf32>
    %cst_13 = arith.constant dense<0.000000e+00> : vector<8x8xf32>
    %33 = tpu.matmul %30, %31, %cst_13 {dimension_numbers = #tpu.dot_dimension_numbers<[1], [1], [0], [0], [0, 0, 1, 0], [], []>} : vector<8x16xf32>, vector<8x16xf32>, vector<8x8xf32> -> vector<8x8xf32>
    %cst_14 = arith.constant 2.500000e-01 : f32
    %34 = vector.broadcast %cst_14 : f32 to vector<8x8xf32>
    %35 = arith.mulf %33, %34 : vector<8x8xf32>
    %cst_15 = arith.constant dense<0xFF800000> : vector<8xf32>
    %36 = vector.multi_reduction <maximumf>, %35, %cst_15 [1] : vector<8x8xf32> to vector<8xf32>
    %37 = vector.shape_cast %36 : vector<8xf32> to vector<8x1xf32>
    %38 = vector.broadcast %37 : vector<8x1xf32> to vector<8x8xf32>
    %39 = arith.subf %35, %38 : vector<8x8xf32>
    %40 = math.exp %39 : vector<8x8xf32>
    %cst_16 = arith.constant dense<0.000000e+00> : vector<8xf32>
    %41 = vector.multi_reduction <add>, %40, %cst_16 [1] : vector<8x8xf32> to vector<8xf32>
    %42 = vector.shape_cast %41 : vector<8xf32> to vector<8x1xf32>
    %43 = vector.broadcast %42 : vector<8x1xf32> to vector<8x8xf32>
    %44 = arith.divf %40, %43 : vector<8x8xf32>
    %cst_17 = arith.constant dense<0.000000e+00> : vector<8x16xf32>
    %45 = tpu.matmul %44, %32, %cst_17 {dimension_numbers = #tpu.dot_dimension_numbers<[1], [0], [0], [1], [0, 0, 1, 1], [], []>} : vector<8x8xf32>, vector<8x16xf32>, vector<8x16xf32> -> vector<8x16xf32>
    %46 = vector.extract_strided_slice %11 {offsets = [0, 32], sizes = [8, 16], strides = [1, 1]} : vector<16x128xf32> to vector<8x16xf32>
    %47 = vector.extract_strided_slice %12 {offsets = [0, 32], sizes = [8, 16], strides = [1, 1]} : vector<16x128xf32> to vector<8x16xf32>
    %48 = vector.extract_strided_slice %13 {offsets = [0, 32], sizes = [8, 16], strides = [1, 1]} : vector<16x128xf32> to vector<8x16xf32>
    %cst_18 = arith.constant dense<0.000000e+00> : vector<8x8xf32>
    %49 = tpu.matmul %46, %47, %cst_18 {dimension_numbers = #tpu.dot_dimension_numbers<[1], [1], [0], [0], [0, 0, 1, 0], [], []>} : vector<8x16xf32>, vector<8x16xf32>, vector<8x8xf32> -> vector<8x8xf32>
    %cst_19 = arith.constant 2.500000e-01 : f32
    %50 = vector.broadcast %cst_19 : f32 to vector<8x8xf32>
    %51 = arith.mulf %49, %50 : vector<8x8xf32>
    %cst_20 = arith.constant dense<0xFF800000> : vector<8xf32>
    %52 = vector.multi_reduction <maximumf>, %51, %cst_20 [1] : vector<8x8xf32> to vector<8xf32>
    %53 = vector.shape_cast %52 : vector<8xf32> to vector<8x1xf32>
    %54 = vector.broadcast %53 : vector<8x1xf32> to vector<8x8xf32>
    %55 = arith.subf %51, %54 : vector<8x8xf32>
    %56 = math.exp %55 : vector<8x8xf32>
    %cst_21 = arith.constant dense<0.000000e+00> : vector<8xf32>
    %57 = vector.multi_reduction <add>, %56, %cst_21 [1] : vector<8x8xf32> to vector<8xf32>
    %58 = vector.shape_cast %57 : vector<8xf32> to vector<8x1xf32>
    %59 = vector.broadcast %58 : vector<8x1xf32> to vector<8x8xf32>
    %60 = arith.divf %56, %59 : vector<8x8xf32>
    %cst_22 = arith.constant dense<0.000000e+00> : vector<8x16xf32>
    %61 = tpu.matmul %60, %48, %cst_22 {dimension_numbers = #tpu.dot_dimension_numbers<[1], [0], [0], [1], [0, 0, 1, 1], [], []>} : vector<8x8xf32>, vector<8x16xf32>, vector<8x16xf32> -> vector<8x16xf32>
    %62 = vector.extract_strided_slice %11 {offsets = [0, 48], sizes = [8, 16], strides = [1, 1]} : vector<16x128xf32> to vector<8x16xf32>
    %63 = vector.extract_strided_slice %12 {offsets = [0, 48], sizes = [8, 16], strides = [1, 1]} : vector<16x128xf32> to vector<8x16xf32>
    %64 = vector.extract_strided_slice %13 {offsets = [0, 48], sizes = [8, 16], strides = [1, 1]} : vector<16x128xf32> to vector<8x16xf32>
    %cst_23 = arith.constant dense<0.000000e+00> : vector<8x8xf32>
    %65 = tpu.matmul %62, %63, %cst_23 {dimension_numbers = #tpu.dot_dimension_numbers<[1], [1], [0], [0], [0, 0, 1, 0], [], []>} : vector<8x16xf32>, vector<8x16xf32>, vector<8x8xf32> -> vector<8x8xf32>
    %cst_24 = arith.constant 2.500000e-01 : f32
    %66 = vector.broadcast %cst_24 : f32 to vector<8x8xf32>
    %67 = arith.mulf %65, %66 : vector<8x8xf32>
    %cst_25 = arith.constant dense<0xFF800000> : vector<8xf32>
    %68 = vector.multi_reduction <maximumf>, %67, %cst_25 [1] : vector<8x8xf32> to vector<8xf32>
    %69 = vector.shape_cast %68 : vector<8xf32> to vector<8x1xf32>
    %70 = vector.broadcast %69 : vector<8x1xf32> to vector<8x8xf32>
    %71 = arith.subf %67, %70 : vector<8x8xf32>
    %72 = math.exp %71 : vector<8x8xf32>
    %cst_26 = arith.constant dense<0.000000e+00> : vector<8xf32>
    %73 = vector.multi_reduction <add>, %72, %cst_26 [1] : vector<8x8xf32> to vector<8xf32>
    %74 = vector.shape_cast %73 : vector<8xf32> to vector<8x1xf32>
    %75 = vector.broadcast %74 : vector<8x1xf32> to vector<8x8xf32>
    %76 = arith.divf %72, %75 : vector<8x8xf32>
    %cst_27 = arith.constant dense<0.000000e+00> : vector<8x16xf32>
    %77 = tpu.matmul %76, %64, %cst_27 {dimension_numbers = #tpu.dot_dimension_numbers<[1], [0], [0], [1], [0, 0, 1, 1], [], []>} : vector<8x8xf32>, vector<8x16xf32>, vector<8x16xf32> -> vector<8x16xf32>
    %78 = vector.extract_strided_slice %11 {offsets = [0, 64], sizes = [8, 16], strides = [1, 1]} : vector<16x128xf32> to vector<8x16xf32>
    %79 = vector.extract_strided_slice %12 {offsets = [0, 64], sizes = [8, 16], strides = [1, 1]} : vector<16x128xf32> to vector<8x16xf32>
    %80 = vector.extract_strided_slice %13 {offsets = [0, 64], sizes = [8, 16], strides = [1, 1]} : vector<16x128xf32> to vector<8x16xf32>
    %cst_28 = arith.constant dense<0.000000e+00> : vector<8x8xf32>
    %81 = tpu.matmul %78, %79, %cst_28 {dimension_numbers = #tpu.dot_dimension_numbers<[1], [1], [0], [0], [0, 0, 1, 0], [], []>} : vector<8x16xf32>, vector<8x16xf32>, vector<8x8xf32> -> vector<8x8xf32>
    %cst_29 = arith.constant 2.500000e-01 : f32
    %82 = vector.broadcast %cst_29 : f32 to vector<8x8xf32>
    %83 = arith.mulf %81, %82 : vector<8x8xf32>
    %cst_30 = arith.constant dense<0xFF800000> : vector<8xf32>
    %84 = vector.multi_reduction <maximumf>, %83, %cst_30 [1] : vector<8x8xf32> to vector<8xf32>
    %85 = vector.shape_cast %84 : vector<8xf32> to vector<8x1xf32>
    %86 = vector.broadcast %85 : vector<8x1xf32> to vector<8x8xf32>
    %87 = arith.subf %83, %86 : vector<8x8xf32>
    %88 = math.exp %87 : vector<8x8xf32>
    %cst_31 = arith.constant dense<0.000000e+00> : vector<8xf32>
    %89 = vector.multi_reduction <add>, %88, %cst_31 [1] : vector<8x8xf32> to vector<8xf32>
    %90 = vector.shape_cast %89 : vector<8xf32> to vector<8x1xf32>
    %91 = vector.broadcast %90 : vector<8x1xf32> to vector<8x8xf32>
    %92 = arith.divf %88, %91 : vector<8x8xf32>
    %cst_32 = arith.constant dense<0.000000e+00> : vector<8x16xf32>
    %93 = tpu.matmul %92, %80, %cst_32 {dimension_numbers = #tpu.dot_dimension_numbers<[1], [0], [0], [1], [0, 0, 1, 1], [], []>} : vector<8x8xf32>, vector<8x16xf32>, vector<8x16xf32> -> vector<8x16xf32>
    %94 = vector.extract_strided_slice %11 {offsets = [0, 80], sizes = [8, 16], strides = [1, 1]} : vector<16x128xf32> to vector<8x16xf32>
    %95 = vector.extract_strided_slice %12 {offsets = [0, 80], sizes = [8, 16], strides = [1, 1]} : vector<16x128xf32> to vector<8x16xf32>
    %96 = vector.extract_strided_slice %13 {offsets = [0, 80], sizes = [8, 16], strides = [1, 1]} : vector<16x128xf32> to vector<8x16xf32>
    %cst_33 = arith.constant dense<0.000000e+00> : vector<8x8xf32>
    %97 = tpu.matmul %94, %95, %cst_33 {dimension_numbers = #tpu.dot_dimension_numbers<[1], [1], [0], [0], [0, 0, 1, 0], [], []>} : vector<8x16xf32>, vector<8x16xf32>, vector<8x8xf32> -> vector<8x8xf32>
    %cst_34 = arith.constant 2.500000e-01 : f32
    %98 = vector.broadcast %cst_34 : f32 to vector<8x8xf32>
    %99 = arith.mulf %97, %98 : vector<8x8xf32>
    %cst_35 = arith.constant dense<0xFF800000> : vector<8xf32>
    %100 = vector.multi_reduction <maximumf>, %99, %cst_35 [1] : vector<8x8xf32> to vector<8xf32>
    %101 = vector.shape_cast %100 : vector<8xf32> to vector<8x1xf32>
    %102 = vector.broadcast %101 : vector<8x1xf32> to vector<8x8xf32>
    %103 = arith.subf %99, %102 : vector<8x8xf32>
    %104 = math.exp %103 : vector<8x8xf32>
    %cst_36 = arith.constant dense<0.000000e+00> : vector<8xf32>
    %105 = vector.multi_reduction <add>, %104, %cst_36 [1] : vector<8x8xf32> to vector<8xf32>
    %106 = vector.shape_cast %105 : vector<8xf32> to vector<8x1xf32>
    %107 = vector.broadcast %106 : vector<8x1xf32> to vector<8x8xf32>
    %108 = arith.divf %104, %107 : vector<8x8xf32>
    %cst_37 = arith.constant dense<0.000000e+00> : vector<8x16xf32>
    %109 = tpu.matmul %108, %96, %cst_37 {dimension_numbers = #tpu.dot_dimension_numbers<[1], [0], [0], [1], [0, 0, 1, 1], [], []>} : vector<8x8xf32>, vector<8x16xf32>, vector<8x16xf32> -> vector<8x16xf32>
    %110 = vector.extract_strided_slice %11 {offsets = [0, 96], sizes = [8, 16], strides = [1, 1]} : vector<16x128xf32> to vector<8x16xf32>
    %111 = vector.extract_strided_slice %12 {offsets = [0, 96], sizes = [8, 16], strides = [1, 1]} : vector<16x128xf32> to vector<8x16xf32>
    %112 = vector.extract_strided_slice %13 {offsets = [0, 96], sizes = [8, 16], strides = [1, 1]} : vector<16x128xf32> to vector<8x16xf32>
    %cst_38 = arith.constant dense<0.000000e+00> : vector<8x8xf32>
    %113 = tpu.matmul %110, %111, %cst_38 {dimension_numbers = #tpu.dot_dimension_numbers<[1], [1], [0], [0], [0, 0, 1, 0], [], []>} : vector<8x16xf32>, vector<8x16xf32>, vector<8x8xf32> -> vector<8x8xf32>
    %cst_39 = arith.constant 2.500000e-01 : f32
    %114 = vector.broadcast %cst_39 : f32 to vector<8x8xf32>
    %115 = arith.mulf %113, %114 : vector<8x8xf32>
    %cst_40 = arith.constant dense<0xFF800000> : vector<8xf32>
    %116 = vector.multi_reduction <maximumf>, %115, %cst_40 [1] : vector<8x8xf32> to vector<8xf32>
    %117 = vector.shape_cast %116 : vector<8xf32> to vector<8x1xf32>
    %118 = vector.broadcast %117 : vector<8x1xf32> to vector<8x8xf32>
    %119 = arith.subf %115, %118 : vector<8x8xf32>
    %120 = math.exp %119 : vector<8x8xf32>
    %cst_41 = arith.constant dense<0.000000e+00> : vector<8xf32>
    %121 = vector.multi_reduction <add>, %120, %cst_41 [1] : vector<8x8xf32> to vector<8xf32>
    %122 = vector.shape_cast %121 : vector<8xf32> to vector<8x1xf32>
    %123 = vector.broadcast %122 : vector<8x1xf32> to vector<8x8xf32>
    %124 = arith.divf %120, %123 : vector<8x8xf32>
    %cst_42 = arith.constant dense<0.000000e+00> : vector<8x16xf32>
    %125 = tpu.matmul %124, %112, %cst_42 {dimension_numbers = #tpu.dot_dimension_numbers<[1], [0], [0], [1], [0, 0, 1, 1], [], []>} : vector<8x8xf32>, vector<8x16xf32>, vector<8x16xf32> -> vector<8x16xf32>
    %126 = vector.extract_strided_slice %11 {offsets = [0, 112], sizes = [8, 16], strides = [1, 1]} : vector<16x128xf32> to vector<8x16xf32>
    %127 = vector.extract_strided_slice %12 {offsets = [0, 112], sizes = [8, 16], strides = [1, 1]} : vector<16x128xf32> to vector<8x16xf32>
    %128 = vector.extract_strided_slice %13 {offsets = [0, 112], sizes = [8, 16], strides = [1, 1]} : vector<16x128xf32> to vector<8x16xf32>
    %cst_43 = arith.constant dense<0.000000e+00> : vector<8x8xf32>
    %129 = tpu.matmul %126, %127, %cst_43 {dimension_numbers = #tpu.dot_dimension_numbers<[1], [1], [0], [0], [0, 0, 1, 0], [], []>} : vector<8x16xf32>, vector<8x16xf32>, vector<8x8xf32> -> vector<8x8xf32>
    %cst_44 = arith.constant 2.500000e-01 : f32
    %130 = vector.broadcast %cst_44 : f32 to vector<8x8xf32>
    %131 = arith.mulf %129, %130 : vector<8x8xf32>
    %cst_45 = arith.constant dense<0xFF800000> : vector<8xf32>
    %132 = vector.multi_reduction <maximumf>, %131, %cst_45 [1] : vector<8x8xf32> to vector<8xf32>
    %133 = vector.shape_cast %132 : vector<8xf32> to vector<8x1xf32>
    %134 = vector.broadcast %133 : vector<8x1xf32> to vector<8x8xf32>
    %135 = arith.subf %131, %134 : vector<8x8xf32>
    %136 = math.exp %135 : vector<8x8xf32>
    %cst_46 = arith.constant dense<0.000000e+00> : vector<8xf32>
    %137 = vector.multi_reduction <add>, %136, %cst_46 [1] : vector<8x8xf32> to vector<8xf32>
    %138 = vector.shape_cast %137 : vector<8xf32> to vector<8x1xf32>
    %139 = vector.broadcast %138 : vector<8x1xf32> to vector<8x8xf32>
    %140 = arith.divf %136, %139 : vector<8x8xf32>
    %cst_47 = arith.constant dense<0.000000e+00> : vector<8x16xf32>
    %141 = tpu.matmul %140, %128, %cst_47 {dimension_numbers = #tpu.dot_dimension_numbers<[1], [0], [0], [1], [0, 0, 1, 1], [], []>} : vector<8x8xf32>, vector<8x16xf32>, vector<8x16xf32> -> vector<8x16xf32>
    %142 = tpu.concatenate %29, %45, %61, %77, %93, %109, %125, %141 in 1 : vector<8x16xf32>, vector<8x16xf32>, vector<8x16xf32>, vector<8x16xf32>, vector<8x16xf32>, vector<8x16xf32>, vector<8x16xf32>, vector<8x16xf32> -> vector<8x128xf32>
    %143 = vector.extract_strided_slice %11 {offsets = [8, 0], sizes = [8, 16], strides = [1, 1]} : vector<16x128xf32> to vector<8x16xf32>
    %144 = vector.extract_strided_slice %12 {offsets = [8, 0], sizes = [8, 16], strides = [1, 1]} : vector<16x128xf32> to vector<8x16xf32>
    %145 = vector.extract_strided_slice %13 {offsets = [8, 0], sizes = [8, 16], strides = [1, 1]} : vector<16x128xf32> to vector<8x16xf32>
    %cst_48 = arith.constant dense<0.000000e+00> : vector<8x8xf32>
    %146 = tpu.matmul %143, %144, %cst_48 {dimension_numbers = #tpu.dot_dimension_numbers<[1], [1], [0], [0], [0, 0, 1, 0], [], []>} : vector<8x16xf32>, vector<8x16xf32>, vector<8x8xf32> -> vector<8x8xf32>
    %cst_49 = arith.constant 2.500000e-01 : f32
    %147 = vector.broadcast %cst_49 : f32 to vector<8x8xf32>
    %148 = arith.mulf %146, %147 : vector<8x8xf32>
    %cst_50 = arith.constant dense<0xFF800000> : vector<8xf32>
    %149 = vector.multi_reduction <maximumf>, %148, %cst_50 [1] : vector<8x8xf32> to vector<8xf32>
    %150 = vector.shape_cast %149 : vector<8xf32> to vector<8x1xf32>
    %151 = vector.broadcast %150 : vector<8x1xf32> to vector<8x8xf32>
    %152 = arith.subf %148, %151 : vector<8x8xf32>
    %153 = math.exp %152 : vector<8x8xf32>
    %cst_51 = arith.constant dense<0.000000e+00> : vector<8xf32>
    %154 = vector.multi_reduction <add>, %153, %cst_51 [1] : vector<8x8xf32> to vector<8xf32>
    %155 = vector.shape_cast %154 : vector<8xf32> to vector<8x1xf32>
    %156 = vector.broadcast %155 : vector<8x1xf32> to vector<8x8xf32>
    %157 = arith.divf %153, %156 : vector<8x8xf32>
    %cst_52 = arith.constant dense<0.000000e+00> : vector<8x16xf32>
    %158 = tpu.matmul %157, %145, %cst_52 {dimension_numbers = #tpu.dot_dimension_numbers<[1], [0], [0], [1], [0, 0, 1, 1], [], []>} : vector<8x8xf32>, vector<8x16xf32>, vector<8x16xf32> -> vector<8x16xf32>
    %159 = vector.extract_strided_slice %11 {offsets = [8, 16], sizes = [8, 16], strides = [1, 1]} : vector<16x128xf32> to vector<8x16xf32>
    %160 = vector.extract_strided_slice %12 {offsets = [8, 16], sizes = [8, 16], strides = [1, 1]} : vector<16x128xf32> to vector<8x16xf32>
    %161 = vector.extract_strided_slice %13 {offsets = [8, 16], sizes = [8, 16], strides = [1, 1]} : vector<16x128xf32> to vector<8x16xf32>
    %cst_53 = arith.constant dense<0.000000e+00> : vector<8x8xf32>
    %162 = tpu.matmul %159, %160, %cst_53 {dimension_numbers = #tpu.dot_dimension_numbers<[1], [1], [0], [0], [0, 0, 1, 0], [], []>} : vector<8x16xf32>, vector<8x16xf32>, vector<8x8xf32> -> vector<8x8xf32>
    %cst_54 = arith.constant 2.500000e-01 : f32
    %163 = vector.broadcast %cst_54 : f32 to vector<8x8xf32>
    %164 = arith.mulf %162, %163 : vector<8x8xf32>
    %cst_55 = arith.constant dense<0xFF800000> : vector<8xf32>
    %165 = vector.multi_reduction <maximumf>, %164, %cst_55 [1] : vector<8x8xf32> to vector<8xf32>
    %166 = vector.shape_cast %165 : vector<8xf32> to vector<8x1xf32>
    %167 = vector.broadcast %166 : vector<8x1xf32> to vector<8x8xf32>
    %168 = arith.subf %164, %167 : vector<8x8xf32>
    %169 = math.exp %168 : vector<8x8xf32>
    %cst_56 = arith.constant dense<0.000000e+00> : vector<8xf32>
    %170 = vector.multi_reduction <add>, %169, %cst_56 [1] : vector<8x8xf32> to vector<8xf32>
    %171 = vector.shape_cast %170 : vector<8xf32> to vector<8x1xf32>
    %172 = vector.broadcast %171 : vector<8x1xf32> to vector<8x8xf32>
    %173 = arith.divf %169, %172 : vector<8x8xf32>
    %cst_57 = arith.constant dense<0.000000e+00> : vector<8x16xf32>
    %174 = tpu.matmul %173, %161, %cst_57 {dimension_numbers = #tpu.dot_dimension_numbers<[1], [0], [0], [1], [0, 0, 1, 1], [], []>} : vector<8x8xf32>, vector<8x16xf32>, vector<8x16xf32> -> vector<8x16xf32>
    %175 = vector.extract_strided_slice %11 {offsets = [8, 32], sizes = [8, 16], strides = [1, 1]} : vector<16x128xf32> to vector<8x16xf32>
    %176 = vector.extract_strided_slice %12 {offsets = [8, 32], sizes = [8, 16], strides = [1, 1]} : vector<16x128xf32> to vector<8x16xf32>
    %177 = vector.extract_strided_slice %13 {offsets = [8, 32], sizes = [8, 16], strides = [1, 1]} : vector<16x128xf32> to vector<8x16xf32>
    %cst_58 = arith.constant dense<0.000000e+00> : vector<8x8xf32>
    %178 = tpu.matmul %175, %176, %cst_58 {dimension_numbers = #tpu.dot_dimension_numbers<[1], [1], [0], [0], [0, 0, 1, 0], [], []>} : vector<8x16xf32>, vector<8x16xf32>, vector<8x8xf32> -> vector<8x8xf32>
    %cst_59 = arith.constant 2.500000e-01 : f32
    %179 = vector.broadcast %cst_59 : f32 to vector<8x8xf32>
    %180 = arith.mulf %178, %179 : vector<8x8xf32>
    %cst_60 = arith.constant dense<0xFF800000> : vector<8xf32>
    %181 = vector.multi_reduction <maximumf>, %180, %cst_60 [1] : vector<8x8xf32> to vector<8xf32>
    %182 = vector.shape_cast %181 : vector<8xf32> to vector<8x1xf32>
    %183 = vector.broadcast %182 : vector<8x1xf32> to vector<8x8xf32>
    %184 = arith.subf %180, %183 : vector<8x8xf32>
    %185 = math.exp %184 : vector<8x8xf32>
    %cst_61 = arith.constant dense<0.000000e+00> : vector<8xf32>
    %186 = vector.multi_reduction <add>, %185, %cst_61 [1] : vector<8x8xf32> to vector<8xf32>
    %187 = vector.shape_cast %186 : vector<8xf32> to vector<8x1xf32>
    %188 = vector.broadcast %187 : vector<8x1xf32> to vector<8x8xf32>
    %189 = arith.divf %185, %188 : vector<8x8xf32>
    %cst_62 = arith.constant dense<0.000000e+00> : vector<8x16xf32>
    %190 = tpu.matmul %189, %177, %cst_62 {dimension_numbers = #tpu.dot_dimension_numbers<[1], [0], [0], [1], [0, 0, 1, 1], [], []>} : vector<8x8xf32>, vector<8x16xf32>, vector<8x16xf32> -> vector<8x16xf32>
    %191 = vector.extract_strided_slice %11 {offsets = [8, 48], sizes = [8, 16], strides = [1, 1]} : vector<16x128xf32> to vector<8x16xf32>
    %192 = vector.extract_strided_slice %12 {offsets = [8, 48], sizes = [8, 16], strides = [1, 1]} : vector<16x128xf32> to vector<8x16xf32>
    %193 = vector.extract_strided_slice %13 {offsets = [8, 48], sizes = [8, 16], strides = [1, 1]} : vector<16x128xf32> to vector<8x16xf32>
    %cst_63 = arith.constant dense<0.000000e+00> : vector<8x8xf32>
    %194 = tpu.matmul %191, %192, %cst_63 {dimension_numbers = #tpu.dot_dimension_numbers<[1], [1], [0], [0], [0, 0, 1, 0], [], []>} : vector<8x16xf32>, vector<8x16xf32>, vector<8x8xf32> -> vector<8x8xf32>
    %cst_64 = arith.constant 2.500000e-01 : f32
    %195 = vector.broadcast %cst_64 : f32 to vector<8x8xf32>
    %196 = arith.mulf %194, %195 : vector<8x8xf32>
    %cst_65 = arith.constant dense<0xFF800000> : vector<8xf32>
    %197 = vector.multi_reduction <maximumf>, %196, %cst_65 [1] : vector<8x8xf32> to vector<8xf32>
    %198 = vector.shape_cast %197 : vector<8xf32> to vector<8x1xf32>
    %199 = vector.broadcast %198 : vector<8x1xf32> to vector<8x8xf32>
    %200 = arith.subf %196, %199 : vector<8x8xf32>
    %201 = math.exp %200 : vector<8x8xf32>
    %cst_66 = arith.constant dense<0.000000e+00> : vector<8xf32>
    %202 = vector.multi_reduction <add>, %201, %cst_66 [1] : vector<8x8xf32> to vector<8xf32>
    %203 = vector.shape_cast %202 : vector<8xf32> to vector<8x1xf32>
    %204 = vector.broadcast %203 : vector<8x1xf32> to vector<8x8xf32>
    %205 = arith.divf %201, %204 : vector<8x8xf32>
    %cst_67 = arith.constant dense<0.000000e+00> : vector<8x16xf32>
    %206 = tpu.matmul %205, %193, %cst_67 {dimension_numbers = #tpu.dot_dimension_numbers<[1], [0], [0], [1], [0, 0, 1, 1], [], []>} : vector<8x8xf32>, vector<8x16xf32>, vector<8x16xf32> -> vector<8x16xf32>
    %207 = vector.extract_strided_slice %11 {offsets = [8, 64], sizes = [8, 16], strides = [1, 1]} : vector<16x128xf32> to vector<8x16xf32>
    %208 = vector.extract_strided_slice %12 {offsets = [8, 64], sizes = [8, 16], strides = [1, 1]} : vector<16x128xf32> to vector<8x16xf32>
    %209 = vector.extract_strided_slice %13 {offsets = [8, 64], sizes = [8, 16], strides = [1, 1]} : vector<16x128xf32> to vector<8x16xf32>
    %cst_68 = arith.constant dense<0.000000e+00> : vector<8x8xf32>
    %210 = tpu.matmul %207, %208, %cst_68 {dimension_numbers = #tpu.dot_dimension_numbers<[1], [1], [0], [0], [0, 0, 1, 0], [], []>} : vector<8x16xf32>, vector<8x16xf32>, vector<8x8xf32> -> vector<8x8xf32>
    %cst_69 = arith.constant 2.500000e-01 : f32
    %211 = vector.broadcast %cst_69 : f32 to vector<8x8xf32>
    %212 = arith.mulf %210, %211 : vector<8x8xf32>
    %cst_70 = arith.constant dense<0xFF800000> : vector<8xf32>
    %213 = vector.multi_reduction <maximumf>, %212, %cst_70 [1] : vector<8x8xf32> to vector<8xf32>
    %214 = vector.shape_cast %213 : vector<8xf32> to vector<8x1xf32>
    %215 = vector.broadcast %214 : vector<8x1xf32> to vector<8x8xf32>
    %216 = arith.subf %212, %215 : vector<8x8xf32>
    %217 = math.exp %216 : vector<8x8xf32>
    %cst_71 = arith.constant dense<0.000000e+00> : vector<8xf32>
    %218 = vector.multi_reduction <add>, %217, %cst_71 [1] : vector<8x8xf32> to vector<8xf32>
    %219 = vector.shape_cast %218 : vector<8xf32> to vector<8x1xf32>
    %220 = vector.broadcast %219 : vector<8x1xf32> to vector<8x8xf32>
    %221 = arith.divf %217, %220 : vector<8x8xf32>
    %cst_72 = arith.constant dense<0.000000e+00> : vector<8x16xf32>
    %222 = tpu.matmul %221, %209, %cst_72 {dimension_numbers = #tpu.dot_dimension_numbers<[1], [0], [0], [1], [0, 0, 1, 1], [], []>} : vector<8x8xf32>, vector<8x16xf32>, vector<8x16xf32> -> vector<8x16xf32>
    %223 = vector.extract_strided_slice %11 {offsets = [8, 80], sizes = [8, 16], strides = [1, 1]} : vector<16x128xf32> to vector<8x16xf32>
    %224 = vector.extract_strided_slice %12 {offsets = [8, 80], sizes = [8, 16], strides = [1, 1]} : vector<16x128xf32> to vector<8x16xf32>
    %225 = vector.extract_strided_slice %13 {offsets = [8, 80], sizes = [8, 16], strides = [1, 1]} : vector<16x128xf32> to vector<8x16xf32>
    %cst_73 = arith.constant dense<0.000000e+00> : vector<8x8xf32>
    %226 = tpu.matmul %223, %224, %cst_73 {dimension_numbers = #tpu.dot_dimension_numbers<[1], [1], [0], [0], [0, 0, 1, 0], [], []>} : vector<8x16xf32>, vector<8x16xf32>, vector<8x8xf32> -> vector<8x8xf32>
    %cst_74 = arith.constant 2.500000e-01 : f32
    %227 = vector.broadcast %cst_74 : f32 to vector<8x8xf32>
    %228 = arith.mulf %226, %227 : vector<8x8xf32>
    %cst_75 = arith.constant dense<0xFF800000> : vector<8xf32>
    %229 = vector.multi_reduction <maximumf>, %228, %cst_75 [1] : vector<8x8xf32> to vector<8xf32>
    %230 = vector.shape_cast %229 : vector<8xf32> to vector<8x1xf32>
    %231 = vector.broadcast %230 : vector<8x1xf32> to vector<8x8xf32>
    %232 = arith.subf %228, %231 : vector<8x8xf32>
    %233 = math.exp %232 : vector<8x8xf32>
    %cst_76 = arith.constant dense<0.000000e+00> : vector<8xf32>
    %234 = vector.multi_reduction <add>, %233, %cst_76 [1] : vector<8x8xf32> to vector<8xf32>
    %235 = vector.shape_cast %234 : vector<8xf32> to vector<8x1xf32>
    %236 = vector.broadcast %235 : vector<8x1xf32> to vector<8x8xf32>
    %237 = arith.divf %233, %236 : vector<8x8xf32>
    %cst_77 = arith.constant dense<0.000000e+00> : vector<8x16xf32>
    %238 = tpu.matmul %237, %225, %cst_77 {dimension_numbers = #tpu.dot_dimension_numbers<[1], [0], [0], [1], [0, 0, 1, 1], [], []>} : vector<8x8xf32>, vector<8x16xf32>, vector<8x16xf32> -> vector<8x16xf32>
    %239 = vector.extract_strided_slice %11 {offsets = [8, 96], sizes = [8, 16], strides = [1, 1]} : vector<16x128xf32> to vector<8x16xf32>
    %240 = vector.extract_strided_slice %12 {offsets = [8, 96], sizes = [8, 16], strides = [1, 1]} : vector<16x128xf32> to vector<8x16xf32>
    %241 = vector.extract_strided_slice %13 {offsets = [8, 96], sizes = [8, 16], strides = [1, 1]} : vector<16x128xf32> to vector<8x16xf32>
    %cst_78 = arith.constant dense<0.000000e+00> : vector<8x8xf32>
    %242 = tpu.matmul %239, %240, %cst_78 {dimension_numbers = #tpu.dot_dimension_numbers<[1], [1], [0], [0], [0, 0, 1, 0], [], []>} : vector<8x16xf32>, vector<8x16xf32>, vector<8x8xf32> -> vector<8x8xf32>
    %cst_79 = arith.constant 2.500000e-01 : f32
    %243 = vector.broadcast %cst_79 : f32 to vector<8x8xf32>
    %244 = arith.mulf %242, %243 : vector<8x8xf32>
    %cst_80 = arith.constant dense<0xFF800000> : vector<8xf32>
    %245 = vector.multi_reduction <maximumf>, %244, %cst_80 [1] : vector<8x8xf32> to vector<8xf32>
    %246 = vector.shape_cast %245 : vector<8xf32> to vector<8x1xf32>
    %247 = vector.broadcast %246 : vector<8x1xf32> to vector<8x8xf32>
    %248 = arith.subf %244, %247 : vector<8x8xf32>
    %249 = math.exp %248 : vector<8x8xf32>
    %cst_81 = arith.constant dense<0.000000e+00> : vector<8xf32>
    %250 = vector.multi_reduction <add>, %249, %cst_81 [1] : vector<8x8xf32> to vector<8xf32>
    %251 = vector.shape_cast %250 : vector<8xf32> to vector<8x1xf32>
    %252 = vector.broadcast %251 : vector<8x1xf32> to vector<8x8xf32>
    %253 = arith.divf %249, %252 : vector<8x8xf32>
    %cst_82 = arith.constant dense<0.000000e+00> : vector<8x16xf32>
    %254 = tpu.matmul %253, %241, %cst_82 {dimension_numbers = #tpu.dot_dimension_numbers<[1], [0], [0], [1], [0, 0, 1, 1], [], []>} : vector<8x8xf32>, vector<8x16xf32>, vector<8x16xf32> -> vector<8x16xf32>
    %255 = vector.extract_strided_slice %11 {offsets = [8, 112], sizes = [8, 16], strides = [1, 1]} : vector<16x128xf32> to vector<8x16xf32>
    %256 = vector.extract_strided_slice %12 {offsets = [8, 112], sizes = [8, 16], strides = [1, 1]} : vector<16x128xf32> to vector<8x16xf32>
    %257 = vector.extract_strided_slice %13 {offsets = [8, 112], sizes = [8, 16], strides = [1, 1]} : vector<16x128xf32> to vector<8x16xf32>
    %cst_83 = arith.constant dense<0.000000e+00> : vector<8x8xf32>
    %258 = tpu.matmul %255, %256, %cst_83 {dimension_numbers = #tpu.dot_dimension_numbers<[1], [1], [0], [0], [0, 0, 1, 0], [], []>} : vector<8x16xf32>, vector<8x16xf32>, vector<8x8xf32> -> vector<8x8xf32>
    %cst_84 = arith.constant 2.500000e-01 : f32
    %259 = vector.broadcast %cst_84 : f32 to vector<8x8xf32>
    %260 = arith.mulf %258, %259 : vector<8x8xf32>
    %cst_85 = arith.constant dense<0xFF800000> : vector<8xf32>
    %261 = vector.multi_reduction <maximumf>, %260, %cst_85 [1] : vector<8x8xf32> to vector<8xf32>
    %262 = vector.shape_cast %261 : vector<8xf32> to vector<8x1xf32>
    %263 = vector.broadcast %262 : vector<8x1xf32> to vector<8x8xf32>
    %264 = arith.subf %260, %263 : vector<8x8xf32>
    %265 = math.exp %264 : vector<8x8xf32>
    %cst_86 = arith.constant dense<0.000000e+00> : vector<8xf32>
    %266 = vector.multi_reduction <add>, %265, %cst_86 [1] : vector<8x8xf32> to vector<8xf32>
    %267 = vector.shape_cast %266 : vector<8xf32> to vector<8x1xf32>
    %268 = vector.broadcast %267 : vector<8x1xf32> to vector<8x8xf32>
    %269 = arith.divf %265, %268 : vector<8x8xf32>
    %cst_87 = arith.constant dense<0.000000e+00> : vector<8x16xf32>
    %270 = tpu.matmul %269, %257, %cst_87 {dimension_numbers = #tpu.dot_dimension_numbers<[1], [0], [0], [1], [0, 0, 1, 1], [], []>} : vector<8x8xf32>, vector<8x16xf32>, vector<8x16xf32> -> vector<8x16xf32>
    %271 = tpu.concatenate %158, %174, %190, %206, %222, %238, %254, %270 in 1 : vector<8x16xf32>, vector<8x16xf32>, vector<8x16xf32>, vector<8x16xf32>, vector<8x16xf32>, vector<8x16xf32>, vector<8x16xf32>, vector<8x16xf32> -> vector<8x128xf32>
    %272 = tpu.concatenate %142, %271 in 0 : vector<8x128xf32>, vector<8x128xf32> -> vector<16x128xf32>
    %c0_88 = arith.constant 0 : index
    %c0_89 = arith.constant 0 : index
    %c0_90 = arith.constant 0 : index
    %273 = vector.load %arg5[%c0_88, %c0_89, %c0_90] : memref<1x128x128xf32, #tpu.memory_space<vmem>>, vector<1x128x128xf32>
    %274 = vector.shape_cast %273 : vector<1x128x128xf32> to vector<128x128xf32>
    %cst_91 = arith.constant dense<0.000000e+00> : vector<16x128xf32>
    %275 = tpu.matmul %272, %274, %cst_91 {dimension_numbers = #tpu.dot_dimension_numbers<[1], [0], [0], [1], [0, 0, 1, 1], [], []>} : vector<16x128xf32>, vector<128x128xf32>, vector<16x128xf32> -> vector<16x128xf32>
    %c0_92 = arith.constant 0 : index
    %c0_93 = arith.constant 0 : index
    %c0_94 = arith.constant 0 : index
    %276 = vector.load %arg6[%c0_92, %c0_93, %c0_94] : memref<1x1x128xf32, #tpu.memory_space<vmem>>, vector<1x1x128xf32>
    %277 = vector.shape_cast %276 : vector<1x1x128xf32> to vector<1x128xf32>
    %278 = vector.broadcast %277 : vector<1x128xf32> to vector<16x128xf32>
    %279 = arith.addf %275, %278 : vector<16x128xf32>
    %280 = arith.addf %3, %279 : vector<16x128xf32>
    %c0_95 = arith.constant 0 : index
    %c0_96 = arith.constant 0 : index
    %c0_97 = arith.constant 0 : index
    %281 = vector.load %arg7[%c0_95, %c0_96, %c0_97] : memref<1x1x128xf32, #tpu.memory_space<vmem>>, vector<1x1x128xf32>
    %282 = vector.shape_cast %281 : vector<1x1x128xf32> to vector<1x128xf32>
    %c0_98 = arith.constant 0 : index
    %c0_99 = arith.constant 0 : index
    %c0_100 = arith.constant 0 : index
    %283 = vector.load %arg8[%c0_98, %c0_99, %c0_100] : memref<1x1x128xf32, #tpu.memory_space<vmem>>, vector<1x1x128xf32>
    %284 = vector.shape_cast %283 : vector<1x1x128xf32> to vector<1x128xf32>
    %cst_101 = arith.constant dense<0.000000e+00> : vector<16xf32>
    %285 = vector.multi_reduction <add>, %280, %cst_101 [1] : vector<16x128xf32> to vector<16xf32>
    %286 = vector.shape_cast %285 : vector<16xf32> to vector<16x1xf32>
    %cst_102 = arith.constant 1.280000e+02 : f32
    %287 = vector.broadcast %cst_102 : f32 to vector<16x1xf32>
    %288 = arith.divf %286, %287 : vector<16x1xf32>
    %289 = vector.broadcast %288 : vector<16x1xf32> to vector<16x128xf32>
    %290 = arith.subf %280, %289 : vector<16x128xf32>
    %291 = arith.mulf %290, %290 : vector<16x128xf32>
    %cst_103 = arith.constant dense<0.000000e+00> : vector<16xf32>
    %292 = vector.multi_reduction <add>, %291, %cst_103 [1] : vector<16x128xf32> to vector<16xf32>
    %293 = vector.shape_cast %292 : vector<16xf32> to vector<16x1xf32>
    %cst_104 = arith.constant 1.280000e+02 : f32
    %294 = vector.broadcast %cst_104 : f32 to vector<16x1xf32>
    %295 = arith.divf %293, %294 : vector<16x1xf32>
    %296 = vector.broadcast %288 : vector<16x1xf32> to vector<16x128xf32>
    %297 = arith.subf %280, %296 : vector<16x128xf32>
    %cst_105 = arith.constant 9.99999974E-6 : f32
    %298 = vector.broadcast %cst_105 : f32 to vector<16x1xf32>
    %299 = arith.addf %295, %298 : vector<16x1xf32>
    %300 = math.rsqrt %299 : vector<16x1xf32>
    %301 = vector.broadcast %300 : vector<16x1xf32> to vector<16x128xf32>
    %302 = arith.mulf %297, %301 : vector<16x128xf32>
    %303 = vector.broadcast %282 : vector<1x128xf32> to vector<16x128xf32>
    %304 = arith.mulf %302, %303 : vector<16x128xf32>
    %305 = vector.broadcast %284 : vector<1x128xf32> to vector<16x128xf32>
    %306 = arith.addf %304, %305 : vector<16x128xf32>
    %c0_106 = arith.constant 0 : index
    %c0_107 = arith.constant 0 : index
    %c0_108 = arith.constant 0 : index
    %307 = vector.load %arg9[%c0_106, %c0_107, %c0_108] : memref<1x128x2048xf32, #tpu.memory_space<vmem>>, vector<1x128x2048xf32>
    %308 = vector.shape_cast %307 : vector<1x128x2048xf32> to vector<128x2048xf32>
    %cst_109 = arith.constant dense<0.000000e+00> : vector<16x2048xf32>
    %309 = tpu.matmul %306, %308, %cst_109 {dimension_numbers = #tpu.dot_dimension_numbers<[1], [0], [0], [1], [0, 0, 1, 1], [], []>} : vector<16x128xf32>, vector<128x2048xf32>, vector<16x2048xf32> -> vector<16x2048xf32>
    %c0_110 = arith.constant 0 : index
    %c0_111 = arith.constant 0 : index
    %c0_112 = arith.constant 0 : index
    %310 = vector.load %arg10[%c0_110, %c0_111, %c0_112] : memref<1x1x2048xf32, #tpu.memory_space<vmem>>, vector<1x1x2048xf32>
    %311 = vector.shape_cast %310 : vector<1x1x2048xf32> to vector<1x2048xf32>
    %312 = vector.broadcast %311 : vector<1x2048xf32> to vector<16x2048xf32>
    %313 = arith.addf %309, %312 : vector<16x2048xf32>
    %cst_113 = arith.constant 0.000000e+00 : f32
    %314 = vector.broadcast %cst_113 : f32 to vector<16x2048xf32>
    %315 = arith.maximumf %313, %314 : vector<16x2048xf32>
    %c0_114 = arith.constant 0 : index
    %c0_115 = arith.constant 0 : index
    %c0_116 = arith.constant 0 : index
    %316 = vector.load %arg11[%c0_114, %c0_115, %c0_116] : memref<1x2048x128xf32, #tpu.memory_space<vmem>>, vector<1x2048x128xf32>
    %317 = vector.shape_cast %316 : vector<1x2048x128xf32> to vector<2048x128xf32>
    %cst_117 = arith.constant dense<0.000000e+00> : vector<16x128xf32>
    %318 = tpu.matmul %315, %317, %cst_117 {dimension_numbers = #tpu.dot_dimension_numbers<[1], [0], [0], [1], [0, 0, 1, 1], [], []>} : vector<16x2048xf32>, vector<2048x128xf32>, vector<16x128xf32> -> vector<16x128xf32>
    %c0_118 = arith.constant 0 : index
    %c0_119 = arith.constant 0 : index
    %c0_120 = arith.constant 0 : index
    %319 = vector.load %arg12[%c0_118, %c0_119, %c0_120] : memref<1x1x128xf32, #tpu.memory_space<vmem>>, vector<1x1x128xf32>
    %320 = vector.shape_cast %319 : vector<1x1x128xf32> to vector<1x128xf32>
    %321 = vector.broadcast %320 : vector<1x128xf32> to vector<16x128xf32>
    %322 = arith.addf %318, %321 : vector<16x128xf32>
    %323 = arith.addf %306, %322 : vector<16x128xf32>
    %c0_121 = arith.constant 0 : index
    %c0_122 = arith.constant 0 : index
    %c0_123 = arith.constant 0 : index
    %324 = vector.load %arg13[%c0_121, %c0_122, %c0_123] : memref<1x1x128xf32, #tpu.memory_space<vmem>>, vector<1x1x128xf32>
    %325 = vector.shape_cast %324 : vector<1x1x128xf32> to vector<1x128xf32>
    %c0_124 = arith.constant 0 : index
    %c0_125 = arith.constant 0 : index
    %c0_126 = arith.constant 0 : index
    %326 = vector.load %arg14[%c0_124, %c0_125, %c0_126] : memref<1x1x128xf32, #tpu.memory_space<vmem>>, vector<1x1x128xf32>
    %327 = vector.shape_cast %326 : vector<1x1x128xf32> to vector<1x128xf32>
    %cst_127 = arith.constant dense<0.000000e+00> : vector<16xf32>
    %328 = vector.multi_reduction <add>, %323, %cst_127 [1] : vector<16x128xf32> to vector<16xf32>
    %329 = vector.shape_cast %328 : vector<16xf32> to vector<16x1xf32>
    %cst_128 = arith.constant 1.280000e+02 : f32
    %330 = vector.broadcast %cst_128 : f32 to vector<16x1xf32>
    %331 = arith.divf %329, %330 : vector<16x1xf32>
    %332 = vector.broadcast %331 : vector<16x1xf32> to vector<16x128xf32>
    %333 = arith.subf %323, %332 : vector<16x128xf32>
    %334 = arith.mulf %333, %333 : vector<16x128xf32>
    %cst_129 = arith.constant dense<0.000000e+00> : vector<16xf32>
    %335 = vector.multi_reduction <add>, %334, %cst_129 [1] : vector<16x128xf32> to vector<16xf32>
    %336 = vector.shape_cast %335 : vector<16xf32> to vector<16x1xf32>
    %cst_130 = arith.constant 1.280000e+02 : f32
    %337 = vector.broadcast %cst_130 : f32 to vector<16x1xf32>
    %338 = arith.divf %336, %337 : vector<16x1xf32>
    %339 = vector.broadcast %331 : vector<16x1xf32> to vector<16x128xf32>
    %340 = arith.subf %323, %339 : vector<16x128xf32>
    %cst_131 = arith.constant 9.99999974E-6 : f32
    %341 = vector.broadcast %cst_131 : f32 to vector<16x1xf32>
    %342 = arith.addf %338, %341 : vector<16x1xf32>
    %343 = math.rsqrt %342 : vector<16x1xf32>
    %344 = vector.broadcast %343 : vector<16x1xf32> to vector<16x128xf32>
    %345 = arith.mulf %340, %344 : vector<16x128xf32>
    %346 = vector.broadcast %325 : vector<1x128xf32> to vector<16x128xf32>
    %347 = arith.mulf %345, %346 : vector<16x128xf32>
    %348 = vector.broadcast %327 : vector<1x128xf32> to vector<16x128xf32>
    %349 = arith.addf %347, %348 : vector<16x128xf32>
    %c0_132 = arith.constant 0 : index
    %c0_133 = arith.constant 0 : index
    %350 = vector.load %arg20[%c0_132, %c0_133] : memref<16x128xf32, #tpu.memory_space<vmem>>, vector<16x128xf32>
    tpu.vector_store %arg20[%c0_132, %c0_133], %349 {strides = array<i32>} : memref<16x128xf32, #tpu.memory_space<vmem>>, vector<16x128xf32>,
    %c1_i32 = arith.constant 1 : i32
    %351 = arith.cmpi eq, %arg0, %c1_i32 : i32
    %352 = arith.extui %351 : i1 to i32
    %c0_i32_134 = arith.constant 0 : i32
    %353 = arith.cmpi ne, %352, %c0_i32_134 : i32
    scf.if %353 {
      %354 = vector.extract_strided_slice %349 {offsets = [0, 0], sizes = [8, 128], strides = [1, 1]} : vector<16x128xf32> to vector<8x128xf32>
      %cst_135 = arith.constant dense<0.000000e+00> : vector<128xf32>
      %355 = vector.multi_reduction <add>, %354, %cst_135 [0] : vector<8x128xf32> to vector<128xf32>
      %356 = vector.shape_cast %355 : vector<128xf32> to vector<1x128xf32>
      %cst_136 = arith.constant 8.000000e+00 : f32
      %357 = vector.broadcast %cst_136 : f32 to vector<1x128xf32>
      %358 = arith.divf %356, %357 : vector<1x128xf32>
      %359 = vector.extract_strided_slice %349 {offsets = [8, 0], sizes = [8, 128], strides = [1, 1]} : vector<16x128xf32> to vector<8x128xf32>
      %cst_137 = arith.constant dense<0.000000e+00> : vector<128xf32>
      %360 = vector.multi_reduction <add>, %359, %cst_137 [0] : vector<8x128xf32> to vector<128xf32>
      %361 = vector.shape_cast %360 : vector<128xf32> to vector<1x128xf32>
      %cst_138 = arith.constant 8.000000e+00 : f32
      %362 = vector.broadcast %cst_138 : f32 to vector<1x128xf32>
      %363 = arith.divf %361, %362 : vector<1x128xf32>
      %364 = tpu.concatenate %358, %363 in 0 : vector<1x128xf32>, vector<1x128xf32> -> vector<2x128xf32>
      %c0_139 = arith.constant 0 : index
      %c0_140 = arith.constant 0 : index
      %365 = vector.load %arg15[%c0_139, %c0_140] : memref<1x128xf32, #tpu.memory_space<vmem>>, vector<1x128xf32>
      %c0_141 = arith.constant 0 : index
      %c0_142 = arith.constant 0 : index
      %366 = vector.load %arg16[%c0_141, %c0_142] : memref<1x128xf32, #tpu.memory_space<vmem>>, vector<1x128xf32>
      %cst_143 = arith.constant dense<0.000000e+00> : vector<2xf32>
      %367 = vector.multi_reduction <add>, %364, %cst_143 [1] : vector<2x128xf32> to vector<2xf32>
      %368 = vector.shape_cast %367 : vector<2xf32> to vector<2x1xf32>
      %cst_144 = arith.constant 1.280000e+02 : f32
      %369 = vector.broadcast %cst_144 : f32 to vector<2x1xf32>
      %370 = arith.divf %368, %369 : vector<2x1xf32>
      %371 = vector.broadcast %370 : vector<2x1xf32> to vector<2x128xf32>
      %372 = arith.subf %364, %371 : vector<2x128xf32>
      %373 = arith.mulf %372, %372 : vector<2x128xf32>
      %cst_145 = arith.constant dense<0.000000e+00> : vector<2xf32>
      %374 = vector.multi_reduction <add>, %373, %cst_145 [1] : vector<2x128xf32> to vector<2xf32>
      %375 = vector.shape_cast %374 : vector<2xf32> to vector<2x1xf32>
      %cst_146 = arith.constant 1.280000e+02 : f32
      %376 = vector.broadcast %cst_146 : f32 to vector<2x1xf32>
      %377 = arith.divf %375, %376 : vector<2x1xf32>
      %378 = vector.broadcast %370 : vector<2x1xf32> to vector<2x128xf32>
      %379 = arith.subf %364, %378 : vector<2x128xf32>
      %cst_147 = arith.constant 9.99999974E-6 : f32
      %380 = vector.broadcast %cst_147 : f32 to vector<2x1xf32>
      %381 = arith.addf %377, %380 : vector<2x1xf32>
      %382 = math.rsqrt %381 : vector<2x1xf32>
      %383 = vector.broadcast %382 : vector<2x1xf32> to vector<2x128xf32>
      %384 = arith.mulf %379, %383 : vector<2x128xf32>
      %385 = vector.broadcast %365 : vector<1x128xf32> to vector<2x128xf32>
      %386 = arith.mulf %384, %385 : vector<2x128xf32>
      %387 = vector.broadcast %366 : vector<1x128xf32> to vector<2x128xf32>
      %388 = arith.addf %386, %387 : vector<2x128xf32>
      %c0_148 = arith.constant 0 : index
      %c0_149 = arith.constant 0 : index
      %389 = vector.load %arg17[%c0_148, %c0_149] : memref<128x2xf32, #tpu.memory_space<vmem>>, vector<128x2xf32>
      %cst_150 = arith.constant dense<0.000000e+00> : vector<2x2xf32>
      %390 = tpu.matmul %388, %389, %cst_150 {dimension_numbers = #tpu.dot_dimension_numbers<[1], [0], [0], [1], [0, 0, 1, 1], [], []>} : vector<2x128xf32>, vector<128x2xf32>, vector<2x2xf32> -> vector<2x2xf32>
      %c0_151 = arith.constant 0 : index
      %c0_152 = arith.constant 0 : index
      %391 = vector.load %arg18[%c0_151, %c0_152] : memref<1x2xf32, #tpu.memory_space<vmem>>, vector<1x2xf32>
      %392 = vector.broadcast %391 : vector<1x2xf32> to vector<2x2xf32>
      %393 = arith.addf %390, %392 : vector<2x2xf32>
      %c0_153 = arith.constant 0 : index
      %c0_154 = arith.constant 0 : index
      %394 = vector.load %arg19[%c0_153, %c0_154] : memref<2x2xf32, #tpu.memory_space<vmem>>, vector<2x2xf32>
      tpu.vector_store %arg19[%c0_153, %c0_154], %393 {strides = array<i32>} : memref<2x2xf32, #tpu.memory_space<vmem>>, vector<2x2xf32>,
    } else {
    }
    return
  }
  func.func @transform_0(%arg0: i32) -> (i32, i32) {
    %c0_i32 = arith.constant 0 : i32
    %c0_i32_0 = arith.constant 0 : i32
    %c0_i32_1 = arith.constant 0 : i32
    return %c0_i32, %c0_i32_0 : i32, i32
  }
  func.func @transform_1(%arg0: i32) -> (i32, i32) {
    %c0_i32 = arith.constant 0 : i32
    %c0_i32_0 = arith.constant 0 : i32
    %c0_i32_1 = arith.constant 0 : i32
    return %c0_i32, %c0_i32_0 : i32, i32
  }
  func.func @transform_2(%arg0: i32) -> (i32, i32, i32) {
    %c0_i32 = arith.constant 0 : i32
    %c0_i32_0 = arith.constant 0 : i32
    %c0_i32_1 = arith.constant 0 : i32
    return %arg0, %c0_i32, %c0_i32_0 : i32, i32, i32
  }
  func.func @transform_3(%arg0: i32) -> (i32, i32, i32) {
    %c0_i32 = arith.constant 0 : i32
    %c0_i32_0 = arith.constant 0 : i32
    %c0_i32_1 = arith.constant 0 : i32
    return %arg0, %c0_i32, %c0_i32_0 : i32, i32, i32
  }
  func.func @transform_4(%arg0: i32) -> (i32, i32, i32) {
    %c0_i32 = arith.constant 0 : i32
    %c0_i32_0 = arith.constant 0 : i32
    %c0_i32_1 = arith.constant 0 : i32
    return %arg0, %c0_i32, %c0_i32_0 : i32, i32, i32
  }
  func.func @transform_5(%arg0: i32) -> (i32, i32, i32) {
    %c0_i32 = arith.constant 0 : i32
    %c0_i32_0 = arith.constant 0 : i32
    %c0_i32_1 = arith.constant 0 : i32
    return %arg0, %c0_i32, %c0_i32_0 : i32, i32, i32
  }
  func.func @transform_6(%arg0: i32) -> (i32, i32, i32) {
    %c0_i32 = arith.constant 0 : i32
    %c0_i32_0 = arith.constant 0 : i32
    %c0_i32_1 = arith.constant 0 : i32
    return %arg0, %c0_i32, %c0_i32_0 : i32, i32, i32
  }
  func.func @transform_7(%arg0: i32) -> (i32, i32, i32) {
    %c0_i32 = arith.constant 0 : i32
    %c0_i32_0 = arith.constant 0 : i32
    %c0_i32_1 = arith.constant 0 : i32
    return %arg0, %c0_i32, %c0_i32_0 : i32, i32, i32
  }
  func.func @transform_8(%arg0: i32) -> (i32, i32, i32) {
    %c0_i32 = arith.constant 0 : i32
    %c0_i32_0 = arith.constant 0 : i32
    %c0_i32_1 = arith.constant 0 : i32
    return %arg0, %c0_i32, %c0_i32_0 : i32, i32, i32
  }
  func.func @transform_9(%arg0: i32) -> (i32, i32, i32) {
    %c0_i32 = arith.constant 0 : i32
    %c0_i32_0 = arith.constant 0 : i32
    %c0_i32_1 = arith.constant 0 : i32
    return %arg0, %c0_i32, %c0_i32_0 : i32, i32, i32
  }
  func.func @transform_10(%arg0: i32) -> (i32, i32, i32) {
    %c0_i32 = arith.constant 0 : i32
    %c0_i32_0 = arith.constant 0 : i32
    %c0_i32_1 = arith.constant 0 : i32
    return %arg0, %c0_i32, %c0_i32_0 : i32, i32, i32
  }
  func.func @transform_11(%arg0: i32) -> (i32, i32, i32) {
    %c0_i32 = arith.constant 0 : i32
    %c0_i32_0 = arith.constant 0 : i32
    %c0_i32_1 = arith.constant 0 : i32
    return %arg0, %c0_i32, %c0_i32_0 : i32, i32, i32
  }
  func.func @transform_12(%arg0: i32) -> (i32, i32, i32) {
    %c0_i32 = arith.constant 0 : i32
    %c0_i32_0 = arith.constant 0 : i32
    %c0_i32_1 = arith.constant 0 : i32
    return %arg0, %c0_i32, %c0_i32_0 : i32, i32, i32
  }
  func.func @transform_13(%arg0: i32) -> (i32, i32, i32) {
    %c0_i32 = arith.constant 0 : i32
    %c0_i32_0 = arith.constant 0 : i32
    %c0_i32_1 = arith.constant 0 : i32
    return %arg0, %c0_i32, %c0_i32_0 : i32, i32, i32
  }
  func.func @transform_14(%arg0: i32) -> (i32, i32) {
    %c0_i32 = arith.constant 0 : i32
    %c0_i32_0 = arith.constant 0 : i32
    %c0_i32_1 = arith.constant 0 : i32
    return %c0_i32, %c0_i32_0 : i32, i32
  }
  func.func @transform_15(%arg0: i32) -> (i32, i32) {
    %c0_i32 = arith.constant 0 : i32
    %c0_i32_0 = arith.constant 0 : i32
    %c0_i32_1 = arith.constant 0 : i32
    return %c0_i32, %c0_i32_0 : i32, i32
  }
  func.func @transform_16(%arg0: i32) -> (i32, i32) {
    %c0_i32 = arith.constant 0 : i32
    %c0_i32_0 = arith.constant 0 : i32
    %c0_i32_1 = arith.constant 0 : i32
    return %c0_i32, %c0_i32_0 : i32, i32
  }
  func.func @transform_17(%arg0: i32) -> (i32, i32) {
    %c0_i32 = arith.constant 0 : i32
    %c0_i32_0 = arith.constant 0 : i32
    %c0_i32_1 = arith.constant 0 : i32
    return %c0_i32, %c0_i32_0 : i32, i32
  }
  func.func @transform_18(%arg0: i32) -> (i32, i32) {
    %c0_i32 = arith.constant 0 : i32
    %c0_i32_0 = arith.constant 0 : i32
    %c0_i32_1 = arith.constant 0 : i32
    return %c0_i32, %c0_i32_0 : i32, i32
  }
}

</mosaic_0001>

<llo_original>
// kernel: forward.1
$region0: #{forward.1}
  #allocation0 [shape = 'u32[]', space=smem, size = 0x4, offset = 0x4, fixed_abs, tag = 'smem constant byte address 0x4 - core index']
  #allocation1 [shape = 'u32[144,128]{1,0:T(1,128)}', space=vmem, size = 0x12000, scoped, tag = 'internal scratch']
  #allocation2 [shape = 'f32[16,128]{1,0:T(8,128)}', space=vmem, size = 0x2000, scoped, tag = 'scratch operand']
  %s0 = inlined_call_operand.vmem [shape: f32[16,128], index: 0, kind: input, shape index: {}]
  %s1 = inlined_call_operand.hbm [shape: f32[8,128], index: 1, kind: input, shape index: {}]
  %s2 = inlined_call_operand.hbm [shape: f32[2,128,384], index: 2, kind: input, shape index: {}]
  %s3 = inlined_call_operand.hbm [shape: f32[2,1,384], index: 3, kind: input, shape index: {}]
  %s4 = inlined_call_operand.hbm [shape: f32[2,128,128], index: 4, kind: input, shape index: {}]
  %s5 = inlined_call_operand.hbm [shape: f32[2,1,128], index: 5, kind: input, shape index: {}]
  %s6 = inlined_call_operand.hbm [shape: f32[2,1,128], index: 6, kind: input, shape index: {}]
  %s7 = inlined_call_operand.hbm [shape: f32[2,1,128], index: 7, kind: input, shape index: {}]
  %s8 = inlined_call_operand.hbm [shape: f32[2,128,2048], index: 8, kind: input, shape index: {}]
  %s9 = inlined_call_operand.hbm [shape: f32[2,1,2048], index: 9, kind: input, shape index: {}]
  %s10 = inlined_call_operand.hbm [shape: f32[2,2048,128], index: 10, kind: input, shape index: {}]
  %s11 = inlined_call_operand.hbm [shape: f32[2,1,128], index: 11, kind: input, shape index: {}]
  %s12 = inlined_call_operand.hbm [shape: f32[2,1,128], index: 12, kind: input, shape index: {}]
  %s13 = inlined_call_operand.hbm [shape: f32[2,1,128], index: 13, kind: input, shape index: {}]
  %s14 = inlined_call_operand.hbm [shape: f32[1,128], index: 14, kind: input, shape index: {}]
  %s15 = inlined_call_operand.hbm [shape: f32[1,128], index: 15, kind: input, shape index: {}]
  %s16 = inlined_call_operand.vmem [shape: f32[128,2], index: 16, kind: input, shape index: {}]
  %s17 = inlined_call_operand.hbm [shape: f32[1,2], index: 17, kind: input, shape index: {}]
  %s18 = inlined_call_operand.hbm [shape: f32[2,2], index: 18, kind: output, shape index: {}]
  %s19 = sld [smem:[#allocation0]]
  $region177: #{forward.1} parent=0
    _
  %s21 = ssub.s32 1, %s19
  %s22 = scalar_select 0, %s21, %s19
  $region1: #{forward.1} parent=0
    #allocation3 [shape = 'u8[4096]{0}', space=vmem, size = 0x1000, scoped, tag = 'input window, operand 1, single buffered']
    #allocation4 [shape = 's32[2]{0}', space=sflag, size = 0x8, scoped, tag = 'scoped memory for forward.1']
    #allocation5 [shape = 's32[2]{0}', space=sflag, size = 0x8, scoped, tag = 'scoped memory for forward.1']
    #allocation6 [shape = 'u8[393216]{0}', space=vmem, size = 0x60000, scoped, tag = 'input window, operand 2']
    #allocation7 [shape = 's32[2]{0}', space=sflag, size = 0x8, scoped, tag = 'scoped memory for forward.1']
    #allocation8 [shape = 'u8[3072]{0}', space=vmem, size = 0xc00, scoped, tag = 'input window, operand 3']
    #allocation9 [shape = 'u8[131072]{0}', space=vmem, size = 0x20000, scoped, tag = 'input window, operand 4']
    #allocation10 [shape = 's32[2]{0}', space=sflag, size = 0x8, scoped, tag = 'scoped memory for forward.1']
    #allocation11 [shape = 'u8[1024]{0}', space=vmem, size = 0x400, scoped, tag = 'input window, operand 5']
    #allocation12 [shape = 'u8[1024]{0}', space=vmem, size = 0x400, scoped, tag = 'input window, operand 6']
    #allocation13 [shape = 's32[2]{0}', space=sflag, size = 0x8, scoped, tag = 'scoped memory for forward.1']
    #allocation14 [shape = 'u8[1024]{0}', space=vmem, size = 0x400, scoped, tag = 'input window, operand 7']
    #allocation15 [shape = 'u8[2097152]{0}', space=vmem, size = 0x200000, scoped, tag = 'input window, operand 8']
    #allocation16 [shape = 's32[2]{0}', space=sflag, size = 0x8, scoped, tag = 'scoped memory for forward.1']
    #allocation17 [shape = 'u8[16384]{0}', space=vmem, size = 0x4000, scoped, tag = 'input window, operand 9']
    #allocation18 [shape = 'u8[2097152]{0}', space=vmem, size = 0x200000, scoped, tag = 'input window, operand 10']
    #allocation19 [shape = 's32[2]{0}', space=sflag, size = 0x8, scoped, tag = 'scoped memory for forward.1']
    #allocation20 [shape = 'u8[1024]{0}', space=vmem, size = 0x400, scoped, tag = 'input window, operand 11']
    #allocation21 [shape = 'u8[1024]{0}', space=vmem, size = 0x400, scoped, tag = 'input window, operand 12']
    #allocation22 [shape = 's32[2]{0}', space=sflag, size = 0x8, scoped, tag = 'scoped memory for forward.1']
    #allocation23 [shape = 'u8[1024]{0}', space=vmem, size = 0x400, scoped, tag = 'input window, operand 13']
    #allocation24 [shape = 'u8[512]{0}', space=vmem, size = 0x400, scoped, tag = 'input window, operand 14, single buffered']
    #allocation25 [shape = 's32[1]{0}', space=sflag, size = 0x4, scoped, tag = 'scoped memory for forward.1']
    #allocation26 [shape = 'u8[512]{0}', space=vmem, size = 0x400, scoped, tag = 'input window, operand 15, single buffered']
    #allocation27 [shape = 'u8[512]{0}', space=vmem, size = 0x400, scoped, tag = 'input window, operand 17, single buffered']
    #allocation28 [shape = 's32[1]{0}', space=sflag, size = 0x4, scoped, tag = 'scoped memory for forward.1']
    #allocation29 [shape = 'u8[1024]{0}', space=vmem, size = 0x400, scoped, tag = 'output window, operand 0, single buffered']
    %23 = vsyncpa [#allocation4], 0
    %24 = vsyncpa [#allocation7], 0
    %s25 = scalar_lea.sflag [#allocation7], 1
    %26 = vsyncpa %s25, 0
    %27 = vsyncpa [#allocation10], 0
    %s28 = scalar_lea.sflag [#allocation10], 1
    %29 = vsyncpa %s28, 0
    %30 = vsyncpa [#allocation13], 0
    %s31 = scalar_lea.sflag [#allocation13], 1
    %32 = vsyncpa %s31, 0
    %33 = vsyncpa [#allocation16], 0
    %s34 = scalar_lea.sflag [#allocation16], 1
    %35 = vsyncpa %s34, 0
    %36 = vsyncpa [#allocation19], 0
    %s37 = scalar_lea.sflag [#allocation19], 1
    %38 = vsyncpa %s37, 0
    %39 = vsyncpa [#allocation22], 0
    %s40 = scalar_lea.sflag [#allocation22], 1
    %41 = vsyncpa %s40, 0
    %42 = vsyncpa [#allocation25], 0
    %43 = vsyncpa [#allocation28], 0
    %44 = vsyncpa [#allocation5], 0
    loop: start=0, step=1, limit=4
    $region2: #{forward.1} parent=1 // loop_pre_header
      _
    $region3: #{forward.1} parent=1 // loop_header
      %s46 = sphi 0, %s50
      %p47 = scmp.ge.s32.totalorder %s46, 4
      %s54 = sphi 0, %s54
      %s56 = sphi 0, %s54
      %s57 = sphi 0, %s56
      %s71 = sphi 0, %s57
      %s75 = sphi 0, %s75
      %s77 = sphi 0, %s75
      %s78 = sphi 0, %s77
      %s92 = sphi 0, %s78
      %s98 = sphi 0, %s100
      %s101 = sphi 0, %s98
      %s102 = sphi 0, %s101
      %s118 = sphi 0, %s102
      %s124 = sphi 0, %s126
      %s127 = sphi 0, %s124
      %s128 = sphi 0, %s127
      %s144 = sphi 0, %s128
      %s150 = sphi 0, %s152
      %s153 = sphi 0, %s150
      %s154 = sphi 0, %s153
      %s170 = sphi 0, %s154
      %s176 = sphi 0, %s178
      %s179 = sphi 0, %s176
      %s180 = sphi 0, %s179
      %s196 = sphi 0, %s180
      %s202 = sphi 0, %s204
      %s205 = sphi 0, %s202
      %s206 = sphi 0, %s205
      %s222 = sphi 0, %s206
      %s228 = sphi 0, %s230
      %s231 = sphi 0, %s228
      %s232 = sphi 0, %s231
      %s248 = sphi 0, %s232
      %s254 = sphi 0, %s256
      %s257 = sphi 0, %s254
      %s258 = sphi 0, %s257
      %s274 = sphi 0, %s258
      %s280 = sphi 0, %s282
      %s283 = sphi 0, %s280
      %s284 = sphi 0, %s283
      %s300 = sphi 0, %s284
      %s306 = sphi 0, %s308
      %s309 = sphi 0, %s306
      %s310 = sphi 0, %s309
      %s326 = sphi 0, %s310
      %s332 = sphi 0, %s334
      %s335 = sphi 0, %s332
      %s336 = sphi 0, %s335
      %s352 = sphi 0, %s336
      %s358 = sphi 0, %s360
      %s361 = sphi 0, %s358
      %s362 = sphi 0, %s361
      %s378 = sphi 0, %s362
      %s384 = sphi 0, %s386
      %s387 = sphi 0, %s384
      %s388 = sphi 0, %s387
      %s404 = sphi 0, %s388
      %s408 = sphi 0, %s408
      %s410 = sphi 0, %s408
      %s411 = sphi 0, %s410
      %s425 = sphi 0, %s411
      %s429 = sphi 0, %s429
      %s431 = sphi 0, %s429
      %s432 = sphi 0, %s431
      %s446 = sphi 0, %s432
      %s450 = sphi 0, %s450
      %s452 = sphi 0, %s450
      %s453 = sphi 0, %s452
      %s467 = sphi 0, %s453
      %s471 = sphi 0, %s471
      %s473 = sphi 0, %s471
      %s474 = sphi 0, %s473
      %s488 = sphi 0, %s474
      %s492 = sphi 0, %s492
      %s494 = sphi 0, %s492
      %s495 = sphi 0, %s494
      %s509 = sphi 0, %s495
    $region4: #{forward.1} parent=1 // loop_header_branch
      %49 = sbr.rel (%p47) target = $region8
    $region5: #{forward.1} parent=1 // loop_body
      %s51 = ssub.s32 %s46, 1
      %s52 = ssub.s32 %s46, 2
      %s53 = sadd.s32 %s46, 1
      %s55 = sadd.s32 %s54, 1
      %p58 = scmp.eq.s32.totalorder %s46, 1
      %p59 = scmp.ne.s32.totalorder %s54, %s56
      %p60 = scmp.eq.s32.totalorder %s46, 0
      %p61 = por %p59, %p60
      %p62 = scmp.ne.s32.totalorder %s54, %s56
      %p63 = scmp.eq.s32.totalorder %s51, 1
      %p64 = por %p62, %p63
      %p65 = scmp.ne.s32.totalorder %s56, %s57
      %p66 = scmp.eq.s32.totalorder %s51, 0
      %p67 = por %p65, %p66
      %p68 = scmp.ne.s32.totalorder %s56, %s57
      %p69 = scmp.eq.s32.totalorder %s52, 1
      %p70 = por %p68, %p69
      %p72 = scmp.ne.s32.totalorder %s57, %s71
      %p73 = scmp.eq.s32.totalorder %s52, 0
      %p74 = por %p72, %p73
      %s76 = sadd.s32 %s75, 1
      %p79 = scmp.eq.s32.totalorder %s46, 1
      %p80 = scmp.ne.s32.totalorder %s75, %s77
      %p81 = scmp.eq.s32.totalorder %s46, 0
      %p82 = por %p80, %p81
      %p83 = scmp.ne.s32.totalorder %s75, %s77
      %p84 = scmp.eq.s32.totalorder %s51, 1
      %p85 = por %p83, %p84
      %p86 = scmp.ne.s32.totalorder %s77, %s78
      %p87 = scmp.eq.s32.totalorder %s51, 0
      %p88 = por %p86, %p87
      %p89 = scmp.ne.s32.totalorder %s77, %s78
      %p90 = scmp.eq.s32.totalorder %s52, 1
      %p91 = por %p89, %p90
      %p93 = scmp.ne.s32.totalorder %s78, %s92
      %p94 = scmp.eq.s32.totalorder %s52, 0
      %p95 = por %p93, %p94
      %s96 = ssub.s32 %s46, %s53
      %p97 = scmp.eq.s32.totalorder %s96, 0
      %s99 = sadd.s32 %s98, 1
      %s100 = scalar_select %p97, %s98, %s99
      %p103 = pneg %p97
      %p104 = scmp.eq.s32.totalorder %s46, 1
      %p105 = por %p103, %p104
      %p106 = scmp.ne.s32.totalorder %s98, %s101
      %p107 = scmp.eq.s32.totalorder %s46, 0
      %p108 = por %p106, %p107
      %p109 = scmp.ne.s32.totalorder %s98, %s101
      %p110 = scmp.eq.s32.totalorder %s51, 1
      %p111 = por %p109, %p110
      %p112 = scmp.ne.s32.totalorder %s101, %s102
      %p113 = scmp.eq.s32.totalorder %s51, 0
      %p114 = por %p112, %p113
      %p115 = scmp.ne.s32.totalorder %s101, %s102
      %p116 = scmp.eq.s32.totalorder %s52, 1
      %p117 = por %p115, %p116
      %p119 = scmp.ne.s32.totalorder %s102, %s118
      %p120 = scmp.eq.s32.totalorder %s52, 0
      %p121 = por %p119, %p120
      %s122 = ssub.s32 %s46, %s53
      %p123 = scmp.eq.s32.totalorder %s122, 0
      %s125 = sadd.s32 %s124, 1
      %s126 = scalar_select %p123, %s124, %s125
      %p129 = pneg %p123
      %p130 = scmp.eq.s32.totalorder %s46, 1
      %p131 = por %p129, %p130
      %p132 = scmp.ne.s32.totalorder %s124, %s127
      %p133 = scmp.eq.s32.totalorder %s46, 0
      %p134 = por %p132, %p133
      %p135 = scmp.ne.s32.totalorder %s124, %s127
      %p136 = scmp.eq.s32.totalorder %s51, 1
      %p137 = por %p135, %p136
      %p138 = scmp.ne.s32.totalorder %s127, %s128
      %p139 = scmp.eq.s32.totalorder %s51, 0
      %p140 = por %p138, %p139
      %p141 = scmp.ne.s32.totalorder %s127, %s128
      %p142 = scmp.eq.s32.totalorder %s52, 1
      %p143 = por %p141, %p142
      %p145 = scmp.ne.s32.totalorder %s128, %s144
      %p146 = scmp.eq.s32.totalorder %s52, 0
      %p147 = por %p145, %p146
      %s148 = ssub.s32 %s46, %s53
      %p149 = scmp.eq.s32.totalorder %s148, 0
      %s151 = sadd.s32 %s150, 1
      %s152 = scalar_select %p149, %s150, %s151
      %p155 = pneg %p149
      %p156 = scmp.eq.s32.totalorder %s46, 1
      %p157 = por %p155, %p156
      %p158 = scmp.ne.s32.totalorder %s150, %s153
      %p159 = scmp.eq.s32.totalorder %s46, 0
      %p160 = por %p158, %p159
      %p161 = scmp.ne.s32.totalorder %s150, %s153
      %p162 = scmp.eq.s32.totalorder %s51, 1
      %p163 = por %p161, %p162
      %p164 = scmp.ne.s32.totalorder %s153, %s154
      %p165 = scmp.eq.s32.totalorder %s51, 0
      %p166 = por %p164, %p165
      %p167 = scmp.ne.s32.totalorder %s153, %s154
      %p168 = scmp.eq.s32.totalorder %s52, 1
      %p169 = por %p167, %p168
      %p171 = scmp.ne.s32.totalorder %s154, %s170
      %p172 = scmp.eq.s32.totalorder %s52, 0
      %p173 = por %p171, %p172
      %s174 = ssub.s32 %s46, %s53
      %p175 = scmp.eq.s32.totalorder %s174, 0
      %s177 = sadd.s32 %s176, 1
      %s178 = scalar_select %p175, %s176, %s177
      %p181 = pneg %p175
      %p182 = scmp.eq.s32.totalorder %s46, 1
      %p183 = por %p181, %p182
      %p184 = scmp.ne.s32.totalorder %s176, %s179
      %p185 = scmp.eq.s32.totalorder %s46, 0
      %p186 = por %p184, %p185
      %p187 = scmp.ne.s32.totalorder %s176, %s179
      %p188 = scmp.eq.s32.totalorder %s51, 1
      %p189 = por %p187, %p188
      %p190 = scmp.ne.s32.totalorder %s179, %s180
      %p191 = scmp.eq.s32.totalorder %s51, 0
      %p192 = por %p190, %p191
      %p193 = scmp.ne.s32.totalorder %s179, %s180
      %p194 = scmp.eq.s32.totalorder %s52, 1
      %p195 = por %p193, %p194
      %p197 = scmp.ne.s32.totalorder %s180, %s196
      %p198 = scmp.eq.s32.totalorder %s52, 0
      %p199 = por %p197, %p198
      %s200 = ssub.s32 %s46, %s53
      %p201 = scmp.eq.s32.totalorder %s200, 0
      %s203 = sadd.s32 %s202, 1
      %s204 = scalar_select %p201, %s202, %s203
      %p207 = pneg %p201
      %p208 = scmp.eq.s32.totalorder %s46, 1
      %p209 = por %p207, %p208
      %p210 = scmp.ne.s32.totalorder %s202, %s205
      %p211 = scmp.eq.s32.totalorder %s46, 0
      %p212 = por %p210, %p211
      %p213 = scmp.ne.s32.totalorder %s202, %s205
      %p214 = scmp.eq.s32.totalorder %s51, 1
      %p215 = por %p213, %p214
      %p216 = scmp.ne.s32.totalorder %s205, %s206
      %p217 = scmp.eq.s32.totalorder %s51, 0
      %p218 = por %p216, %p217
      %p219 = scmp.ne.s32.totalorder %s205, %s206
      %p220 = scmp.eq.s32.totalorder %s52, 1
      %p221 = por %p219, %p220
      %p223 = scmp.ne.s32.totalorder %s206, %s222
      %p224 = scmp.eq.s32.totalorder %s52, 0
      %p225 = por %p223, %p224
      %s226 = ssub.s32 %s46, %s53
      %p227 = scmp.eq.s32.totalorder %s226, 0
      %s229 = sadd.s32 %s228, 1
      %s230 = scalar_select %p227, %s228, %s229
      %p233 = pneg %p227
      %p234 = scmp.eq.s32.totalorder %s46, 1
      %p235 = por %p233, %p234
      %p236 = scmp.ne.s32.totalorder %s228, %s231
      %p237 = scmp.eq.s32.totalorder %s46, 0
      %p238 = por %p236, %p237
      %p239 = scmp.ne.s32.totalorder %s228, %s231
      %p240 = scmp.eq.s32.totalorder %s51, 1
      %p241 = por %p239, %p240
      %p242 = scmp.ne.s32.totalorder %s231, %s232
      %p243 = scmp.eq.s32.totalorder %s51, 0
      %p244 = por %p242, %p243
      %p245 = scmp.ne.s32.totalorder %s231, %s232
      %p246 = scmp.eq.s32.totalorder %s52, 1
      %p247 = por %p245, %p246
      %p249 = scmp.ne.s32.totalorder %s232, %s248
      %p250 = scmp.eq.s32.totalorder %s52, 0
      %p251 = por %p249, %p250
      %s252 = ssub.s32 %s46, %s53
      %p253 = scmp.eq.s32.totalorder %s252, 0
      %s255 = sadd.s32 %s254, 1
      %s256 = scalar_select %p253, %s254, %s255
      %p259 = pneg %p253
      %p260 = scmp.eq.s32.totalorder %s46, 1
      %p261 = por %p259, %p260
      %p262 = scmp.ne.s32.totalorder %s254, %s257
      %p263 = scmp.eq.s32.totalorder %s46, 0
      %p264 = por %p262, %p263
      %p265 = scmp.ne.s32.totalorder %s254, %s257
      %p266 = scmp.eq.s32.totalorder %s51, 1
      %p267 = por %p265, %p266
      %p268 = scmp.ne.s32.totalorder %s257, %s258
      %p269 = scmp.eq.s32.totalorder %s51, 0
      %p270 = por %p268, %p269
      %p271 = scmp.ne.s32.totalorder %s257, %s258
      %p272 = scmp.eq.s32.totalorder %s52, 1
      %p273 = por %p271, %p272
      %p275 = scmp.ne.s32.totalorder %s258, %s274
      %p276 = scmp.eq.s32.totalorder %s52, 0
      %p277 = por %p275, %p276
      %s278 = ssub.s32 %s46, %s53
      %p279 = scmp.eq.s32.totalorder %s278, 0
      %s281 = sadd.s32 %s280, 1
      %s282 = scalar_select %p279, %s280, %s281
      %p285 = pneg %p279
      %p286 = scmp.eq.s32.totalorder %s46, 1
      %p287 = por %p285, %p286
      %p288 = scmp.ne.s32.totalorder %s280, %s283
      %p289 = scmp.eq.s32.totalorder %s46, 0
      %p290 = por %p288, %p289
      %p291 = scmp.ne.s32.totalorder %s280, %s283
      %p292 = scmp.eq.s32.totalorder %s51, 1
      %p293 = por %p291, %p292
      %p294 = scmp.ne.s32.totalorder %s283, %s284
      %p295 = scmp.eq.s32.totalorder %s51, 0
      %p296 = por %p294, %p295
      %p297 = scmp.ne.s32.totalorder %s283, %s284
      %p298 = scmp.eq.s32.totalorder %s52, 1
      %p299 = por %p297, %p298
      %p301 = scmp.ne.s32.totalorder %s284, %s300
      %p302 = scmp.eq.s32.totalorder %s52, 0
      %p303 = por %p301, %p302
      %s304 = ssub.s32 %s46, %s53
      %p305 = scmp.eq.s32.totalorder %s304, 0
      %s307 = sadd.s32 %s306, 1
      %s308 = scalar_select %p305, %s306, %s307
      %p311 = pneg %p305
      %p312 = scmp.eq.s32.totalorder %s46, 1
      %p313 = por %p311, %p312
      %p314 = scmp.ne.s32.totalorder %s306, %s309
      %p315 = scmp.eq.s32.totalorder %s46, 0
      %p316 = por %p314, %p315
      %p317 = scmp.ne.s32.totalorder %s306, %s309
      %p318 = scmp.eq.s32.totalorder %s51, 1
      %p319 = por %p317, %p318
      %p320 = scmp.ne.s32.totalorder %s309, %s310
      %p321 = scmp.eq.s32.totalorder %s51, 0
      %p322 = por %p320, %p321
      %p323 = scmp.ne.s32.totalorder %s309, %s310
      %p324 = scmp.eq.s32.totalorder %s52, 1
      %p325 = por %p323, %p324
      %p327 = scmp.ne.s32.totalorder %s310, %s326
      %p328 = scmp.eq.s32.totalorder %s52, 0
      %p329 = por %p327, %p328
      %s330 = ssub.s32 %s46, %s53
      %p331 = scmp.eq.s32.totalorder %s330, 0
      %s333 = sadd.s32 %s332, 1
      %s334 = scalar_select %p331, %s332, %s333
      %p337 = pneg %p331
      %p338 = scmp.eq.s32.totalorder %s46, 1
      %p339 = por %p337, %p338
      %p340 = scmp.ne.s32.totalorder %s332, %s335
      %p341 = scmp.eq.s32.totalorder %s46, 0
      %p342 = por %p340, %p341
      %p343 = scmp.ne.s32.totalorder %s332, %s335
      %p344 = scmp.eq.s32.totalorder %s51, 1
      %p345 = por %p343, %p344
      %p346 = scmp.ne.s32.totalorder %s335, %s336
      %p347 = scmp.eq.s32.totalorder %s51, 0
      %p348 = por %p346, %p347
      %p349 = scmp.ne.s32.totalorder %s335, %s336
      %p350 = scmp.eq.s32.totalorder %s52, 1
      %p351 = por %p349, %p350
      %p353 = scmp.ne.s32.totalorder %s336, %s352
      %p354 = scmp.eq.s32.totalorder %s52, 0
      %p355 = por %p353, %p354
      %s356 = ssub.s32 %s46, %s53
      %p357 = scmp.eq.s32.totalorder %s356, 0
      %s359 = sadd.s32 %s358, 1
      %s360 = scalar_select %p357, %s358, %s359
      %p363 = pneg %p357
      %p364 = scmp.eq.s32.totalorder %s46, 1
      %p365 = por %p363, %p364
      %p366 = scmp.ne.s32.totalorder %s358, %s361
      %p367 = scmp.eq.s32.totalorder %s46, 0
      %p368 = por %p366, %p367
      %p369 = scmp.ne.s32.totalorder %s358, %s361
      %p370 = scmp.eq.s32.totalorder %s51, 1
      %p371 = por %p369, %p370
      %p372 = scmp.ne.s32.totalorder %s361, %s362
      %p373 = scmp.eq.s32.totalorder %s51, 0
      %p374 = por %p372, %p373
      %p375 = scmp.ne.s32.totalorder %s361, %s362
      %p376 = scmp.eq.s32.totalorder %s52, 1
      %p377 = por %p375, %p376
      %p379 = scmp.ne.s32.totalorder %s362, %s378
      %p380 = scmp.eq.s32.totalorder %s52, 0
      %p381 = por %p379, %p380
      %s382 = ssub.s32 %s46, %s53
      %p383 = scmp.eq.s32.totalorder %s382, 0
      %s385 = sadd.s32 %s384, 1
      %s386 = scalar_select %p383, %s384, %s385
      %p389 = pneg %p383
      %p390 = scmp.eq.s32.totalorder %s46, 1
      %p391 = por %p389, %p390
      %p392 = scmp.ne.s32.totalorder %s384, %s387
      %p393 = scmp.eq.s32.totalorder %s46, 0
      %p394 = por %p392, %p393
      %p395 = scmp.ne.s32.totalorder %s384, %s387
      %p396 = scmp.eq.s32.totalorder %s51, 1
      %p397 = por %p395, %p396
      %p398 = scmp.ne.s32.totalorder %s387, %s388
      %p399 = scmp.eq.s32.totalorder %s51, 0
      %p400 = por %p398, %p399
      %p401 = scmp.ne.s32.totalorder %s387, %s388
      %p402 = scmp.eq.s32.totalorder %s52, 1
      %p403 = por %p401, %p402
      %p405 = scmp.ne.s32.totalorder %s388, %s404
      %p406 = scmp.eq.s32.totalorder %s52, 0
      %p407 = por %p405, %p406
      %s409 = sadd.s32 %s408, 1
      %p412 = scmp.eq.s32.totalorder %s46, 1
      %p413 = scmp.ne.s32.totalorder %s408, %s410
      %p414 = scmp.eq.s32.totalorder %s46, 0
      %p415 = por %p413, %p414
      %p416 = scmp.ne.s32.totalorder %s408, %s410
      %p417 = scmp.eq.s32.totalorder %s51, 1
      %p418 = por %p416, %p417
      %p419 = scmp.ne.s32.totalorder %s410, %s411
      %p420 = scmp.eq.s32.totalorder %s51, 0
      %p421 = por %p419, %p420
      %p422 = scmp.ne.s32.totalorder %s410, %s411
      %p423 = scmp.eq.s32.totalorder %s52, 1
      %p424 = por %p422, %p423
      %p426 = scmp.ne.s32.totalorder %s411, %s425
      %p427 = scmp.eq.s32.totalorder %s52, 0
      %p428 = por %p426, %p427
      %s430 = sadd.s32 %s429, 1
      %p433 = scmp.eq.s32.totalorder %s46, 1
      %p434 = scmp.ne.s32.totalorder %s429, %s431
      %p435 = scmp.eq.s32.totalorder %s46, 0
      %p436 = por %p434, %p435
      %p437 = scmp.ne.s32.totalorder %s429, %s431
      %p438 = scmp.eq.s32.totalorder %s51, 1
      %p439 = por %p437, %p438
      %p440 = scmp.ne.s32.totalorder %s431, %s432
      %p441 = scmp.eq.s32.totalorder %s51, 0
      %p442 = por %p440, %p441
      %p443 = scmp.ne.s32.totalorder %s431, %s432
      %p444 = scmp.eq.s32.totalorder %s52, 1
      %p445 = por %p443, %p444
      %p447 = scmp.ne.s32.totalorder %s432, %s446
      %p448 = scmp.eq.s32.totalorder %s52, 0
      %p449 = por %p447, %p448
      %s451 = sadd.s32 %s450, 1
      %p454 = scmp.eq.s32.totalorder %s46, 1
      %p455 = scmp.ne.s32.totalorder %s450, %s452
      %p456 = scmp.eq.s32.totalorder %s46, 0
      %p457 = por %p455, %p456
      %p458 = scmp.ne.s32.totalorder %s450, %s452
      %p459 = scmp.eq.s32.totalorder %s51, 1
      %p460 = por %p458, %p459
      %p461 = scmp.ne.s32.totalorder %s452, %s453
      %p462 = scmp.eq.s32.totalorder %s51, 0
      %p463 = por %p461, %p462
      %p464 = scmp.ne.s32.totalorder %s452, %s453
      %p465 = scmp.eq.s32.totalorder %s52, 1
      %p466 = por %p464, %p465
      %p468 = scmp.ne.s32.totalorder %s453, %s467
      %p469 = scmp.eq.s32.totalorder %s52, 0
      %p470 = por %p468, %p469
      %s472 = sadd.s32 %s471, 1
      %p475 = scmp.eq.s32.totalorder %s46, 1
      %p476 = scmp.ne.s32.totalorder %s471, %s473
      %p477 = scmp.eq.s32.totalorder %s46, 0
      %p478 = por %p476, %p477
      %p479 = scmp.ne.s32.totalorder %s471, %s473
      %p480 = scmp.eq.s32.totalorder %s51, 1
      %p481 = por %p479, %p480
      %p482 = scmp.ne.s32.totalorder %s473, %s474
      %p483 = scmp.eq.s32.totalorder %s51, 0
      %p484 = por %p482, %p483
      %p485 = scmp.ne.s32.totalorder %s473, %s474
      %p486 = scmp.eq.s32.totalorder %s52, 1
      %p487 = por %p485, %p486
      %p489 = scmp.ne.s32.totalorder %s474, %s488
      %p490 = scmp.eq.s32.totalorder %s52, 0
      %p491 = por %p489, %p490
      %s493 = sadd.s32 %s492, 1
      %p496 = scmp.eq.s32.totalorder %s46, 1
      %p497 = scmp.ne.s32.totalorder %s492, %s494
      %p498 = scmp.eq.s32.totalorder %s46, 0
      %p499 = por %p497, %p498
      %p500 = scmp.ne.s32.totalorder %s492, %s494
      %p501 = scmp.eq.s32.totalorder %s51, 1
      %p502 = por %p500, %p501
      %p503 = scmp.ne.s32.totalorder %s494, %s495
      %p504 = scmp.eq.s32.totalorder %s51, 0
      %p505 = por %p503, %p504
      %p506 = scmp.ne.s32.totalorder %s494, %s495
      %p507 = scmp.eq.s32.totalorder %s52, 1
      %p508 = por %p506, %p507
      %p510 = scmp.ne.s32.totalorder %s495, %s509
      %p511 = scmp.eq.s32.totalorder %s52, 0
      %p512 = por %p510, %p511
      %p513 = scmp.le.s32.totalorder 1, %s46
      %p514 = scmp.lt.s32.totalorder %s46, 3
      %p515 = pnand %p513, %p514
      %p516 = pneg %p515
      // Predicated region
      $region9: #{forward.1} parent=5 // pred_check
        _
      $region10: #{forward.1} parent=5 // pred_check_branch
        %518 = sbr.rel (%p515) target = $region12
      $region11: #{forward.1} parent=5 // pred_region
        %s519 = ssub.s32 %s46, 1
        // Predicated region
        $region13: #{forward.1} parent=11 // pred_check
          %p520 = pneg %p67
        $region14: #{forward.1} parent=11 // pred_check_branch
          %522 = sbr.rel (%p520) target = $region16
        $region15: #{forward.1} parent=11 // pred_region
          _
        $region16: #{forward.1} parent=11 // pred_fallthru
          _
        // Predicated region
        $region17: #{forward.1} parent=11 // pred_check
          %p523 = pneg %p88
        $region18: #{forward.1} parent=11 // pred_check_branch
          %525 = sbr.rel (%p523) target = $region20
        $region19: #{forward.1} parent=11 // pred_region
          %s527 = ssub.s32 128, 128
          %528 = vsyncadd [#allocation4], %s527
          %s530 = sshll.u32 [#allocation3], 4
          %s531 = int_to_ptr.vmem [resolvable:$true] %s530
          %533 = dma.hbm_to_vmem [thread:$0]  %s1, 128, %s531, [#allocation4]
        $region20: #{forward.1} parent=11 // pred_fallthru
          _
        // Predicated region
        $region21: #{forward.1} parent=11 // pred_check
          %p534 = pneg %p421
        $region22: #{forward.1} parent=11 // pred_check_branch
          %536 = sbr.rel (%p534) target = $region24
        $region23: #{forward.1} parent=11 // pred_region
          %s538 = ssub.s32 16, 16
          %539 = vsyncadd [#allocation25], %s538
          %s541 = sshll.u32 [#allocation24], 4
          %s542 = int_to_ptr.vmem [resolvable:$true] %s541
          %544 = dma.hbm_to_vmem [thread:$0]  %s14, 16, %s542, [#allocation25]
        $region24: #{forward.1} parent=11 // pred_fallthru
          _
        // Predicated region
        $region25: #{forward.1} parent=11 // pred_check
          %p545 = pneg %p442
        $region26: #{forward.1} parent=11 // pred_check_branch
          %547 = sbr.rel (%p545) target = $region28
        $region27: #{forward.1} parent=11 // pred_region
          %s549 = ssub.s32 16, 16
          %550 = vsyncadd [#allocation25], %s549
          %s552 = sshll.u32 [#allocation26], 4
          %s553 = int_to_ptr.vmem [resolvable:$true] %s552
          %555 = dma.hbm_to_vmem [thread:$0]  %s15, 16, %s553, [#allocation25]
        $region28: #{forward.1} parent=11 // pred_fallthru
          _
        // Predicated region
        $region29: #{forward.1} parent=11 // pred_check
          %p556 = pneg %p463
        $region30: #{forward.1} parent=11 // pred_check_branch
          %558 = sbr.rel (%p556) target = $region32
        $region31: #{forward.1} parent=11 // pred_region
          _
        $region32: #{forward.1} parent=11 // pred_fallthru
          _
        // Predicated region
        $region33: #{forward.1} parent=11 // pred_check
          %p559 = pneg %p484
        $region34: #{forward.1} parent=11 // pred_check_branch
          %561 = sbr.rel (%p559) target = $region36
        $region35: #{forward.1} parent=11 // pred_region
          %s563 = ssub.s32 16, 16
          %564 = vsyncadd [#allocation28], %s563
          %s566 = sshll.u32 [#allocation27], 4
          %s567 = int_to_ptr.vmem [resolvable:$true] %s566
          %569 = dma.hbm_to_vmem [thread:$0]  %s17, 16, %s567, [#allocation28]
        $region36: #{forward.1} parent=11 // pred_fallthru
          _
      $region12: #{forward.1} parent=5 // pred_fallthru
        _
      %p570 = scmp.lt.s32.totalorder %s46, 2
      // Predicated region
      $region37: #{forward.1} parent=5 // pred_check
        %p571 = pneg %p570
      $region38: #{forward.1} parent=5 // pred_check_branch
        %573 = sbr.rel (%p571) target = $region40
      $region39: #{forward.1} parent=5 // pred_region
        // Predicated region
        $region41: #{forward.1} parent=39 // pred_check
          %p574 = pneg %p108
        $region42: #{forward.1} parent=39 // pred_check_branch
          %576 = sbr.rel (%p574) target = $region44
        $region43: #{forward.1} parent=39 // pred_region
          %s577 = sand.u32 %s46, 1
          %s578 = scalar_lea.sflag [#allocation7], %s577
          %s579 = sand.u32 %s98, 1
          %s580 = smul.addr %s579, 384
          %s581 = scalar_lea.vmem [#allocation6], %s580
          %s583 = ssub.s32 6144, 6144
          %584 = vsyncadd %s578, %s583
          %s585 = smul.addr %s46, 48
          %s586 = smul.addr %s585, 128
          %s587 = scalar_lea.hbm %s2, %s586
          %s588 = sshll.u32 %s581, 4
          %s589 = int_to_ptr.vmem [resolvable:$true] %s588
          %594 = dma.hbm_to_vmem [thread:$0]  %s587, 6144, %s589, %s578, 384, 384, 24
        $region44: #{forward.1} parent=39 // pred_fallthru
          _
        // Predicated region
        $region45: #{forward.1} parent=39 // pred_check
          %p595 = pneg %p134
        $region46: #{forward.1} parent=39 // pred_check_branch
          %597 = sbr.rel (%p595) target = $region48
        $region47: #{forward.1} parent=39 // pred_region
          %s598 = sand.u32 %s46, 1
          %s599 = scalar_lea.sflag [#allocation7], %s598
          %s600 = sand.u32 %s124, 1
          %s601 = smul.addr %s600, 3
          %s602 = scalar_lea.vmem [#allocation8], %s601
          %s604 = ssub.s32 48, 48
          %605 = vsyncadd %s599, %s604
          %s606 = smul.addr %s46, 3
          %s607 = smul.addr %s606, 16
          %s608 = scalar_lea.hbm %s3, %s607
          %s610 = sshll.u32 %s602, 4
          %s611 = int_to_ptr.vmem [resolvable:$true] %s610
          %613 = dma.hbm_to_vmem [thread:$0]  %s608, 48, %s611, %s599
        $region48: #{forward.1} parent=39 // pred_fallthru
          _
        // Predicated region
        $region49: #{forward.1} parent=39 // pred_check
          %p614 = pneg %p160
        $region50: #{forward.1} parent=39 // pred_check_branch
          %616 = sbr.rel (%p614) target = $region52
        $region51: #{forward.1} parent=39 // pred_region
          %s617 = sand.u32 %s46, 1
          %s618 = scalar_lea.sflag [#allocation10], %s617
          %s619 = sand.u32 %s150, 1
          %s620 = smul.addr %s619, 128
          %s621 = scalar_lea.vmem [#allocation9], %s620
          %s623 = ssub.s32 2048, 2048
          %624 = vsyncadd %s618, %s623
          %s625 = smul.addr %s46, 16
          %s626 = smul.addr %s625, 128
          %s627 = scalar_lea.hbm %s4, %s626
          %s628 = sshll.u32 %s621, 4
          %s629 = int_to_ptr.vmem [resolvable:$true] %s628
          %634 = dma.hbm_to_vmem [thread:$0]  %s627, 2048, %s629, %s618, 128, 128, 8
        $region52: #{forward.1} parent=39 // pred_fallthru
          _
        // Predicated region
        $region53: #{forward.1} parent=39 // pred_check
          %p635 = pneg %p186
        $region54: #{forward.1} parent=39 // pred_check_branch
          %637 = sbr.rel (%p635) target = $region56
        $region55: #{forward.1} parent=39 // pred_region
          %s638 = sand.u32 %s46, 1
          %s639 = scalar_lea.sflag [#allocation10], %s638
          %s640 = sand.u32 %s176, 1
          %s641 = scalar_lea.vmem [#allocation11], %s640
          %s643 = ssub.s32 16, 16
          %644 = vsyncadd %s639, %s643
          %s645 = smul.addr %s46, 16
          %s646 = scalar_lea.hbm %s5, %s645
          %s648 = sshll.u32 %s641, 4
          %s649 = int_to_ptr.vmem [resolvable:$true] %s648
          %651 = dma.hbm_to_vmem [thread:$0]  %s646, 16, %s649, %s639
        $region56: #{forward.1} parent=39 // pred_fallthru
          _
        // Predicated region
        $region57: #{forward.1} parent=39 // pred_check
          %p652 = pneg %p212
        $region58: #{forward.1} parent=39 // pred_check_branch
          %654 = sbr.rel (%p652) target = $region60
        $region59: #{forward.1} parent=39 // pred_region
          %s655 = sand.u32 %s46, 1
          %s656 = scalar_lea.sflag [#allocation13], %s655
          %s657 = sand.u32 %s202, 1
          %s658 = scalar_lea.vmem [#allocation12], %s657
          %s660 = ssub.s32 16, 16
          %661 = vsyncadd %s656, %s660
          %s662 = smul.addr %s46, 16
          %s663 = scalar_lea.hbm %s6, %s662
          %s665 = sshll.u32 %s658, 4
          %s666 = int_to_ptr.vmem [resolvable:$true] %s665
          %668 = dma.hbm_to_vmem [thread:$0]  %s663, 16, %s666, %s656
        $region60: #{forward.1} parent=39 // pred_fallthru
          _
        // Predicated region
        $region61: #{forward.1} parent=39 // pred_check
          %p669 = pneg %p238
        $region62: #{forward.1} parent=39 // pred_check_branch
          %671 = sbr.rel (%p669) target = $region64
        $region63: #{forward.1} parent=39 // pred_region
          %s672 = sand.u32 %s46, 1
          %s673 = scalar_lea.sflag [#allocation13], %s672
          %s674 = sand.u32 %s228, 1
          %s675 = scalar_lea.vmem [#allocation14], %s674
          %s677 = ssub.s32 16, 16
          %678 = vsyncadd %s673, %s677
          %s679 = smul.addr %s46, 16
          %s680 = scalar_lea.hbm %s7, %s679
          %s682 = sshll.u32 %s675, 4
          %s683 = int_to_ptr.vmem [resolvable:$true] %s682
          %685 = dma.hbm_to_vmem [thread:$0]  %s680, 16, %s683, %s673
        $region64: #{forward.1} parent=39 // pred_fallthru
          _
        // Predicated region
        $region65: #{forward.1} parent=39 // pred_check
          %p686 = pneg %p264
        $region66: #{forward.1} parent=39 // pred_check_branch
          %688 = sbr.rel (%p686) target = $region68
        $region67: #{forward.1} parent=39 // pred_region
          %s689 = sand.u32 %s46, 1
          %s690 = scalar_lea.sflag [#allocation16], %s689
          %s691 = sand.u32 %s254, 1
          %s692 = smul.addr %s691, 2048
          %s693 = scalar_lea.vmem [#allocation15], %s692
          %s695 = ssub.s32 32768, 32768
          %696 = vsyncadd %s690, %s695
          %s697 = smul.addr %s46, 256
          %s698 = smul.addr %s697, 128
          %s699 = scalar_lea.hbm %s8, %s698
          %s700 = sshll.u32 %s693, 4
          %s701 = int_to_ptr.vmem [resolvable:$true] %s700
          %706 = dma.hbm_to_vmem [thread:$0]  %s699, 32768, %s701, %s690, 2048, 2048, 128
        $region68: #{forward.1} parent=39 // pred_fallthru
          _
        // Predicated region
        $region69: #{forward.1} parent=39 // pred_check
          %p707 = pneg %p290
        $region70: #{forward.1} parent=39 // pred_check_branch
          %709 = sbr.rel (%p707) target = $region72
        $region71: #{forward.1} parent=39 // pred_region
          %s710 = sand.u32 %s46, 1
          %s711 = scalar_lea.sflag [#allocation16], %s710
          %s712 = sand.u32 %s280, 1
          %s713 = smul.addr %s712, 16
          %s714 = scalar_lea.vmem [#allocation17], %s713
          %s716 = ssub.s32 256, 256
          %717 = vsyncadd %s711, %s716
          %s718 = smul.addr %s46, 16
          %s719 = smul.addr %s718, 16
          %s720 = scalar_lea.hbm %s9, %s719
          %s722 = sshll.u32 %s714, 4
          %s723 = int_to_ptr.vmem [resolvable:$true] %s722
          %725 = dma.hbm_to_vmem [thread:$0]  %s720, 256, %s723, %s711
        $region72: #{forward.1} parent=39 // pred_fallthru
          _
        // Predicated region
        $region73: #{forward.1} parent=39 // pred_check
          %p726 = pneg %p316
        $region74: #{forward.1} parent=39 // pred_check_branch
          %728 = sbr.rel (%p726) target = $region76
        $region75: #{forward.1} parent=39 // pred_region
          %s729 = sand.u32 %s46, 1
          %s730 = scalar_lea.sflag [#allocation19], %s729
          %s731 = sand.u32 %s306, 1
          %s732 = smul.addr %s731, 2048
          %s733 = scalar_lea.vmem [#allocation18], %s732
          %s735 = ssub.s32 32768, 32768
          %736 = vsyncadd %s730, %s735
          %s737 = smul.addr %s46, 256
          %s738 = smul.addr %s737, 128
          %s739 = scalar_lea.hbm %s10, %s738
          %s740 = sshll.u32 %s733, 4
          %s741 = int_to_ptr.vmem [resolvable:$true] %s740
          %746 = dma.hbm_to_vmem [thread:$0]  %s739, 32768, %s741, %s730, 128, 128, 8
        $region76: #{forward.1} parent=39 // pred_fallthru
          _
        // Predicated region
        $region77: #{forward.1} parent=39 // pred_check
          %p747 = pneg %p342
        $region78: #{forward.1} parent=39 // pred_check_branch
          %749 = sbr.rel (%p747) target = $region80
        $region79: #{forward.1} parent=39 // pred_region
          %s750 = sand.u32 %s46, 1
          %s751 = scalar_lea.sflag [#allocation19], %s750
          %s752 = sand.u32 %s332, 1
          %s753 = scalar_lea.vmem [#allocation20], %s752
          %s755 = ssub.s32 16, 16
          %756 = vsyncadd %s751, %s755
          %s757 = smul.addr %s46, 16
          %s758 = scalar_lea.hbm %s11, %s757
          %s760 = sshll.u32 %s753, 4
          %s761 = int_to_ptr.vmem [resolvable:$true] %s760
          %763 = dma.hbm_to_vmem [thread:$0]  %s758, 16, %s761, %s751
        $region80: #{forward.1} parent=39 // pred_fallthru
          _
        // Predicated region
        $region81: #{forward.1} parent=39 // pred_check
          %p764 = pneg %p368
        $region82: #{forward.1} parent=39 // pred_check_branch
          %766 = sbr.rel (%p764) target = $region84
        $region83: #{forward.1} parent=39 // pred_region
          %s767 = sand.u32 %s46, 1
          %s768 = scalar_lea.sflag [#allocation22], %s767
          %s769 = sand.u32 %s358, 1
          %s770 = scalar_lea.vmem [#allocation21], %s769
          %s772 = ssub.s32 16, 16
          %773 = vsyncadd %s768, %s772
          %s774 = smul.addr %s46, 16
          %s775 = scalar_lea.hbm %s12, %s774
          %s777 = sshll.u32 %s770, 4
          %s778 = int_to_ptr.vmem [resolvable:$true] %s777
          %780 = dma.hbm_to_vmem [thread:$0]  %s775, 16, %s778, %s768
        $region84: #{forward.1} parent=39 // pred_fallthru
          _
        // Predicated region
        $region85: #{forward.1} parent=39 // pred_check
          %p781 = pneg %p394
        $region86: #{forward.1} parent=39 // pred_check_branch
          %783 = sbr.rel (%p781) target = $region88
        $region87: #{forward.1} parent=39 // pred_region
          %s784 = sand.u32 %s46, 1
          %s785 = scalar_lea.sflag [#allocation22], %s784
          %s786 = sand.u32 %s384, 1
          %s787 = scalar_lea.vmem [#allocation23], %s786
          %s789 = ssub.s32 16, 16
          %790 = vsyncadd %s785, %s789
          %s791 = smul.addr %s46, 16
          %s792 = scalar_lea.hbm %s13, %s791
          %s794 = sshll.u32 %s787, 4
          %s795 = int_to_ptr.vmem [resolvable:$true] %s794
          %797 = dma.hbm_to_vmem [thread:$0]  %s792, 16, %s795, %s785
        $region88: #{forward.1} parent=39 // pred_fallthru
          _
      $region40: #{forward.1} parent=5 // pred_fallthru
        _
      %p798 = scmp.le.s32.totalorder 1, %s46
      %p799 = scmp.lt.s32.totalorder %s46, 3
      %p800 = pnand %p798, %p799
      %p801 = pneg %p800
      // Predicated region
      $region89: #{forward.1} parent=5 // pred_check
        _
      $region90: #{forward.1} parent=5 // pred_check_branch
        %803 = sbr.rel (%p800) target = $region92
      $region91: #{forward.1} parent=5 // pred_region
        %s804 = ssub.s32 %s46, 1
        // Predicated region
        $region93: #{forward.1} parent=91 // pred_check
          %p805 = pneg %p88
        $region94: #{forward.1} parent=91 // pred_check_branch
          %807 = sbr.rel (%p805) target = $region96
        $region95: #{forward.1} parent=91 // pred_region
          %808 = dma.done [#allocation4], 128
        $region96: #{forward.1} parent=91 // pred_fallthru
          _
        %s809 = sand.u32 %s51, 1
        %s810 = scalar_lea.sflag [#allocation7], %s809
        %s811 = sand.u32 %s101, 1
        %s812 = smul.addr %s811, 384
        %s813 = scalar_lea.vmem [#allocation6], %s812
        // Predicated region
        $region97: #{forward.1} parent=91 // pred_check
          %p814 = pneg %p114
        $region98: #{forward.1} parent=91 // pred_check_branch
          %816 = sbr.rel (%p814) target = $region100
        $region99: #{forward.1} parent=91 // pred_region
          %817 = dma.done %s810, 6144
        $region100: #{forward.1} parent=91 // pred_fallthru
          _
        %s818 = sand.u32 %s51, 1
        %s819 = scalar_lea.sflag [#allocation7], %s818
        %s820 = sand.u32 %s127, 1
        %s821 = smul.addr %s820, 3
        %s822 = scalar_lea.vmem [#allocation8], %s821
        // Predicated region
        $region101: #{forward.1} parent=91 // pred_check
          %p823 = pneg %p140
        $region102: #{forward.1} parent=91 // pred_check_branch
          %825 = sbr.rel (%p823) target = $region104
        $region103: #{forward.1} parent=91 // pred_region
          %826 = dma.done %s819, 48
        $region104: #{forward.1} parent=91 // pred_fallthru
          _
        %s827 = sand.u32 %s51, 1
        %s828 = scalar_lea.sflag [#allocation10], %s827
        %s829 = sand.u32 %s153, 1
        %s830 = smul.addr %s829, 128
        %s831 = scalar_lea.vmem [#allocation9], %s830
        // Predicated region
        $region105: #{forward.1} parent=91 // pred_check
          %p832 = pneg %p166
        $region106: #{forward.1} parent=91 // pred_check_branch
          %834 = sbr.rel (%p832) target = $region108
        $region107: #{forward.1} parent=91 // pred_region
          %835 = dma.done %s828, 2048
        $region108: #{forward.1} parent=91 // pred_fallthru
          _
        %s836 = sand.u32 %s51, 1
        %s837 = scalar_lea.sflag [#allocation10], %s836
        %s838 = sand.u32 %s179, 1
        %s839 = scalar_lea.vmem [#allocation11], %s838
        // Predicated region
        $region109: #{forward.1} parent=91 // pred_check
          %p840 = pneg %p192
        $region110: #{forward.1} parent=91 // pred_check_branch
          %842 = sbr.rel (%p840) target = $region112
        $region111: #{forward.1} parent=91 // pred_region
          %843 = dma.done %s837, 16
        $region112: #{forward.1} parent=91 // pred_fallthru
          _
        %s844 = sand.u32 %s51, 1
        %s845 = scalar_lea.sflag [#allocation13], %s844
        %s846 = sand.u32 %s205, 1
        %s847 = scalar_lea.vmem [#allocation12], %s846
        // Predicated region
        $region113: #{forward.1} parent=91 // pred_check
          %p848 = pneg %p218
        $region114: #{forward.1} parent=91 // pred_check_branch
          %850 = sbr.rel (%p848) target = $region116
        $region115: #{forward.1} parent=91 // pred_region
          %851 = dma.done %s845, 16
        $region116: #{forward.1} parent=91 // pred_fallthru
          _
        %s852 = sand.u32 %s51, 1
        %s853 = scalar_lea.sflag [#allocation13], %s852
        %s854 = sand.u32 %s231, 1
        %s855 = scalar_lea.vmem [#allocation14], %s854
        // Predicated region
        $region117: #{forward.1} parent=91 // pred_check
          %p856 = pneg %p244
        $region118: #{forward.1} parent=91 // pred_check_branch
          %858 = sbr.rel (%p856) target = $region120
        $region119: #{forward.1} parent=91 // pred_region
          %859 = dma.done %s853, 16
        $region120: #{forward.1} parent=91 // pred_fallthru
          _
        %s860 = sand.u32 %s51, 1
        %s861 = scalar_lea.sflag [#allocation16], %s860
        %s862 = sand.u32 %s257, 1
        %s863 = smul.addr %s862, 2048
        %s864 = scalar_lea.vmem [#allocation15], %s863
        // Predicated region
        $region121: #{forward.1} parent=91 // pred_check
          %p865 = pneg %p270
        $region122: #{forward.1} parent=91 // pred_check_branch
          %867 = sbr.rel (%p865) target = $region124
        $region123: #{forward.1} parent=91 // pred_region
          %868 = dma.done %s861, 32768
        $region124: #{forward.1} parent=91 // pred_fallthru
          _
        %s869 = sand.u32 %s51, 1
        %s870 = scalar_lea.sflag [#allocation16], %s869
        %s871 = sand.u32 %s283, 1
        %s872 = smul.addr %s871, 16
        %s873 = scalar_lea.vmem [#allocation17], %s872
        // Predicated region
        $region125: #{forward.1} parent=91 // pred_check
          %p874 = pneg %p296
        $region126: #{forward.1} parent=91 // pred_check_branch
          %876 = sbr.rel (%p874) target = $region128
        $region127: #{forward.1} parent=91 // pred_region
          %877 = dma.done %s870, 256
        $region128: #{forward.1} parent=91 // pred_fallthru
          _
        %s878 = sand.u32 %s51, 1
        %s879 = scalar_lea.sflag [#allocation19], %s878
        %s880 = sand.u32 %s309, 1
        %s881 = smul.addr %s880, 2048
        %s882 = scalar_lea.vmem [#allocation18], %s881
        // Predicated region
        $region129: #{forward.1} parent=91 // pred_check
          %p883 = pneg %p322
        $region130: #{forward.1} parent=91 // pred_check_branch
          %885 = sbr.rel (%p883) target = $region132
        $region131: #{forward.1} parent=91 // pred_region
          %886 = dma.done %s879, 32768
        $region132: #{forward.1} parent=91 // pred_fallthru
          _
        %s887 = sand.u32 %s51, 1
        %s888 = scalar_lea.sflag [#allocation19], %s887
        %s889 = sand.u32 %s335, 1
        %s890 = scalar_lea.vmem [#allocation20], %s889
        // Predicated region
        $region133: #{forward.1} parent=91 // pred_check
          %p891 = pneg %p348
        $region134: #{forward.1} parent=91 // pred_check_branch
          %893 = sbr.rel (%p891) target = $region136
        $region135: #{forward.1} parent=91 // pred_region
          %894 = dma.done %s888, 16
        $region136: #{forward.1} parent=91 // pred_fallthru
          _
        %s895 = sand.u32 %s51, 1
        %s896 = scalar_lea.sflag [#allocation22], %s895
        %s897 = sand.u32 %s361, 1
        %s898 = scalar_lea.vmem [#allocation21], %s897
        // Predicated region
        $region137: #{forward.1} parent=91 // pred_check
          %p899 = pneg %p374
        $region138: #{forward.1} parent=91 // pred_check_branch
          %901 = sbr.rel (%p899) target = $region140
        $region139: #{forward.1} parent=91 // pred_region
          %902 = dma.done %s896, 16
        $region140: #{forward.1} parent=91 // pred_fallthru
          _
        %s903 = sand.u32 %s51, 1
        %s904 = scalar_lea.sflag [#allocation22], %s903
        %s905 = sand.u32 %s387, 1
        %s906 = scalar_lea.vmem [#allocation23], %s905
        // Predicated region
        $region141: #{forward.1} parent=91 // pred_check
          %p907 = pneg %p400
        $region142: #{forward.1} parent=91 // pred_check_branch
          %909 = sbr.rel (%p907) target = $region144
        $region143: #{forward.1} parent=91 // pred_region
          %910 = dma.done %s904, 16
        $region144: #{forward.1} parent=91 // pred_fallthru
          _
        // Predicated region
        $region145: #{forward.1} parent=91 // pred_check
          %p911 = pneg %p421
        $region146: #{forward.1} parent=91 // pred_check_branch
          %913 = sbr.rel (%p911) target = $region148
        $region147: #{forward.1} parent=91 // pred_region
          %914 = dma.done [#allocation25], 16
        $region148: #{forward.1} parent=91 // pred_fallthru
          _
        // Predicated region
        $region149: #{forward.1} parent=91 // pred_check
          %p915 = pneg %p442
        $region150: #{forward.1} parent=91 // pred_check_branch
          %917 = sbr.rel (%p915) target = $region152
        $region151: #{forward.1} parent=91 // pred_region
          %918 = dma.done [#allocation25], 16
        $region152: #{forward.1} parent=91 // pred_fallthru
          _
        // Predicated region
        $region153: #{forward.1} parent=91 // pred_check
          %p919 = pneg %p484
        $region154: #{forward.1} parent=91 // pred_check_branch
          %921 = sbr.rel (%p919) target = $region156
        $region155: #{forward.1} parent=91 // pred_region
          %922 = dma.done [#allocation28], 16
        $region156: #{forward.1} parent=91 // pred_fallthru
          _
        %p923 = pneg %p67
        %p924 = pneg %p64
        %p925 = pneg %p88
        %p926 = pneg %p85
        %s927 = sand.u32 %s51, 1
        %s928 = scalar_lea.sflag [#allocation7], %s927
        %s929 = sand.u32 %s101, 1
        %s930 = smul.addr %s929, 384
        %s931 = scalar_lea.vmem [#allocation6], %s930
        %p932 = pneg %p114
        %p933 = pneg %p111
        %s934 = sand.u32 %s51, 1
        %s935 = scalar_lea.sflag [#allocation7], %s934
        %s936 = sand.u32 %s127, 1
        %s937 = smul.addr %s936, 3
        %s938 = scalar_lea.vmem [#allocation8], %s937
        %p939 = pneg %p140
        %p940 = pneg %p137
        %s941 = sand.u32 %s51, 1
        %s942 = scalar_lea.sflag [#allocation10], %s941
        %s943 = sand.u32 %s153, 1
        %s944 = smul.addr %s943, 128
        %s945 = scalar_lea.vmem [#allocation9], %s944
        %p946 = pneg %p166
        %p947 = pneg %p163
        %s948 = sand.u32 %s51, 1
        %s949 = scalar_lea.sflag [#allocation10], %s948
        %s950 = sand.u32 %s179, 1
        %s951 = scalar_lea.vmem [#allocation11], %s950
        %p952 = pneg %p192
        %p953 = pneg %p189
        %s954 = sand.u32 %s51, 1
        %s955 = scalar_lea.sflag [#allocation13], %s954
        %s956 = sand.u32 %s205, 1
        %s957 = scalar_lea.vmem [#allocation12], %s956
        %p958 = pneg %p218
        %p959 = pneg %p215
        %s960 = sand.u32 %s51, 1
        %s961 = scalar_lea.sflag [#allocation13], %s960
        %s962 = sand.u32 %s231, 1
        %s963 = scalar_lea.vmem [#allocation14], %s962
        %p964 = pneg %p244
        %p965 = pneg %p241
        %s966 = sand.u32 %s51, 1
        %s967 = scalar_lea.sflag [#allocation16], %s966
        %s968 = sand.u32 %s257, 1
        %s969 = smul.addr %s968, 2048
        %s970 = scalar_lea.vmem [#allocation15], %s969
        %p971 = pneg %p270
        %p972 = pneg %p267
        %s973 = sand.u32 %s51, 1
        %s974 = scalar_lea.sflag [#allocation16], %s973
        %s975 = sand.u32 %s283, 1
        %s976 = smul.addr %s975, 16
        %s977 = scalar_lea.vmem [#allocation17], %s976
        %p978 = pneg %p296
        %p979 = pneg %p293
        %s980 = sand.u32 %s51, 1
        %s981 = scalar_lea.sflag [#allocation19], %s980
        %s982 = sand.u32 %s309, 1
        %s983 = smul.addr %s982, 2048
        %s984 = scalar_lea.vmem [#allocation18], %s983
        %p985 = pneg %p322
        %p986 = pneg %p319
        %s987 = sand.u32 %s51, 1
        %s988 = scalar_lea.sflag [#allocation19], %s987
        %s989 = sand.u32 %s335, 1
        %s990 = scalar_lea.vmem [#allocation20], %s989
        %p991 = pneg %p348
        %p992 = pneg %p345
        %s993 = sand.u32 %s51, 1
        %s994 = scalar_lea.sflag [#allocation22], %s993
        %s995 = sand.u32 %s361, 1
        %s996 = scalar_lea.vmem [#allocation21], %s995
        %p997 = pneg %p374
        %p998 = pneg %p371
        %s999 = sand.u32 %s51, 1
        %s1000 = scalar_lea.sflag [#allocation22], %s999
        %s1001 = sand.u32 %s387, 1
        %s1002 = scalar_lea.vmem [#allocation23], %s1001
        %p1003 = pneg %p400
        %p1004 = pneg %p397
        %p1005 = pneg %p421
        %p1006 = pneg %p418
        %p1007 = pneg %p442
        %p1008 = pneg %p439
        %p1009 = pneg %p463
        %p1010 = pneg %p460
        %p1011 = pneg %p484
        %p1012 = pneg %p481
        %p1013 = pneg %p505
        %p1014 = pneg %p502
        %p1015 = scmp.eq.s32.totalorder %s51, 0
        // Predicated region
        $region157: #{forward.1} parent=91 // pred_check
          %p1016 = pneg %p1015
        $region158: #{forward.1} parent=91 // pred_check_branch
          %1018 = sbr.rel (%p1016) target = $region160
        $region159: #{forward.1} parent=91 // pred_region
          %v1019 = vld [vmem:[#allocation3] sm:$0xff]
          %v1020 = vld [vmem:[%s0] sm:$0xff]
          %v1021 = vld [vmem:[%s0 + $0x8] sm:$0xff]
          %v1022 = vmul.f32 %v1020, 2.0
          %v1023 = vmul.f32 %v1021, 2.0
          %v1024 = vadd.f32 %v1022, %v1019
          %v1025 = vadd.f32 %v1023, %v1019
          %1026 = vst [vmem:[#allocation2] sm:$0xff] %v1024
          %1027 = vst [vmem:[#allocation2 + $0x8] sm:$0xff] %v1025
        $region160: #{forward.1} parent=91 // pred_fallthru
          _
        %v1028 = vld [vmem:[#allocation2] sm:$0xff]
        %v1029 = vld [vmem:[#allocation2 + $0x8] sm:$0xff]
        %v1030 = vld [vmem:[%s813] sm:$0xff]
        %v1031 = vld [vmem:[%s813 + $0x8] sm:$0xff]
        %v1032 = vld [vmem:[%s813 + $0x10] sm:$0xff]
        %v1033 = vld [vmem:[%s813 + $0x18] sm:$0xff]
        %v1034 = vld [vmem:[%s813 + $0x20] sm:$0xff]
        %v1035 = vld [vmem:[%s813 + $0x28] sm:$0xff]
        %v1036 = vld [vmem:[%s813 + $0x30] sm:$0xff]
        %v1037 = vld [vmem:[%s813 + $0x38] sm:$0xff]
        %v1038 = vld [vmem:[%s813 + $0x40] sm:$0xff]
        %v1039 = vld [vmem:[%s813 + $0x48] sm:$0xff]
        %v1040 = vld [vmem:[%s813 + $0x50] sm:$0xff]
        %v1041 = vld [vmem:[%s813 + $0x58] sm:$0xff]
        %v1042 = vld [vmem:[%s813 + $0x60] sm:$0xff]
        %v1043 = vld [vmem:[%s813 + $0x68] sm:$0xff]
        %v1044 = vld [vmem:[%s813 + $0x70] sm:$0xff]
        %v1045 = vld [vmem:[%s813 + $0x78] sm:$0xff]
        %v1046 = vld [vmem:[%s813 + $0x80] sm:$0xff]
        %v1047 = vld [vmem:[%s813 + $0x88] sm:$0xff]
        %v1048 = vld [vmem:[%s813 + $0x90] sm:$0xff]
        %v1049 = vld [vmem:[%s813 + $0x98] sm:$0xff]
        %v1050 = vld [vmem:[%s813 + $0xa0] sm:$0xff]
        %v1051 = vld [vmem:[%s813 + $0xa8] sm:$0xff]
        %v1052 = vld [vmem:[%s813 + $0xb0] sm:$0xff]
        %v1053 = vld [vmem:[%s813 + $0xb8] sm:$0xff]
        %v1054 = vld [vmem:[%s813 + $0xc0] sm:$0xff]
        %v1055 = vld [vmem:[%s813 + $0xc8] sm:$0xff]
        %v1056 = vld [vmem:[%s813 + $0xd0] sm:$0xff]
        %v1057 = vld [vmem:[%s813 + $0xd8] sm:$0xff]
        %v1058 = vld [vmem:[%s813 + $0xe0] sm:$0xff]
        %v1059 = vld [vmem:[%s813 + $0xe8] sm:$0xff]
        %v1060 = vld [vmem:[%s813 + $0xf0] sm:$0xff]
        %v1061 = vld [vmem:[%s813 + $0xf8] sm:$0xff]
        %v1062 = vld [vmem:[%s813 + $0x100] sm:$0xff]
        %v1063 = vld [vmem:[%s813 + $0x108] sm:$0xff]
        %v1064 = vld [vmem:[%s813 + $0x110] sm:$0xff]
        %v1065 = vld [vmem:[%s813 + $0x118] sm:$0xff]
        %v1066 = vld [vmem:[%s813 + $0x120] sm:$0xff]
        %v1067 = vld [vmem:[%s813 + $0x128] sm:$0xff]
        %v1068 = vld [vmem:[%s813 + $0x130] sm:$0xff]
        %v1069 = vld [vmem:[%s813 + $0x138] sm:$0xff]
        %v1070 = vld [vmem:[%s813 + $0x140] sm:$0xff]
        %v1071 = vld [vmem:[%s813 + $0x148] sm:$0xff]
        %v1072 = vld [vmem:[%s813 + $0x150] sm:$0xff]
        %v1073 = vld [vmem:[%s813 + $0x158] sm:$0xff]
        %v1074 = vld [vmem:[%s813 + $0x160] sm:$0xff]
        %v1075 = vld [vmem:[%s813 + $0x168] sm:$0xff]
        %v1076 = vld [vmem:[%s813 + $0x170] sm:$0xff]
        %v1077 = vld [vmem:[%s813 + $0x178] sm:$0xff]
        %v1078 = vld [vmem:[%s822] sm:$0x7]
        %v1080 = vlaneseq
        %v1081 = vshrl.u32 %v1080, 7
        %v1082 = vsub.s32 0, %v1081
        %v1083 = vrot.slane %v1078, %v1082
        %v1084 = vlaneseq
        %v1085 = vshrl.u32 %v1084, 7
        %v1086 = vsub.s32 1, %v1085
        %v1087 = vrot.slane %v1078, %v1086
        %v1088 = vlaneseq
        %v1089 = vshrl.u32 %v1088, 7
        %v1090 = vsub.s32 2, %v1089
        %v1091 = vrot.slane %v1078, %v1090
        %1095 = vmatprep.subr.mxu0 %v1031
        %1096 = vmatpush1.msra.mxu0 %v1030
        %1097 = vmatprep.subr.mxu0 %v1034
        %1098 = vmatpush1.msra.mxu0 %v1033
        %1099 = vmatprep.subr.mxu0 %v1037
        %1100 = vmatpush1.msra.mxu0 %v1036
        %1101 = vmatprep.subr.mxu0 %v1040
        %1102 = vmatpush1.msra.mxu0 %v1039
        %1103 = vmatprep.subr.mxu0 %v1043
        %1104 = vmatpush1.msra.mxu0 %v1042
        %1105 = vmatprep.subr.mxu0 %v1046
        %1106 = vmatpush1.msra.mxu0 %v1045
        %1107 = vmatprep.subr.mxu0 %v1049
        %1108 = vmatpush1.msra.mxu0 %v1048
        %1109 = vmatprep.subr.mxu0 %v1052
        %1110 = vmatpush1.msra.mxu0 %v1051
        %1111 = vmatprep.subr.mxu0 %v1055
        %1112 = vmatpush1.msra.mxu0 %v1054
        %1113 = vmatprep.subr.mxu0 %v1058
        %1114 = vmatpush1.msra.mxu0 %v1057
        %1115 = vmatprep.subr.mxu0 %v1061
        %1116 = vmatpush1.msra.mxu0 %v1060
        %1117 = vmatprep.subr.mxu0 %v1064
        %1118 = vmatpush1.msra.mxu0 %v1063
        %1119 = vmatprep.subr.mxu0 %v1067
        %1120 = vmatpush1.msra.mxu0 %v1066
        %1121 = vmatprep.subr.mxu0 %v1070
        %1122 = vmatpush1.msra.mxu0 %v1069
        %1123 = vmatprep.subr.mxu0 %v1073
        %1124 = vmatpush1.msra.mxu0 %v1072
        %1125 = vmatprep.subr.mxu0 %v1076
        %1126 = vmatpush1.msra.mxu0 %v1075
        %1127 = vmatprep.subr.mxu0 0.0
        %1128 = vmatpush1.msra.mxu0 0.0
        %1129 = vmatprep.subr.mxu0 0.0
        %1130 = vmatpush1.msra.mxu0 0.0
        %1131 = vmatprep.subr.mxu0 0.0
        %1132 = vmatpush1.msra.mxu0 0.0
        %1133 = vmatprep.subr.mxu0 0.0
        %1134 = vmatpush1.msra.mxu0 0.0
        %1135 = vmatprep.subr.mxu0 0.0
        %1136 = vmatpush1.msra.mxu0 0.0
        %1137 = vmatprep.subr.mxu0 0.0
        %1138 = vmatpush1.msra.mxu0 0.0
        %1139 = vmatprep.subr.mxu0 0.0
        %1140 = vmatpush1.msra.mxu0 0.0
        %1141 = vmatprep.subr.mxu0 0.0
        %1142 = vmatpush1.msra.mxu0 0.0
        %1143 = vmatprep.subr.mxu0 0.0
        %1144 = vmatpush1.msra.mxu0 0.0
        %1145 = vmatprep.subr.mxu0 0.0
        %1146 = vmatpush1.msra.mxu0 0.0
        %1147 = vmatprep.subr.mxu0 0.0
        %1148 = vmatpush1.msra.mxu0 0.0
        %1149 = vmatprep.subr.mxu0 0.0
        %1150 = vmatpush1.msra.mxu0 0.0
        %1151 = vmatprep.subr.mxu0 0.0
        %1152 = vmatpush1.msra.mxu0 0.0
        %1153 = vmatprep.subr.mxu0 0.0
        %1154 = vmatpush1.msra.mxu0 0.0
        %1155 = vmatprep.subr.mxu0 0.0
        %1156 = vmatpush1.msra.mxu0 0.0
        %1157 = vmatprep.subr.mxu0 0.0
        %1158 = vmatpush1.msra.mxu0 0.0
        %1159 = vmatprep.mubr.f32.mxu0 0.0
        %1160 = vmatmul.mubr.f32.gmra.mrb[0].mxu0 %v1028
        %v1161 = vpop.f32.mrb[0].mxu0
        %v1162 = vadd.f32 %v1083, %v1161
        %v1163 = vpop.f32.mrb[0].mxu0
        %v1164 = vadd.f32 %v1087, %v1163
        %1165 = vmatprep.mubr.f32.mxu0 0.0
        %1166 = vmatmul.mubr.f32.gmra.mrb[0].mxu0 %v1029
        %v1167 = vpop.f32.mrb[0].mxu0
        %v1168 = vadd.f32 %v1083, %v1167
        %v1169 = vpop.f32.mrb[0].mxu0
        %v1170 = vadd.f32 %v1087, %v1169
        %1171 = vdwg.mxu0
        %1172 = vmatprep.subr.mxu0 0.0
        %1173 = vmatpush1.msra.mxu0 %v1032
        %1174 = vmatprep.subr.mxu0 0.0
        %1175 = vmatpush1.msra.mxu0 %v1035
        %1176 = vmatprep.subr.mxu0 0.0
        %1177 = vmatpush1.msra.mxu0 %v1038
        %1178 = vmatprep.subr.mxu0 0.0
        %1179 = vmatpush1.msra.mxu0 %v1041
        %1180 = vmatprep.subr.mxu0 0.0
        %1181 = vmatpush1.msra.mxu0 %v1044
        %1182 = vmatprep.subr.mxu0 0.0
        %1183 = vmatpush1.msra.mxu0 %v1047
        %1184 = vmatprep.subr.mxu0 0.0
        %1185 = vmatpush1.msra.mxu0 %v1050
        %1186 = vmatprep.subr.mxu0 0.0
        %1187 = vmatpush1.msra.mxu0 %v1053
        %1188 = vmatprep.subr.mxu0 0.0
        %1189 = vmatpush1.msra.mxu0 %v1056
        %1190 = vmatprep.subr.mxu0 0.0
        %1191 = vmatpush1.msra.mxu0 %v1059
        %1192 = vmatprep.subr.mxu0 0.0
        %1193 = vmatpush1.msra.mxu0 %v1062
        %1194 = vmatprep.subr.mxu0 0.0
        %1195 = vmatpush1.msra.mxu0 %v1065
        %1196 = vmatprep.subr.mxu0 0.0
        %1197 = vmatpush1.msra.mxu0 %v1068
        %1198 = vmatprep.subr.mxu0 0.0
        %1199 = vmatpush1.msra.mxu0 %v1071
        %1200 = vmatprep.subr.mxu0 0.0
        %1201 = vmatpush1.msra.mxu0 %v1074
        %1202 = vmatprep.subr.mxu0 0.0
        %1203 = vmatpush1.msra.mxu0 %v1077
        %1204 = vmatprep.subr.mxu0 0.0
        %1205 = vmatpush1.msra.mxu0 0.0
        %1206 = vmatprep.subr.mxu0 0.0
        %1207 = vmatpush1.msra.mxu0 0.0
        %1208 = vmatprep.subr.mxu0 0.0
        %1209 = vmatpush1.msra.mxu0 0.0
        %1210 = vmatprep.subr.mxu0 0.0
        %1211 = vmatpush1.msra.mxu0 0.0
        %1212 = vmatprep.subr.mxu0 0.0
        %1213 = vmatpush1.msra.mxu0 0.0
        %1214 = vmatprep.subr.mxu0 0.0
        %1215 = vmatpush1.msra.mxu0 0.0
        %1216 = vmatprep.subr.mxu0 0.0
        %1217 = vmatpush1.msra.mxu0 0.0
        %1218 = vmatprep.subr.mxu0 0.0
        %1219 = vmatpush1.msra.mxu0 0.0
        %1220 = vmatprep.subr.mxu0 0.0
        %1221 = vmatpush1.msra.mxu0 0.0
        %1222 = vmatprep.subr.mxu0 0.0
        %1223 = vmatpush1.msra.mxu0 0.0
        %1224 = vmatprep.subr.mxu0 0.0
        %1225 = vmatpush1.msra.mxu0 0.0
        %1226 = vmatprep.subr.mxu0 0.0
        %1227 = vmatpush1.msra.mxu0 0.0
        %1228 = vmatprep.subr.mxu0 0.0
        %1229 = vmatpush1.msra.mxu0 0.0
        %1230 = vmatprep.subr.mxu0 0.0
        %1231 = vmatpush1.msra.mxu0 0.0
        %1232 = vmatprep.subr.mxu0 0.0
        %1233 = vmatpush1.msra.mxu0 0.0
        %1234 = vmatprep.subr.mxu0 0.0
        %1235 = vmatpush1.msra.mxu0 0.0
        %1236 = vmatprep.mubr.f32.mxu0 0.0
        %1237 = vmatmul.mubr.f32.gmra.mrb[0].mxu0 %v1028
        %v1238 = vpop.f32.mrb[0].mxu0
        %v1239 = vadd.f32 %v1091, %v1238
        %v1240 = vpop.f32.mrb[0].mxu0
        %1241 = vmatprep.mubr.f32.mxu0 0.0
        %1242 = vmatmul.mubr.f32.gmra.mrb[0].mxu0 %v1029
        %v1243 = vpop.f32.mrb[0].mxu0
        %v1244 = vadd.f32 %v1091, %v1243
        %v1245 = vpop.f32.mrb[0].mxu0
        %1246 = vdwg.mxu0
        %vm1247 = vcmask 130048
        %v1249 = vsel %vm1247, %v1162, 0
        %v1252 = vsel %vm1247, %v1164, 0
        %1254 = vmatprep.subr.mxu0 0.0
        %1255 = vmatpush1.xpose.msra.mxu0 %v1252
        %1256 = vmatprep.subr.mxu0 0.0
        %1257 = vmatpush1.xpose.msra.mxu0 0.0
        %1258 = vmatprep.subr.mxu0 0.0
        %1259 = vmatpush1.xpose.msra.mxu0 0.0
        %1260 = vmatprep.subr.mxu0 0.0
        %1261 = vmatpush1.xpose.msra.mxu0 0.0
        %1262 = vmatprep.subr.mxu0 0.0
        %1263 = vmatpush1.xpose.msra.mxu0 0.0
        %1264 = vmatprep.subr.mxu0 0.0
        %1265 = vmatpush1.xpose.msra.mxu0 0.0
        %1266 = vmatprep.subr.mxu0 0.0
        %1267 = vmatpush1.xpose.msra.mxu0 0.0
        %1268 = vmatprep.subr.mxu0 0.0
        %1269 = vmatpush1.xpose.msra.mxu0 0.0
        %1270 = vmatprep.subr.mxu0 0.0
        %1271 = vmatpush1.xpose.msra.mxu0 0.0
        %1272 = vmatprep.subr.mxu0 0.0
        %1273 = vmatpush1.xpose.msra.mxu0 0.0
        %1274 = vmatprep.subr.mxu0 0.0
        %1275 = vmatpush1.xpose.msra.mxu0 0.0
        %1276 = vmatprep.subr.mxu0 0.0
        %1277 = vmatpush1.xpose.msra.mxu0 0.0
        %1278 = vmatprep.subr.mxu0 0.0
        %1279 = vmatpush1.xpose.msra.mxu0 0.0
        %1280 = vmatprep.subr.mxu0 0.0
        %1281 = vmatpush1.xpose.msra.mxu0 0.0
        %1282 = vmatprep.subr.mxu0 0.0
        %1283 = vmatpush1.xpose.msra.mxu0 0.0
        %1284 = vmatprep.subr.mxu0 0.0
        %1285 = vmatpush1.xpose.msra.mxu0 0.0
        %1286 = vmatprep.subr.mxu0 0.0
        %1287 = vmatpush1.xpose.msra.mxu0 0.0
        %1288 = vmatprep.subr.mxu0 0.0
        %1289 = vmatpush1.xpose.msra.mxu0 0.0
        %1290 = vmatprep.subr.mxu0 0.0
        %1291 = vmatpush1.xpose.msra.mxu0 0.0
        %1292 = vmatprep.subr.mxu0 0.0
        %1293 = vmatpush1.xpose.msra.mxu0 0.0
        %1294 = vmatprep.subr.mxu0 0.0
        %1295 = vmatpush1.xpose.msra.mxu0 0.0
        %1296 = vmatprep.subr.mxu0 0.0
        %1297 = vmatpush1.xpose.msra.mxu0 0.0
        %1298 = vmatprep.subr.mxu0 0.0
        %1299 = vmatpush1.xpose.msra.mxu0 0.0
        %1300 = vmatprep.subr.mxu0 0.0
        %1301 = vmatpush1.xpose.msra.mxu0 0.0
        %1302 = vmatprep.subr.mxu0 0.0
        %1303 = vmatpush1.xpose.msra.mxu0 0.0
        %1304 = vmatprep.subr.mxu0 0.0
        %1305 = vmatpush1.xpose.msra.mxu0 0.0
        %1306 = vmatprep.subr.mxu0 0.0
        %1307 = vmatpush1.xpose.msra.mxu0 0.0
        %1308 = vmatprep.subr.mxu0 0.0
        %1309 = vmatpush1.xpose.msra.mxu0 0.0
        %1310 = vmatprep.subr.mxu0 0.0
        %1311 = vmatpush1.xpose.msra.mxu0 0.0
        %1312 = vmatprep.subr.mxu0 0.0
        %1313 = vmatpush1.xpose.msra.mxu0 0.0
        %1314 = vmatprep.subr.mxu0 0.0
        %1315 = vmatpush1.xpose.msra.mxu0 0.0
        %1316 = vmatprep.subr.mxu0 0.0
        %1317 = vmatpush1.xpose.msra.mxu0 0.0
        %1318 = vmatprep.mubr.f32.mxu0 0.0
        %1319 = vmatmul.mubr.f32.gmra.mrb[0].mxu0 %v1249
        %v1320 = vpop.f32.mrb[0].mxu0
        %v1321 = vadd.f32 0.0, %v1320
        %v1322 = vpop.f32.mrb[0].mxu0
        %1323 = vdwg.mxu0
        %v1324 = vmul.f32 %v1321, 0.25
        %vm1325 = vcmask 64512
        %v1326 = vsel %vm1325, %v1324, -inf
        %1327 = vmax.xlane.f32.xlu0 %v1326
        %v1328 = vpop.xlane.xlu0 %1327
        %v1329 = vsub.f32 %v1324, %v1328
        %v1330 = vmul.f32 %v1329, 1.442695
        %v1331 = vpow.pop %v1330
        %v1332 = vsel %vm1325, %v1331, 0.0
        %1333 = vadd.xlane.f32.xlu0 %v1332
        %v1334 = vpop.xlane.xlu0 %1333
        %v1335 = vrcp.pop %v1334
        %v1336 = vmul.f32 %v1331, %v1335
        %v1338 = vsel %vm1325, %v1336, 0
        %1340 = vmatprep.subr.mxu0 0.0
        %1341 = vmatpush1.msra.mxu0 %v1239
        %1342 = vmatprep.subr.mxu0 0.0
        %1343 = vmatpush1.msra.mxu0 0.0
        %1344 = vmatprep.subr.mxu0 0.0
        %1345 = vmatpush1.msra.mxu0 0.0
        %1346 = vmatprep.subr.mxu0 0.0
        %1347 = vmatpush1.msra.mxu0 0.0
        %1348 = vmatprep.subr.mxu0 0.0
        %1349 = vmatpush1.msra.mxu0 0.0
        %1350 = vmatprep.subr.mxu0 0.0
        %1351 = vmatpush1.msra.mxu0 0.0
        %1352 = vmatprep.subr.mxu0 0.0
        %1353 = vmatpush1.msra.mxu0 0.0
        %1354 = vmatprep.subr.mxu0 0.0
        %1355 = vmatpush1.msra.mxu0 0.0
        %1356 = vmatprep.subr.mxu0 0.0
        %1357 = vmatpush1.msra.mxu0 0.0
        %1358 = vmatprep.subr.mxu0 0.0
        %1359 = vmatpush1.msra.mxu0 0.0
        %1360 = vmatprep.subr.mxu0 0.0
        %1361 = vmatpush1.msra.mxu0 0.0
        %1362 = vmatprep.subr.mxu0 0.0
        %1363 = vmatpush1.msra.mxu0 0.0
        %1364 = vmatprep.subr.mxu0 0.0
        %1365 = vmatpush1.msra.mxu0 0.0
        %1366 = vmatprep.subr.mxu0 0.0
        %1367 = vmatpush1.msra.mxu0 0.0
        %1368 = vmatprep.subr.mxu0 0.0
        %1369 = vmatpush1.msra.mxu0 0.0
        %1370 = vmatprep.subr.mxu0 0.0
        %1371 = vmatpush1.msra.mxu0 0.0
        %1372 = vmatprep.subr.mxu0 0.0
        %1373 = vmatpush1.msra.mxu0 0.0
        %1374 = vmatprep.subr.mxu0 0.0
        %1375 = vmatpush1.msra.mxu0 0.0
        %1376 = vmatprep.subr.mxu0 0.0
        %1377 = vmatpush1.msra.mxu0 0.0
        %1378 = vmatprep.subr.mxu0 0.0
        %1379 = vmatpush1.msra.mxu0 0.0
        %1380 = vmatprep.subr.mxu0 0.0
        %1381 = vmatpush1.msra.mxu0 0.0
        %1382 = vmatprep.subr.mxu0 0.0
        %1383 = vmatpush1.msra.mxu0 0.0
        %1384 = vmatprep.subr.mxu0 0.0
        %1385 = vmatpush1.msra.mxu0 0.0
        %1386 = vmatprep.subr.mxu0 0.0
        %1387 = vmatpush1.msra.mxu0 0.0
        %1388 = vmatprep.subr.mxu0 0.0
        %1389 = vmatpush1.msra.mxu0 0.0
        %1390 = vmatprep.subr.mxu0 0.0
        %1391 = vmatpush1.msra.mxu0 0.0
        %1392 = vmatprep.subr.mxu0 0.0
        %1393 = vmatpush1.msra.mxu0 0.0
        %1394 = vmatprep.subr.mxu0 0.0
        %1395 = vmatpush1.msra.mxu0 0.0
        %1396 = vmatprep.subr.mxu0 0.0
        %1397 = vmatpush1.msra.mxu0 0.0
        %1398 = vmatprep.subr.mxu0 0.0
        %1399 = vmatpush1.msra.mxu0 0.0
        %1400 = vmatprep.subr.mxu0 0.0
        %1401 = vmatpush1.msra.mxu0 0.0
        %1402 = vmatprep.subr.mxu0 0.0
        %1403 = vmatpush1.msra.mxu0 0.0
        %1404 = vmatprep.mubr.f32.mxu0 0.0
        %1405 = vmatmul.mubr.f32.gmra.mrb[0].mxu0 %v1338
        %v1406 = vpop.f32.mrb[0].mxu0
        %v1407 = vadd.f32 0.0, %v1406
        %v1408 = vpop.f32.mrb[0].mxu0
        %1409 = vdwg.mxu0
        %1410 = vrot.lane.b32.xlu0 %v1162, 112
        %v1411 = vpop.permute.xlu0 %1410
        %1412 = vrot.lane.b32.xlu0 %v1164, 112
        %v1413 = vpop.permute.xlu0 %1412
        %v1414 = vsel %vm1247, %v1411, 0
        %v1416 = vsel %vm1247, %v1413, 0
        %1418 = vmatprep.subr.mxu0 0.0
        %1419 = vmatpush1.xpose.msra.mxu0 %v1416
        %1420 = vmatprep.subr.mxu0 0.0
        %1421 = vmatpush1.xpose.msra.mxu0 0.0
        %1422 = vmatprep.subr.mxu0 0.0
        %1423 = vmatpush1.xpose.msra.mxu0 0.0
        %1424 = vmatprep.subr.mxu0 0.0
        %1425 = vmatpush1.xpose.msra.mxu0 0.0
        %1426 = vmatprep.subr.mxu0 0.0
        %1427 = vmatpush1.xpose.msra.mxu0 0.0
        %1428 = vmatprep.subr.mxu0 0.0
        %1429 = vmatpush1.xpose.msra.mxu0 0.0
        %1430 = vmatprep.subr.mxu0 0.0
        %1431 = vmatpush1.xpose.msra.mxu0 0.0
        %1432 = vmatprep.subr.mxu0 0.0
        %1433 = vmatpush1.xpose.msra.mxu0 0.0
        %1434 = vmatprep.subr.mxu0 0.0
        %1435 = vmatpush1.xpose.msra.mxu0 0.0
        %1436 = vmatprep.subr.mxu0 0.0
        %1437 = vmatpush1.xpose.msra.mxu0 0.0
        %1438 = vmatprep.subr.mxu0 0.0
        %1439 = vmatpush1.xpose.msra.mxu0 0.0
        %1440 = vmatprep.subr.mxu0 0.0
        %1441 = vmatpush1.xpose.msra.mxu0 0.0
        %1442 = vmatprep.subr.mxu0 0.0
        %1443 = vmatpush1.xpose.msra.mxu0 0.0
        %1444 = vmatprep.subr.mxu0 0.0
        %1445 = vmatpush1.xpose.msra.mxu0 0.0
        %1446 = vmatprep.subr.mxu0 0.0
        %1447 = vmatpush1.xpose.msra.mxu0 0.0
        %1448 = vmatprep.subr.mxu0 0.0
        %1449 = vmatpush1.xpose.msra.mxu0 0.0
        %1450 = vmatprep.subr.mxu0 0.0
        %1451 = vmatpush1.xpose.msra.mxu0 0.0
        %1452 = vmatprep.subr.mxu0 0.0
        %1453 = vmatpush1.xpose.msra.mxu0 0.0
        %1454 = vmatprep.subr.mxu0 0.0
        %1455 = vmatpush1.xpose.msra.mxu0 0.0
        %1456 = vmatprep.subr.mxu0 0.0
        %1457 = vmatpush1.xpose.msra.mxu0 0.0
        %1458 = vmatprep.subr.mxu0 0.0
        %1459 = vmatpush1.xpose.msra.mxu0 0.0
        %1460 = vmatprep.subr.mxu0 0.0
        %1461 = vmatpush1.xpose.msra.mxu0 0.0
        %1462 = vmatprep.subr.mxu0 0.0
        %1463 = vmatpush1.xpose.msra.mxu0 0.0
        %1464 = vmatprep.subr.mxu0 0.0
        %1465 = vmatpush1.xpose.msra.mxu0 0.0
        %1466 = vmatprep.subr.mxu0 0.0
        %1467 = vmatpush1.xpose.msra.mxu0 0.0
        %1468 = vmatprep.subr.mxu0 0.0
        %1469 = vmatpush1.xpose.msra.mxu0 0.0
        %1470 = vmatprep.subr.mxu0 0.0
        %1471 = vmatpush1.xpose.msra.mxu0 0.0
        %1472 = vmatprep.subr.mxu0 0.0
        %1473 = vmatpush1.xpose.msra.mxu0 0.0
        %1474 = vmatprep.subr.mxu0 0.0
        %1475 = vmatpush1.xpose.msra.mxu0 0.0
        %1476 = vmatprep.subr.mxu0 0.0
        %1477 = vmatpush1.xpose.msra.mxu0 0.0
        %1478 = vmatprep.subr.mxu0 0.0
        %1479 = vmatpush1.xpose.msra.mxu0 0.0
        %1480 = vmatprep.subr.mxu0 0.0
        %1481 = vmatpush1.xpose.msra.mxu0 0.0
        %1482 = vmatprep.mubr.f32.mxu0 0.0
        %1483 = vmatmul.mubr.f32.gmra.mrb[0].mxu0 %v1414
        %v1484 = vpop.f32.mrb[0].mxu0
        %v1485 = vadd.f32 0.0, %v1484
        %v1486 = vpop.f32.mrb[0].mxu0
        %1487 = vdwg.mxu0
        %v1488 = vmul.f32 %v1485, 0.25
        %v1489 = vsel %vm1325, %v1488, -inf
        %1490 = vmax.xlane.f32.xlu0 %v1489
        %v1491 = vpop.xlane.xlu0 %1490
        %v1492 = vsub.f32 %v1488, %v1491
        %v1493 = vmul.f32 %v1492, 1.442695
        %v1494 = vpow.pop %v1493
        %v1495 = vsel %vm1325, %v1494, 0.0
        %1496 = vadd.xlane.f32.xlu0 %v1495
        %v1497 = vpop.xlane.xlu0 %1496
        %v1498 = vrcp.pop %v1497
        %v1499 = vmul.f32 %v1494, %v1498
        %1501 = vrot.lane.b32.xlu0 %v1239, 112
        %v1502 = vpop.permute.xlu0 %1501
        %v1505 = vsel %vm1325, %v1499, 0
        %1507 = vmatprep.subr.mxu0 0.0
        %1508 = vmatpush1.msra.mxu0 %v1502
        %1509 = vmatprep.subr.mxu0 0.0
        %1510 = vmatpush1.msra.mxu0 0.0
        %1511 = vmatprep.subr.mxu0 0.0
        %1512 = vmatpush1.msra.mxu0 0.0
        %1513 = vmatprep.subr.mxu0 0.0
        %1514 = vmatpush1.msra.mxu0 0.0
        %1515 = vmatprep.subr.mxu0 0.0
        %1516 = vmatpush1.msra.mxu0 0.0
        %1517 = vmatprep.subr.mxu0 0.0
        %1518 = vmatpush1.msra.mxu0 0.0
        %1519 = vmatprep.subr.mxu0 0.0
        %1520 = vmatpush1.msra.mxu0 0.0
        %1521 = vmatprep.subr.mxu0 0.0
        %1522 = vmatpush1.msra.mxu0 0.0
        %1523 = vmatprep.subr.mxu0 0.0
        %1524 = vmatpush1.msra.mxu0 0.0
        %1525 = vmatprep.subr.mxu0 0.0
        %1526 = vmatpush1.msra.mxu0 0.0
        %1527 = vmatprep.subr.mxu0 0.0
        %1528 = vmatpush1.msra.mxu0 0.0
        %1529 = vmatprep.subr.mxu0 0.0
        %1530 = vmatpush1.msra.mxu0 0.0
        %1531 = vmatprep.subr.mxu0 0.0
        %1532 = vmatpush1.msra.mxu0 0.0
        %1533 = vmatprep.subr.mxu0 0.0
        %1534 = vmatpush1.msra.mxu0 0.0
        %1535 = vmatprep.subr.mxu0 0.0
        %1536 = vmatpush1.msra.mxu0 0.0
        %1537 = vmatprep.subr.mxu0 0.0
        %1538 = vmatpush1.msra.mxu0 0.0
        %1539 = vmatprep.subr.mxu0 0.0
        %1540 = vmatpush1.msra.mxu0 0.0
        %1541 = vmatprep.subr.mxu0 0.0
        %1542 = vmatpush1.msra.mxu0 0.0
        %1543 = vmatprep.subr.mxu0 0.0
        %1544 = vmatpush1.msra.mxu0 0.0
        %1545 = vmatprep.subr.mxu0 0.0
        %1546 = vmatpush1.msra.mxu0 0.0
        %1547 = vmatprep.subr.mxu0 0.0
        %1548 = vmatpush1.msra.mxu0 0.0
        %1549 = vmatprep.subr.mxu0 0.0
        %1550 = vmatpush1.msra.mxu0 0.0
        %1551 = vmatprep.subr.mxu0 0.0
        %1552 = vmatpush1.msra.mxu0 0.0
        %1553 = vmatprep.subr.mxu0 0.0
        %1554 = vmatpush1.msra.mxu0 0.0
        %1555 = vmatprep.subr.mxu0 0.0
        %1556 = vmatpush1.msra.mxu0 0.0
        %1557 = vmatprep.subr.mxu0 0.0
        %1558 = vmatpush1.msra.mxu0 0.0
        %1559 = vmatprep.subr.mxu0 0.0
        %1560 = vmatpush1.msra.mxu0 0.0
        %1561 = vmatprep.subr.mxu0 0.0
        %1562 = vmatpush1.msra.mxu0 0.0
        %1563 = vmatprep.subr.mxu0 0.0
        %1564 = vmatpush1.msra.mxu0 0.0
        %1565 = vmatprep.subr.mxu0 0.0
        %1566 = vmatpush1.msra.mxu0 0.0
        %1567 = vmatprep.subr.mxu0 0.0
        %1568 = vmatpush1.msra.mxu0 0.0
        %1569 = vmatprep.subr.mxu0 0.0
        %1570 = vmatpush1.msra.mxu0 0.0
        %1571 = vmatprep.mubr.f32.mxu0 0.0
        %1572 = vmatmul.mubr.f32.gmra.mrb[0].mxu0 %v1505
        %v1573 = vpop.f32.mrb[0].mxu0
        %v1574 = vadd.f32 0.0, %v1573
        %v1575 = vpop.f32.mrb[0].mxu0
        %1576 = vdwg.mxu0
        %1577 = vrot.lane.b32.xlu0 %v1162, 96
        %v1578 = vpop.permute.xlu0 %1577
        %1579 = vrot.lane.b32.xlu0 %v1164, 96
        %v1580 = vpop.permute.xlu0 %1579
        %v1581 = vsel %vm1247, %v1578, 0
        %v1583 = vsel %vm1247, %v1580, 0
        %1585 = vmatprep.subr.mxu0 0.0
        %1586 = vmatpush1.xpose.msra.mxu0 %v1583
        %1587 = vmatprep.subr.mxu0 0.0
        %1588 = vmatpush1.xpose.msra.mxu0 0.0
        %1589 = vmatprep.subr.mxu0 0.0
        %1590 = vmatpush1.xpose.msra.mxu0 0.0
        %1591 = vmatprep.subr.mxu0 0.0
        %1592 = vmatpush1.xpose.msra.mxu0 0.0
        %1593 = vmatprep.subr.mxu0 0.0
        %1594 = vmatpush1.xpose.msra.mxu0 0.0
        %1595 = vmatprep.subr.mxu0 0.0
        %1596 = vmatpush1.xpose.msra.mxu0 0.0
        %1597 = vmatprep.subr.mxu0 0.0
        %1598 = vmatpush1.xpose.msra.mxu0 0.0
        %1599 = vmatprep.subr.mxu0 0.0
        %1600 = vmatpush1.xpose.msra.mxu0 0.0
        %1601 = vmatprep.subr.mxu0 0.0
        %1602 = vmatpush1.xpose.msra.mxu0 0.0
        %1603 = vmatprep.subr.mxu0 0.0
        %1604 = vmatpush1.xpose.msra.mxu0 0.0
        %1605 = vmatprep.subr.mxu0 0.0
        %1606 = vmatpush1.xpose.msra.mxu0 0.0
        %1607 = vmatprep.subr.mxu0 0.0
        %1608 = vmatpush1.xpose.msra.mxu0 0.0
        %1609 = vmatprep.subr.mxu0 0.0
        %1610 = vmatpush1.xpose.msra.mxu0 0.0
        %1611 = vmatprep.subr.mxu0 0.0
        %1612 = vmatpush1.xpose.msra.mxu0 0.0
        %1613 = vmatprep.subr.mxu0 0.0
        %1614 = vmatpush1.xpose.msra.mxu0 0.0
        %1615 = vmatprep.subr.mxu0 0.0
        %1616 = vmatpush1.xpose.msra.mxu0 0.0
        %1617 = vmatprep.subr.mxu0 0.0
        %1618 = vmatpush1.xpose.msra.mxu0 0.0
        %1619 = vmatprep.subr.mxu0 0.0
        %1620 = vmatpush1.xpose.msra.mxu0 0.0
        %1621 = vmatprep.subr.mxu0 0.0
        %1622 = vmatpush1.xpose.msra.mxu0 0.0
        %1623 = vmatprep.subr.mxu0 0.0
        %1624 = vmatpush1.xpose.msra.mxu0 0.0
        %1625 = vmatprep.subr.mxu0 0.0
        %1626 = vmatpush1.xpose.msra.mxu0 0.0
        %1627 = vmatprep.subr.mxu0 0.0
        %1628 = vmatpush1.xpose.msra.mxu0 0.0
        %1629 = vmatprep.subr.mxu0 0.0
        %1630 = vmatpush1.xpose.msra.mxu0 0.0
        %1631 = vmatprep.subr.mxu0 0.0
        %1632 = vmatpush1.xpose.msra.mxu0 0.0
        %1633 = vmatprep.subr.mxu0 0.0
        %1634 = vmatpush1.xpose.msra.mxu0 0.0
        %1635 = vmatprep.subr.mxu0 0.0
        %1636 = vmatpush1.xpose.msra.mxu0 0.0
        %1637 = vmatprep.subr.mxu0 0.0
        %1638 = vmatpush1.xpose.msra.mxu0 0.0
        %1639 = vmatprep.subr.mxu0 0.0
        %1640 = vmatpush1.xpose.msra.mxu0 0.0
        %1641 = vmatprep.subr.mxu0 0.0
        %1642 = vmatpush1.xpose.msra.mxu0 0.0
        %1643 = vmatprep.subr.mxu0 0.0
        %1644 = vmatpush1.xpose.msra.mxu0 0.0
        %1645 = vmatprep.subr.mxu0 0.0
        %1646 = vmatpush1.xpose.msra.mxu0 0.0
        %1647 = vmatprep.subr.mxu0 0.0
        %1648 = vmatpush1.xpose.msra.mxu0 0.0
        %1649 = vmatprep.mubr.f32.mxu0 0.0
        %1650 = vmatmul.mubr.f32.gmra.mrb[0].mxu0 %v1581
        %v1651 = vpop.f32.mrb[0].mxu0
        %v1652 = vadd.f32 0.0, %v1651
        %v1653 = vpop.f32.mrb[0].mxu0
        %1654 = vdwg.mxu0
        %v1655 = vmul.f32 %v1652, 0.25
        %v1656 = vsel %vm1325, %v1655, -inf
        %1657 = vmax.xlane.f32.xlu0 %v1656
        %v1658 = vpop.xlane.xlu0 %1657
        %v1659 = vsub.f32 %v1655, %v1658
        %v1660 = vmul.f32 %v1659, 1.442695
        %v1661 = vpow.pop %v1660
        %v1662 = vsel %vm1325, %v1661, 0.0
        %1663 = vadd.xlane.f32.xlu0 %v1662
        %v1664 = vpop.xlane.xlu0 %1663
        %v1665 = vrcp.pop %v1664
        %v1666 = vmul.f32 %v1661, %v1665
        %1667 = vrot.lane.b32.xlu0 %v1239, 96
        %v1668 = vpop.permute.xlu0 %1667
        %v1671 = vsel %vm1325, %v1666, 0
        %1673 = vmatprep.subr.mxu0 0.0
        %1674 = vmatpush1.msra.mxu0 %v1668
        %1675 = vmatprep.subr.mxu0 0.0
        %1676 = vmatpush1.msra.mxu0 0.0
        %1677 = vmatprep.subr.mxu0 0.0
        %1678 = vmatpush1.msra.mxu0 0.0
        %1679 = vmatprep.subr.mxu0 0.0
        %1680 = vmatpush1.msra.mxu0 0.0
        %1681 = vmatprep.subr.mxu0 0.0
        %1682 = vmatpush1.msra.mxu0 0.0
        %1683 = vmatprep.subr.mxu0 0.0
        %1684 = vmatpush1.msra.mxu0 0.0
        %1685 = vmatprep.subr.mxu0 0.0
        %1686 = vmatpush1.msra.mxu0 0.0
        %1687 = vmatprep.subr.mxu0 0.0
        %1688 = vmatpush1.msra.mxu0 0.0
        %1689 = vmatprep.subr.mxu0 0.0
        %1690 = vmatpush1.msra.mxu0 0.0
        %1691 = vmatprep.subr.mxu0 0.0
        %1692 = vmatpush1.msra.mxu0 0.0
        %1693 = vmatprep.subr.mxu0 0.0
        %1694 = vmatpush1.msra.mxu0 0.0
        %1695 = vmatprep.subr.mxu0 0.0
        %1696 = vmatpush1.msra.mxu0 0.0
        %1697 = vmatprep.subr.mxu0 0.0
        %1698 = vmatpush1.msra.mxu0 0.0
        %1699 = vmatprep.subr.mxu0 0.0
        %1700 = vmatpush1.msra.mxu0 0.0
        %1701 = vmatprep.subr.mxu0 0.0
        %1702 = vmatpush1.msra.mxu0 0.0
        %1703 = vmatprep.subr.mxu0 0.0
        %1704 = vmatpush1.msra.mxu0 0.0
        %1705 = vmatprep.subr.mxu0 0.0
        %1706 = vmatpush1.msra.mxu0 0.0
        %1707 = vmatprep.subr.mxu0 0.0
        %1708 = vmatpush1.msra.mxu0 0.0
        %1709 = vmatprep.subr.mxu0 0.0
        %1710 = vmatpush1.msra.mxu0 0.0
        %1711 = vmatprep.subr.mxu0 0.0
        %1712 = vmatpush1.msra.mxu0 0.0
        %1713 = vmatprep.subr.mxu0 0.0
        %1714 = vmatpush1.msra.mxu0 0.0
        %1715 = vmatprep.subr.mxu0 0.0
        %1716 = vmatpush1.msra.mxu0 0.0
        %1717 = vmatprep.subr.mxu0 0.0
        %1718 = vmatpush1.msra.mxu0 0.0
        %1719 = vmatprep.subr.mxu0 0.0
        %1720 = vmatpush1.msra.mxu0 0.0
        %1721 = vmatprep.subr.mxu0 0.0
        %1722 = vmatpush1.msra.mxu0 0.0
        %1723 = vmatprep.subr.mxu0 0.0
        %1724 = vmatpush1.msra.mxu0 0.0
        %1725 = vmatprep.subr.mxu0 0.0
        %1726 = vmatpush1.msra.mxu0 0.0
        %1727 = vmatprep.subr.mxu0 0.0
        %1728 = vmatpush1.msra.mxu0 0.0
        %1729 = vmatprep.subr.mxu0 0.0
        %1730 = vmatpush1.msra.mxu0 0.0
        %1731 = vmatprep.subr.mxu0 0.0
        %1732 = vmatpush1.msra.mxu0 0.0
        %1733 = vmatprep.subr.mxu0 0.0
        %1734 = vmatpush1.msra.mxu0 0.0
        %1735 = vmatprep.subr.mxu0 0.0
        %1736 = vmatpush1.msra.mxu0 0.0
        %1737 = vmatprep.mubr.f32.mxu0 0.0
        %1738 = vmatmul.mubr.f32.gmra.mrb[0].mxu0 %v1671
        %v1739 = vpop.f32.mrb[0].mxu0
        %v1740 = vadd.f32 0.0, %v1739
        %v1741 = vpop.f32.mrb[0].mxu0
        %1742 = vdwg.mxu0
        %1743 = vrot.lane.b32.xlu0 %v1162, 80
        %v1744 = vpop.permute.xlu0 %1743
        %1745 = vrot.lane.b32.xlu0 %v1164, 80
        %v1746 = vpop.permute.xlu0 %1745
        %v1747 = vsel %vm1247, %v1744, 0
        %v1749 = vsel %vm1247, %v1746, 0
        %1751 = vmatprep.subr.mxu0 0.0
        %1752 = vmatpush1.xpose.msra.mxu0 %v1749
        %1753 = vmatprep.subr.mxu0 0.0
        %1754 = vmatpush1.xpose.msra.mxu0 0.0
        %1755 = vmatprep.subr.mxu0 0.0
        %1756 = vmatpush1.xpose.msra.mxu0 0.0
        %1757 = vmatprep.subr.mxu0 0.0
        %1758 = vmatpush1.xpose.msra.mxu0 0.0
        %1759 = vmatprep.subr.mxu0 0.0
        %1760 = vmatpush1.xpose.msra.mxu0 0.0
        %1761 = vmatprep.subr.mxu0 0.0
        %1762 = vmatpush1.xpose.msra.mxu0 0.0
        %1763 = vmatprep.subr.mxu0 0.0
        %1764 = vmatpush1.xpose.msra.mxu0 0.0
        %1765 = vmatprep.subr.mxu0 0.0
        %1766 = vmatpush1.xpose.msra.mxu0 0.0
        %1767 = vmatprep.subr.mxu0 0.0
        %1768 = vmatpush1.xpose.msra.mxu0 0.0
        %1769 = vmatprep.subr.mxu0 0.0
        %1770 = vmatpush1.xpose.msra.mxu0 0.0
        %1771 = vmatprep.subr.mxu0 0.0
        %1772 = vmatpush1.xpose.msra.mxu0 0.0
        %1773 = vmatprep.subr.mxu0 0.0
        %1774 = vmatpush1.xpose.msra.mxu0 0.0
        %1775 = vmatprep.subr.mxu0 0.0
        %1776 = vmatpush1.xpose.msra.mxu0 0.0
        %1777 = vmatprep.subr.mxu0 0.0
        %1778 = vmatpush1.xpose.msra.mxu0 0.0
        %1779 = vmatprep.subr.mxu0 0.0
        %1780 = vmatpush1.xpose.msra.mxu0 0.0
        %1781 = vmatprep.subr.mxu0 0.0
        %1782 = vmatpush1.xpose.msra.mxu0 0.0
        %1783 = vmatprep.subr.mxu0 0.0
        %1784 = vmatpush1.xpose.msra.mxu0 0.0
        %1785 = vmatprep.subr.mxu0 0.0
        %1786 = vmatpush1.xpose.msra.mxu0 0.0
        %1787 = vmatprep.subr.mxu0 0.0
        %1788 = vmatpush1.xpose.msra.mxu0 0.0
        %1789 = vmatprep.subr.mxu0 0.0
        %1790 = vmatpush1.xpose.msra.mxu0 0.0
        %1791 = vmatprep.subr.mxu0 0.0
        %1792 = vmatpush1.xpose.msra.mxu0 0.0
        %1793 = vmatprep.subr.mxu0 0.0
        %1794 = vmatpush1.xpose.msra.mxu0 0.0
        %1795 = vmatprep.subr.mxu0 0.0
        %1796 = vmatpush1.xpose.msra.mxu0 0.0
        %1797 = vmatprep.subr.mxu0 0.0
        %1798 = vmatpush1.xpose.msra.mxu0 0.0
        %1799 = vmatprep.subr.mxu0 0.0
        %1800 = vmatpush1.xpose.msra.mxu0 0.0
        %1801 = vmatprep.subr.mxu0 0.0
        %1802 = vmatpush1.xpose.msra.mxu0 0.0
        %1803 = vmatprep.subr.mxu0 0.0
        %1804 = vmatpush1.xpose.msra.mxu0 0.0
        %1805 = vmatprep.subr.mxu0 0.0
        %1806 = vmatpush1.xpose.msra.mxu0 0.0
        %1807 = vmatprep.subr.mxu0 0.0
        %1808 = vmatpush1.xpose.msra.mxu0 0.0
        %1809 = vmatprep.subr.mxu0 0.0
        %1810 = vmatpush1.xpose.msra.mxu0 0.0
        %1811 = vmatprep.subr.mxu0 0.0
        %1812 = vmatpush1.xpose.msra.mxu0 0.0
        %1813 = vmatprep.subr.mxu0 0.0
        %1814 = vmatpush1.xpose.msra.mxu0 0.0
        %1815 = vmatprep.mubr.f32.mxu0 0.0
        %1816 = vmatmul.mubr.f32.gmra.mrb[0].mxu0 %v1747
        %v1817 = vpop.f32.mrb[0].mxu0
        %v1818 = vadd.f32 0.0, %v1817
        %v1819 = vpop.f32.mrb[0].mxu0
        %1820 = vdwg.mxu0
        %v1821 = vmul.f32 %v1818, 0.25
        %v1822 = vsel %vm1325, %v1821, -inf
        %1823 = vmax.xlane.f32.xlu0 %v1822
        %v1824 = vpop.xlane.xlu0 %1823
        %v1825 = vsub.f32 %v1821, %v1824
        %v1826 = vmul.f32 %v1825, 1.442695
        %v1827 = vpow.pop %v1826
        %v1828 = vsel %vm1325, %v1827, 0.0
        %1829 = vadd.xlane.f32.xlu0 %v1828
        %v1830 = vpop.xlane.xlu0 %1829
        %v1831 = vrcp.pop %v1830
        %v1832 = vmul.f32 %v1827, %v1831
        %1833 = vrot.lane.b32.xlu0 %v1239, 80
        %v1834 = vpop.permute.xlu0 %1833
        %v1837 = vsel %vm1325, %v1832, 0
        %1839 = vmatprep.subr.mxu0 0.0
        %1840 = vmatpush1.msra.mxu0 %v1834
        %1841 = vmatprep.subr.mxu0 0.0
        %1842 = vmatpush1.msra.mxu0 0.0
        %1843 = vmatprep.subr.mxu0 0.0
        %1844 = vmatpush1.msra.mxu0 0.0
        %1845 = vmatprep.subr.mxu0 0.0
        %1846 = vmatpush1.msra.mxu0 0.0
        %1847 = vmatprep.subr.mxu0 0.0
        %1848 = vmatpush1.msra.mxu0 0.0
        %1849 = vmatprep.subr.mxu0 0.0
        %1850 = vmatpush1.msra.mxu0 0.0
        %1851 = vmatprep.subr.mxu0 0.0
        %1852 = vmatpush1.msra.mxu0 0.0
        %1853 = vmatprep.subr.mxu0 0.0
        %1854 = vmatpush1.msra.mxu0 0.0
        %1855 = vmatprep.subr.mxu0 0.0
        %1856 = vmatpush1.msra.mxu0 0.0
        %1857 = vmatprep.subr.mxu0 0.0
        %1858 = vmatpush1.msra.mxu0 0.0
        %1859 = vmatprep.subr.mxu0 0.0
        %1860 = vmatpush1.msra.mxu0 0.0
        %1861 = vmatprep.subr.mxu0 0.0
        %1862 = vmatpush1.msra.mxu0 0.0
        %1863 = vmatprep.subr.mxu0 0.0
        %1864 = vmatpush1.msra.mxu0 0.0
        %1865 = vmatprep.subr.mxu0 0.0
        %1866 = vmatpush1.msra.mxu0 0.0
        %1867 = vmatprep.subr.mxu0 0.0
        %1868 = vmatpush1.msra.mxu0 0.0
        %1869 = vmatprep.subr.mxu0 0.0
        %1870 = vmatpush1.msra.mxu0 0.0
        %1871 = vmatprep.subr.mxu0 0.0
        %1872 = vmatpush1.msra.mxu0 0.0
        %1873 = vmatprep.subr.mxu0 0.0
        %1874 = vmatpush1.msra.mxu0 0.0
        %1875 = vmatprep.subr.mxu0 0.0
        %1876 = vmatpush1.msra.mxu0 0.0
        %1877 = vmatprep.subr.mxu0 0.0
        %1878 = vmatpush1.msra.mxu0 0.0
        %1879 = vmatprep.subr.mxu0 0.0
        %1880 = vmatpush1.msra.mxu0 0.0
        %1881 = vmatprep.subr.mxu0 0.0
        %1882 = vmatpush1.msra.mxu0 0.0
        %1883 = vmatprep.subr.mxu0 0.0
        %1884 = vmatpush1.msra.mxu0 0.0
        %1885 = vmatprep.subr.mxu0 0.0
        %1886 = vmatpush1.msra.mxu0 0.0
        %1887 = vmatprep.subr.mxu0 0.0
        %1888 = vmatpush1.msra.mxu0 0.0
        %1889 = vmatprep.subr.mxu0 0.0
        %1890 = vmatpush1.msra.mxu0 0.0
        %1891 = vmatprep.subr.mxu0 0.0
        %1892 = vmatpush1.msra.mxu0 0.0
        %1893 = vmatprep.subr.mxu0 0.0
        %1894 = vmatpush1.msra.mxu0 0.0
        %1895 = vmatprep.subr.mxu0 0.0
        %1896 = vmatpush1.msra.mxu0 0.0
        %1897 = vmatprep.subr.mxu0 0.0
        %1898 = vmatpush1.msra.mxu0 0.0
        %1899 = vmatprep.subr.mxu0 0.0
        %1900 = vmatpush1.msra.mxu0 0.0
        %1901 = vmatprep.subr.mxu0 0.0
        %1902 = vmatpush1.msra.mxu0 0.0
        %1903 = vmatprep.mubr.f32.mxu0 0.0
        %1904 = vmatmul.mubr.f32.gmra.mrb[0].mxu0 %v1837
        %v1905 = vpop.f32.mrb[0].mxu0
        %v1906 = vadd.f32 0.0, %v1905
        %v1907 = vpop.f32.mrb[0].mxu0
        %1908 = vdwg.mxu0
        %1909 = vrot.lane.b32.xlu0 %v1162, 64
        %v1910 = vpop.permute.xlu0 %1909
        %1911 = vrot.lane.b32.xlu0 %v1164, 64
        %v1912 = vpop.permute.xlu0 %1911
        %v1913 = vsel %vm1247, %v1910, 0
        %v1915 = vsel %vm1247, %v1912, 0
        %1917 = vmatprep.subr.mxu0 0.0
        %1918 = vmatpush1.xpose.msra.mxu0 %v1915
        %1919 = vmatprep.subr.mxu0 0.0
        %1920 = vmatpush1.xpose.msra.mxu0 0.0
        %1921 = vmatprep.subr.mxu0 0.0
        %1922 = vmatpush1.xpose.msra.mxu0 0.0
        %1923 = vmatprep.subr.mxu0 0.0
        %1924 = vmatpush1.xpose.msra.mxu0 0.0
        %1925 = vmatprep.subr.mxu0 0.0
        %1926 = vmatpush1.xpose.msra.mxu0 0.0
        %1927 = vmatprep.subr.mxu0 0.0
        %1928 = vmatpush1.xpose.msra.mxu0 0.0
        %1929 = vmatprep.subr.mxu0 0.0
        %1930 = vmatpush1.xpose.msra.mxu0 0.0
        %1931 = vmatprep.subr.mxu0 0.0
        %1932 = vmatpush1.xpose.msra.mxu0 0.0
        %1933 = vmatprep.subr.mxu0 0.0
        %1934 = vmatpush1.xpose.msra.mxu0 0.0
        %1935 = vmatprep.subr.mxu0 0.0
        %1936 = vmatpush1.xpose.msra.mxu0 0.0
        %1937 = vmatprep.subr.mxu0 0.0
        %1938 = vmatpush1.xpose.msra.mxu0 0.0
        %1939 = vmatprep.subr.mxu0 0.0
        %1940 = vmatpush1.xpose.msra.mxu0 0.0
        %1941 = vmatprep.subr.mxu0 0.0
        %1942 = vmatpush1.xpose.msra.mxu0 0.0
        %1943 = vmatprep.subr.mxu0 0.0
        %1944 = vmatpush1.xpose.msra.mxu0 0.0
        %1945 = vmatprep.subr.mxu0 0.0
        %1946 = vmatpush1.xpose.msra.mxu0 0.0
        %1947 = vmatprep.subr.mxu0 0.0
        %1948 = vmatpush1.xpose.msra.mxu0 0.0
        %1949 = vmatprep.subr.mxu0 0.0
        %1950 = vmatpush1.xpose.msra.mxu0 0.0
        %1951 = vmatprep.subr.mxu0 0.0
        %1952 = vmatpush1.xpose.msra.mxu0 0.0
        %1953 = vmatprep.subr.mxu0 0.0
        %1954 = vmatpush1.xpose.msra.mxu0 0.0
        %1955 = vmatprep.subr.mxu0 0.0
        %1956 = vmatpush1.xpose.msra.mxu0 0.0
        %1957 = vmatprep.subr.mxu0 0.0
        %1958 = vmatpush1.xpose.msra.mxu0 0.0
        %1959 = vmatprep.subr.mxu0 0.0
        %1960 = vmatpush1.xpose.msra.mxu0 0.0
        %1961 = vmatprep.subr.mxu0 0.0
        %1962 = vmatpush1.xpose.msra.mxu0 0.0
        %1963 = vmatprep.subr.mxu0 0.0
        %1964 = vmatpush1.xpose.msra.mxu0 0.0
        %1965 = vmatprep.subr.mxu0 0.0
        %1966 = vmatpush1.xpose.msra.mxu0 0.0
        %1967 = vmatprep.subr.mxu0 0.0
        %1968 = vmatpush1.xpose.msra.mxu0 0.0
        %1969 = vmatprep.subr.mxu0 0.0
        %1970 = vmatpush1.xpose.msra.mxu0 0.0
        %1971 = vmatprep.subr.mxu0 0.0
        %1972 = vmatpush1.xpose.msra.mxu0 0.0
        %1973 = vmatprep.subr.mxu0 0.0
        %1974 = vmatpush1.xpose.msra.mxu0 0.0
        %1975 = vmatprep.subr.mxu0 0.0
        %1976 = vmatpush1.xpose.msra.mxu0 0.0
        %1977 = vmatprep.subr.mxu0 0.0
        %1978 = vmatpush1.xpose.msra.mxu0 0.0
        %1979 = vmatprep.subr.mxu0 0.0
        %1980 = vmatpush1.xpose.msra.mxu0 0.0
        %1981 = vmatprep.mubr.f32.mxu0 0.0
        %1982 = vmatmul.mubr.f32.gmra.mrb[0].mxu0 %v1913
        %v1983 = vpop.f32.mrb[0].mxu0
        %v1984 = vadd.f32 0.0, %v1983
        %v1985 = vpop.f32.mrb[0].mxu0
        %1986 = vdwg.mxu0
        %v1987 = vmul.f32 %v1984, 0.25
        %v1988 = vsel %vm1325, %v1987, -inf
        %1989 = vmax.xlane.f32.xlu0 %v1988
        %v1990 = vpop.xlane.xlu0 %1989
        %v1991 = vsub.f32 %v1987, %v1990
        %v1992 = vmul.f32 %v1991, 1.442695
        %v1993 = vpow.pop %v1992
        %v1994 = vsel %vm1325, %v1993, 0.0
        %1995 = vadd.xlane.f32.xlu0 %v1994
        %v1996 = vpop.xlane.xlu0 %1995
        %v1997 = vrcp.pop %v1996
        %v1998 = vmul.f32 %v1993, %v1997
        %1999 = vrot.lane.b32.xlu0 %v1239, 64
        %v2000 = vpop.permute.xlu0 %1999
        %v2003 = vsel %vm1325, %v1998, 0
        %2005 = vmatprep.subr.mxu0 0.0
        %2006 = vmatpush1.msra.mxu0 %v2000
        %2007 = vmatprep.subr.mxu0 0.0
        %2008 = vmatpush1.msra.mxu0 0.0
        %2009 = vmatprep.subr.mxu0 0.0
        %2010 = vmatpush1.msra.mxu0 0.0
        %2011 = vmatprep.subr.mxu0 0.0
        %2012 = vmatpush1.msra.mxu0 0.0
        %2013 = vmatprep.subr.mxu0 0.0
        %2014 = vmatpush1.msra.mxu0 0.0
        %2015 = vmatprep.subr.mxu0 0.0
        %2016 = vmatpush1.msra.mxu0 0.0
        %2017 = vmatprep.subr.mxu0 0.0
        %2018 = vmatpush1.msra.mxu0 0.0
        %2019 = vmatprep.subr.mxu0 0.0
        %2020 = vmatpush1.msra.mxu0 0.0
        %2021 = vmatprep.subr.mxu0 0.0
        %2022 = vmatpush1.msra.mxu0 0.0
        %2023 = vmatprep.subr.mxu0 0.0
        %2024 = vmatpush1.msra.mxu0 0.0
        %2025 = vmatprep.subr.mxu0 0.0
        %2026 = vmatpush1.msra.mxu0 0.0
        %2027 = vmatprep.subr.mxu0 0.0
        %2028 = vmatpush1.msra.mxu0 0.0
        %2029 = vmatprep.subr.mxu0 0.0
        %2030 = vmatpush1.msra.mxu0 0.0
        %2031 = vmatprep.subr.mxu0 0.0
        %2032 = vmatpush1.msra.mxu0 0.0
        %2033 = vmatprep.subr.mxu0 0.0
        %2034 = vmatpush1.msra.mxu0 0.0
        %2035 = vmatprep.subr.mxu0 0.0
        %2036 = vmatpush1.msra.mxu0 0.0
        %2037 = vmatprep.subr.mxu0 0.0
        %2038 = vmatpush1.msra.mxu0 0.0
        %2039 = vmatprep.subr.mxu0 0.0
        %2040 = vmatpush1.msra.mxu0 0.0
        %2041 = vmatprep.subr.mxu0 0.0
        %2042 = vmatpush1.msra.mxu0 0.0
        %2043 = vmatprep.subr.mxu0 0.0
        %2044 = vmatpush1.msra.mxu0 0.0
        %2045 = vmatprep.subr.mxu0 0.0
        %2046 = vmatpush1.msra.mxu0 0.0
        %2047 = vmatprep.subr.mxu0 0.0
        %2048 = vmatpush1.msra.mxu0 0.0
        %2049 = vmatprep.subr.mxu0 0.0
        %2050 = vmatpush1.msra.mxu0 0.0
        %2051 = vmatprep.subr.mxu0 0.0
        %2052 = vmatpush1.msra.mxu0 0.0
        %2053 = vmatprep.subr.mxu0 0.0
        %2054 = vmatpush1.msra.mxu0 0.0
        %2055 = vmatprep.subr.mxu0 0.0
        %2056 = vmatpush1.msra.mxu0 0.0
        %2057 = vmatprep.subr.mxu0 0.0
        %2058 = vmatpush1.msra.mxu0 0.0
        %2059 = vmatprep.subr.mxu0 0.0
        %2060 = vmatpush1.msra.mxu0 0.0
        %2061 = vmatprep.subr.mxu0 0.0
        %2062 = vmatpush1.msra.mxu0 0.0
        %2063 = vmatprep.subr.mxu0 0.0
        %2064 = vmatpush1.msra.mxu0 0.0
        %2065 = vmatprep.subr.mxu0 0.0
        %2066 = vmatpush1.msra.mxu0 0.0
        %2067 = vmatprep.subr.mxu0 0.0
        %2068 = vmatpush1.msra.mxu0 0.0
        %2069 = vmatprep.mubr.f32.mxu0 0.0
        %2070 = vmatmul.mubr.f32.gmra.mrb[0].mxu0 %v2003
        %v2071 = vpop.f32.mrb[0].mxu0
        %v2072 = vadd.f32 0.0, %v2071
        %v2073 = vpop.f32.mrb[0].mxu0
        %2074 = vdwg.mxu0
        %2075 = vrot.lane.b32.xlu0 %v1162, 48
        %v2076 = vpop.permute.xlu0 %2075
        %2077 = vrot.lane.b32.xlu0 %v1164, 48
        %v2078 = vpop.permute.xlu0 %2077
        %v2079 = vsel %vm1247, %v2076, 0
        %v2081 = vsel %vm1247, %v2078, 0
        %2083 = vmatprep.subr.mxu0 0.0
        %2084 = vmatpush1.xpose.msra.mxu0 %v2081
        %2085 = vmatprep.subr.mxu0 0.0
        %2086 = vmatpush1.xpose.msra.mxu0 0.0
        %2087 = vmatprep.subr.mxu0 0.0
        %2088 = vmatpush1.xpose.msra.mxu0 0.0
        %2089 = vmatprep.subr.mxu0 0.0
        %2090 = vmatpush1.xpose.msra.mxu0 0.0
        %2091 = vmatprep.subr.mxu0 0.0
        %2092 = vmatpush1.xpose.msra.mxu0 0.0
        %2093 = vmatprep.subr.mxu0 0.0
        %2094 = vmatpush1.xpose.msra.mxu0 0.0
        %2095 = vmatprep.subr.mxu0 0.0
        %2096 = vmatpush1.xpose.msra.mxu0 0.0
        %2097 = vmatprep.subr.mxu0 0.0
        %2098 = vmatpush1.xpose.msra.mxu0 0.0
        %2099 = vmatprep.subr.mxu0 0.0
        %2100 = vmatpush1.xpose.msra.mxu0 0.0
        %2101 = vmatprep.subr.mxu0 0.0
        %2102 = vmatpush1.xpose.msra.mxu0 0.0
        %2103 = vmatprep.subr.mxu0 0.0
        %2104 = vmatpush1.xpose.msra.mxu0 0.0
        %2105 = vmatprep.subr.mxu0 0.0
        %2106 = vmatpush1.xpose.msra.mxu0 0.0
        %2107 = vmatprep.subr.mxu0 0.0
        %2108 = vmatpush1.xpose.msra.mxu0 0.0
        %2109 = vmatprep.subr.mxu0 0.0
        %2110 = vmatpush1.xpose.msra.mxu0 0.0
        %2111 = vmatprep.subr.mxu0 0.0
        %2112 = vmatpush1.xpose.msra.mxu0 0.0
        %2113 = vmatprep.subr.mxu0 0.0
        %2114 = vmatpush1.xpose.msra.mxu0 0.0
        %2115 = vmatprep.subr.mxu0 0.0
        %2116 = vmatpush1.xpose.msra.mxu0 0.0
        %2117 = vmatprep.subr.mxu0 0.0
        %2118 = vmatpush1.xpose.msra.mxu0 0.0
        %2119 = vmatprep.subr.mxu0 0.0
        %2120 = vmatpush1.xpose.msra.mxu0 0.0
        %2121 = vmatprep.subr.mxu0 0.0
        %2122 = vmatpush1.xpose.msra.mxu0 0.0
        %2123 = vmatprep.subr.mxu0 0.0
        %2124 = vmatpush1.xpose.msra.mxu0 0.0
        %2125 = vmatprep.subr.mxu0 0.0
        %2126 = vmatpush1.xpose.msra.mxu0 0.0
        %2127 = vmatprep.subr.mxu0 0.0
        %2128 = vmatpush1.xpose.msra.mxu0 0.0
        %2129 = vmatprep.subr.mxu0 0.0
        %2130 = vmatpush1.xpose.msra.mxu0 0.0
        %2131 = vmatprep.subr.mxu0 0.0
        %2132 = vmatpush1.xpose.msra.mxu0 0.0
        %2133 = vmatprep.subr.mxu0 0.0
        %2134 = vmatpush1.xpose.msra.mxu0 0.0
        %2135 = vmatprep.subr.mxu0 0.0
        %2136 = vmatpush1.xpose.msra.mxu0 0.0
        %2137 = vmatprep.subr.mxu0 0.0
        %2138 = vmatpush1.xpose.msra.mxu0 0.0
        %2139 = vmatprep.subr.mxu0 0.0
        %2140 = vmatpush1.xpose.msra.mxu0 0.0
        %2141 = vmatprep.subr.mxu0 0.0
        %2142 = vmatpush1.xpose.msra.mxu0 0.0
        %2143 = vmatprep.subr.mxu0 0.0
        %2144 = vmatpush1.xpose.msra.mxu0 0.0
        %2145 = vmatprep.subr.mxu0 0.0
        %2146 = vmatpush1.xpose.msra.mxu0 0.0
        %2147 = vmatprep.mubr.f32.mxu0 0.0
        %2148 = vmatmul.mubr.f32.gmra.mrb[0].mxu0 %v2079
        %v2149 = vpop.f32.mrb[0].mxu0
        %v2150 = vadd.f32 0.0, %v2149
        %v2151 = vpop.f32.mrb[0].mxu0
        %2152 = vdwg.mxu0
        %v2153 = vmul.f32 %v2150, 0.25
        %v2154 = vsel %vm1325, %v2153, -inf
        %2155 = vmax.xlane.f32.xlu0 %v2154
        %v2156 = vpop.xlane.xlu0 %2155
        %v2157 = vsub.f32 %v2153, %v2156
        %v2158 = vmul.f32 %v2157, 1.442695
        %v2159 = vpow.pop %v2158
        %v2160 = vsel %vm1325, %v2159, 0.0
        %2161 = vadd.xlane.f32.xlu0 %v2160
        %v2162 = vpop.xlane.xlu0 %2161
        %v2163 = vrcp.pop %v2162
        %v2164 = vmul.f32 %v2159, %v2163
        %2165 = vrot.lane.b32.xlu0 %v1239, 48
        %v2166 = vpop.permute.xlu0 %2165
        %v2169 = vsel %vm1325, %v2164, 0
        %2171 = vmatprep.subr.mxu0 0.0
        %2172 = vmatpush1.msra.mxu0 %v2166
        %2173 = vmatprep.subr.mxu0 0.0
        %2174 = vmatpush1.msra.mxu0 0.0
        %2175 = vmatprep.subr.mxu0 0.0
        %2176 = vmatpush1.msra.mxu0 0.0
        %2177 = vmatprep.subr.mxu0 0.0
        %2178 = vmatpush1.msra.mxu0 0.0
        %2179 = vmatprep.subr.mxu0 0.0
        %2180 = vmatpush1.msra.mxu0 0.0
        %2181 = vmatprep.subr.mxu0 0.0
        %2182 = vmatpush1.msra.mxu0 0.0
        %2183 = vmatprep.subr.mxu0 0.0
        %2184 = vmatpush1.msra.mxu0 0.0
        %2185 = vmatprep.subr.mxu0 0.0
        %2186 = vmatpush1.msra.mxu0 0.0
        %2187 = vmatprep.subr.mxu0 0.0
        %2188 = vmatpush1.msra.mxu0 0.0
        %2189 = vmatprep.subr.mxu0 0.0
        %2190 = vmatpush1.msra.mxu0 0.0
        %2191 = vmatprep.subr.mxu0 0.0
        %2192 = vmatpush1.msra.mxu0 0.0
        %2193 = vmatprep.subr.mxu0 0.0
        %2194 = vmatpush1.msra.mxu0 0.0
        %2195 = vmatprep.subr.mxu0 0.0
        %2196 = vmatpush1.msra.mxu0 0.0
        %2197 = vmatprep.subr.mxu0 0.0
        %2198 = vmatpush1.msra.mxu0 0.0
        %2199 = vmatprep.subr.mxu0 0.0
        %2200 = vmatpush1.msra.mxu0 0.0
        %2201 = vmatprep.subr.mxu0 0.0
        %2202 = vmatpush1.msra.mxu0 0.0
        %2203 = vmatprep.subr.mxu0 0.0
        %2204 = vmatpush1.msra.mxu0 0.0
        %2205 = vmatprep.subr.mxu0 0.0
        %2206 = vmatpush1.msra.mxu0 0.0
        %2207 = vmatprep.subr.mxu0 0.0
        %2208 = vmatpush1.msra.mxu0 0.0
        %2209 = vmatprep.subr.mxu0 0.0
        %2210 = vmatpush1.msra.mxu0 0.0
        %2211 = vmatprep.subr.mxu0 0.0
        %2212 = vmatpush1.msra.mxu0 0.0
        %2213 = vmatprep.subr.mxu0 0.0
        %2214 = vmatpush1.msra.mxu0 0.0
        %2215 = vmatprep.subr.mxu0 0.0
        %2216 = vmatpush1.msra.mxu0 0.0
        %2217 = vmatprep.subr.mxu0 0.0
        %2218 = vmatpush1.msra.mxu0 0.0
        %2219 = vmatprep.subr.mxu0 0.0
        %2220 = vmatpush1.msra.mxu0 0.0
        %2221 = vmatprep.subr.mxu0 0.0
        %2222 = vmatpush1.msra.mxu0 0.0
        %2223 = vmatprep.subr.mxu0 0.0
        %2224 = vmatpush1.msra.mxu0 0.0
        %2225 = vmatprep.subr.mxu0 0.0
        %2226 = vmatpush1.msra.mxu0 0.0
        %2227 = vmatprep.subr.mxu0 0.0
        %2228 = vmatpush1.msra.mxu0 0.0
        %2229 = vmatprep.subr.mxu0 0.0
        %2230 = vmatpush1.msra.mxu0 0.0
        %2231 = vmatprep.subr.mxu0 0.0
        %2232 = vmatpush1.msra.mxu0 0.0
        %2233 = vmatprep.subr.mxu0 0.0
        %2234 = vmatpush1.msra.mxu0 0.0
        %2235 = vmatprep.mubr.f32.mxu0 0.0
        %2236 = vmatmul.mubr.f32.gmra.mrb[0].mxu0 %v2169
        %v2237 = vpop.f32.mrb[0].mxu0
        %v2238 = vadd.f32 0.0, %v2237
        %v2239 = vpop.f32.mrb[0].mxu0
        %2240 = vdwg.mxu0
        %2241 = vrot.lane.b32.xlu0 %v1162, 32
        %v2242 = vpop.permute.xlu0 %2241
        %2243 = vrot.lane.b32.xlu0 %v1164, 32
        %v2244 = vpop.permute.xlu0 %2243
        %v2245 = vsel %vm1247, %v2242, 0
        %v2247 = vsel %vm1247, %v2244, 0
        %2249 = vmatprep.subr.mxu0 0.0
        %2250 = vmatpush1.xpose.msra.mxu0 %v2247
        %2251 = vmatprep.subr.mxu0 0.0
        %2252 = vmatpush1.xpose.msra.mxu0 0.0
        %2253 = vmatprep.subr.mxu0 0.0
        %2254 = vmatpush1.xpose.msra.mxu0 0.0
        %2255 = vmatprep.subr.mxu0 0.0
        %2256 = vmatpush1.xpose.msra.mxu0 0.0
        %2257 = vmatprep.subr.mxu0 0.0
        %2258 = vmatpush1.xpose.msra.mxu0 0.0
        %2259 = vmatprep.subr.mxu0 0.0
        %2260 = vmatpush1.xpose.msra.mxu0 0.0
        %2261 = vmatprep.subr.mxu0 0.0
        %2262 = vmatpush1.xpose.msra.mxu0 0.0
        %2263 = vmatprep.subr.mxu0 0.0
        %2264 = vmatpush1.xpose.msra.mxu0 0.0
        %2265 = vmatprep.subr.mxu0 0.0
        %2266 = vmatpush1.xpose.msra.mxu0 0.0
        %2267 = vmatprep.subr.mxu0 0.0
        %2268 = vmatpush1.xpose.msra.mxu0 0.0
        %2269 = vmatprep.subr.mxu0 0.0
        %2270 = vmatpush1.xpose.msra.mxu0 0.0
        %2271 = vmatprep.subr.mxu0 0.0
        %2272 = vmatpush1.xpose.msra.mxu0 0.0
        %2273 = vmatprep.subr.mxu0 0.0
        %2274 = vmatpush1.xpose.msra.mxu0 0.0
        %2275 = vmatprep.subr.mxu0 0.0
        %2276 = vmatpush1.xpose.msra.mxu0 0.0
        %2277 = vmatprep.subr.mxu0 0.0
        %2278 = vmatpush1.xpose.msra.mxu0 0.0
        %2279 = vmatprep.subr.mxu0 0.0
        %2280 = vmatpush1.xpose.msra.mxu0 0.0
        %2281 = vmatprep.subr.mxu0 0.0
        %2282 = vmatpush1.xpose.msra.mxu0 0.0
        %2283 = vmatprep.subr.mxu0 0.0
        %2284 = vmatpush1.xpose.msra.mxu0 0.0
        %2285 = vmatprep.subr.mxu0 0.0
        %2286 = vmatpush1.xpose.msra.mxu0 0.0
        %2287 = vmatprep.subr.mxu0 0.0
        %2288 = vmatpush1.xpose.msra.mxu0 0.0
        %2289 = vmatprep.subr.mxu0 0.0
        %2290 = vmatpush1.xpose.msra.mxu0 0.0
        %2291 = vmatprep.subr.mxu0 0.0
        %2292 = vmatpush1.xpose.msra.mxu0 0.0
        %2293 = vmatprep.subr.mxu0 0.0
        %2294 = vmatpush1.xpose.msra.mxu0 0.0
        %2295 = vmatprep.subr.mxu0 0.0
        %2296 = vmatpush1.xpose.msra.mxu0 0.0
        %2297 = vmatprep.subr.mxu0 0.0
        %2298 = vmatpush1.xpose.msra.mxu0 0.0
        %2299 = vmatprep.subr.mxu0 0.0
        %2300 = vmatpush1.xpose.msra.mxu0 0.0
        %2301 = vmatprep.subr.mxu0 0.0
        %2302 = vmatpush1.xpose.msra.mxu0 0.0
        %2303 = vmatprep.subr.mxu0 0.0
        %2304 = vmatpush1.xpose.msra.mxu0 0.0
        %2305 = vmatprep.subr.mxu0 0.0
        %2306 = vmatpush1.xpose.msra.mxu0 0.0
        %2307 = vmatprep.subr.mxu0 0.0
        %2308 = vmatpush1.xpose.msra.mxu0 0.0
        %2309 = vmatprep.subr.mxu0 0.0
        %2310 = vmatpush1.xpose.msra.mxu0 0.0
        %2311 = vmatprep.subr.mxu0 0.0
        %2312 = vmatpush1.xpose.msra.mxu0 0.0
        %2313 = vmatprep.mubr.f32.mxu0 0.0
        %2314 = vmatmul.mubr.f32.gmra.mrb[0].mxu0 %v2245
        %v2315 = vpop.f32.mrb[0].mxu0
        %v2316 = vadd.f32 0.0, %v2315
        %v2317 = vpop.f32.mrb[0].mxu0
        %2318 = vdwg.mxu0
        %v2319 = vmul.f32 %v2316, 0.25
        %v2320 = vsel %vm1325, %v2319, -inf
        %2321 = vmax.xlane.f32.xlu0 %v2320
        %v2322 = vpop.xlane.xlu0 %2321
        %v2323 = vsub.f32 %v2319, %v2322
        %v2324 = vmul.f32 %v2323, 1.442695
        %v2325 = vpow.pop %v2324
        %v2326 = vsel %vm1325, %v2325, 0.0
        %2327 = vadd.xlane.f32.xlu0 %v2326
        %v2328 = vpop.xlane.xlu0 %2327
        %v2329 = vrcp.pop %v2328
        %v2330 = vmul.f32 %v2325, %v2329
        %2331 = vrot.lane.b32.xlu0 %v1239, 32
        %v2332 = vpop.permute.xlu0 %2331
        %v2335 = vsel %vm1325, %v2330, 0
        %2337 = vmatprep.subr.mxu0 0.0
        %2338 = vmatpush1.msra.mxu0 %v2332
        %2339 = vmatprep.subr.mxu0 0.0
        %2340 = vmatpush1.msra.mxu0 0.0
        %2341 = vmatprep.subr.mxu0 0.0
        %2342 = vmatpush1.msra.mxu0 0.0
        %2343 = vmatprep.subr.mxu0 0.0
        %2344 = vmatpush1.msra.mxu0 0.0
        %2345 = vmatprep.subr.mxu0 0.0
        %2346 = vmatpush1.msra.mxu0 0.0
        %2347 = vmatprep.subr.mxu0 0.0
        %2348 = vmatpush1.msra.mxu0 0.0
        %2349 = vmatprep.subr.mxu0 0.0
        %2350 = vmatpush1.msra.mxu0 0.0
        %2351 = vmatprep.subr.mxu0 0.0
        %2352 = vmatpush1.msra.mxu0 0.0
        %2353 = vmatprep.subr.mxu0 0.0
        %2354 = vmatpush1.msra.mxu0 0.0
        %2355 = vmatprep.subr.mxu0 0.0
        %2356 = vmatpush1.msra.mxu0 0.0
        %2357 = vmatprep.subr.mxu0 0.0
        %2358 = vmatpush1.msra.mxu0 0.0
        %2359 = vmatprep.subr.mxu0 0.0
        %2360 = vmatpush1.msra.mxu0 0.0
        %2361 = vmatprep.subr.mxu0 0.0
        %2362 = vmatpush1.msra.mxu0 0.0
        %2363 = vmatprep.subr.mxu0 0.0
        %2364 = vmatpush1.msra.mxu0 0.0
        %2365 = vmatprep.subr.mxu0 0.0
        %2366 = vmatpush1.msra.mxu0 0.0
        %2367 = vmatprep.subr.mxu0 0.0
        %2368 = vmatpush1.msra.mxu0 0.0
        %2369 = vmatprep.subr.mxu0 0.0
        %2370 = vmatpush1.msra.mxu0 0.0
        %2371 = vmatprep.subr.mxu0 0.0
        %2372 = vmatpush1.msra.mxu0 0.0
        %2373 = vmatprep.subr.mxu0 0.0
        %2374 = vmatpush1.msra.mxu0 0.0
        %2375 = vmatprep.subr.mxu0 0.0
        %2376 = vmatpush1.msra.mxu0 0.0
        %2377 = vmatprep.subr.mxu0 0.0
        %2378 = vmatpush1.msra.mxu0 0.0
        %2379 = vmatprep.subr.mxu0 0.0
        %2380 = vmatpush1.msra.mxu0 0.0
        %2381 = vmatprep.subr.mxu0 0.0
        %2382 = vmatpush1.msra.mxu0 0.0
        %2383 = vmatprep.subr.mxu0 0.0
        %2384 = vmatpush1.msra.mxu0 0.0
        %2385 = vmatprep.subr.mxu0 0.0
        %2386 = vmatpush1.msra.mxu0 0.0
        %2387 = vmatprep.subr.mxu0 0.0
        %2388 = vmatpush1.msra.mxu0 0.0
        %2389 = vmatprep.subr.mxu0 0.0
        %2390 = vmatpush1.msra.mxu0 0.0
        %2391 = vmatprep.subr.mxu0 0.0
        %2392 = vmatpush1.msra.mxu0 0.0
        %2393 = vmatprep.subr.mxu0 0.0
        %2394 = vmatpush1.msra.mxu0 0.0
        %2395 = vmatprep.subr.mxu0 0.0
        %2396 = vmatpush1.msra.mxu0 0.0
        %2397 = vmatprep.subr.mxu0 0.0
        %2398 = vmatpush1.msra.mxu0 0.0
        %2399 = vmatprep.subr.mxu0 0.0
        %2400 = vmatpush1.msra.mxu0 0.0
        %2401 = vmatprep.mubr.f32.mxu0 0.0
        %2402 = vmatmul.mubr.f32.gmra.mrb[0].mxu0 %v2335
        %v2403 = vpop.f32.mrb[0].mxu0
        %v2404 = vadd.f32 0.0, %v2403
        %v2405 = vpop.f32.mrb[0].mxu0
        %2406 = vdwg.mxu0
        %2407 = vrot.lane.b32.xlu0 %v1162, 16
        %v2408 = vpop.permute.xlu0 %2407
        %2409 = vrot.lane.b32.xlu0 %v1164, 16
        %v2410 = vpop.permute.xlu0 %2409
        %v2411 = vsel %vm1247, %v2408, 0
        %v2413 = vsel %vm1247, %v2410, 0
        %2415 = vmatprep.subr.mxu0 0.0
        %2416 = vmatpush1.xpose.msra.mxu0 %v2413
        %2417 = vmatprep.subr.mxu0 0.0
        %2418 = vmatpush1.xpose.msra.mxu0 0.0
        %2419 = vmatprep.subr.mxu0 0.0
        %2420 = vmatpush1.xpose.msra.mxu0 0.0
        %2421 = vmatprep.subr.mxu0 0.0
        %2422 = vmatpush1.xpose.msra.mxu0 0.0
        %2423 = vmatprep.subr.mxu0 0.0
        %2424 = vmatpush1.xpose.msra.mxu0 0.0
        %2425 = vmatprep.subr.mxu0 0.0
        %2426 = vmatpush1.xpose.msra.mxu0 0.0
        %2427 = vmatprep.subr.mxu0 0.0
        %2428 = vmatpush1.xpose.msra.mxu0 0.0
        %2429 = vmatprep.subr.mxu0 0.0
        %2430 = vmatpush1.xpose.msra.mxu0 0.0
        %2431 = vmatprep.subr.mxu0 0.0
        %2432 = vmatpush1.xpose.msra.mxu0 0.0
        %2433 = vmatprep.subr.mxu0 0.0
        %2434 = vmatpush1.xpose.msra.mxu0 0.0
        %2435 = vmatprep.subr.mxu0 0.0
        %2436 = vmatpush1.xpose.msra.mxu0 0.0
        %2437 = vmatprep.subr.mxu0 0.0
        %2438 = vmatpush1.xpose.msra.mxu0 0.0
        %2439 = vmatprep.subr.mxu0 0.0
        %2440 = vmatpush1.xpose.msra.mxu0 0.0
        %2441 = vmatprep.subr.mxu0 0.0
        %2442 = vmatpush1.xpose.msra.mxu0 0.0
        %2443 = vmatprep.subr.mxu0 0.0
        %2444 = vmatpush1.xpose.msra.mxu0 0.0
        %2445 = vmatprep.subr.mxu0 0.0
        %2446 = vmatpush1.xpose.msra.mxu0 0.0
        %2447 = vmatprep.subr.mxu0 0.0
        %2448 = vmatpush1.xpose.msra.mxu0 0.0
        %2449 = vmatprep.subr.mxu0 0.0
        %2450 = vmatpush1.xpose.msra.mxu0 0.0
        %2451 = vmatprep.subr.mxu0 0.0
        %2452 = vmatpush1.xpose.msra.mxu0 0.0
        %2453 = vmatprep.subr.mxu0 0.0
        %2454 = vmatpush1.xpose.msra.mxu0 0.0
        %2455 = vmatprep.subr.mxu0 0.0
        %2456 = vmatpush1.xpose.msra.mxu0 0.0
        %2457 = vmatprep.subr.mxu0 0.0
        %2458 = vmatpush1.xpose.msra.mxu0 0.0
        %2459 = vmatprep.subr.mxu0 0.0
        %2460 = vmatpush1.xpose.msra.mxu0 0.0
        %2461 = vmatprep.subr.mxu0 0.0
        %2462 = vmatpush1.xpose.msra.mxu0 0.0
        %2463 = vmatprep.subr.mxu0 0.0
        %2464 = vmatpush1.xpose.msra.mxu0 0.0
        %2465 = vmatprep.subr.mxu0 0.0
        %2466 = vmatpush1.xpose.msra.mxu0 0.0
        %2467 = vmatprep.subr.mxu0 0.0
        %2468 = vmatpush1.xpose.msra.mxu0 0.0
        %2469 = vmatprep.subr.mxu0 0.0
        %2470 = vmatpush1.xpose.msra.mxu0 0.0
        %2471 = vmatprep.subr.mxu0 0.0
        %2472 = vmatpush1.xpose.msra.mxu0 0.0
        %2473 = vmatprep.subr.mxu0 0.0
        %2474 = vmatpush1.xpose.msra.mxu0 0.0
        %2475 = vmatprep.subr.mxu0 0.0
        %2476 = vmatpush1.xpose.msra.mxu0 0.0
        %2477 = vmatprep.subr.mxu0 0.0
        %2478 = vmatpush1.xpose.msra.mxu0 0.0
        %2479 = vmatprep.mubr.f32.mxu0 0.0
        %2480 = vmatmul.mubr.f32.gmra.mrb[0].mxu0 %v2411
        %v2481 = vpop.f32.mrb[0].mxu0
        %v2482 = vadd.f32 0.0, %v2481
        %v2483 = vpop.f32.mrb[0].mxu0
        %2484 = vdwg.mxu0
        %v2485 = vmul.f32 %v2482, 0.25
        %v2486 = vsel %vm1325, %v2485, -inf
        %2487 = vmax.xlane.f32.xlu0 %v2486
        %v2488 = vpop.xlane.xlu0 %2487
        %v2489 = vsub.f32 %v2485, %v2488
        %v2490 = vmul.f32 %v2489, 1.442695
        %v2491 = vpow.pop %v2490
        %v2492 = vsel %vm1325, %v2491, 0.0
        %2493 = vadd.xlane.f32.xlu0 %v2492
        %v2494 = vpop.xlane.xlu0 %2493
        %v2495 = vrcp.pop %v2494
        %v2496 = vmul.f32 %v2491, %v2495
        %2497 = vrot.lane.b32.xlu0 %v1239, 16
        %v2498 = vpop.permute.xlu0 %2497
        %v2501 = vsel %vm1325, %v2496, 0
        %2503 = vmatprep.subr.mxu0 0.0
        %2504 = vmatpush1.msra.mxu0 %v2498
        %2505 = vmatprep.subr.mxu0 0.0
        %2506 = vmatpush1.msra.mxu0 0.0
        %2507 = vmatprep.subr.mxu0 0.0
        %2508 = vmatpush1.msra.mxu0 0.0
        %2509 = vmatprep.subr.mxu0 0.0
        %2510 = vmatpush1.msra.mxu0 0.0
        %2511 = vmatprep.subr.mxu0 0.0
        %2512 = vmatpush1.msra.mxu0 0.0
        %2513 = vmatprep.subr.mxu0 0.0
        %2514 = vmatpush1.msra.mxu0 0.0
        %2515 = vmatprep.subr.mxu0 0.0
        %2516 = vmatpush1.msra.mxu0 0.0
        %2517 = vmatprep.subr.mxu0 0.0
        %2518 = vmatpush1.msra.mxu0 0.0
        %2519 = vmatprep.subr.mxu0 0.0
        %2520 = vmatpush1.msra.mxu0 0.0
        %2521 = vmatprep.subr.mxu0 0.0
        %2522 = vmatpush1.msra.mxu0 0.0
        %2523 = vmatprep.subr.mxu0 0.0
        %2524 = vmatpush1.msra.mxu0 0.0
        %2525 = vmatprep.subr.mxu0 0.0
        %2526 = vmatpush1.msra.mxu0 0.0
        %2527 = vmatprep.subr.mxu0 0.0
        %2528 = vmatpush1.msra.mxu0 0.0
        %2529 = vmatprep.subr.mxu0 0.0
        %2530 = vmatpush1.msra.mxu0 0.0
        %2531 = vmatprep.subr.mxu0 0.0
        %2532 = vmatpush1.msra.mxu0 0.0
        %2533 = vmatprep.subr.mxu0 0.0
        %2534 = vmatpush1.msra.mxu0 0.0
        %2535 = vmatprep.subr.mxu0 0.0
        %2536 = vmatpush1.msra.mxu0 0.0
        %2537 = vmatprep.subr.mxu0 0.0
        %2538 = vmatpush1.msra.mxu0 0.0
        %2539 = vmatprep.subr.mxu0 0.0
        %2540 = vmatpush1.msra.mxu0 0.0
        %2541 = vmatprep.subr.mxu0 0.0
        %2542 = vmatpush1.msra.mxu0 0.0
        %2543 = vmatprep.subr.mxu0 0.0
        %2544 = vmatpush1.msra.mxu0 0.0
        %2545 = vmatprep.subr.mxu0 0.0
        %2546 = vmatpush1.msra.mxu0 0.0
        %2547 = vmatprep.subr.mxu0 0.0
        %2548 = vmatpush1.msra.mxu0 0.0
        %2549 = vmatprep.subr.mxu0 0.0
        %2550 = vmatpush1.msra.mxu0 0.0
        %2551 = vmatprep.subr.mxu0 0.0
        %2552 = vmatpush1.msra.mxu0 0.0
        %2553 = vmatprep.subr.mxu0 0.0
        %2554 = vmatpush1.msra.mxu0 0.0
        %2555 = vmatprep.subr.mxu0 0.0
        %2556 = vmatpush1.msra.mxu0 0.0
        %2557 = vmatprep.subr.mxu0 0.0
        %2558 = vmatpush1.msra.mxu0 0.0
        %2559 = vmatprep.subr.mxu0 0.0
        %2560 = vmatpush1.msra.mxu0 0.0
        %2561 = vmatprep.subr.mxu0 0.0
        %2562 = vmatpush1.msra.mxu0 0.0
        %2563 = vmatprep.subr.mxu0 0.0
        %2564 = vmatpush1.msra.mxu0 0.0
        %2565 = vmatprep.subr.mxu0 0.0
        %2566 = vmatpush1.msra.mxu0 0.0
        %2567 = vmatprep.mubr.f32.mxu0 0.0
        %2568 = vmatmul.mubr.f32.gmra.mrb[0].mxu0 %v2501
        %v2569 = vpop.f32.mrb[0].mxu0
        %v2570 = vadd.f32 0.0, %v2569
        %v2571 = vpop.f32.mrb[0].mxu0
        %2572 = vdwg.mxu0
        %2574 = vrot.lane.b32.xlu0 %v1574, 16
        %v2575 = vpop.permute.xlu0 %2574
        %2578 = vrot.lane.b32.xlu0 %v1740, 32
        %v2579 = vpop.permute.xlu0 %2578
        %2582 = vrot.lane.b32.xlu0 %v1906, 48
        %v2583 = vpop.permute.xlu0 %2582
        %2586 = vrot.lane.b32.xlu0 %v2072, 64
        %v2587 = vpop.permute.xlu0 %2586
        %2590 = vrot.lane.b32.xlu0 %v2238, 80
        %v2591 = vpop.permute.xlu0 %2590
        %2594 = vrot.lane.b32.xlu0 %v2404, 96
        %v2595 = vpop.permute.xlu0 %2594
        %2598 = vrot.lane.b32.xlu0 %v2570, 112
        %v2599 = vpop.permute.xlu0 %2598
        %v2601 = vsel %vm1247, %v1407, %v2575
        %vm2602 = vcmask 261120
        %v2603 = vsel %vm2602, %v2601, %v2579
        %vm2604 = vcmask 392192
        %v2605 = vsel %vm2604, %v2603, %v2583
        %vm2606 = vcmask 523264
        %v2607 = vsel %vm2606, %v2605, %v2587
        %vm2608 = vcmask 654336
        %v2609 = vsel %vm2608, %v2607, %v2591
        %vm2610 = vcmask 785408
        %v2611 = vsel %vm2610, %v2609, %v2595
        %vm2612 = vcmask 916480
        %v2613 = vsel %vm2612, %v2611, %v2599
        %v2615 = vsel %vm1247, %v1168, 0
        %v2618 = vsel %vm1247, %v1170, 0
        %2620 = vmatprep.subr.mxu0 0.0
        %2621 = vmatpush1.xpose.msra.mxu0 %v2618
        %2622 = vmatprep.subr.mxu0 0.0
        %2623 = vmatpush1.xpose.msra.mxu0 0.0
        %2624 = vmatprep.subr.mxu0 0.0
        %2625 = vmatpush1.xpose.msra.mxu0 0.0
        %2626 = vmatprep.subr.mxu0 0.0
        %2627 = vmatpush1.xpose.msra.mxu0 0.0
        %2628 = vmatprep.subr.mxu0 0.0
        %2629 = vmatpush1.xpose.msra.mxu0 0.0
        %2630 = vmatprep.subr.mxu0 0.0
        %2631 = vmatpush1.xpose.msra.mxu0 0.0
        %2632 = vmatprep.subr.mxu0 0.0
        %2633 = vmatpush1.xpose.msra.mxu0 0.0
        %2634 = vmatprep.subr.mxu0 0.0
        %2635 = vmatpush1.xpose.msra.mxu0 0.0
        %2636 = vmatprep.subr.mxu0 0.0
        %2637 = vmatpush1.xpose.msra.mxu0 0.0
        %2638 = vmatprep.subr.mxu0 0.0
        %2639 = vmatpush1.xpose.msra.mxu0 0.0
        %2640 = vmatprep.subr.mxu0 0.0
        %2641 = vmatpush1.xpose.msra.mxu0 0.0
        %2642 = vmatprep.subr.mxu0 0.0
        %2643 = vmatpush1.xpose.msra.mxu0 0.0
        %2644 = vmatprep.subr.mxu0 0.0
        %2645 = vmatpush1.xpose.msra.mxu0 0.0
        %2646 = vmatprep.subr.mxu0 0.0
        %2647 = vmatpush1.xpose.msra.mxu0 0.0
        %2648 = vmatprep.subr.mxu0 0.0
        %2649 = vmatpush1.xpose.msra.mxu0 0.0
        %2650 = vmatprep.subr.mxu0 0.0
        %2651 = vmatpush1.xpose.msra.mxu0 0.0
        %2652 = vmatprep.subr.mxu0 0.0
        %2653 = vmatpush1.xpose.msra.mxu0 0.0
        %2654 = vmatprep.subr.mxu0 0.0
        %2655 = vmatpush1.xpose.msra.mxu0 0.0
        %2656 = vmatprep.subr.mxu0 0.0
        %2657 = vmatpush1.xpose.msra.mxu0 0.0
        %2658 = vmatprep.subr.mxu0 0.0
        %2659 = vmatpush1.xpose.msra.mxu0 0.0
        %2660 = vmatprep.subr.mxu0 0.0
        %2661 = vmatpush1.xpose.msra.mxu0 0.0
        %2662 = vmatprep.subr.mxu0 0.0
        %2663 = vmatpush1.xpose.msra.mxu0 0.0
        %2664 = vmatprep.subr.mxu0 0.0
        %2665 = vmatpush1.xpose.msra.mxu0 0.0
        %2666 = vmatprep.subr.mxu0 0.0
        %2667 = vmatpush1.xpose.msra.mxu0 0.0
        %2668 = vmatprep.subr.mxu0 0.0
        %2669 = vmatpush1.xpose.msra.mxu0 0.0
        %2670 = vmatprep.subr.mxu0 0.0
        %2671 = vmatpush1.xpose.msra.mxu0 0.0
        %2672 = vmatprep.subr.mxu0 0.0
        %2673 = vmatpush1.xpose.msra.mxu0 0.0
        %2674 = vmatprep.subr.mxu0 0.0
        %2675 = vmatpush1.xpose.msra.mxu0 0.0
        %2676 = vmatprep.subr.mxu0 0.0
        %2677 = vmatpush1.xpose.msra.mxu0 0.0
        %2678 = vmatprep.subr.mxu0 0.0
        %2679 = vmatpush1.xpose.msra.mxu0 0.0
        %2680 = vmatprep.subr.mxu0 0.0
        %2681 = vmatpush1.xpose.msra.mxu0 0.0
        %2682 = vmatprep.subr.mxu0 0.0
        %2683 = vmatpush1.xpose.msra.mxu0 0.0
        %2684 = vmatprep.mubr.f32.mxu0 0.0
        %2685 = vmatmul.mubr.f32.gmra.mrb[0].mxu0 %v2615
        %v2686 = vpop.f32.mrb[0].mxu0
        %v2687 = vadd.f32 0.0, %v2686
        %v2688 = vpop.f32.mrb[0].mxu0
        %2689 = vdwg.mxu0
        %v2690 = vmul.f32 %v2687, 0.25
        %v2691 = vsel %vm1325, %v2690, -inf
        %2692 = vmax.xlane.f32.xlu0 %v2691
        %v2693 = vpop.xlane.xlu0 %2692
        %v2694 = vsub.f32 %v2690, %v2693
        %v2695 = vmul.f32 %v2694, 1.442695
        %v2696 = vpow.pop %v2695
        %v2697 = vsel %vm1325, %v2696, 0.0
        %2698 = vadd.xlane.f32.xlu0 %v2697
        %v2699 = vpop.xlane.xlu0 %2698
        %v2700 = vrcp.pop %v2699
        %v2701 = vmul.f32 %v2696, %v2700
        %v2703 = vsel %vm1325, %v2701, 0
        %2705 = vmatprep.subr.mxu0 0.0
        %2706 = vmatpush1.msra.mxu0 %v1244
        %2707 = vmatprep.subr.mxu0 0.0
        %2708 = vmatpush1.msra.mxu0 0.0
        %2709 = vmatprep.subr.mxu0 0.0
        %2710 = vmatpush1.msra.mxu0 0.0
        %2711 = vmatprep.subr.mxu0 0.0
        %2712 = vmatpush1.msra.mxu0 0.0
        %2713 = vmatprep.subr.mxu0 0.0
        %2714 = vmatpush1.msra.mxu0 0.0
        %2715 = vmatprep.subr.mxu0 0.0
        %2716 = vmatpush1.msra.mxu0 0.0
        %2717 = vmatprep.subr.mxu0 0.0
        %2718 = vmatpush1.msra.mxu0 0.0
        %2719 = vmatprep.subr.mxu0 0.0
        %2720 = vmatpush1.msra.mxu0 0.0
        %2721 = vmatprep.subr.mxu0 0.0
        %2722 = vmatpush1.msra.mxu0 0.0
        %2723 = vmatprep.subr.mxu0 0.0
        %2724 = vmatpush1.msra.mxu0 0.0
        %2725 = vmatprep.subr.mxu0 0.0
        %2726 = vmatpush1.msra.mxu0 0.0
        %2727 = vmatprep.subr.mxu0 0.0
        %2728 = vmatpush1.msra.mxu0 0.0
        %2729 = vmatprep.subr.mxu0 0.0
        %2730 = vmatpush1.msra.mxu0 0.0
        %2731 = vmatprep.subr.mxu0 0.0
        %2732 = vmatpush1.msra.mxu0 0.0
        %2733 = vmatprep.subr.mxu0 0.0
        %2734 = vmatpush1.msra.mxu0 0.0
        %2735 = vmatprep.subr.mxu0 0.0
        %2736 = vmatpush1.msra.mxu0 0.0
        %2737 = vmatprep.subr.mxu0 0.0
        %2738 = vmatpush1.msra.mxu0 0.0
        %2739 = vmatprep.subr.mxu0 0.0
        %2740 = vmatpush1.msra.mxu0 0.0
        %2741 = vmatprep.subr.mxu0 0.0
        %2742 = vmatpush1.msra.mxu0 0.0
        %2743 = vmatprep.subr.mxu0 0.0
        %2744 = vmatpush1.msra.mxu0 0.0
        %2745 = vmatprep.subr.mxu0 0.0
        %2746 = vmatpush1.msra.mxu0 0.0
        %2747 = vmatprep.subr.mxu0 0.0
        %2748 = vmatpush1.msra.mxu0 0.0
        %2749 = vmatprep.subr.mxu0 0.0
        %2750 = vmatpush1.msra.mxu0 0.0
        %2751 = vmatprep.subr.mxu0 0.0
        %2752 = vmatpush1.msra.mxu0 0.0
        %2753 = vmatprep.subr.mxu0 0.0
        %2754 = vmatpush1.msra.mxu0 0.0
        %2755 = vmatprep.subr.mxu0 0.0
        %2756 = vmatpush1.msra.mxu0 0.0
        %2757 = vmatprep.subr.mxu0 0.0
        %2758 = vmatpush1.msra.mxu0 0.0
        %2759 = vmatprep.subr.mxu0 0.0
        %2760 = vmatpush1.msra.mxu0 0.0
        %2761 = vmatprep.subr.mxu0 0.0
        %2762 = vmatpush1.msra.mxu0 0.0
        %2763 = vmatprep.subr.mxu0 0.0
        %2764 = vmatpush1.msra.mxu0 0.0
        %2765 = vmatprep.subr.mxu0 0.0
        %2766 = vmatpush1.msra.mxu0 0.0
        %2767 = vmatprep.subr.mxu0 0.0
        %2768 = vmatpush1.msra.mxu0 0.0
        %2769 = vmatprep.mubr.f32.mxu0 0.0
        %2770 = vmatmul.mubr.f32.gmra.mrb[0].mxu0 %v2703
        %v2771 = vpop.f32.mrb[0].mxu0
        %v2772 = vadd.f32 0.0, %v2771
        %v2773 = vpop.f32.mrb[0].mxu0
        %2774 = vdwg.mxu0
        %2775 = vrot.lane.b32.xlu0 %v1168, 112
        %v2776 = vpop.permute.xlu0 %2775
        %2777 = vrot.lane.b32.xlu0 %v1170, 112
        %v2778 = vpop.permute.xlu0 %2777
        %v2779 = vsel %vm1247, %v2776, 0
        %v2781 = vsel %vm1247, %v2778, 0
        %2783 = vmatprep.subr.mxu0 0.0
        %2784 = vmatpush1.xpose.msra.mxu0 %v2781
        %2785 = vmatprep.subr.mxu0 0.0
        %2786 = vmatpush1.xpose.msra.mxu0 0.0
        %2787 = vmatprep.subr.mxu0 0.0
        %2788 = vmatpush1.xpose.msra.mxu0 0.0
        %2789 = vmatprep.subr.mxu0 0.0
        %2790 = vmatpush1.xpose.msra.mxu0 0.0
        %2791 = vmatprep.subr.mxu0 0.0
        %2792 = vmatpush1.xpose.msra.mxu0 0.0
        %2793 = vmatprep.subr.mxu0 0.0
        %2794 = vmatpush1.xpose.msra.mxu0 0.0
        %2795 = vmatprep.subr.mxu0 0.0
        %2796 = vmatpush1.xpose.msra.mxu0 0.0
        %2797 = vmatprep.subr.mxu0 0.0
        %2798 = vmatpush1.xpose.msra.mxu0 0.0
        %2799 = vmatprep.subr.mxu0 0.0
        %2800 = vmatpush1.xpose.msra.mxu0 0.0
        %2801 = vmatprep.subr.mxu0 0.0
        %2802 = vmatpush1.xpose.msra.mxu0 0.0
        %2803 = vmatprep.subr.mxu0 0.0
        %2804 = vmatpush1.xpose.msra.mxu0 0.0
        %2805 = vmatprep.subr.mxu0 0.0
        %2806 = vmatpush1.xpose.msra.mxu0 0.0
        %2807 = vmatprep.subr.mxu0 0.0
        %2808 = vmatpush1.xpose.msra.mxu0 0.0
        %2809 = vmatprep.subr.mxu0 0.0
        %2810 = vmatpush1.xpose.msra.mxu0 0.0
        %2811 = vmatprep.subr.mxu0 0.0
        %2812 = vmatpush1.xpose.msra.mxu0 0.0
        %2813 = vmatprep.subr.mxu0 0.0
        %2814 = vmatpush1.xpose.msra.mxu0 0.0
        %2815 = vmatprep.subr.mxu0 0.0
        %2816 = vmatpush1.xpose.msra.mxu0 0.0
        %2817 = vmatprep.subr.mxu0 0.0
        %2818 = vmatpush1.xpose.msra.mxu0 0.0
        %2819 = vmatprep.subr.mxu0 0.0
        %2820 = vmatpush1.xpose.msra.mxu0 0.0
        %2821 = vmatprep.subr.mxu0 0.0
        %2822 = vmatpush1.xpose.msra.mxu0 0.0
        %2823 = vmatprep.subr.mxu0 0.0
        %2824 = vmatpush1.xpose.msra.mxu0 0.0
        %2825 = vmatprep.subr.mxu0 0.0
        %2826 = vmatpush1.xpose.msra.mxu0 0.0
        %2827 = vmatprep.subr.mxu0 0.0
        %2828 = vmatpush1.xpose.msra.mxu0 0.0
        %2829 = vmatprep.subr.mxu0 0.0
        %2830 = vmatpush1.xpose.msra.mxu0 0.0
        %2831 = vmatprep.subr.mxu0 0.0
        %2832 = vmatpush1.xpose.msra.mxu0 0.0
        %2833 = vmatprep.subr.mxu0 0.0
        %2834 = vmatpush1.xpose.msra.mxu0 0.0
        %2835 = vmatprep.subr.mxu0 0.0
        %2836 = vmatpush1.xpose.msra.mxu0 0.0
        %2837 = vmatprep.subr.mxu0 0.0
        %2838 = vmatpush1.xpose.msra.mxu0 0.0
        %2839 = vmatprep.subr.mxu0 0.0
        %2840 = vmatpush1.xpose.msra.mxu0 0.0
        %2841 = vmatprep.subr.mxu0 0.0
        %2842 = vmatpush1.xpose.msra.mxu0 0.0
        %2843 = vmatprep.subr.mxu0 0.0
        %2844 = vmatpush1.xpose.msra.mxu0 0.0
        %2845 = vmatprep.subr.mxu0 0.0
        %2846 = vmatpush1.xpose.msra.mxu0 0.0
        %2847 = vmatprep.mubr.f32.mxu0 0.0
        %2848 = vmatmul.mubr.f32.gmra.mrb[0].mxu0 %v2779
        %v2849 = vpop.f32.mrb[0].mxu0
        %v2850 = vadd.f32 0.0, %v2849
        %v2851 = vpop.f32.mrb[0].mxu0
        %2852 = vdwg.mxu0
        %v2853 = vmul.f32 %v2850, 0.25
        %v2854 = vsel %vm1325, %v2853, -inf
        %2855 = vmax.xlane.f32.xlu0 %v2854
        %v2856 = vpop.xlane.xlu0 %2855
        %v2857 = vsub.f32 %v2853, %v2856
        %v2858 = vmul.f32 %v2857, 1.442695
        %v2859 = vpow.pop %v2858
        %v2860 = vsel %vm1325, %v2859, 0.0
        %2861 = vadd.xlane.f32.xlu0 %v2860
        %v2862 = vpop.xlane.xlu0 %2861
        %v2863 = vrcp.pop %v2862
        %v2864 = vmul.f32 %v2859, %v2863
        %2866 = vrot.lane.b32.xlu0 %v1244, 112
        %v2867 = vpop.permute.xlu0 %2866
        %v2870 = vsel %vm1325, %v2864, 0
        %2872 = vmatprep.subr.mxu0 0.0
        %2873 = vmatpush1.msra.mxu0 %v2867
        %2874 = vmatprep.subr.mxu0 0.0
        %2875 = vmatpush1.msra.mxu0 0.0
        %2876 = vmatprep.subr.mxu0 0.0
        %2877 = vmatpush1.msra.mxu0 0.0
        %2878 = vmatprep.subr.mxu0 0.0
        %2879 = vmatpush1.msra.mxu0 0.0
        %2880 = vmatprep.subr.mxu0 0.0
        %2881 = vmatpush1.msra.mxu0 0.0
        %2882 = vmatprep.subr.mxu0 0.0
        %2883 = vmatpush1.msra.mxu0 0.0
        %2884 = vmatprep.subr.mxu0 0.0
        %2885 = vmatpush1.msra.mxu0 0.0
        %2886 = vmatprep.subr.mxu0 0.0
        %2887 = vmatpush1.msra.mxu0 0.0
        %2888 = vmatprep.subr.mxu0 0.0
        %2889 = vmatpush1.msra.mxu0 0.0
        %2890 = vmatprep.subr.mxu0 0.0
        %2891 = vmatpush1.msra.mxu0 0.0
        %2892 = vmatprep.subr.mxu0 0.0
        %2893 = vmatpush1.msra.mxu0 0.0
        %2894 = vmatprep.subr.mxu0 0.0
        %2895 = vmatpush1.msra.mxu0 0.0
        %2896 = vmatprep.subr.mxu0 0.0
        %2897 = vmatpush1.msra.mxu0 0.0
        %2898 = vmatprep.subr.mxu0 0.0
        %2899 = vmatpush1.msra.mxu0 0.0
        %2900 = vmatprep.subr.mxu0 0.0
        %2901 = vmatpush1.msra.mxu0 0.0
        %2902 = vmatprep.subr.mxu0 0.0
        %2903 = vmatpush1.msra.mxu0 0.0
        %2904 = vmatprep.subr.mxu0 0.0
        %2905 = vmatpush1.msra.mxu0 0.0
        %2906 = vmatprep.subr.mxu0 0.0
        %2907 = vmatpush1.msra.mxu0 0.0
        %2908 = vmatprep.subr.mxu0 0.0
        %2909 = vmatpush1.msra.mxu0 0.0
        %2910 = vmatprep.subr.mxu0 0.0
        %2911 = vmatpush1.msra.mxu0 0.0
        %2912 = vmatprep.subr.mxu0 0.0
        %2913 = vmatpush1.msra.mxu0 0.0
        %2914 = vmatprep.subr.mxu0 0.0
        %2915 = vmatpush1.msra.mxu0 0.0
        %2916 = vmatprep.subr.mxu0 0.0
        %2917 = vmatpush1.msra.mxu0 0.0
        %2918 = vmatprep.subr.mxu0 0.0
        %2919 = vmatpush1.msra.mxu0 0.0
        %2920 = vmatprep.subr.mxu0 0.0
        %2921 = vmatpush1.msra.mxu0 0.0
        %2922 = vmatprep.subr.mxu0 0.0
        %2923 = vmatpush1.msra.mxu0 0.0
        %2924 = vmatprep.subr.mxu0 0.0
        %2925 = vmatpush1.msra.mxu0 0.0
        %2926 = vmatprep.subr.mxu0 0.0
        %2927 = vmatpush1.msra.mxu0 0.0
        %2928 = vmatprep.subr.mxu0 0.0
        %2929 = vmatpush1.msra.mxu0 0.0
        %2930 = vmatprep.subr.mxu0 0.0
        %2931 = vmatpush1.msra.mxu0 0.0
        %2932 = vmatprep.subr.mxu0 0.0
        %2933 = vmatpush1.msra.mxu0 0.0
        %2934 = vmatprep.subr.mxu0 0.0
        %2935 = vmatpush1.msra.mxu0 0.0
        %2936 = vmatprep.mubr.f32.mxu0 0.0
        %2937 = vmatmul.mubr.f32.gmra.mrb[0].mxu0 %v2870
        %v2938 = vpop.f32.mrb[0].mxu0
        %v2939 = vadd.f32 0.0, %v2938
        %v2940 = vpop.f32.mrb[0].mxu0
        %2941 = vdwg.mxu0
        %2942 = vrot.lane.b32.xlu0 %v1168, 96
        %v2943 = vpop.permute.xlu0 %2942
        %2944 = vrot.lane.b32.xlu0 %v1170, 96
        %v2945 = vpop.permute.xlu0 %2944
        %v2946 = vsel %vm1247, %v2943, 0
        %v2948 = vsel %vm1247, %v2945, 0
        %2950 = vmatprep.subr.mxu0 0.0
        %2951 = vmatpush1.xpose.msra.mxu0 %v2948
        %2952 = vmatprep.subr.mxu0 0.0
        %2953 = vmatpush1.xpose.msra.mxu0 0.0
        %2954 = vmatprep.subr.mxu0 0.0
        %2955 = vmatpush1.xpose.msra.mxu0 0.0
        %2956 = vmatprep.subr.mxu0 0.0
        %2957 = vmatpush1.xpose.msra.mxu0 0.0
        %2958 = vmatprep.subr.mxu0 0.0
        %2959 = vmatpush1.xpose.msra.mxu0 0.0
        %2960 = vmatprep.subr.mxu0 0.0
        %2961 = vmatpush1.xpose.msra.mxu0 0.0
        %2962 = vmatprep.subr.mxu0 0.0
        %2963 = vmatpush1.xpose.msra.mxu0 0.0
        %2964 = vmatprep.subr.mxu0 0.0
        %2965 = vmatpush1.xpose.msra.mxu0 0.0
        %2966 = vmatprep.subr.mxu0 0.0
        %2967 = vmatpush1.xpose.msra.mxu0 0.0
        %2968 = vmatprep.subr.mxu0 0.0
        %2969 = vmatpush1.xpose.msra.mxu0 0.0
        %2970 = vmatprep.subr.mxu0 0.0
        %2971 = vmatpush1.xpose.msra.mxu0 0.0
        %2972 = vmatprep.subr.mxu0 0.0
        %2973 = vmatpush1.xpose.msra.mxu0 0.0
        %2974 = vmatprep.subr.mxu0 0.0
        %2975 = vmatpush1.xpose.msra.mxu0 0.0
        %2976 = vmatprep.subr.mxu0 0.0
        %2977 = vmatpush1.xpose.msra.mxu0 0.0
        %2978 = vmatprep.subr.mxu0 0.0
        %2979 = vmatpush1.xpose.msra.mxu0 0.0
        %2980 = vmatprep.subr.mxu0 0.0
        %2981 = vmatpush1.xpose.msra.mxu0 0.0
        %2982 = vmatprep.subr.mxu0 0.0
        %2983 = vmatpush1.xpose.msra.mxu0 0.0
        %2984 = vmatprep.subr.mxu0 0.0
        %2985 = vmatpush1.xpose.msra.mxu0 0.0
        %2986 = vmatprep.subr.mxu0 0.0
        %2987 = vmatpush1.xpose.msra.mxu0 0.0
        %2988 = vmatprep.subr.mxu0 0.0
        %2989 = vmatpush1.xpose.msra.mxu0 0.0
        %2990 = vmatprep.subr.mxu0 0.0
        %2991 = vmatpush1.xpose.msra.mxu0 0.0
        %2992 = vmatprep.subr.mxu0 0.0
        %2993 = vmatpush1.xpose.msra.mxu0 0.0
        %2994 = vmatprep.subr.mxu0 0.0
        %2995 = vmatpush1.xpose.msra.mxu0 0.0
        %2996 = vmatprep.subr.mxu0 0.0
        %2997 = vmatpush1.xpose.msra.mxu0 0.0
        %2998 = vmatprep.subr.mxu0 0.0
        %2999 = vmatpush1.xpose.msra.mxu0 0.0
        %3000 = vmatprep.subr.mxu0 0.0
        %3001 = vmatpush1.xpose.msra.mxu0 0.0
        %3002 = vmatprep.subr.mxu0 0.0
        %3003 = vmatpush1.xpose.msra.mxu0 0.0
        %3004 = vmatprep.subr.mxu0 0.0
        %3005 = vmatpush1.xpose.msra.mxu0 0.0
        %3006 = vmatprep.subr.mxu0 0.0
        %3007 = vmatpush1.xpose.msra.mxu0 0.0
        %3008 = vmatprep.subr.mxu0 0.0
        %3009 = vmatpush1.xpose.msra.mxu0 0.0
        %3010 = vmatprep.subr.mxu0 0.0
        %3011 = vmatpush1.xpose.msra.mxu0 0.0
        %3012 = vmatprep.subr.mxu0 0.0
        %3013 = vmatpush1.xpose.msra.mxu0 0.0
        %3014 = vmatprep.mubr.f32.mxu0 0.0
        %3015 = vmatmul.mubr.f32.gmra.mrb[0].mxu0 %v2946
        %v3016 = vpop.f32.mrb[0].mxu0
        %v3017 = vadd.f32 0.0, %v3016
        %v3018 = vpop.f32.mrb[0].mxu0
        %3019 = vdwg.mxu0
        %v3020 = vmul.f32 %v3017, 0.25
        %v3021 = vsel %vm1325, %v3020, -inf
        %3022 = vmax.xlane.f32.xlu0 %v3021
        %v3023 = vpop.xlane.xlu0 %3022
        %v3024 = vsub.f32 %v3020, %v3023
        %v3025 = vmul.f32 %v3024, 1.442695
        %v3026 = vpow.pop %v3025
        %v3027 = vsel %vm1325, %v3026, 0.0
        %3028 = vadd.xlane.f32.xlu0 %v3027
        %v3029 = vpop.xlane.xlu0 %3028
        %v3030 = vrcp.pop %v3029
        %v3031 = vmul.f32 %v3026, %v3030
        %3032 = vrot.lane.b32.xlu0 %v1244, 96
        %v3033 = vpop.permute.xlu0 %3032
        %v3036 = vsel %vm1325, %v3031, 0
        %3038 = vmatprep.subr.mxu0 0.0
        %3039 = vmatpush1.msra.mxu0 %v3033
        %3040 = vmatprep.subr.mxu0 0.0
        %3041 = vmatpush1.msra.mxu0 0.0
        %3042 = vmatprep.subr.mxu0 0.0
        %3043 = vmatpush1.msra.mxu0 0.0
        %3044 = vmatprep.subr.mxu0 0.0
        %3045 = vmatpush1.msra.mxu0 0.0
        %3046 = vmatprep.subr.mxu0 0.0
        %3047 = vmatpush1.msra.mxu0 0.0
        %3048 = vmatprep.subr.mxu0 0.0
        %3049 = vmatpush1.msra.mxu0 0.0
        %3050 = vmatprep.subr.mxu0 0.0
        %3051 = vmatpush1.msra.mxu0 0.0
        %3052 = vmatprep.subr.mxu0 0.0
        %3053 = vmatpush1.msra.mxu0 0.0
        %3054 = vmatprep.subr.mxu0 0.0
        %3055 = vmatpush1.msra.mxu0 0.0
        %3056 = vmatprep.subr.mxu0 0.0
        %3057 = vmatpush1.msra.mxu0 0.0
        %3058 = vmatprep.subr.mxu0 0.0
        %3059 = vmatpush1.msra.mxu0 0.0
        %3060 = vmatprep.subr.mxu0 0.0
        %3061 = vmatpush1.msra.mxu0 0.0
        %3062 = vmatprep.subr.mxu0 0.0
        %3063 = vmatpush1.msra.mxu0 0.0
        %3064 = vmatprep.subr.mxu0 0.0
        %3065 = vmatpush1.msra.mxu0 0.0
        %3066 = vmatprep.subr.mxu0 0.0
        %3067 = vmatpush1.msra.mxu0 0.0
        %3068 = vmatprep.subr.mxu0 0.0
        %3069 = vmatpush1.msra.mxu0 0.0
        %3070 = vmatprep.subr.mxu0 0.0
        %3071 = vmatpush1.msra.mxu0 0.0
        %3072 = vmatprep.subr.mxu0 0.0
        %3073 = vmatpush1.msra.mxu0 0.0
        %3074 = vmatprep.subr.mxu0 0.0
        %3075 = vmatpush1.msra.mxu0 0.0
        %3076 = vmatprep.subr.mxu0 0.0
        %3077 = vmatpush1.msra.mxu0 0.0
        %3078 = vmatprep.subr.mxu0 0.0
        %3079 = vmatpush1.msra.mxu0 0.0
        %3080 = vmatprep.subr.mxu0 0.0
        %3081 = vmatpush1.msra.mxu0 0.0
        %3082 = vmatprep.subr.mxu0 0.0
        %3083 = vmatpush1.msra.mxu0 0.0
        %3084 = vmatprep.subr.mxu0 0.0
        %3085 = vmatpush1.msra.mxu0 0.0
        %3086 = vmatprep.subr.mxu0 0.0
        %3087 = vmatpush1.msra.mxu0 0.0
        %3088 = vmatprep.subr.mxu0 0.0
        %3089 = vmatpush1.msra.mxu0 0.0
        %3090 = vmatprep.subr.mxu0 0.0
        %3091 = vmatpush1.msra.mxu0 0.0
        %3092 = vmatprep.subr.mxu0 0.0
        %3093 = vmatpush1.msra.mxu0 0.0
        %3094 = vmatprep.subr.mxu0 0.0
        %3095 = vmatpush1.msra.mxu0 0.0
        %3096 = vmatprep.subr.mxu0 0.0
        %3097 = vmatpush1.msra.mxu0 0.0
        %3098 = vmatprep.subr.mxu0 0.0
        %3099 = vmatpush1.msra.mxu0 0.0
        %3100 = vmatprep.subr.mxu0 0.0
        %3101 = vmatpush1.msra.mxu0 0.0
        %3102 = vmatprep.mubr.f32.mxu0 0.0
        %3103 = vmatmul.mubr.f32.gmra.mrb[0].mxu0 %v3036
        %v3104 = vpop.f32.mrb[0].mxu0
        %v3105 = vadd.f32 0.0, %v3104
        %v3106 = vpop.f32.mrb[0].mxu0
        %3107 = vdwg.mxu0
        %3108 = vrot.lane.b32.xlu0 %v1168, 80
        %v3109 = vpop.permute.xlu0 %3108
        %3110 = vrot.lane.b32.xlu0 %v1170, 80
        %v3111 = vpop.permute.xlu0 %3110
        %v3112 = vsel %vm1247, %v3109, 0
        %v3114 = vsel %vm1247, %v3111, 0
        %3116 = vmatprep.subr.mxu0 0.0
        %3117 = vmatpush1.xpose.msra.mxu0 %v3114
        %3118 = vmatprep.subr.mxu0 0.0
        %3119 = vmatpush1.xpose.msra.mxu0 0.0
        %3120 = vmatprep.subr.mxu0 0.0
        %3121 = vmatpush1.xpose.msra.mxu0 0.0
        %3122 = vmatprep.subr.mxu0 0.0
        %3123 = vmatpush1.xpose.msra.mxu0 0.0
        %3124 = vmatprep.subr.mxu0 0.0
        %3125 = vmatpush1.xpose.msra.mxu0 0.0
        %3126 = vmatprep.subr.mxu0 0.0
        %3127 = vmatpush1.xpose.msra.mxu0 0.0
        %3128 = vmatprep.subr.mxu0 0.0
        %3129 = vmatpush1.xpose.msra.mxu0 0.0
        %3130 = vmatprep.subr.mxu0 0.0
        %3131 = vmatpush1.xpose.msra.mxu0 0.0
        %3132 = vmatprep.subr.mxu0 0.0
        %3133 = vmatpush1.xpose.msra.mxu0 0.0
        %3134 = vmatprep.subr.mxu0 0.0
        %3135 = vmatpush1.xpose.msra.mxu0 0.0
        %3136 = vmatprep.subr.mxu0 0.0
        %3137 = vmatpush1.xpose.msra.mxu0 0.0
        %3138 = vmatprep.subr.mxu0 0.0
        %3139 = vmatpush1.xpose.msra.mxu0 0.0
        %3140 = vmatprep.subr.mxu0 0.0
        %3141 = vmatpush1.xpose.msra.mxu0 0.0
        %3142 = vmatprep.subr.mxu0 0.0
        %3143 = vmatpush1.xpose.msra.mxu0 0.0
        %3144 = vmatprep.subr.mxu0 0.0
        %3145 = vmatpush1.xpose.msra.mxu0 0.0
        %3146 = vmatprep.subr.mxu0 0.0
        %3147 = vmatpush1.xpose.msra.mxu0 0.0
        %3148 = vmatprep.subr.mxu0 0.0
        %3149 = vmatpush1.xpose.msra.mxu0 0.0
        %3150 = vmatprep.subr.mxu0 0.0
        %3151 = vmatpush1.xpose.msra.mxu0 0.0
        %3152 = vmatprep.subr.mxu0 0.0
        %3153 = vmatpush1.xpose.msra.mxu0 0.0
        %3154 = vmatprep.subr.mxu0 0.0
        %3155 = vmatpush1.xpose.msra.mxu0 0.0
        %3156 = vmatprep.subr.mxu0 0.0
        %3157 = vmatpush1.xpose.msra.mxu0 0.0
        %3158 = vmatprep.subr.mxu0 0.0
        %3159 = vmatpush1.xpose.msra.mxu0 0.0
        %3160 = vmatprep.subr.mxu0 0.0
        %3161 = vmatpush1.xpose.msra.mxu0 0.0
        %3162 = vmatprep.subr.mxu0 0.0
        %3163 = vmatpush1.xpose.msra.mxu0 0.0
        %3164 = vmatprep.subr.mxu0 0.0
        %3165 = vmatpush1.xpose.msra.mxu0 0.0
        %3166 = vmatprep.subr.mxu0 0.0
        %3167 = vmatpush1.xpose.msra.mxu0 0.0
        %3168 = vmatprep.subr.mxu0 0.0
        %3169 = vmatpush1.xpose.msra.mxu0 0.0
        %3170 = vmatprep.subr.mxu0 0.0
        %3171 = vmatpush1.xpose.msra.mxu0 0.0
        %3172 = vmatprep.subr.mxu0 0.0
        %3173 = vmatpush1.xpose.msra.mxu0 0.0
        %3174 = vmatprep.subr.mxu0 0.0
        %3175 = vmatpush1.xpose.msra.mxu0 0.0
        %3176 = vmatprep.subr.mxu0 0.0
        %3177 = vmatpush1.xpose.msra.mxu0 0.0
        %3178 = vmatprep.subr.mxu0 0.0
        %3179 = vmatpush1.xpose.msra.mxu0 0.0
        %3180 = vmatprep.mubr.f32.mxu0 0.0
        %3181 = vmatmul.mubr.f32.gmra.mrb[0].mxu0 %v3112
        %v3182 = vpop.f32.mrb[0].mxu0
        %v3183 = vadd.f32 0.0, %v3182
        %v3184 = vpop.f32.mrb[0].mxu0
        %3185 = vdwg.mxu0
        %v3186 = vmul.f32 %v3183, 0.25
        %v3187 = vsel %vm1325, %v3186, -inf
        %3188 = vmax.xlane.f32.xlu0 %v3187
        %v3189 = vpop.xlane.xlu0 %3188
        %v3190 = vsub.f32 %v3186, %v3189
        %v3191 = vmul.f32 %v3190, 1.442695
        %v3192 = vpow.pop %v3191
        %v3193 = vsel %vm1325, %v3192, 0.0
        %3194 = vadd.xlane.f32.xlu0 %v3193
        %v3195 = vpop.xlane.xlu0 %3194
        %v3196 = vrcp.pop %v3195
        %v3197 = vmul.f32 %v3192, %v3196
        %3198 = vrot.lane.b32.xlu0 %v1244, 80
        %v3199 = vpop.permute.xlu0 %3198
        %v3202 = vsel %vm1325, %v3197, 0
        %3204 = vmatprep.subr.mxu0 0.0
        %3205 = vmatpush1.msra.mxu0 %v3199
        %3206 = vmatprep.subr.mxu0 0.0
        %3207 = vmatpush1.msra.mxu0 0.0
        %3208 = vmatprep.subr.mxu0 0.0
        %3209 = vmatpush1.msra.mxu0 0.0
        %3210 = vmatprep.subr.mxu0 0.0
        %3211 = vmatpush1.msra.mxu0 0.0
        %3212 = vmatprep.subr.mxu0 0.0
        %3213 = vmatpush1.msra.mxu0 0.0
        %3214 = vmatprep.subr.mxu0 0.0
        %3215 = vmatpush1.msra.mxu0 0.0
        %3216 = vmatprep.subr.mxu0 0.0
        %3217 = vmatpush1.msra.mxu0 0.0
        %3218 = vmatprep.subr.mxu0 0.0
        %3219 = vmatpush1.msra.mxu0 0.0
        %3220 = vmatprep.subr.mxu0 0.0
        %3221 = vmatpush1.msra.mxu0 0.0
        %3222 = vmatprep.subr.mxu0 0.0
        %3223 = vmatpush1.msra.mxu0 0.0
        %3224 = vmatprep.subr.mxu0 0.0
        %3225 = vmatpush1.msra.mxu0 0.0
        %3226 = vmatprep.subr.mxu0 0.0
        %3227 = vmatpush1.msra.mxu0 0.0
        %3228 = vmatprep.subr.mxu0 0.0
        %3229 = vmatpush1.msra.mxu0 0.0
        %3230 = vmatprep.subr.mxu0 0.0
        %3231 = vmatpush1.msra.mxu0 0.0
        %3232 = vmatprep.subr.mxu0 0.0
        %3233 = vmatpush1.msra.mxu0 0.0
        %3234 = vmatprep.subr.mxu0 0.0
        %3235 = vmatpush1.msra.mxu0 0.0
        %3236 = vmatprep.subr.mxu0 0.0
        %3237 = vmatpush1.msra.mxu0 0.0
        %3238 = vmatprep.subr.mxu0 0.0
        %3239 = vmatpush1.msra.mxu0 0.0
        %3240 = vmatprep.subr.mxu0 0.0
        %3241 = vmatpush1.msra.mxu0 0.0
        %3242 = vmatprep.subr.mxu0 0.0
        %3243 = vmatpush1.msra.mxu0 0.0
        %3244 = vmatprep.subr.mxu0 0.0
        %3245 = vmatpush1.msra.mxu0 0.0
        %3246 = vmatprep.subr.mxu0 0.0
        %3247 = vmatpush1.msra.mxu0 0.0
        %3248 = vmatprep.subr.mxu0 0.0
        %3249 = vmatpush1.msra.mxu0 0.0
        %3250 = vmatprep.subr.mxu0 0.0
        %3251 = vmatpush1.msra.mxu0 0.0
        %3252 = vmatprep.subr.mxu0 0.0
        %3253 = vmatpush1.msra.mxu0 0.0
        %3254 = vmatprep.subr.mxu0 0.0
        %3255 = vmatpush1.msra.mxu0 0.0
        %3256 = vmatprep.subr.mxu0 0.0
        %3257 = vmatpush1.msra.mxu0 0.0
        %3258 = vmatprep.subr.mxu0 0.0
        %3259 = vmatpush1.msra.mxu0 0.0
        %3260 = vmatprep.subr.mxu0 0.0
        %3261 = vmatpush1.msra.mxu0 0.0
        %3262 = vmatprep.subr.mxu0 0.0
        %3263 = vmatpush1.msra.mxu0 0.0
        %3264 = vmatprep.subr.mxu0 0.0
        %3265 = vmatpush1.msra.mxu0 0.0
        %3266 = vmatprep.subr.mxu0 0.0
        %3267 = vmatpush1.msra.mxu0 0.0
        %3268 = vmatprep.mubr.f32.mxu0 0.0
        %3269 = vmatmul.mubr.f32.gmra.mrb[0].mxu0 %v3202
        %v3270 = vpop.f32.mrb[0].mxu0
        %v3271 = vadd.f32 0.0, %v3270
        %v3272 = vpop.f32.mrb[0].mxu0
        %3273 = vdwg.mxu0
        %3274 = vrot.lane.b32.xlu0 %v1168, 64
        %v3275 = vpop.permute.xlu0 %3274
        %3276 = vrot.lane.b32.xlu0 %v1170, 64
        %v3277 = vpop.permute.xlu0 %3276
        %v3278 = vsel %vm1247, %v3275, 0
        %v3280 = vsel %vm1247, %v3277, 0
        %3282 = vmatprep.subr.mxu0 0.0
        %3283 = vmatpush1.xpose.msra.mxu0 %v3280
        %3284 = vmatprep.subr.mxu0 0.0
        %3285 = vmatpush1.xpose.msra.mxu0 0.0
        %3286 = vmatprep.subr.mxu0 0.0
        %3287 = vmatpush1.xpose.msra.mxu0 0.0
        %3288 = vmatprep.subr.mxu0 0.0
        %3289 = vmatpush1.xpose.msra.mxu0 0.0
        %3290 = vmatprep.subr.mxu0 0.0
        %3291 = vmatpush1.xpose.msra.mxu0 0.0
        %3292 = vmatprep.subr.mxu0 0.0
        %3293 = vmatpush1.xpose.msra.mxu0 0.0
        %3294 = vmatprep.subr.mxu0 0.0
        %3295 = vmatpush1.xpose.msra.mxu0 0.0
        %3296 = vmatprep.subr.mxu0 0.0
        %3297 = vmatpush1.xpose.msra.mxu0 0.0
        %3298 = vmatprep.subr.mxu0 0.0
        %3299 = vmatpush1.xpose.msra.mxu0 0.0
        %3300 = vmatprep.subr.mxu0 0.0
        %3301 = vmatpush1.xpose.msra.mxu0 0.0
        %3302 = vmatprep.subr.mxu0 0.0
        %3303 = vmatpush1.xpose.msra.mxu0 0.0
        %3304 = vmatprep.subr.mxu0 0.0
        %3305 = vmatpush1.xpose.msra.mxu0 0.0
        %3306 = vmatprep.subr.mxu0 0.0
        %3307 = vmatpush1.xpose.msra.mxu0 0.0
        %3308 = vmatprep.subr.mxu0 0.0
        %3309 = vmatpush1.xpose.msra.mxu0 0.0
        %3310 = vmatprep.subr.mxu0 0.0
        %3311 = vmatpush1.xpose.msra.mxu0 0.0
        %3312 = vmatprep.subr.mxu0 0.0
        %3313 = vmatpush1.xpose.msra.mxu0 0.0
        %3314 = vmatprep.subr.mxu0 0.0
        %3315 = vmatpush1.xpose.msra.mxu0 0.0
        %3316 = vmatprep.subr.mxu0 0.0
        %3317 = vmatpush1.xpose.msra.mxu0 0.0
        %3318 = vmatprep.subr.mxu0 0.0
        %3319 = vmatpush1.xpose.msra.mxu0 0.0
        %3320 = vmatprep.subr.mxu0 0.0
        %3321 = vmatpush1.xpose.msra.mxu0 0.0
        %3322 = vmatprep.subr.mxu0 0.0
        %3323 = vmatpush1.xpose.msra.mxu0 0.0
        %3324 = vmatprep.subr.mxu0 0.0
        %3325 = vmatpush1.xpose.msra.mxu0 0.0
        %3326 = vmatprep.subr.mxu0 0.0
        %3327 = vmatpush1.xpose.msra.mxu0 0.0
        %3328 = vmatprep.subr.mxu0 0.0
        %3329 = vmatpush1.xpose.msra.mxu0 0.0
        %3330 = vmatprep.subr.mxu0 0.0
        %3331 = vmatpush1.xpose.msra.mxu0 0.0
        %3332 = vmatprep.subr.mxu0 0.0
        %3333 = vmatpush1.xpose.msra.mxu0 0.0
        %3334 = vmatprep.subr.mxu0 0.0
        %3335 = vmatpush1.xpose.msra.mxu0 0.0
        %3336 = vmatprep.subr.mxu0 0.0
        %3337 = vmatpush1.xpose.msra.mxu0 0.0
        %3338 = vmatprep.subr.mxu0 0.0
        %3339 = vmatpush1.xpose.msra.mxu0 0.0
        %3340 = vmatprep.subr.mxu0 0.0
        %3341 = vmatpush1.xpose.msra.mxu0 0.0
        %3342 = vmatprep.subr.mxu0 0.0
        %3343 = vmatpush1.xpose.msra.mxu0 0.0
        %3344 = vmatprep.subr.mxu0 0.0
        %3345 = vmatpush1.xpose.msra.mxu0 0.0
        %3346 = vmatprep.mubr.f32.mxu0 0.0
        %3347 = vmatmul.mubr.f32.gmra.mrb[0].mxu0 %v3278
        %v3348 = vpop.f32.mrb[0].mxu0
        %v3349 = vadd.f32 0.0, %v3348
        %v3350 = vpop.f32.mrb[0].mxu0
        %3351 = vdwg.mxu0
        %v3352 = vmul.f32 %v3349, 0.25
        %v3353 = vsel %vm1325, %v3352, -inf
        %3354 = vmax.xlane.f32.xlu0 %v3353
        %v3355 = vpop.xlane.xlu0 %3354
        %v3356 = vsub.f32 %v3352, %v3355
        %v3357 = vmul.f32 %v3356, 1.442695
        %v3358 = vpow.pop %v3357
        %v3359 = vsel %vm1325, %v3358, 0.0
        %3360 = vadd.xlane.f32.xlu0 %v3359
        %v3361 = vpop.xlane.xlu0 %3360
        %v3362 = vrcp.pop %v3361
        %v3363 = vmul.f32 %v3358, %v3362
        %3364 = vrot.lane.b32.xlu0 %v1244, 64
        %v3365 = vpop.permute.xlu0 %3364
        %v3368 = vsel %vm1325, %v3363, 0
        %3370 = vmatprep.subr.mxu0 0.0
        %3371 = vmatpush1.msra.mxu0 %v3365
        %3372 = vmatprep.subr.mxu0 0.0
        %3373 = vmatpush1.msra.mxu0 0.0
        %3374 = vmatprep.subr.mxu0 0.0
        %3375 = vmatpush1.msra.mxu0 0.0
        %3376 = vmatprep.subr.mxu0 0.0
        %3377 = vmatpush1.msra.mxu0 0.0
        %3378 = vmatprep.subr.mxu0 0.0
        %3379 = vmatpush1.msra.mxu0 0.0
        %3380 = vmatprep.subr.mxu0 0.0
        %3381 = vmatpush1.msra.mxu0 0.0
        %3382 = vmatprep.subr.mxu0 0.0
        %3383 = vmatpush1.msra.mxu0 0.0
        %3384 = vmatprep.subr.mxu0 0.0
        %3385 = vmatpush1.msra.mxu0 0.0
        %3386 = vmatprep.subr.mxu0 0.0
        %3387 = vmatpush1.msra.mxu0 0.0
        %3388 = vmatprep.subr.mxu0 0.0
        %3389 = vmatpush1.msra.mxu0 0.0
        %3390 = vmatprep.subr.mxu0 0.0
        %3391 = vmatpush1.msra.mxu0 0.0
        %3392 = vmatprep.subr.mxu0 0.0
        %3393 = vmatpush1.msra.mxu0 0.0
        %3394 = vmatprep.subr.mxu0 0.0
        %3395 = vmatpush1.msra.mxu0 0.0
        %3396 = vmatprep.subr.mxu0 0.0
        %3397 = vmatpush1.msra.mxu0 0.0
        %3398 = vmatprep.subr.mxu0 0.0
        %3399 = vmatpush1.msra.mxu0 0.0
        %3400 = vmatprep.subr.mxu0 0.0
        %3401 = vmatpush1.msra.mxu0 0.0
        %3402 = vmatprep.subr.mxu0 0.0
        %3403 = vmatpush1.msra.mxu0 0.0
        %3404 = vmatprep.subr.mxu0 0.0
        %3405 = vmatpush1.msra.mxu0 0.0
        %3406 = vmatprep.subr.mxu0 0.0
        %3407 = vmatpush1.msra.mxu0 0.0
        %3408 = vmatprep.subr.mxu0 0.0
        %3409 = vmatpush1.msra.mxu0 0.0
        %3410 = vmatprep.subr.mxu0 0.0
        %3411 = vmatpush1.msra.mxu0 0.0
        %3412 = vmatprep.subr.mxu0 0.0
        %3413 = vmatpush1.msra.mxu0 0.0
        %3414 = vmatprep.subr.mxu0 0.0
        %3415 = vmatpush1.msra.mxu0 0.0
        %3416 = vmatprep.subr.mxu0 0.0
        %3417 = vmatpush1.msra.mxu0 0.0
        %3418 = vmatprep.subr.mxu0 0.0
        %3419 = vmatpush1.msra.mxu0 0.0
        %3420 = vmatprep.subr.mxu0 0.0
        %3421 = vmatpush1.msra.mxu0 0.0
        %3422 = vmatprep.subr.mxu0 0.0
        %3423 = vmatpush1.msra.mxu0 0.0
        %3424 = vmatprep.subr.mxu0 0.0
        %3425 = vmatpush1.msra.mxu0 0.0
        %3426 = vmatprep.subr.mxu0 0.0
        %3427 = vmatpush1.msra.mxu0 0.0
        %3428 = vmatprep.subr.mxu0 0.0
        %3429 = vmatpush1.msra.mxu0 0.0
        %3430 = vmatprep.subr.mxu0 0.0
        %3431 = vmatpush1.msra.mxu0 0.0
        %3432 = vmatprep.subr.mxu0 0.0
        %3433 = vmatpush1.msra.mxu0 0.0
        %3434 = vmatprep.mubr.f32.mxu0 0.0
        %3435 = vmatmul.mubr.f32.gmra.mrb[0].mxu0 %v3368
        %v3436 = vpop.f32.mrb[0].mxu0
        %v3437 = vadd.f32 0.0, %v3436
        %v3438 = vpop.f32.mrb[0].mxu0
        %3439 = vdwg.mxu0
        %3440 = vrot.lane.b32.xlu0 %v1168, 48
        %v3441 = vpop.permute.xlu0 %3440
        %3442 = vrot.lane.b32.xlu0 %v1170, 48
        %v3443 = vpop.permute.xlu0 %3442
        %v3444 = vsel %vm1247, %v3441, 0
        %v3446 = vsel %vm1247, %v3443, 0
        %3448 = vmatprep.subr.mxu0 0.0
        %3449 = vmatpush1.xpose.msra.mxu0 %v3446
        %3450 = vmatprep.subr.mxu0 0.0
        %3451 = vmatpush1.xpose.msra.mxu0 0.0
        %3452 = vmatprep.subr.mxu0 0.0
        %3453 = vmatpush1.xpose.msra.mxu0 0.0
        %3454 = vmatprep.subr.mxu0 0.0
        %3455 = vmatpush1.xpose.msra.mxu0 0.0
        %3456 = vmatprep.subr.mxu0 0.0
        %3457 = vmatpush1.xpose.msra.mxu0 0.0
        %3458 = vmatprep.subr.mxu0 0.0
        %3459 = vmatpush1.xpose.msra.mxu0 0.0
        %3460 = vmatprep.subr.mxu0 0.0
        %3461 = vmatpush1.xpose.msra.mxu0 0.0
        %3462 = vmatprep.subr.mxu0 0.0
        %3463 = vmatpush1.xpose.msra.mxu0 0.0
        %3464 = vmatprep.subr.mxu0 0.0
        %3465 = vmatpush1.xpose.msra.mxu0 0.0
        %3466 = vmatprep.subr.mxu0 0.0
        %3467 = vmatpush1.xpose.msra.mxu0 0.0
        %3468 = vmatprep.subr.mxu0 0.0
        %3469 = vmatpush1.xpose.msra.mxu0 0.0
        %3470 = vmatprep.subr.mxu0 0.0
        %3471 = vmatpush1.xpose.msra.mxu0 0.0
        %3472 = vmatprep.subr.mxu0 0.0
        %3473 = vmatpush1.xpose.msra.mxu0 0.0
        %3474 = vmatprep.subr.mxu0 0.0
        %3475 = vmatpush1.xpose.msra.mxu0 0.0
        %3476 = vmatprep.subr.mxu0 0.0
        %3477 = vmatpush1.xpose.msra.mxu0 0.0
        %3478 = vmatprep.subr.mxu0 0.0
        %3479 = vmatpush1.xpose.msra.mxu0 0.0
        %3480 = vmatprep.subr.mxu0 0.0
        %3481 = vmatpush1.xpose.msra.mxu0 0.0
        %3482 = vmatprep.subr.mxu0 0.0
        %3483 = vmatpush1.xpose.msra.mxu0 0.0
        %3484 = vmatprep.subr.mxu0 0.0
        %3485 = vmatpush1.xpose.msra.mxu0 0.0
        %3486 = vmatprep.subr.mxu0 0.0
        %3487 = vmatpush1.xpose.msra.mxu0 0.0
        %3488 = vmatprep.subr.mxu0 0.0
        %3489 = vmatpush1.xpose.msra.mxu0 0.0
        %3490 = vmatprep.subr.mxu0 0.0
        %3491 = vmatpush1.xpose.msra.mxu0 0.0
        %3492 = vmatprep.subr.mxu0 0.0
        %3493 = vmatpush1.xpose.msra.mxu0 0.0
        %3494 = vmatprep.subr.mxu0 0.0
        %3495 = vmatpush1.xpose.msra.mxu0 0.0
        %3496 = vmatprep.subr.mxu0 0.0
        %3497 = vmatpush1.xpose.msra.mxu0 0.0
        %3498 = vmatprep.subr.mxu0 0.0
        %3499 = vmatpush1.xpose.msra.mxu0 0.0
        %3500 = vmatprep.subr.mxu0 0.0
        %3501 = vmatpush1.xpose.msra.mxu0 0.0
        %3502 = vmatprep.subr.mxu0 0.0
        %3503 = vmatpush1.xpose.msra.mxu0 0.0
        %3504 = vmatprep.subr.mxu0 0.0
        %3505 = vmatpush1.xpose.msra.mxu0 0.0
        %3506 = vmatprep.subr.mxu0 0.0
        %3507 = vmatpush1.xpose.msra.mxu0 0.0
        %3508 = vmatprep.subr.mxu0 0.0
        %3509 = vmatpush1.xpose.msra.mxu0 0.0
        %3510 = vmatprep.subr.mxu0 0.0
        %3511 = vmatpush1.xpose.msra.mxu0 0.0
        %3512 = vmatprep.mubr.f32.mxu0 0.0
        %3513 = vmatmul.mubr.f32.gmra.mrb[0].mxu0 %v3444
        %v3514 = vpop.f32.mrb[0].mxu0
        %v3515 = vadd.f32 0.0, %v3514
        %v3516 = vpop.f32.mrb[0].mxu0
        %3517 = vdwg.mxu0
        %v3518 = vmul.f32 %v3515, 0.25
        %v3519 = vsel %vm1325, %v3518, -inf
        %3520 = vmax.xlane.f32.xlu0 %v3519
        %v3521 = vpop.xlane.xlu0 %3520
        %v3522 = vsub.f32 %v3518, %v3521
        %v3523 = vmul.f32 %v3522, 1.442695
        %v3524 = vpow.pop %v3523
        %v3525 = vsel %vm1325, %v3524, 0.0
        %3526 = vadd.xlane.f32.xlu0 %v3525
        %v3527 = vpop.xlane.xlu0 %3526
        %v3528 = vrcp.pop %v3527
        %v3529 = vmul.f32 %v3524, %v3528
        %3530 = vrot.lane.b32.xlu0 %v1244, 48
        %v3531 = vpop.permute.xlu0 %3530
        %v3534 = vsel %vm1325, %v3529, 0
        %3536 = vmatprep.subr.mxu0 0.0
        %3537 = vmatpush1.msra.mxu0 %v3531
        %3538 = vmatprep.subr.mxu0 0.0
        %3539 = vmatpush1.msra.mxu0 0.0
        %3540 = vmatprep.subr.mxu0 0.0
        %3541 = vmatpush1.msra.mxu0 0.0
        %3542 = vmatprep.subr.mxu0 0.0
        %3543 = vmatpush1.msra.mxu0 0.0
        %3544 = vmatprep.subr.mxu0 0.0
        %3545 = vmatpush1.msra.mxu0 0.0
        %3546 = vmatprep.subr.mxu0 0.0
        %3547 = vmatpush1.msra.mxu0 0.0
        %3548 = vmatprep.subr.mxu0 0.0
        %3549 = vmatpush1.msra.mxu0 0.0
        %3550 = vmatprep.subr.mxu0 0.0
        %3551 = vmatpush1.msra.mxu0 0.0
        %3552 = vmatprep.subr.mxu0 0.0
        %3553 = vmatpush1.msra.mxu0 0.0
        %3554 = vmatprep.subr.mxu0 0.0
        %3555 = vmatpush1.msra.mxu0 0.0
        %3556 = vmatprep.subr.mxu0 0.0
        %3557 = vmatpush1.msra.mxu0 0.0
        %3558 = vmatprep.subr.mxu0 0.0
        %3559 = vmatpush1.msra.mxu0 0.0
        %3560 = vmatprep.subr.mxu0 0.0
        %3561 = vmatpush1.msra.mxu0 0.0
        %3562 = vmatprep.subr.mxu0 0.0
        %3563 = vmatpush1.msra.mxu0 0.0
        %3564 = vmatprep.subr.mxu0 0.0
        %3565 = vmatpush1.msra.mxu0 0.0
        %3566 = vmatprep.subr.mxu0 0.0
        %3567 = vmatpush1.msra.mxu0 0.0
        %3568 = vmatprep.subr.mxu0 0.0
        %3569 = vmatpush1.msra.mxu0 0.0
        %3570 = vmatprep.subr.mxu0 0.0
        %3571 = vmatpush1.msra.mxu0 0.0
        %3572 = vmatprep.subr.mxu0 0.0
        %3573 = vmatpush1.msra.mxu0 0.0
        %3574 = vmatprep.subr.mxu0 0.0
        %3575 = vmatpush1.msra.mxu0 0.0
        %3576 = vmatprep.subr.mxu0 0.0
        %3577 = vmatpush1.msra.mxu0 0.0
        %3578 = vmatprep.subr.mxu0 0.0
        %3579 = vmatpush1.msra.mxu0 0.0
        %3580 = vmatprep.subr.mxu0 0.0
        %3581 = vmatpush1.msra.mxu0 0.0
        %3582 = vmatprep.subr.mxu0 0.0
        %3583 = vmatpush1.msra.mxu0 0.0
        %3584 = vmatprep.subr.mxu0 0.0
        %3585 = vmatpush1.msra.mxu0 0.0
        %3586 = vmatprep.subr.mxu0 0.0
        %3587 = vmatpush1.msra.mxu0 0.0
        %3588 = vmatprep.subr.mxu0 0.0
        %3589 = vmatpush1.msra.mxu0 0.0
        %3590 = vmatprep.subr.mxu0 0.0
        %3591 = vmatpush1.msra.mxu0 0.0
        %3592 = vmatprep.subr.mxu0 0.0
        %3593 = vmatpush1.msra.mxu0 0.0
        %3594 = vmatprep.subr.mxu0 0.0
        %3595 = vmatpush1.msra.mxu0 0.0
        %3596 = vmatprep.subr.mxu0 0.0
        %3597 = vmatpush1.msra.mxu0 0.0
        %3598 = vmatprep.subr.mxu0 0.0
        %3599 = vmatpush1.msra.mxu0 0.0
        %3600 = vmatprep.mubr.f32.mxu0 0.0
        %3601 = vmatmul.mubr.f32.gmra.mrb[0].mxu0 %v3534
        %v3602 = vpop.f32.mrb[0].mxu0
        %v3603 = vadd.f32 0.0, %v3602
        %v3604 = vpop.f32.mrb[0].mxu0
        %3605 = vdwg.mxu0
        %3606 = vrot.lane.b32.xlu0 %v1168, 32
        %v3607 = vpop.permute.xlu0 %3606
        %3608 = vrot.lane.b32.xlu0 %v1170, 32
        %v3609 = vpop.permute.xlu0 %3608
        %v3610 = vsel %vm1247, %v3607, 0
        %v3612 = vsel %vm1247, %v3609, 0
        %3614 = vmatprep.subr.mxu0 0.0
        %3615 = vmatpush1.xpose.msra.mxu0 %v3612
        %3616 = vmatprep.subr.mxu0 0.0
        %3617 = vmatpush1.xpose.msra.mxu0 0.0
        %3618 = vmatprep.subr.mxu0 0.0
        %3619 = vmatpush1.xpose.msra.mxu0 0.0
        %3620 = vmatprep.subr.mxu0 0.0
        %3621 = vmatpush1.xpose.msra.mxu0 0.0
        %3622 = vmatprep.subr.mxu0 0.0
        %3623 = vmatpush1.xpose.msra.mxu0 0.0
        %3624 = vmatprep.subr.mxu0 0.0
        %3625 = vmatpush1.xpose.msra.mxu0 0.0
        %3626 = vmatprep.subr.mxu0 0.0
        %3627 = vmatpush1.xpose.msra.mxu0 0.0
        %3628 = vmatprep.subr.mxu0 0.0
        %3629 = vmatpush1.xpose.msra.mxu0 0.0
        %3630 = vmatprep.subr.mxu0 0.0
        %3631 = vmatpush1.xpose.msra.mxu0 0.0
        %3632 = vmatprep.subr.mxu0 0.0
        %3633 = vmatpush1.xpose.msra.mxu0 0.0
        %3634 = vmatprep.subr.mxu0 0.0
        %3635 = vmatpush1.xpose.msra.mxu0 0.0
        %3636 = vmatprep.subr.mxu0 0.0
        %3637 = vmatpush1.xpose.msra.mxu0 0.0
        %3638 = vmatprep.subr.mxu0 0.0
        %3639 = vmatpush1.xpose.msra.mxu0 0.0
        %3640 = vmatprep.subr.mxu0 0.0
        %3641 = vmatpush1.xpose.msra.mxu0 0.0
        %3642 = vmatprep.subr.mxu0 0.0
        %3643 = vmatpush1.xpose.msra.mxu0 0.0
        %3644 = vmatprep.subr.mxu0 0.0
        %3645 = vmatpush1.xpose.msra.mxu0 0.0
        %3646 = vmatprep.subr.mxu0 0.0
        %3647 = vmatpush1.xpose.msra.mxu0 0.0
        %3648 = vmatprep.subr.mxu0 0.0
        %3649 = vmatpush1.xpose.msra.mxu0 0.0
        %3650 = vmatprep.subr.mxu0 0.0
        %3651 = vmatpush1.xpose.msra.mxu0 0.0
        %3652 = vmatprep.subr.mxu0 0.0
        %3653 = vmatpush1.xpose.msra.mxu0 0.0
        %3654 = vmatprep.subr.mxu0 0.0
        %3655 = vmatpush1.xpose.msra.mxu0 0.0
        %3656 = vmatprep.subr.mxu0 0.0
        %3657 = vmatpush1.xpose.msra.mxu0 0.0
        %3658 = vmatprep.subr.mxu0 0.0
        %3659 = vmatpush1.xpose.msra.mxu0 0.0
        %3660 = vmatprep.subr.mxu0 0.0
        %3661 = vmatpush1.xpose.msra.mxu0 0.0
        %3662 = vmatprep.subr.mxu0 0.0
        %3663 = vmatpush1.xpose.msra.mxu0 0.0
        %3664 = vmatprep.subr.mxu0 0.0
        %3665 = vmatpush1.xpose.msra.mxu0 0.0
        %3666 = vmatprep.subr.mxu0 0.0
        %3667 = vmatpush1.xpose.msra.mxu0 0.0
        %3668 = vmatprep.subr.mxu0 0.0
        %3669 = vmatpush1.xpose.msra.mxu0 0.0
        %3670 = vmatprep.subr.mxu0 0.0
        %3671 = vmatpush1.xpose.msra.mxu0 0.0
        %3672 = vmatprep.subr.mxu0 0.0
        %3673 = vmatpush1.xpose.msra.mxu0 0.0
        %3674 = vmatprep.subr.mxu0 0.0
        %3675 = vmatpush1.xpose.msra.mxu0 0.0
        %3676 = vmatprep.subr.mxu0 0.0
        %3677 = vmatpush1.xpose.msra.mxu0 0.0
        %3678 = vmatprep.mubr.f32.mxu0 0.0
        %3679 = vmatmul.mubr.f32.gmra.mrb[0].mxu0 %v3610
        %v3680 = vpop.f32.mrb[0].mxu0
        %v3681 = vadd.f32 0.0, %v3680
        %v3682 = vpop.f32.mrb[0].mxu0
        %3683 = vdwg.mxu0
        %v3684 = vmul.f32 %v3681, 0.25
        %v3685 = vsel %vm1325, %v3684, -inf
        %3686 = vmax.xlane.f32.xlu0 %v3685
        %v3687 = vpop.xlane.xlu0 %3686
        %v3688 = vsub.f32 %v3684, %v3687
        %v3689 = vmul.f32 %v3688, 1.442695
        %v3690 = vpow.pop %v3689
        %v3691 = vsel %vm1325, %v3690, 0.0
        %3692 = vadd.xlane.f32.xlu0 %v3691
        %v3693 = vpop.xlane.xlu0 %3692
        %v3694 = vrcp.pop %v3693
        %v3695 = vmul.f32 %v3690, %v3694
        %3696 = vrot.lane.b32.xlu0 %v1244, 32
        %v3697 = vpop.permute.xlu0 %3696
        %v3700 = vsel %vm1325, %v3695, 0
        %3702 = vmatprep.subr.mxu0 0.0
        %3703 = vmatpush1.msra.mxu0 %v3697
        %3704 = vmatprep.subr.mxu0 0.0
        %3705 = vmatpush1.msra.mxu0 0.0
        %3706 = vmatprep.subr.mxu0 0.0
        %3707 = vmatpush1.msra.mxu0 0.0
        %3708 = vmatprep.subr.mxu0 0.0
        %3709 = vmatpush1.msra.mxu0 0.0
        %3710 = vmatprep.subr.mxu0 0.0
        %3711 = vmatpush1.msra.mxu0 0.0
        %3712 = vmatprep.subr.mxu0 0.0
        %3713 = vmatpush1.msra.mxu0 0.0
        %3714 = vmatprep.subr.mxu0 0.0
        %3715 = vmatpush1.msra.mxu0 0.0
        %3716 = vmatprep.subr.mxu0 0.0
        %3717 = vmatpush1.msra.mxu0 0.0
        %3718 = vmatprep.subr.mxu0 0.0
        %3719 = vmatpush1.msra.mxu0 0.0
        %3720 = vmatprep.subr.mxu0 0.0
        %3721 = vmatpush1.msra.mxu0 0.0
        %3722 = vmatprep.subr.mxu0 0.0
        %3723 = vmatpush1.msra.mxu0 0.0
        %3724 = vmatprep.subr.mxu0 0.0
        %3725 = vmatpush1.msra.mxu0 0.0
        %3726 = vmatprep.subr.mxu0 0.0
        %3727 = vmatpush1.msra.mxu0 0.0
        %3728 = vmatprep.subr.mxu0 0.0
        %3729 = vmatpush1.msra.mxu0 0.0
        %3730 = vmatprep.subr.mxu0 0.0
        %3731 = vmatpush1.msra.mxu0 0.0
        %3732 = vmatprep.subr.mxu0 0.0
        %3733 = vmatpush1.msra.mxu0 0.0
        %3734 = vmatprep.subr.mxu0 0.0
        %3735 = vmatpush1.msra.mxu0 0.0
        %3736 = vmatprep.subr.mxu0 0.0
        %3737 = vmatpush1.msra.mxu0 0.0
        %3738 = vmatprep.subr.mxu0 0.0
        %3739 = vmatpush1.msra.mxu0 0.0
        %3740 = vmatprep.subr.mxu0 0.0
        %3741 = vmatpush1.msra.mxu0 0.0
        %3742 = vmatprep.subr.mxu0 0.0
        %3743 = vmatpush1.msra.mxu0 0.0
        %3744 = vmatprep.subr.mxu0 0.0
        %3745 = vmatpush1.msra.mxu0 0.0
        %3746 = vmatprep.subr.mxu0 0.0
        %3747 = vmatpush1.msra.mxu0 0.0
        %3748 = vmatprep.subr.mxu0 0.0
        %3749 = vmatpush1.msra.mxu0 0.0
        %3750 = vmatprep.subr.mxu0 0.0
        %3751 = vmatpush1.msra.mxu0 0.0
        %3752 = vmatprep.subr.mxu0 0.0
        %3753 = vmatpush1.msra.mxu0 0.0
        %3754 = vmatprep.subr.mxu0 0.0
        %3755 = vmatpush1.msra.mxu0 0.0
        %3756 = vmatprep.subr.mxu0 0.0
        %3757 = vmatpush1.msra.mxu0 0.0
        %3758 = vmatprep.subr.mxu0 0.0
        %3759 = vmatpush1.msra.mxu0 0.0
        %3760 = vmatprep.subr.mxu0 0.0
        %3761 = vmatpush1.msra.mxu0 0.0
        %3762 = vmatprep.subr.mxu0 0.0
        %3763 = vmatpush1.msra.mxu0 0.0
        %3764 = vmatprep.subr.mxu0 0.0
        %3765 = vmatpush1.msra.mxu0 0.0
        %3766 = vmatprep.mubr.f32.mxu0 0.0
        %3767 = vmatmul.mubr.f32.gmra.mrb[0].mxu0 %v3700
        %v3768 = vpop.f32.mrb[0].mxu0
        %v3769 = vadd.f32 0.0, %v3768
        %v3770 = vpop.f32.mrb[0].mxu0
        %3771 = vdwg.mxu0
        %3772 = vrot.lane.b32.xlu0 %v1168, 16
        %v3773 = vpop.permute.xlu0 %3772
        %3774 = vrot.lane.b32.xlu0 %v1170, 16
        %v3775 = vpop.permute.xlu0 %3774
        %v3776 = vsel %vm1247, %v3773, 0
        %v3778 = vsel %vm1247, %v3775, 0
        %3780 = vmatprep.subr.mxu0 0.0
        %3781 = vmatpush1.xpose.msra.mxu0 %v3778
        %3782 = vmatprep.subr.mxu0 0.0
        %3783 = vmatpush1.xpose.msra.mxu0 0.0
        %3784 = vmatprep.subr.mxu0 0.0
        %3785 = vmatpush1.xpose.msra.mxu0 0.0
        %3786 = vmatprep.subr.mxu0 0.0
        %3787 = vmatpush1.xpose.msra.mxu0 0.0
        %3788 = vmatprep.subr.mxu0 0.0
        %3789 = vmatpush1.xpose.msra.mxu0 0.0
        %3790 = vmatprep.subr.mxu0 0.0
        %3791 = vmatpush1.xpose.msra.mxu0 0.0
        %3792 = vmatprep.subr.mxu0 0.0
        %3793 = vmatpush1.xpose.msra.mxu0 0.0
        %3794 = vmatprep.subr.mxu0 0.0
        %3795 = vmatpush1.xpose.msra.mxu0 0.0
        %3796 = vmatprep.subr.mxu0 0.0
        %3797 = vmatpush1.xpose.msra.mxu0 0.0
        %3798 = vmatprep.subr.mxu0 0.0
        %3799 = vmatpush1.xpose.msra.mxu0 0.0
        %3800 = vmatprep.subr.mxu0 0.0
        %3801 = vmatpush1.xpose.msra.mxu0 0.0
        %3802 = vmatprep.subr.mxu0 0.0
        %3803 = vmatpush1.xpose.msra.mxu0 0.0
        %3804 = vmatprep.subr.mxu0 0.0
        %3805 = vmatpush1.xpose.msra.mxu0 0.0
        %3806 = vmatprep.subr.mxu0 0.0
        %3807 = vmatpush1.xpose.msra.mxu0 0.0
        %3808 = vmatprep.subr.mxu0 0.0
        %3809 = vmatpush1.xpose.msra.mxu0 0.0
        %3810 = vmatprep.subr.mxu0 0.0
        %3811 = vmatpush1.xpose.msra.mxu0 0.0
        %3812 = vmatprep.subr.mxu0 0.0
        %3813 = vmatpush1.xpose.msra.mxu0 0.0
        %3814 = vmatprep.subr.mxu0 0.0
        %3815 = vmatpush1.xpose.msra.mxu0 0.0
        %3816 = vmatprep.subr.mxu0 0.0
        %3817 = vmatpush1.xpose.msra.mxu0 0.0
        %3818 = vmatprep.subr.mxu0 0.0
        %3819 = vmatpush1.xpose.msra.mxu0 0.0
        %3820 = vmatprep.subr.mxu0 0.0
        %3821 = vmatpush1.xpose.msra.mxu0 0.0
        %3822 = vmatprep.subr.mxu0 0.0
        %3823 = vmatpush1.xpose.msra.mxu0 0.0
        %3824 = vmatprep.subr.mxu0 0.0
        %3825 = vmatpush1.xpose.msra.mxu0 0.0
        %3826 = vmatprep.subr.mxu0 0.0
        %3827 = vmatpush1.xpose.msra.mxu0 0.0
        %3828 = vmatprep.subr.mxu0 0.0
        %3829 = vmatpush1.xpose.msra.mxu0 0.0
        %3830 = vmatprep.subr.mxu0 0.0
        %3831 = vmatpush1.xpose.msra.mxu0 0.0
        %3832 = vmatprep.subr.mxu0 0.0
        %3833 = vmatpush1.xpose.msra.mxu0 0.0
        %3834 = vmatprep.subr.mxu0 0.0
        %3835 = vmatpush1.xpose.msra.mxu0 0.0
        %3836 = vmatprep.subr.mxu0 0.0
        %3837 = vmatpush1.xpose.msra.mxu0 0.0
        %3838 = vmatprep.subr.mxu0 0.0
        %3839 = vmatpush1.xpose.msra.mxu0 0.0
        %3840 = vmatprep.subr.mxu0 0.0
        %3841 = vmatpush1.xpose.msra.mxu0 0.0
        %3842 = vmatprep.subr.mxu0 0.0
        %3843 = vmatpush1.xpose.msra.mxu0 0.0
        %3844 = vmatprep.mubr.f32.mxu0 0.0
        %3845 = vmatmul.mubr.f32.gmra.mrb[0].mxu0 %v3776
        %v3846 = vpop.f32.mrb[0].mxu0
        %v3847 = vadd.f32 0.0, %v3846
        %v3848 = vpop.f32.mrb[0].mxu0
        %3849 = vdwg.mxu0
        %v3850 = vmul.f32 %v3847, 0.25
        %v3851 = vsel %vm1325, %v3850, -inf
        %3852 = vmax.xlane.f32.xlu0 %v3851
        %v3853 = vpop.xlane.xlu0 %3852
        %v3854 = vsub.f32 %v3850, %v3853
        %v3855 = vmul.f32 %v3854, 1.442695
        %v3856 = vpow.pop %v3855
        %v3857 = vsel %vm1325, %v3856, 0.0
        %3858 = vadd.xlane.f32.xlu0 %v3857
        %v3859 = vpop.xlane.xlu0 %3858
        %v3860 = vrcp.pop %v3859
        %v3861 = vmul.f32 %v3856, %v3860
        %3862 = vrot.lane.b32.xlu0 %v1244, 16
        %v3863 = vpop.permute.xlu0 %3862
        %v3866 = vsel %vm1325, %v3861, 0
        %3868 = vmatprep.subr.mxu0 0.0
        %3869 = vmatpush1.msra.mxu0 %v3863
        %3870 = vmatprep.subr.mxu0 0.0
        %3871 = vmatpush1.msra.mxu0 0.0
        %3872 = vmatprep.subr.mxu0 0.0
        %3873 = vmatpush1.msra.mxu0 0.0
        %3874 = vmatprep.subr.mxu0 0.0
        %3875 = vmatpush1.msra.mxu0 0.0
        %3876 = vmatprep.subr.mxu0 0.0
        %3877 = vmatpush1.msra.mxu0 0.0
        %3878 = vmatprep.subr.mxu0 0.0
        %3879 = vmatpush1.msra.mxu0 0.0
        %3880 = vmatprep.subr.mxu0 0.0
        %3881 = vmatpush1.msra.mxu0 0.0
        %3882 = vmatprep.subr.mxu0 0.0
        %3883 = vmatpush1.msra.mxu0 0.0
        %3884 = vmatprep.subr.mxu0 0.0
        %3885 = vmatpush1.msra.mxu0 0.0
        %3886 = vmatprep.subr.mxu0 0.0
        %3887 = vmatpush1.msra.mxu0 0.0
        %3888 = vmatprep.subr.mxu0 0.0
        %3889 = vmatpush1.msra.mxu0 0.0
        %3890 = vmatprep.subr.mxu0 0.0
        %3891 = vmatpush1.msra.mxu0 0.0
        %3892 = vmatprep.subr.mxu0 0.0
        %3893 = vmatpush1.msra.mxu0 0.0
        %3894 = vmatprep.subr.mxu0 0.0
        %3895 = vmatpush1.msra.mxu0 0.0
        %3896 = vmatprep.subr.mxu0 0.0
        %3897 = vmatpush1.msra.mxu0 0.0
        %3898 = vmatprep.subr.mxu0 0.0
        %3899 = vmatpush1.msra.mxu0 0.0
        %3900 = vmatprep.subr.mxu0 0.0
        %3901 = vmatpush1.msra.mxu0 0.0
        %3902 = vmatprep.subr.mxu0 0.0
        %3903 = vmatpush1.msra.mxu0 0.0
        %3904 = vmatprep.subr.mxu0 0.0
        %3905 = vmatpush1.msra.mxu0 0.0
        %3906 = vmatprep.subr.mxu0 0.0
        %3907 = vmatpush1.msra.mxu0 0.0
        %3908 = vmatprep.subr.mxu0 0.0
        %3909 = vmatpush1.msra.mxu0 0.0
        %3910 = vmatprep.subr.mxu0 0.0
        %3911 = vmatpush1.msra.mxu0 0.0
        %3912 = vmatprep.subr.mxu0 0.0
        %3913 = vmatpush1.msra.mxu0 0.0
        %3914 = vmatprep.subr.mxu0 0.0
        %3915 = vmatpush1.msra.mxu0 0.0
        %3916 = vmatprep.subr.mxu0 0.0
        %3917 = vmatpush1.msra.mxu0 0.0
        %3918 = vmatprep.subr.mxu0 0.0
        %3919 = vmatpush1.msra.mxu0 0.0
        %3920 = vmatprep.subr.mxu0 0.0
        %3921 = vmatpush1.msra.mxu0 0.0
        %3922 = vmatprep.subr.mxu0 0.0
        %3923 = vmatpush1.msra.mxu0 0.0
        %3924 = vmatprep.subr.mxu0 0.0
        %3925 = vmatpush1.msra.mxu0 0.0
        %3926 = vmatprep.subr.mxu0 0.0
        %3927 = vmatpush1.msra.mxu0 0.0
        %3928 = vmatprep.subr.mxu0 0.0
        %3929 = vmatpush1.msra.mxu0 0.0
        %3930 = vmatprep.subr.mxu0 0.0
        %3931 = vmatpush1.msra.mxu0 0.0
        %3932 = vmatprep.mubr.f32.mxu0 0.0
        %3933 = vmatmul.mubr.f32.gmra.mrb[0].mxu0 %v3866
        %v3934 = vpop.f32.mrb[0].mxu0
        %v3935 = vadd.f32 0.0, %v3934
        %v3936 = vpop.f32.mrb[0].mxu0
        %3937 = vdwg.mxu0
        %3939 = vrot.lane.b32.xlu0 %v2939, 16
        %v3940 = vpop.permute.xlu0 %3939
        %3943 = vrot.lane.b32.xlu0 %v3105, 32
        %v3944 = vpop.permute.xlu0 %3943
        %3947 = vrot.lane.b32.xlu0 %v3271, 48
        %v3948 = vpop.permute.xlu0 %3947
        %3951 = vrot.lane.b32.xlu0 %v3437, 64
        %v3952 = vpop.permute.xlu0 %3951
        %3955 = vrot.lane.b32.xlu0 %v3603, 80
        %v3956 = vpop.permute.xlu0 %3955
        %3959 = vrot.lane.b32.xlu0 %v3769, 96
        %v3960 = vpop.permute.xlu0 %3959
        %3963 = vrot.lane.b32.xlu0 %v3935, 112
        %v3964 = vpop.permute.xlu0 %3963
        %v3966 = vsel %vm1247, %v2772, %v3940
        %v3967 = vsel %vm2602, %v3966, %v3944
        %v3968 = vsel %vm2604, %v3967, %v3948
        %v3969 = vsel %vm2606, %v3968, %v3952
        %v3970 = vsel %vm2608, %v3969, %v3956
        %v3971 = vsel %vm2610, %v3970, %v3960
        %v3972 = vsel %vm2612, %v3971, %v3964
        %v3973 = vld [vmem:[%s831] sm:$0xff]
        %v3974 = vld [vmem:[%s831 + $0x8] sm:$0xff]
        %v3975 = vld [vmem:[%s831 + $0x10] sm:$0xff]
        %v3976 = vld [vmem:[%s831 + $0x18] sm:$0xff]
        %v3977 = vld [vmem:[%s831 + $0x20] sm:$0xff]
        %v3978 = vld [vmem:[%s831 + $0x28] sm:$0xff]
        %v3979 = vld [vmem:[%s831 + $0x30] sm:$0xff]
        %v3980 = vld [vmem:[%s831 + $0x38] sm:$0xff]
        %v3981 = vld [vmem:[%s831 + $0x40] sm:$0xff]
        %v3982 = vld [vmem:[%s831 + $0x48] sm:$0xff]
        %v3983 = vld [vmem:[%s831 + $0x50] sm:$0xff]
        %v3984 = vld [vmem:[%s831 + $0x58] sm:$0xff]
        %v3985 = vld [vmem:[%s831 + $0x60] sm:$0xff]
        %v3986 = vld [vmem:[%s831 + $0x68] sm:$0xff]
        %v3987 = vld [vmem:[%s831 + $0x70] sm:$0xff]
        %v3988 = vld [vmem:[%s831 + $0x78] sm:$0xff]
        %v3989 = vld [vmem:[%s839] sm:$0x1]
        %v3991 = vlaneseq
        %v3992 = vshrl.u32 %v3991, 7
        %v3993 = vsub.s32 0, %v3992
        %v3994 = vrot.slane %v3989, %v3993
        %3996 = vmatprep.subr.mxu0 0.0
        %3997 = vmatpush1.msra.mxu0 %v3973
        %3998 = vmatprep.subr.mxu0 0.0
        %3999 = vmatpush1.msra.mxu0 %v3974
        %4000 = vmatprep.subr.mxu0 0.0
        %4001 = vmatpush1.msra.mxu0 %v3975
        %4002 = vmatprep.subr.mxu0 0.0
        %4003 = vmatpush1.msra.mxu0 %v3976
        %4004 = vmatprep.subr.mxu0 0.0
        %4005 = vmatpush1.msra.mxu0 %v3977
        %4006 = vmatprep.subr.mxu0 0.0
        %4007 = vmatpush1.msra.mxu0 %v3978
        %4008 = vmatprep.subr.mxu0 0.0
        %4009 = vmatpush1.msra.mxu0 %v3979
        %4010 = vmatprep.subr.mxu0 0.0
        %4011 = vmatpush1.msra.mxu0 %v3980
        %4012 = vmatprep.subr.mxu0 0.0
        %4013 = vmatpush1.msra.mxu0 %v3981
        %4014 = vmatprep.subr.mxu0 0.0
        %4015 = vmatpush1.msra.mxu0 %v3982
        %4016 = vmatprep.subr.mxu0 0.0
        %4017 = vmatpush1.msra.mxu0 %v3983
        %4018 = vmatprep.subr.mxu0 0.0
        %4019 = vmatpush1.msra.mxu0 %v3984
        %4020 = vmatprep.subr.mxu0 0.0
        %4021 = vmatpush1.msra.mxu0 %v3985
        %4022 = vmatprep.subr.mxu0 0.0
        %4023 = vmatpush1.msra.mxu0 %v3986
        %4024 = vmatprep.subr.mxu0 0.0
        %4025 = vmatpush1.msra.mxu0 %v3987
        %4026 = vmatprep.subr.mxu0 0.0
        %4027 = vmatpush1.msra.mxu0 %v3988
        %4028 = vmatprep.subr.mxu0 0.0
        %4029 = vmatpush1.msra.mxu0 0.0
        %4030 = vmatprep.subr.mxu0 0.0
        %4031 = vmatpush1.msra.mxu0 0.0
        %4032 = vmatprep.subr.mxu0 0.0
        %4033 = vmatpush1.msra.mxu0 0.0
        %4034 = vmatprep.subr.mxu0 0.0
        %4035 = vmatpush1.msra.mxu0 0.0
        %4036 = vmatprep.subr.mxu0 0.0
        %4037 = vmatpush1.msra.mxu0 0.0
        %4038 = vmatprep.subr.mxu0 0.0
        %4039 = vmatpush1.msra.mxu0 0.0
        %4040 = vmatprep.subr.mxu0 0.0
        %4041 = vmatpush1.msra.mxu0 0.0
        %4042 = vmatprep.subr.mxu0 0.0
        %4043 = vmatpush1.msra.mxu0 0.0
        %4044 = vmatprep.subr.mxu0 0.0
        %4045 = vmatpush1.msra.mxu0 0.0
        %4046 = vmatprep.subr.mxu0 0.0
        %4047 = vmatpush1.msra.mxu0 0.0
        %4048 = vmatprep.subr.mxu0 0.0
        %4049 = vmatpush1.msra.mxu0 0.0
        %4050 = vmatprep.subr.mxu0 0.0
        %4051 = vmatpush1.msra.mxu0 0.0
        %4052 = vmatprep.subr.mxu0 0.0
        %4053 = vmatpush1.msra.mxu0 0.0
        %4054 = vmatprep.subr.mxu0 0.0
        %4055 = vmatpush1.msra.mxu0 0.0
        %4056 = vmatprep.subr.mxu0 0.0
        %4057 = vmatpush1.msra.mxu0 0.0
        %4058 = vmatprep.subr.mxu0 0.0
        %4059 = vmatpush1.msra.mxu0 0.0
        %4060 = vmatprep.mubr.f32.mxu0 0.0
        %4061 = vmatmul.mubr.f32.gmra.mrb[0].mxu0 %v2613
        %v4062 = vpop.f32.mrb[0].mxu0
        %v4063 = vadd.f32 %v3994, %v4062
        %v4064 = vpop.f32.mrb[0].mxu0
        %4065 = vmatprep.mubr.f32.mxu0 0.0
        %4066 = vmatmul.mubr.f32.gmra.mrb[0].mxu0 %v3972
        %v4067 = vpop.f32.mrb[0].mxu0
        %v4068 = vadd.f32 %v3994, %v4067
        %v4069 = vpop.f32.mrb[0].mxu0
        %4070 = vdwg.mxu0
        %v4071 = vadd.f32 %v1028, %v4063
        %v4072 = vadd.f32 %v1029, %v4068
        %v4073 = vld [vmem:[%s847] sm:$0x1]
        %v4074 = vld [vmem:[%s855] sm:$0x1]
        %4075 = vadd.xlane.f32.xlu0 %v4071
        %v4076 = vpop.xlane.xlu0 %4075
        %4077 = vadd.xlane.f32.xlu0 %v4072
        %v4078 = vpop.xlane.xlu0 %4077
        %v4079 = vrcp.pop 128.0
        %v4080 = vmul.f32 %v4076, %v4079
        %v4081 = vmul.f32 %v4078, %v4079
        %v4082 = vsub.f32 %v4071, %v4080
        %v4083 = vsub.f32 %v4072, %v4081
        %v4084 = vmul.f32 %v4082, %v4082
        %v4085 = vmul.f32 %v4083, %v4083
        %4086 = vadd.xlane.f32.xlu0 %v4084
        %v4087 = vpop.xlane.xlu0 %4086
        %4088 = vadd.xlane.f32.xlu0 %v4085
        %v4089 = vpop.xlane.xlu0 %4088
        %v4090 = vmul.f32 %v4087, %v4079
        %v4091 = vmul.f32 %v4089, %v4079
        %v4092 = vadd.f32 %v4090, 1e-05
        %v4093 = vadd.f32 %v4091, 1e-05
        %v4094 = vrsqrt.pop %v4092
        %v4095 = vrsqrt.pop %v4093
        %v4096 = vmul.f32 %v4082, %v4094
        %v4097 = vmul.f32 %v4083, %v4095
        %v4099 = vlaneseq
        %v4100 = vshrl.u32 %v4099, 7
        %v4101 = vsub.s32 0, %v4100
        %v4102 = vrot.slane %v4073, %v4101
        %v4104 = vmul.f32 %v4096, %v4102
        %v4105 = vmul.f32 %v4097, %v4102
        %v4107 = vlaneseq
        %v4108 = vshrl.u32 %v4107, 7
        %v4109 = vsub.s32 0, %v4108
        %v4110 = vrot.slane %v4074, %v4109
        %v4112 = vadd.f32 %v4104, %v4110
        %v4113 = vadd.f32 %v4105, %v4110
        %v4114 = vld [vmem:[%s864] sm:$0xff]
        %v4115 = vld [vmem:[%s864 + $0x8] sm:$0xff]
        %v4116 = vld [vmem:[%s864 + $0x10] sm:$0xff]
        %v4117 = vld [vmem:[%s864 + $0x18] sm:$0xff]
        %v4118 = vld [vmem:[%s864 + $0x20] sm:$0xff]
        %v4119 = vld [vmem:[%s864 + $0x28] sm:$0xff]
        %v4120 = vld [vmem:[%s864 + $0x30] sm:$0xff]
        %v4121 = vld [vmem:[%s864 + $0x38] sm:$0xff]
        %v4122 = vld [vmem:[%s864 + $0x40] sm:$0xff]
        %v4123 = vld [vmem:[%s864 + $0x48] sm:$0xff]
        %v4124 = vld [vmem:[%s864 + $0x50] sm:$0xff]
        %v4125 = vld [vmem:[%s864 + $0x58] sm:$0xff]
        %v4126 = vld [vmem:[%s864 + $0x60] sm:$0xff]
        %v4127 = vld [vmem:[%s864 + $0x68] sm:$0xff]
        %v4128 = vld [vmem:[%s864 + $0x70] sm:$0xff]
        %v4129 = vld [vmem:[%s864 + $0x78] sm:$0xff]
        %v4130 = vld [vmem:[%s864 + $0x80] sm:$0xff]
        %v4131 = vld [vmem:[%s864 + $0x88] sm:$0xff]
        %v4132 = vld [vmem:[%s864 + $0x90] sm:$0xff]
        %v4133 = vld [vmem:[%s864 + $0x98] sm:$0xff]
        %v4134 = vld [vmem:[%s864 + $0xa0] sm:$0xff]
        %v4135 = vld [vmem:[%s864 + $0xa8] sm:$0xff]
        %v4136 = vld [vmem:[%s864 + $0xb0] sm:$0xff]
        %v4137 = vld [vmem:[%s864 + $0xb8] sm:$0xff]
        %v4138 = vld [vmem:[%s864 + $0xc0] sm:$0xff]
        %v4139 = vld [vmem:[%s864 + $0xc8] sm:$0xff]
        %v4140 = vld [vmem:[%s864 + $0xd0] sm:$0xff]
        %v4141 = vld [vmem:[%s864 + $0xd8] sm:$0xff]
        %v4142 = vld [vmem:[%s864 + $0xe0] sm:$0xff]
        %v4143 = vld [vmem:[%s864 + $0xe8] sm:$0xff]
        %v4144 = vld [vmem:[%s864 + $0xf0] sm:$0xff]
        %v4145 = vld [vmem:[%s864 + $0xf8] sm:$0xff]
        %v4146 = vld [vmem:[%s864 + $0x100] sm:$0xff]
        %v4147 = vld [vmem:[%s864 + $0x108] sm:$0xff]
        %v4148 = vld [vmem:[%s864 + $0x110] sm:$0xff]
        %v4149 = vld [vmem:[%s864 + $0x118] sm:$0xff]
        %v4150 = vld [vmem:[%s864 + $0x120] sm:$0xff]
        %v4151 = vld [vmem:[%s864 + $0x128] sm:$0xff]
        %v4152 = vld [vmem:[%s864 + $0x130] sm:$0xff]
        %v4153 = vld [vmem:[%s864 + $0x138] sm:$0xff]
        %v4154 = vld [vmem:[%s864 + $0x140] sm:$0xff]
        %v4155 = vld [vmem:[%s864 + $0x148] sm:$0xff]
        %v4156 = vld [vmem:[%s864 + $0x150] sm:$0xff]
        %v4157 = vld [vmem:[%s864 + $0x158] sm:$0xff]
        %v4158 = vld [vmem:[%s864 + $0x160] sm:$0xff]
        %v4159 = vld [vmem:[%s864 + $0x168] sm:$0xff]
        %v4160 = vld [vmem:[%s864 + $0x170] sm:$0xff]
        %v4161 = vld [vmem:[%s864 + $0x178] sm:$0xff]
        %v4162 = vld [vmem:[%s864 + $0x180] sm:$0xff]
        %v4163 = vld [vmem:[%s864 + $0x188] sm:$0xff]
        %v4164 = vld [vmem:[%s864 + $0x190] sm:$0xff]
        %v4165 = vld [vmem:[%s864 + $0x198] sm:$0xff]
        %v4166 = vld [vmem:[%s864 + $0x1a0] sm:$0xff]
        %v4167 = vld [vmem:[%s864 + $0x1a8] sm:$0xff]
        %v4168 = vld [vmem:[%s864 + $0x1b0] sm:$0xff]
        %v4169 = vld [vmem:[%s864 + $0x1b8] sm:$0xff]
        %v4170 = vld [vmem:[%s864 + $0x1c0] sm:$0xff]
        %v4171 = vld [vmem:[%s864 + $0x1c8] sm:$0xff]
        %v4172 = vld [vmem:[%s864 + $0x1d0] sm:$0xff]
        %v4173 = vld [vmem:[%s864 + $0x1d8] sm:$0xff]
        %v4174 = vld [vmem:[%s864 + $0x1e0] sm:$0xff]
        %v4175 = vld [vmem:[%s864 + $0x1e8] sm:$0xff]
        %v4176 = vld [vmem:[%s864 + $0x1f0] sm:$0xff]
        %v4177 = vld [vmem:[%s864 + $0x1f8] sm:$0xff]
        %v4178 = vld [vmem:[%s864 + $0x200] sm:$0xff]
        %v4179 = vld [vmem:[%s864 + $0x208] sm:$0xff]
        %v4180 = vld [vmem:[%s864 + $0x210] sm:$0xff]
        %v4181 = vld [vmem:[%s864 + $0x218] sm:$0xff]
        %v4182 = vld [vmem:[%s864 + $0x220] sm:$0xff]
        %v4183 = vld [vmem:[%s864 + $0x228] sm:$0xff]
        %v4184 = vld [vmem:[%s864 + $0x230] sm:$0xff]
        %v4185 = vld [vmem:[%s864 + $0x238] sm:$0xff]
        %v4186 = vld [vmem:[%s864 + $0x240] sm:$0xff]
        %v4187 = vld [vmem:[%s864 + $0x248] sm:$0xff]
        %v4188 = vld [vmem:[%s864 + $0x250] sm:$0xff]
        %v4189 = vld [vmem:[%s864 + $0x258] sm:$0xff]
        %v4190 = vld [vmem:[%s864 + $0x260] sm:$0xff]
        %v4191 = vld [vmem:[%s864 + $0x268] sm:$0xff]
        %v4192 = vld [vmem:[%s864 + $0x270] sm:$0xff]
        %v4193 = vld [vmem:[%s864 + $0x278] sm:$0xff]
        %v4194 = vld [vmem:[%s864 + $0x280] sm:$0xff]
        %v4195 = vld [vmem:[%s864 + $0x288] sm:$0xff]
        %v4196 = vld [vmem:[%s864 + $0x290] sm:$0xff]
        %v4197 = vld [vmem:[%s864 + $0x298] sm:$0xff]
        %v4198 = vld [vmem:[%s864 + $0x2a0] sm:$0xff]
        %v4199 = vld [vmem:[%s864 + $0x2a8] sm:$0xff]
        %v4200 = vld [vmem:[%s864 + $0x2b0] sm:$0xff]
        %v4201 = vld [vmem:[%s864 + $0x2b8] sm:$0xff]
        %v4202 = vld [vmem:[%s864 + $0x2c0] sm:$0xff]
        %v4203 = vld [vmem:[%s864 + $0x2c8] sm:$0xff]
        %v4204 = vld [vmem:[%s864 + $0x2d0] sm:$0xff]
        %v4205 = vld [vmem:[%s864 + $0x2d8] sm:$0xff]
        %v4206 = vld [vmem:[%s864 + $0x2e0] sm:$0xff]
        %v4207 = vld [vmem:[%s864 + $0x2e8] sm:$0xff]
        %v4208 = vld [vmem:[%s864 + $0x2f0] sm:$0xff]
        %v4209 = vld [vmem:[%s864 + $0x2f8] sm:$0xff]
        %v4210 = vld [vmem:[%s864 + $0x300] sm:$0xff]
        %v4211 = vld [vmem:[%s864 + $0x308] sm:$0xff]
        %v4212 = vld [vmem:[%s864 + $0x310] sm:$0xff]
        %v4213 = vld [vmem:[%s864 + $0x318] sm:$0xff]
        %v4214 = vld [vmem:[%s864 + $0x320] sm:$0xff]
        %v4215 = vld [vmem:[%s864 + $0x328] sm:$0xff]
        %v4216 = vld [vmem:[%s864 + $0x330] sm:$0xff]
        %v4217 = vld [vmem:[%s864 + $0x338] sm:$0xff]
        %v4218 = vld [vmem:[%s864 + $0x340] sm:$0xff]
        %v4219 = vld [vmem:[%s864 + $0x348] sm:$0xff]
        %v4220 = vld [vmem:[%s864 + $0x350] sm:$0xff]
        %v4221 = vld [vmem:[%s864 + $0x358] sm:$0xff]
        %v4222 = vld [vmem:[%s864 + $0x360] sm:$0xff]
        %v4223 = vld [vmem:[%s864 + $0x368] sm:$0xff]
        %v4224 = vld [vmem:[%s864 + $0x370] sm:$0xff]
        %v4225 = vld [vmem:[%s864 + $0x378] sm:$0xff]
        %v4226 = vld [vmem:[%s864 + $0x380] sm:$0xff]
        %v4227 = vld [vmem:[%s864 + $0x388] sm:$0xff]
        %v4228 = vld [vmem:[%s864 + $0x390] sm:$0xff]
        %v4229 = vld [vmem:[%s864 + $0x398] sm:$0xff]
        %v4230 = vld [vmem:[%s864 + $0x3a0] sm:$0xff]
        %v4231 = vld [vmem:[%s864 + $0x3a8] sm:$0xff]
        %v4232 = vld [vmem:[%s864 + $0x3b0] sm:$0xff]
        %v4233 = vld [vmem:[%s864 + $0x3b8] sm:$0xff]
        %v4234 = vld [vmem:[%s864 + $0x3c0] sm:$0xff]
        %v4235 = vld [vmem:[%s864 + $0x3c8] sm:$0xff]
        %v4236 = vld [vmem:[%s864 + $0x3d0] sm:$0xff]
        %v4237 = vld [vmem:[%s864 + $0x3d8] sm:$0xff]
        %v4238 = vld [vmem:[%s864 + $0x3e0] sm:$0xff]
        %v4239 = vld [vmem:[%s864 + $0x3e8] sm:$0xff]
        %v4240 = vld [vmem:[%s864 + $0x3f0] sm:$0xff]
        %v4241 = vld [vmem:[%s864 + $0x3f8] sm:$0xff]
        %v4242 = vld [vmem:[%s864 + $0x400] sm:$0xff]
        %v4243 = vld [vmem:[%s864 + $0x408] sm:$0xff]
        %v4244 = vld [vmem:[%s864 + $0x410] sm:$0xff]
        %v4245 = vld [vmem:[%s864 + $0x418] sm:$0xff]
        %v4246 = vld [vmem:[%s864 + $0x420] sm:$0xff]
        %v4247 = vld [vmem:[%s864 + $0x428] sm:$0xff]
        %v4248 = vld [vmem:[%s864 + $0x430] sm:$0xff]
        %v4249 = vld [vmem:[%s864 + $0x438] sm:$0xff]
        %v4250 = vld [vmem:[%s864 + $0x440] sm:$0xff]
        %v4251 = vld [vmem:[%s864 + $0x448] sm:$0xff]
        %v4252 = vld [vmem:[%s864 + $0x450] sm:$0xff]
        %v4253 = vld [vmem:[%s864 + $0x458] sm:$0xff]
        %v4254 = vld [vmem:[%s864 + $0x460] sm:$0xff]
        %v4255 = vld [vmem:[%s864 + $0x468] sm:$0xff]
        %v4256 = vld [vmem:[%s864 + $0x470] sm:$0xff]
        %v4257 = vld [vmem:[%s864 + $0x478] sm:$0xff]
        %v4258 = vld [vmem:[%s864 + $0x480] sm:$0xff]
        %v4259 = vld [vmem:[%s864 + $0x488] sm:$0xff]
        %v4260 = vld [vmem:[%s864 + $0x490] sm:$0xff]
        %v4261 = vld [vmem:[%s864 + $0x498] sm:$0xff]
        %v4262 = vld [vmem:[%s864 + $0x4a0] sm:$0xff]
        %v4263 = vld [vmem:[%s864 + $0x4a8] sm:$0xff]
        %v4264 = vld [vmem:[%s864 + $0x4b0] sm:$0xff]
        %v4265 = vld [vmem:[%s864 + $0x4b8] sm:$0xff]
        %v4266 = vld [vmem:[%s864 + $0x4c0] sm:$0xff]
        %v4267 = vld [vmem:[%s864 + $0x4c8] sm:$0xff]
        %v4268 = vld [vmem:[%s864 + $0x4d0] sm:$0xff]
        %v4269 = vld [vmem:[%s864 + $0x4d8] sm:$0xff]
        %v4270 = vld [vmem:[%s864 + $0x4e0] sm:$0xff]
        %v4271 = vld [vmem:[%s864 + $0x4e8] sm:$0xff]
        %v4272 = vld [vmem:[%s864 + $0x4f0] sm:$0xff]
        %v4273 = vld [vmem:[%s864 + $0x4f8] sm:$0xff]
        %v4274 = vld [vmem:[%s864 + $0x500] sm:$0xff]
        %v4275 = vld [vmem:[%s864 + $0x508] sm:$0xff]
        %v4276 = vld [vmem:[%s864 + $0x510] sm:$0xff]
        %v4277 = vld [vmem:[%s864 + $0x518] sm:$0xff]
        %v4278 = vld [vmem:[%s864 + $0x520] sm:$0xff]
        %v4279 = vld [vmem:[%s864 + $0x528] sm:$0xff]
        %v4280 = vld [vmem:[%s864 + $0x530] sm:$0xff]
        %v4281 = vld [vmem:[%s864 + $0x538] sm:$0xff]
        %v4282 = vld [vmem:[%s864 + $0x540] sm:$0xff]
        %v4283 = vld [vmem:[%s864 + $0x548] sm:$0xff]
        %v4284 = vld [vmem:[%s864 + $0x550] sm:$0xff]
        %v4285 = vld [vmem:[%s864 + $0x558] sm:$0xff]
        %v4286 = vld [vmem:[%s864 + $0x560] sm:$0xff]
        %v4287 = vld [vmem:[%s864 + $0x568] sm:$0xff]
        %v4288 = vld [vmem:[%s864 + $0x570] sm:$0xff]
        %v4289 = vld [vmem:[%s864 + $0x578] sm:$0xff]
        %v4290 = vld [vmem:[%s864 + $0x580] sm:$0xff]
        %v4291 = vld [vmem:[%s864 + $0x588] sm:$0xff]
        %v4292 = vld [vmem:[%s864 + $0x590] sm:$0xff]
        %v4293 = vld [vmem:[%s864 + $0x598] sm:$0xff]
        %v4294 = vld [vmem:[%s864 + $0x5a0] sm:$0xff]
        %v4295 = vld [vmem:[%s864 + $0x5a8] sm:$0xff]
        %v4296 = vld [vmem:[%s864 + $0x5b0] sm:$0xff]
        %v4297 = vld [vmem:[%s864 + $0x5b8] sm:$0xff]
        %v4298 = vld [vmem:[%s864 + $0x5c0] sm:$0xff]
        %v4299 = vld [vmem:[%s864 + $0x5c8] sm:$0xff]
        %v4300 = vld [vmem:[%s864 + $0x5d0] sm:$0xff]
        %v4301 = vld [vmem:[%s864 + $0x5d8] sm:$0xff]
        %v4302 = vld [vmem:[%s864 + $0x5e0] sm:$0xff]
        %v4303 = vld [vmem:[%s864 + $0x5e8] sm:$0xff]
        %v4304 = vld [vmem:[%s864 + $0x5f0] sm:$0xff]
        %v4305 = vld [vmem:[%s864 + $0x5f8] sm:$0xff]
        %v4306 = vld [vmem:[%s864 + $0x600] sm:$0xff]
        %v4307 = vld [vmem:[%s864 + $0x608] sm:$0xff]
        %v4308 = vld [vmem:[%s864 + $0x610] sm:$0xff]
        %v4309 = vld [vmem:[%s864 + $0x618] sm:$0xff]
        %v4310 = vld [vmem:[%s864 + $0x620] sm:$0xff]
        %v4311 = vld [vmem:[%s864 + $0x628] sm:$0xff]
        %v4312 = vld [vmem:[%s864 + $0x630] sm:$0xff]
        %v4313 = vld [vmem:[%s864 + $0x638] sm:$0xff]
        %v4314 = vld [vmem:[%s864 + $0x640] sm:$0xff]
        %v4315 = vld [vmem:[%s864 + $0x648] sm:$0xff]
        %v4316 = vld [vmem:[%s864 + $0x650] sm:$0xff]
        %v4317 = vld [vmem:[%s864 + $0x658] sm:$0xff]
        %v4318 = vld [vmem:[%s864 + $0x660] sm:$0xff]
        %v4319 = vld [vmem:[%s864 + $0x668] sm:$0xff]
        %v4320 = vld [vmem:[%s864 + $0x670] sm:$0xff]
        %v4321 = vld [vmem:[%s864 + $0x678] sm:$0xff]
        %v4322 = vld [vmem:[%s864 + $0x680] sm:$0xff]
        %v4323 = vld [vmem:[%s864 + $0x688] sm:$0xff]
        %v4324 = vld [vmem:[%s864 + $0x690] sm:$0xff]
        %v4325 = vld [vmem:[%s864 + $0x698] sm:$0xff]
        %v4326 = vld [vmem:[%s864 + $0x6a0] sm:$0xff]
        %v4327 = vld [vmem:[%s864 + $0x6a8] sm:$0xff]
        %v4328 = vld [vmem:[%s864 + $0x6b0] sm:$0xff]
        %v4329 = vld [vmem:[%s864 + $0x6b8] sm:$0xff]
        %v4330 = vld [vmem:[%s864 + $0x6c0] sm:$0xff]
        %v4331 = vld [vmem:[%s864 + $0x6c8] sm:$0xff]
        %v4332 = vld [vmem:[%s864 + $0x6d0] sm:$0xff]
        %v4333 = vld [vmem:[%s864 + $0x6d8] sm:$0xff]
        %v4334 = vld [vmem:[%s864 + $0x6e0] sm:$0xff]
        %v4335 = vld [vmem:[%s864 + $0x6e8] sm:$0xff]
        %v4336 = vld [vmem:[%s864 + $0x6f0] sm:$0xff]
        %v4337 = vld [vmem:[%s864 + $0x6f8] sm:$0xff]
        %v4338 = vld [vmem:[%s864 + $0x700] sm:$0xff]
        %v4339 = vld [vmem:[%s864 + $0x708] sm:$0xff]
        %v4340 = vld [vmem:[%s864 + $0x710] sm:$0xff]
        %v4341 = vld [vmem:[%s864 + $0x718] sm:$0xff]
        %v4342 = vld [vmem:[%s864 + $0x720] sm:$0xff]
        %v4343 = vld [vmem:[%s864 + $0x728] sm:$0xff]
        %v4344 = vld [vmem:[%s864 + $0x730] sm:$0xff]
        %v4345 = vld [vmem:[%s864 + $0x738] sm:$0xff]
        %v4346 = vld [vmem:[%s864 + $0x740] sm:$0xff]
        %v4347 = vld [vmem:[%s864 + $0x748] sm:$0xff]
        %v4348 = vld [vmem:[%s864 + $0x750] sm:$0xff]
        %v4349 = vld [vmem:[%s864 + $0x758] sm:$0xff]
        %v4350 = vld [vmem:[%s864 + $0x760] sm:$0xff]
        %v4351 = vld [vmem:[%s864 + $0x768] sm:$0xff]
        %v4352 = vld [vmem:[%s864 + $0x770] sm:$0xff]
        %v4353 = vld [vmem:[%s864 + $0x778] sm:$0xff]
        %v4354 = vld [vmem:[%s864 + $0x780] sm:$0xff]
        %v4355 = vld [vmem:[%s864 + $0x788] sm:$0xff]
        %v4356 = vld [vmem:[%s864 + $0x790] sm:$0xff]
        %v4357 = vld [vmem:[%s864 + $0x798] sm:$0xff]
        %v4358 = vld [vmem:[%s864 + $0x7a0] sm:$0xff]
        %v4359 = vld [vmem:[%s864 + $0x7a8] sm:$0xff]
        %v4360 = vld [vmem:[%s864 + $0x7b0] sm:$0xff]
        %v4361 = vld [vmem:[%s864 + $0x7b8] sm:$0xff]
        %v4362 = vld [vmem:[%s864 + $0x7c0] sm:$0xff]
        %v4363 = vld [vmem:[%s864 + $0x7c8] sm:$0xff]
        %v4364 = vld [vmem:[%s864 + $0x7d0] sm:$0xff]
        %v4365 = vld [vmem:[%s864 + $0x7d8] sm:$0xff]
        %v4366 = vld [vmem:[%s864 + $0x7e0] sm:$0xff]
        %v4367 = vld [vmem:[%s864 + $0x7e8] sm:$0xff]
        %v4368 = vld [vmem:[%s864 + $0x7f0] sm:$0xff]
        %v4369 = vld [vmem:[%s864 + $0x7f8] sm:$0xff]
        %v4370 = vld [vmem:[%s873] sm:$0xff]
        %v4371 = vld [vmem:[%s873 + $0x8] sm:$0xff]
        %v4374 = vlaneseq
        %v4375 = vshrl.u32 %v4374, 7
        %v4376 = vsub.s32 0, %v4375
        %v4377 = vrot.slane %v4370, %v4376
        %v4378 = vlaneseq
        %v4379 = vshrl.u32 %v4378, 7
        %v4380 = vsub.s32 1, %v4379
        %v4381 = vrot.slane %v4370, %v4380
        %v4382 = vlaneseq
        %v4383 = vshrl.u32 %v4382, 7
        %v4384 = vsub.s32 2, %v4383
        %v4385 = vrot.slane %v4370, %v4384
        %v4386 = vlaneseq
        %v4387 = vshrl.u32 %v4386, 7
        %v4388 = vsub.s32 3, %v4387
        %v4389 = vrot.slane %v4370, %v4388
        %v4390 = vlaneseq
        %v4391 = vshrl.u32 %v4390, 7
        %v4392 = vsub.s32 4, %v4391
        %v4393 = vrot.slane %v4370, %v4392
        %v4394 = vlaneseq
        %v4395 = vshrl.u32 %v4394, 7
        %v4396 = vsub.s32 5, %v4395
        %v4397 = vrot.slane %v4370, %v4396
        %v4398 = vlaneseq
        %v4399 = vshrl.u32 %v4398, 7
        %v4400 = vsub.s32 6, %v4399
        %v4401 = vrot.slane %v4370, %v4400
        %v4402 = vlaneseq
        %v4403 = vshrl.u32 %v4402, 7
        %v4404 = vsub.s32 7, %v4403
        %v4405 = vrot.slane %v4370, %v4404
        %v4406 = vlaneseq
        %v4407 = vshrl.u32 %v4406, 7
        %v4408 = vsub.s32 0, %v4407
        %v4409 = vrot.slane %v4371, %v4408
        %v4410 = vlaneseq
        %v4411 = vshrl.u32 %v4410, 7
        %v4412 = vsub.s32 1, %v4411
        %v4413 = vrot.slane %v4371, %v4412
        %v4414 = vlaneseq
        %v4415 = vshrl.u32 %v4414, 7
        %v4416 = vsub.s32 2, %v4415
        %v4417 = vrot.slane %v4371, %v4416
        %v4418 = vlaneseq
        %v4419 = vshrl.u32 %v4418, 7
        %v4420 = vsub.s32 3, %v4419
        %v4421 = vrot.slane %v4371, %v4420
        %v4422 = vlaneseq
        %v4423 = vshrl.u32 %v4422, 7
        %v4424 = vsub.s32 4, %v4423
        %v4425 = vrot.slane %v4371, %v4424
        %v4426 = vlaneseq
        %v4427 = vshrl.u32 %v4426, 7
        %v4428 = vsub.s32 5, %v4427
        %v4429 = vrot.slane %v4371, %v4428
        %v4430 = vlaneseq
        %v4431 = vshrl.u32 %v4430, 7
        %v4432 = vsub.s32 6, %v4431
        %v4433 = vrot.slane %v4371, %v4432
        %v4434 = vlaneseq
        %v4435 = vshrl.u32 %v4434, 7
        %v4436 = vsub.s32 7, %v4435
        %v4437 = vrot.slane %v4371, %v4436
        %4454 = vmatprep.subr.mxu0 %v4115
        %4455 = vmatpush1.msra.mxu0 %v4114
        %4456 = vmatprep.subr.mxu0 %v4131
        %4457 = vmatpush1.msra.mxu0 %v4130
        %4458 = vmatprep.subr.mxu0 %v4147
        %4459 = vmatpush1.msra.mxu0 %v4146
        %4460 = vmatprep.subr.mxu0 %v4163
        %4461 = vmatpush1.msra.mxu0 %v4162
        %4462 = vmatprep.subr.mxu0 %v4179
        %4463 = vmatpush1.msra.mxu0 %v4178
        %4464 = vmatprep.subr.mxu0 %v4195
        %4465 = vmatpush1.msra.mxu0 %v4194
        %4466 = vmatprep.subr.mxu0 %v4211
        %4467 = vmatpush1.msra.mxu0 %v4210
        %4468 = vmatprep.subr.mxu0 %v4227
        %4469 = vmatpush1.msra.mxu0 %v4226
        %4470 = vmatprep.subr.mxu0 %v4243
        %4471 = vmatpush1.msra.mxu0 %v4242
        %4472 = vmatprep.subr.mxu0 %v4259
        %4473 = vmatpush1.msra.mxu0 %v4258
        %4474 = vmatprep.subr.mxu0 %v4275
        %4475 = vmatpush1.msra.mxu0 %v4274
        %4476 = vmatprep.subr.mxu0 %v4291
        %4477 = vmatpush1.msra.mxu0 %v4290
        %4478 = vmatprep.subr.mxu0 %v4307
        %4479 = vmatpush1.msra.mxu0 %v4306
        %4480 = vmatprep.subr.mxu0 %v4323
        %4481 = vmatpush1.msra.mxu0 %v4322
        %4482 = vmatprep.subr.mxu0 %v4339
        %4483 = vmatpush1.msra.mxu0 %v4338
        %4484 = vmatprep.subr.mxu0 %v4355
        %4485 = vmatpush1.msra.mxu0 %v4354
        %4486 = vmatprep.subr.mxu0 0.0
        %4487 = vmatpush1.msra.mxu0 0.0
        %4488 = vmatprep.subr.mxu0 0.0
        %4489 = vmatpush1.msra.mxu0 0.0
        %4490 = vmatprep.subr.mxu0 0.0
        %4491 = vmatpush1.msra.mxu0 0.0
        %4492 = vmatprep.subr.mxu0 0.0
        %4493 = vmatpush1.msra.mxu0 0.0
        %4494 = vmatprep.subr.mxu0 0.0
        %4495 = vmatpush1.msra.mxu0 0.0
        %4496 = vmatprep.subr.mxu0 0.0
        %4497 = vmatpush1.msra.mxu0 0.0
        %4498 = vmatprep.subr.mxu0 0.0
        %4499 = vmatpush1.msra.mxu0 0.0
        %4500 = vmatprep.subr.mxu0 0.0
        %4501 = vmatpush1.msra.mxu0 0.0
        %4502 = vmatprep.subr.mxu0 0.0
        %4503 = vmatpush1.msra.mxu0 0.0
        %4504 = vmatprep.subr.mxu0 0.0
        %4505 = vmatpush1.msra.mxu0 0.0
        %4506 = vmatprep.subr.mxu0 0.0
        %4507 = vmatpush1.msra.mxu0 0.0
        %4508 = vmatprep.subr.mxu0 0.0
        %4509 = vmatpush1.msra.mxu0 0.0
        %4510 = vmatprep.subr.mxu0 0.0
        %4511 = vmatpush1.msra.mxu0 0.0
        %4512 = vmatprep.subr.mxu0 0.0
        %4513 = vmatpush1.msra.mxu0 0.0
        %4514 = vmatprep.subr.mxu0 0.0
        %4515 = vmatpush1.msra.mxu0 0.0
        %4516 = vmatprep.subr.mxu0 0.0
        %4517 = vmatpush1.msra.mxu0 0.0
        %4518 = vmatprep.mubr.f32.mxu0 0.0
        %4519 = vmatmul.mubr.f32.gmra.mrb[0].mxu0 %v4112
        %v4520 = vpop.f32.mrb[0].mxu0
        %v4521 = vadd.f32 %v4377, %v4520
        %v4522 = vpop.f32.mrb[0].mxu0
        %v4523 = vadd.f32 %v4381, %v4522
        %4524 = vmatprep.mubr.f32.mxu0 0.0
        %4525 = vmatmul.mubr.f32.gmra.mrb[0].mxu0 %v4113
        %v4526 = vpop.f32.mrb[0].mxu0
        %v4527 = vadd.f32 %v4377, %v4526
        %v4528 = vpop.f32.mrb[0].mxu0
        %v4529 = vadd.f32 %v4381, %v4528
        %4530 = vdwg.mxu0
        %4531 = vmatprep.subr.mxu0 %v4117
        %4532 = vmatpush1.msra.mxu0 %v4116
        %4533 = vmatprep.subr.mxu0 %v4133
        %4534 = vmatpush1.msra.mxu0 %v4132
        %4535 = vmatprep.subr.mxu0 %v4149
        %4536 = vmatpush1.msra.mxu0 %v4148
        %4537 = vmatprep.subr.mxu0 %v4165
        %4538 = vmatpush1.msra.mxu0 %v4164
        %4539 = vmatprep.subr.mxu0 %v4181
        %4540 = vmatpush1.msra.mxu0 %v4180
        %4541 = vmatprep.subr.mxu0 %v4197
        %4542 = vmatpush1.msra.mxu0 %v4196
        %4543 = vmatprep.subr.mxu0 %v4213
        %4544 = vmatpush1.msra.mxu0 %v4212
        %4545 = vmatprep.subr.mxu0 %v4229
        %4546 = vmatpush1.msra.mxu0 %v4228
        %4547 = vmatprep.subr.mxu0 %v4245
        %4548 = vmatpush1.msra.mxu0 %v4244
        %4549 = vmatprep.subr.mxu0 %v4261
        %4550 = vmatpush1.msra.mxu0 %v4260
        %4551 = vmatprep.subr.mxu0 %v4277
        %4552 = vmatpush1.msra.mxu0 %v4276
        %4553 = vmatprep.subr.mxu0 %v4293
        %4554 = vmatpush1.msra.mxu0 %v4292
        %4555 = vmatprep.subr.mxu0 %v4309
        %4556 = vmatpush1.msra.mxu0 %v4308
        %4557 = vmatprep.subr.mxu0 %v4325
        %4558 = vmatpush1.msra.mxu0 %v4324
        %4559 = vmatprep.subr.mxu0 %v4341
        %4560 = vmatpush1.msra.mxu0 %v4340
        %4561 = vmatprep.subr.mxu0 %v4357
        %4562 = vmatpush1.msra.mxu0 %v4356
        %4563 = vmatprep.subr.mxu0 0.0
        %4564 = vmatpush1.msra.mxu0 0.0
        %4565 = vmatprep.subr.mxu0 0.0
        %4566 = vmatpush1.msra.mxu0 0.0
        %4567 = vmatprep.subr.mxu0 0.0
        %4568 = vmatpush1.msra.mxu0 0.0
        %4569 = vmatprep.subr.mxu0 0.0
        %4570 = vmatpush1.msra.mxu0 0.0
        %4571 = vmatprep.subr.mxu0 0.0
        %4572 = vmatpush1.msra.mxu0 0.0
        %4573 = vmatprep.subr.mxu0 0.0
        %4574 = vmatpush1.msra.mxu0 0.0
        %4575 = vmatprep.subr.mxu0 0.0
        %4576 = vmatpush1.msra.mxu0 0.0
        %4577 = vmatprep.subr.mxu0 0.0
        %4578 = vmatpush1.msra.mxu0 0.0
        %4579 = vmatprep.subr.mxu0 0.0
        %4580 = vmatpush1.msra.mxu0 0.0
        %4581 = vmatprep.subr.mxu0 0.0
        %4582 = vmatpush1.msra.mxu0 0.0
        %4583 = vmatprep.subr.mxu0 0.0
        %4584 = vmatpush1.msra.mxu0 0.0
        %4585 = vmatprep.subr.mxu0 0.0
        %4586 = vmatpush1.msra.mxu0 0.0
        %4587 = vmatprep.subr.mxu0 0.0
        %4588 = vmatpush1.msra.mxu0 0.0
        %4589 = vmatprep.subr.mxu0 0.0
        %4590 = vmatpush1.msra.mxu0 0.0
        %4591 = vmatprep.subr.mxu0 0.0
        %4592 = vmatpush1.msra.mxu0 0.0
        %4593 = vmatprep.subr.mxu0 0.0
        %4594 = vmatpush1.msra.mxu0 0.0
        %4595 = vmatprep.mubr.f32.mxu0 0.0
        %4596 = vmatmul.mubr.f32.gmra.mrb[0].mxu0 %v4112
        %v4597 = vpop.f32.mrb[0].mxu0
        %v4598 = vadd.f32 %v4385, %v4597
        %v4599 = vpop.f32.mrb[0].mxu0
        %v4600 = vadd.f32 %v4389, %v4599
        %4601 = vmatprep.mubr.f32.mxu0 0.0
        %4602 = vmatmul.mubr.f32.gmra.mrb[0].mxu0 %v4113
        %v4603 = vpop.f32.mrb[0].mxu0
        %v4604 = vadd.f32 %v4385, %v4603
        %v4605 = vpop.f32.mrb[0].mxu0
        %v4606 = vadd.f32 %v4389, %v4605
        %4607 = vdwg.mxu0
        %4608 = vmatprep.subr.mxu0 %v4119
        %4609 = vmatpush1.msra.mxu0 %v4118
        %4610 = vmatprep.subr.mxu0 %v4135
        %4611 = vmatpush1.msra.mxu0 %v4134
        %4612 = vmatprep.subr.mxu0 %v4151
        %4613 = vmatpush1.msra.mxu0 %v4150
        %4614 = vmatprep.subr.mxu0 %v4167
        %4615 = vmatpush1.msra.mxu0 %v4166
        %4616 = vmatprep.subr.mxu0 %v4183
        %4617 = vmatpush1.msra.mxu0 %v4182
        %4618 = vmatprep.subr.mxu0 %v4199
        %4619 = vmatpush1.msra.mxu0 %v4198
        %4620 = vmatprep.subr.mxu0 %v4215
        %4621 = vmatpush1.msra.mxu0 %v4214
        %4622 = vmatprep.subr.mxu0 %v4231
        %4623 = vmatpush1.msra.mxu0 %v4230
        %4624 = vmatprep.subr.mxu0 %v4247
        %4625 = vmatpush1.msra.mxu0 %v4246
        %4626 = vmatprep.subr.mxu0 %v4263
        %4627 = vmatpush1.msra.mxu0 %v4262
        %4628 = vmatprep.subr.mxu0 %v4279
        %4629 = vmatpush1.msra.mxu0 %v4278
        %4630 = vmatprep.subr.mxu0 %v4295
        %4631 = vmatpush1.msra.mxu0 %v4294
        %4632 = vmatprep.subr.mxu0 %v4311
        %4633 = vmatpush1.msra.mxu0 %v4310
        %4634 = vmatprep.subr.mxu0 %v4327
        %4635 = vmatpush1.msra.mxu0 %v4326
        %4636 = vmatprep.subr.mxu0 %v4343
        %4637 = vmatpush1.msra.mxu0 %v4342
        %4638 = vmatprep.subr.mxu0 %v4359
        %4639 = vmatpush1.msra.mxu0 %v4358
        %4640 = vmatprep.subr.mxu0 0.0
        %4641 = vmatpush1.msra.mxu0 0.0
        %4642 = vmatprep.subr.mxu0 0.0
        %4643 = vmatpush1.msra.mxu0 0.0
        %4644 = vmatprep.subr.mxu0 0.0
        %4645 = vmatpush1.msra.mxu0 0.0
        %4646 = vmatprep.subr.mxu0 0.0
        %4647 = vmatpush1.msra.mxu0 0.0
        %4648 = vmatprep.subr.mxu0 0.0
        %4649 = vmatpush1.msra.mxu0 0.0
        %4650 = vmatprep.subr.mxu0 0.0
        %4651 = vmatpush1.msra.mxu0 0.0
        %4652 = vmatprep.subr.mxu0 0.0
        %4653 = vmatpush1.msra.mxu0 0.0
        %4654 = vmatprep.subr.mxu0 0.0
        %4655 = vmatpush1.msra.mxu0 0.0
        %4656 = vmatprep.subr.mxu0 0.0
        %4657 = vmatpush1.msra.mxu0 0.0
        %4658 = vmatprep.subr.mxu0 0.0
        %4659 = vmatpush1.msra.mxu0 0.0
        %4660 = vmatprep.subr.mxu0 0.0
        %4661 = vmatpush1.msra.mxu0 0.0
        %4662 = vmatprep.subr.mxu0 0.0
        %4663 = vmatpush1.msra.mxu0 0.0
        %4664 = vmatprep.subr.mxu0 0.0
        %4665 = vmatpush1.msra.mxu0 0.0
        %4666 = vmatprep.subr.mxu0 0.0
        %4667 = vmatpush1.msra.mxu0 0.0
        %4668 = vmatprep.subr.mxu0 0.0
        %4669 = vmatpush1.msra.mxu0 0.0
        %4670 = vmatprep.subr.mxu0 0.0
        %4671 = vmatpush1.msra.mxu0 0.0
        %4672 = vmatprep.mubr.f32.mxu0 0.0
        %4673 = vmatmul.mubr.f32.gmra.mrb[0].mxu0 %v4112
        %v4674 = vpop.f32.mrb[0].mxu0
        %v4675 = vadd.f32 %v4393, %v4674
        %v4676 = vpop.f32.mrb[0].mxu0
        %v4677 = vadd.f32 %v4397, %v4676
        %4678 = vmatprep.mubr.f32.mxu0 0.0
        %4679 = vmatmul.mubr.f32.gmra.mrb[0].mxu0 %v4113
        %v4680 = vpop.f32.mrb[0].mxu0
        %v4681 = vadd.f32 %v4393, %v4680
        %v4682 = vpop.f32.mrb[0].mxu0
        %v4683 = vadd.f32 %v4397, %v4682
        %4684 = vdwg.mxu0
        %4685 = vmatprep.subr.mxu0 %v4121
        %4686 = vmatpush1.msra.mxu0 %v4120
        %4687 = vmatprep.subr.mxu0 %v4137
        %4688 = vmatpush1.msra.mxu0 %v4136
        %4689 = vmatprep.subr.mxu0 %v4153
        %4690 = vmatpush1.msra.mxu0 %v4152
        %4691 = vmatprep.subr.mxu0 %v4169
        %4692 = vmatpush1.msra.mxu0 %v4168
        %4693 = vmatprep.subr.mxu0 %v4185
        %4694 = vmatpush1.msra.mxu0 %v4184
        %4695 = vmatprep.subr.mxu0 %v4201
        %4696 = vmatpush1.msra.mxu0 %v4200
        %4697 = vmatprep.subr.mxu0 %v4217
        %4698 = vmatpush1.msra.mxu0 %v4216
        %4699 = vmatprep.subr.mxu0 %v4233
        %4700 = vmatpush1.msra.mxu0 %v4232
        %4701 = vmatprep.subr.mxu0 %v4249
        %4702 = vmatpush1.msra.mxu0 %v4248
        %4703 = vmatprep.subr.mxu0 %v4265
        %4704 = vmatpush1.msra.mxu0 %v4264
        %4705 = vmatprep.subr.mxu0 %v4281
        %4706 = vmatpush1.msra.mxu0 %v4280
        %4707 = vmatprep.subr.mxu0 %v4297
        %4708 = vmatpush1.msra.mxu0 %v4296
        %4709 = vmatprep.subr.mxu0 %v4313
        %4710 = vmatpush1.msra.mxu0 %v4312
        %4711 = vmatprep.subr.mxu0 %v4329
        %4712 = vmatpush1.msra.mxu0 %v4328
        %4713 = vmatprep.subr.mxu0 %v4345
        %4714 = vmatpush1.msra.mxu0 %v4344
        %4715 = vmatprep.subr.mxu0 %v4361
        %4716 = vmatpush1.msra.mxu0 %v4360
        %4717 = vmatprep.subr.mxu0 0.0
        %4718 = vmatpush1.msra.mxu0 0.0
        %4719 = vmatprep.subr.mxu0 0.0
        %4720 = vmatpush1.msra.mxu0 0.0
        %4721 = vmatprep.subr.mxu0 0.0
        %4722 = vmatpush1.msra.mxu0 0.0
        %4723 = vmatprep.subr.mxu0 0.0
        %4724 = vmatpush1.msra.mxu0 0.0
        %4725 = vmatprep.subr.mxu0 0.0
        %4726 = vmatpush1.msra.mxu0 0.0
        %4727 = vmatprep.subr.mxu0 0.0
        %4728 = vmatpush1.msra.mxu0 0.0
        %4729 = vmatprep.subr.mxu0 0.0
        %4730 = vmatpush1.msra.mxu0 0.0
        %4731 = vmatprep.subr.mxu0 0.0
        %4732 = vmatpush1.msra.mxu0 0.0
        %4733 = vmatprep.subr.mxu0 0.0
        %4734 = vmatpush1.msra.mxu0 0.0
        %4735 = vmatprep.subr.mxu0 0.0
        %4736 = vmatpush1.msra.mxu0 0.0
        %4737 = vmatprep.subr.mxu0 0.0
        %4738 = vmatpush1.msra.mxu0 0.0
        %4739 = vmatprep.subr.mxu0 0.0
        %4740 = vmatpush1.msra.mxu0 0.0
        %4741 = vmatprep.subr.mxu0 0.0
        %4742 = vmatpush1.msra.mxu0 0.0
        %4743 = vmatprep.subr.mxu0 0.0
        %4744 = vmatpush1.msra.mxu0 0.0
        %4745 = vmatprep.subr.mxu0 0.0
        %4746 = vmatpush1.msra.mxu0 0.0
        %4747 = vmatprep.subr.mxu0 0.0
        %4748 = vmatpush1.msra.mxu0 0.0
        %4749 = vmatprep.mubr.f32.mxu0 0.0
        %4750 = vmatmul.mubr.f32.gmra.mrb[0].mxu0 %v4112
        %v4751 = vpop.f32.mrb[0].mxu0
        %v4752 = vadd.f32 %v4401, %v4751
        %v4753 = vpop.f32.mrb[0].mxu0
        %v4754 = vadd.f32 %v4405, %v4753
        %4755 = vmatprep.mubr.f32.mxu0 0.0
        %4756 = vmatmul.mubr.f32.gmra.mrb[0].mxu0 %v4113
        %v4757 = vpop.f32.mrb[0].mxu0
        %v4758 = vadd.f32 %v4401, %v4757
        %v4759 = vpop.f32.mrb[0].mxu0
        %v4760 = vadd.f32 %v4405, %v4759
        %4761 = vdwg.mxu0
        %4762 = vmatprep.subr.mxu0 %v4123
        %4763 = vmatpush1.msra.mxu0 %v4122
        %4764 = vmatprep.subr.mxu0 %v4139
        %4765 = vmatpush1.msra.mxu0 %v4138
        %4766 = vmatprep.subr.mxu0 %v4155
        %4767 = vmatpush1.msra.mxu0 %v4154
        %4768 = vmatprep.subr.mxu0 %v4171
        %4769 = vmatpush1.msra.mxu0 %v4170
        %4770 = vmatprep.subr.mxu0 %v4187
        %4771 = vmatpush1.msra.mxu0 %v4186
        %4772 = vmatprep.subr.mxu0 %v4203
        %4773 = vmatpush1.msra.mxu0 %v4202
        %4774 = vmatprep.subr.mxu0 %v4219
        %4775 = vmatpush1.msra.mxu0 %v4218
        %4776 = vmatprep.subr.mxu0 %v4235
        %4777 = vmatpush1.msra.mxu0 %v4234
        %4778 = vmatprep.subr.mxu0 %v4251
        %4779 = vmatpush1.msra.mxu0 %v4250
        %4780 = vmatprep.subr.mxu0 %v4267
        %4781 = vmatpush1.msra.mxu0 %v4266
        %4782 = vmatprep.subr.mxu0 %v4283
        %4783 = vmatpush1.msra.mxu0 %v4282
        %4784 = vmatprep.subr.mxu0 %v4299
        %4785 = vmatpush1.msra.mxu0 %v4298
        %4786 = vmatprep.subr.mxu0 %v4315
        %4787 = vmatpush1.msra.mxu0 %v4314
        %4788 = vmatprep.subr.mxu0 %v4331
        %4789 = vmatpush1.msra.mxu0 %v4330
        %4790 = vmatprep.subr.mxu0 %v4347
        %4791 = vmatpush1.msra.mxu0 %v4346
        %4792 = vmatprep.subr.mxu0 %v4363
        %4793 = vmatpush1.msra.mxu0 %v4362
        %4794 = vmatprep.subr.mxu0 0.0
        %4795 = vmatpush1.msra.mxu0 0.0
        %4796 = vmatprep.subr.mxu0 0.0
        %4797 = vmatpush1.msra.mxu0 0.0
        %4798 = vmatprep.subr.mxu0 0.0
        %4799 = vmatpush1.msra.mxu0 0.0
        %4800 = vmatprep.subr.mxu0 0.0
        %4801 = vmatpush1.msra.mxu0 0.0
        %4802 = vmatprep.subr.mxu0 0.0
        %4803 = vmatpush1.msra.mxu0 0.0
        %4804 = vmatprep.subr.mxu0 0.0
        %4805 = vmatpush1.msra.mxu0 0.0
        %4806 = vmatprep.subr.mxu0 0.0
        %4807 = vmatpush1.msra.mxu0 0.0
        %4808 = vmatprep.subr.mxu0 0.0
        %4809 = vmatpush1.msra.mxu0 0.0
        %4810 = vmatprep.subr.mxu0 0.0
        %4811 = vmatpush1.msra.mxu0 0.0
        %4812 = vmatprep.subr.mxu0 0.0
        %4813 = vmatpush1.msra.mxu0 0.0
        %4814 = vmatprep.subr.mxu0 0.0
        %4815 = vmatpush1.msra.mxu0 0.0
        %4816 = vmatprep.subr.mxu0 0.0
        %4817 = vmatpush1.msra.mxu0 0.0
        %4818 = vmatprep.subr.mxu0 0.0
        %4819 = vmatpush1.msra.mxu0 0.0
        %4820 = vmatprep.subr.mxu0 0.0
        %4821 = vmatpush1.msra.mxu0 0.0
        %4822 = vmatprep.subr.mxu0 0.0
        %4823 = vmatpush1.msra.mxu0 0.0
        %4824 = vmatprep.subr.mxu0 0.0
        %4825 = vmatpush1.msra.mxu0 0.0
        %4826 = vmatprep.mubr.f32.mxu0 0.0
        %4827 = vmatmul.mubr.f32.gmra.mrb[0].mxu0 %v4112
        %v4828 = vpop.f32.mrb[0].mxu0
        %v4829 = vadd.f32 %v4409, %v4828
        %v4830 = vpop.f32.mrb[0].mxu0
        %v4831 = vadd.f32 %v4413, %v4830
        %4832 = vmatprep.mubr.f32.mxu0 0.0
        %4833 = vmatmul.mubr.f32.gmra.mrb[0].mxu0 %v4113
        %v4834 = vpop.f32.mrb[0].mxu0
        %v4835 = vadd.f32 %v4409, %v4834
        %v4836 = vpop.f32.mrb[0].mxu0
        %v4837 = vadd.f32 %v4413, %v4836
        %4838 = vdwg.mxu0
        %4839 = vmatprep.subr.mxu0 %v4125
        %4840 = vmatpush1.msra.mxu0 %v4124
        %4841 = vmatprep.subr.mxu0 %v4141
        %4842 = vmatpush1.msra.mxu0 %v4140
        %4843 = vmatprep.subr.mxu0 %v4157
        %4844 = vmatpush1.msra.mxu0 %v4156
        %4845 = vmatprep.subr.mxu0 %v4173
        %4846 = vmatpush1.msra.mxu0 %v4172
        %4847 = vmatprep.subr.mxu0 %v4189
        %4848 = vmatpush1.msra.mxu0 %v4188
        %4849 = vmatprep.subr.mxu0 %v4205
        %4850 = vmatpush1.msra.mxu0 %v4204
        %4851 = vmatprep.subr.mxu0 %v4221
        %4852 = vmatpush1.msra.mxu0 %v4220
        %4853 = vmatprep.subr.mxu0 %v4237
        %4854 = vmatpush1.msra.mxu0 %v4236
        %4855 = vmatprep.subr.mxu0 %v4253
        %4856 = vmatpush1.msra.mxu0 %v4252
        %4857 = vmatprep.subr.mxu0 %v4269
        %4858 = vmatpush1.msra.mxu0 %v4268
        %4859 = vmatprep.subr.mxu0 %v4285
        %4860 = vmatpush1.msra.mxu0 %v4284
        %4861 = vmatprep.subr.mxu0 %v4301
        %4862 = vmatpush1.msra.mxu0 %v4300
        %4863 = vmatprep.subr.mxu0 %v4317
        %4864 = vmatpush1.msra.mxu0 %v4316
        %4865 = vmatprep.subr.mxu0 %v4333
        %4866 = vmatpush1.msra.mxu0 %v4332
        %4867 = vmatprep.subr.mxu0 %v4349
        %4868 = vmatpush1.msra.mxu0 %v4348
        %4869 = vmatprep.subr.mxu0 %v4365
        %4870 = vmatpush1.msra.mxu0 %v4364
        %4871 = vmatprep.subr.mxu0 0.0
        %4872 = vmatpush1.msra.mxu0 0.0
        %4873 = vmatprep.subr.mxu0 0.0
        %4874 = vmatpush1.msra.mxu0 0.0
        %4875 = vmatprep.subr.mxu0 0.0
        %4876 = vmatpush1.msra.mxu0 0.0
        %4877 = vmatprep.subr.mxu0 0.0
        %4878 = vmatpush1.msra.mxu0 0.0
        %4879 = vmatprep.subr.mxu0 0.0
        %4880 = vmatpush1.msra.mxu0 0.0
        %4881 = vmatprep.subr.mxu0 0.0
        %4882 = vmatpush1.msra.mxu0 0.0
        %4883 = vmatprep.subr.mxu0 0.0
        %4884 = vmatpush1.msra.mxu0 0.0
        %4885 = vmatprep.subr.mxu0 0.0
        %4886 = vmatpush1.msra.mxu0 0.0
        %4887 = vmatprep.subr.mxu0 0.0
        %4888 = vmatpush1.msra.mxu0 0.0
        %4889 = vmatprep.subr.mxu0 0.0
        %4890 = vmatpush1.msra.mxu0 0.0
        %4891 = vmatprep.subr.mxu0 0.0
        %4892 = vmatpush1.msra.mxu0 0.0
        %4893 = vmatprep.subr.mxu0 0.0
        %4894 = vmatpush1.msra.mxu0 0.0
        %4895 = vmatprep.subr.mxu0 0.0
        %4896 = vmatpush1.msra.mxu0 0.0
        %4897 = vmatprep.subr.mxu0 0.0
        %4898 = vmatpush1.msra.mxu0 0.0
        %4899 = vmatprep.subr.mxu0 0.0
        %4900 = vmatpush1.msra.mxu0 0.0
        %4901 = vmatprep.subr.mxu0 0.0
        %4902 = vmatpush1.msra.mxu0 0.0
        %4903 = vmatprep.mubr.f32.mxu0 0.0
        %4904 = vmatmul.mubr.f32.gmra.mrb[0].mxu0 %v4112
        %v4905 = vpop.f32.mrb[0].mxu0
        %v4906 = vadd.f32 %v4417, %v4905
        %v4907 = vpop.f32.mrb[0].mxu0
        %v4908 = vadd.f32 %v4421, %v4907
        %4909 = vmatprep.mubr.f32.mxu0 0.0
        %4910 = vmatmul.mubr.f32.gmra.mrb[0].mxu0 %v4113
        %v4911 = vpop.f32.mrb[0].mxu0
        %v4912 = vadd.f32 %v4417, %v4911
        %v4913 = vpop.f32.mrb[0].mxu0
        %v4914 = vadd.f32 %v4421, %v4913
        %4915 = vdwg.mxu0
        %4916 = vmatprep.subr.mxu0 %v4127
        %4917 = vmatpush1.msra.mxu0 %v4126
        %4918 = vmatprep.subr.mxu0 %v4143
        %4919 = vmatpush1.msra.mxu0 %v4142
        %4920 = vmatprep.subr.mxu0 %v4159
        %4921 = vmatpush1.msra.mxu0 %v4158
        %4922 = vmatprep.subr.mxu0 %v4175
        %4923 = vmatpush1.msra.mxu0 %v4174
        %4924 = vmatprep.subr.mxu0 %v4191
        %4925 = vmatpush1.msra.mxu0 %v4190
        %4926 = vmatprep.subr.mxu0 %v4207
        %4927 = vmatpush1.msra.mxu0 %v4206
        %4928 = vmatprep.subr.mxu0 %v4223
        %4929 = vmatpush1.msra.mxu0 %v4222
        %4930 = vmatprep.subr.mxu0 %v4239
        %4931 = vmatpush1.msra.mxu0 %v4238
        %4932 = vmatprep.subr.mxu0 %v4255
        %4933 = vmatpush1.msra.mxu0 %v4254
        %4934 = vmatprep.subr.mxu0 %v4271
        %4935 = vmatpush1.msra.mxu0 %v4270
        %4936 = vmatprep.subr.mxu0 %v4287
        %4937 = vmatpush1.msra.mxu0 %v4286
        %4938 = vmatprep.subr.mxu0 %v4303
        %4939 = vmatpush1.msra.mxu0 %v4302
        %4940 = vmatprep.subr.mxu0 %v4319
        %4941 = vmatpush1.msra.mxu0 %v4318
        %4942 = vmatprep.subr.mxu0 %v4335
        %4943 = vmatpush1.msra.mxu0 %v4334
        %4944 = vmatprep.subr.mxu0 %v4351
        %4945 = vmatpush1.msra.mxu0 %v4350
        %4946 = vmatprep.subr.mxu0 %v4367
        %4947 = vmatpush1.msra.mxu0 %v4366
        %4948 = vmatprep.subr.mxu0 0.0
        %4949 = vmatpush1.msra.mxu0 0.0
        %4950 = vmatprep.subr.mxu0 0.0
        %4951 = vmatpush1.msra.mxu0 0.0
        %4952 = vmatprep.subr.mxu0 0.0
        %4953 = vmatpush1.msra.mxu0 0.0
        %4954 = vmatprep.subr.mxu0 0.0
        %4955 = vmatpush1.msra.mxu0 0.0
        %4956 = vmatprep.subr.mxu0 0.0
        %4957 = vmatpush1.msra.mxu0 0.0
        %4958 = vmatprep.subr.mxu0 0.0
        %4959 = vmatpush1.msra.mxu0 0.0
        %4960 = vmatprep.subr.mxu0 0.0
        %4961 = vmatpush1.msra.mxu0 0.0
        %4962 = vmatprep.subr.mxu0 0.0
        %4963 = vmatpush1.msra.mxu0 0.0
        %4964 = vmatprep.subr.mxu0 0.0
        %4965 = vmatpush1.msra.mxu0 0.0
        %4966 = vmatprep.subr.mxu0 0.0
        %4967 = vmatpush1.msra.mxu0 0.0
        %4968 = vmatprep.subr.mxu0 0.0
        %4969 = vmatpush1.msra.mxu0 0.0
        %4970 = vmatprep.subr.mxu0 0.0
        %4971 = vmatpush1.msra.mxu0 0.0
        %4972 = vmatprep.subr.mxu0 0.0
        %4973 = vmatpush1.msra.mxu0 0.0
        %4974 = vmatprep.subr.mxu0 0.0
        %4975 = vmatpush1.msra.mxu0 0.0
        %4976 = vmatprep.subr.mxu0 0.0
        %4977 = vmatpush1.msra.mxu0 0.0
        %4978 = vmatprep.subr.mxu0 0.0
        %4979 = vmatpush1.msra.mxu0 0.0
        %4980 = vmatprep.mubr.f32.mxu0 0.0
        %4981 = vmatmul.mubr.f32.gmra.mrb[0].mxu0 %v4112
        %v4982 = vpop.f32.mrb[0].mxu0
        %v4983 = vadd.f32 %v4425, %v4982
        %v4984 = vpop.f32.mrb[0].mxu0
        %v4985 = vadd.f32 %v4429, %v4984
        %4986 = vmatprep.mubr.f32.mxu0 0.0
        %4987 = vmatmul.mubr.f32.gmra.mrb[0].mxu0 %v4113
        %v4988 = vpop.f32.mrb[0].mxu0
        %v4989 = vadd.f32 %v4425, %v4988
        %v4990 = vpop.f32.mrb[0].mxu0
        %v4991 = vadd.f32 %v4429, %v4990
        %4992 = vdwg.mxu0
        %4993 = vmatprep.subr.mxu0 %v4129
        %4994 = vmatpush1.msra.mxu0 %v4128
        %4995 = vmatprep.subr.mxu0 %v4145
        %4996 = vmatpush1.msra.mxu0 %v4144
        %4997 = vmatprep.subr.mxu0 %v4161
        %4998 = vmatpush1.msra.mxu0 %v4160
        %4999 = vmatprep.subr.mxu0 %v4177
        %5000 = vmatpush1.msra.mxu0 %v4176
        %5001 = vmatprep.subr.mxu0 %v4193
        %5002 = vmatpush1.msra.mxu0 %v4192
        %5003 = vmatprep.subr.mxu0 %v4209
        %5004 = vmatpush1.msra.mxu0 %v4208
        %5005 = vmatprep.subr.mxu0 %v4225
        %5006 = vmatpush1.msra.mxu0 %v4224
        %5007 = vmatprep.subr.mxu0 %v4241
        %5008 = vmatpush1.msra.mxu0 %v4240
        %5009 = vmatprep.subr.mxu0 %v4257
        %5010 = vmatpush1.msra.mxu0 %v4256
        %5011 = vmatprep.subr.mxu0 %v4273
        %5012 = vmatpush1.msra.mxu0 %v4272
        %5013 = vmatprep.subr.mxu0 %v4289
        %5014 = vmatpush1.msra.mxu0 %v4288
        %5015 = vmatprep.subr.mxu0 %v4305
        %5016 = vmatpush1.msra.mxu0 %v4304
        %5017 = vmatprep.subr.mxu0 %v4321
        %5018 = vmatpush1.msra.mxu0 %v4320
        %5019 = vmatprep.subr.mxu0 %v4337
        %5020 = vmatpush1.msra.mxu0 %v4336
        %5021 = vmatprep.subr.mxu0 %v4353
        %5022 = vmatpush1.msra.mxu0 %v4352
        %5023 = vmatprep.subr.mxu0 %v4369
        %5024 = vmatpush1.msra.mxu0 %v4368
        %5025 = vmatprep.subr.mxu0 0.0
        %5026 = vmatpush1.msra.mxu0 0.0
        %5027 = vmatprep.subr.mxu0 0.0
        %5028 = vmatpush1.msra.mxu0 0.0
        %5029 = vmatprep.subr.mxu0 0.0
        %5030 = vmatpush1.msra.mxu0 0.0
        %5031 = vmatprep.subr.mxu0 0.0
        %5032 = vmatpush1.msra.mxu0 0.0
        %5033 = vmatprep.subr.mxu0 0.0
        %5034 = vmatpush1.msra.mxu0 0.0
        %5035 = vmatprep.subr.mxu0 0.0
        %5036 = vmatpush1.msra.mxu0 0.0
        %5037 = vmatprep.subr.mxu0 0.0
        %5038 = vmatpush1.msra.mxu0 0.0
        %5039 = vmatprep.subr.mxu0 0.0
        %5040 = vmatpush1.msra.mxu0 0.0
        %5041 = vmatprep.subr.mxu0 0.0
        %5042 = vmatpush1.msra.mxu0 0.0
        %5043 = vmatprep.subr.mxu0 0.0
        %5044 = vmatpush1.msra.mxu0 0.0
        %5045 = vmatprep.subr.mxu0 0.0
        %5046 = vmatpush1.msra.mxu0 0.0
        %5047 = vmatprep.subr.mxu0 0.0
        %5048 = vmatpush1.msra.mxu0 0.0
        %5049 = vmatprep.subr.mxu0 0.0
        %5050 = vmatpush1.msra.mxu0 0.0
        %5051 = vmatprep.subr.mxu0 0.0
        %5052 = vmatpush1.msra.mxu0 0.0
        %5053 = vmatprep.subr.mxu0 0.0
        %5054 = vmatpush1.msra.mxu0 0.0
        %5055 = vmatprep.subr.mxu0 0.0
        %5056 = vmatpush1.msra.mxu0 0.0
        %5057 = vmatprep.mubr.f32.mxu0 0.0
        %5058 = vmatmul.mubr.f32.gmra.mrb[0].mxu0 %v4112
        %v5059 = vpop.f32.mrb[0].mxu0
        %v5060 = vadd.f32 %v4433, %v5059
        %v5061 = vpop.f32.mrb[0].mxu0
        %v5062 = vadd.f32 %v4437, %v5061
        %5063 = vmatprep.mubr.f32.mxu0 0.0
        %5064 = vmatmul.mubr.f32.gmra.mrb[0].mxu0 %v4113
        %v5065 = vpop.f32.mrb[0].mxu0
        %v5066 = vadd.f32 %v4433, %v5065
        %v5067 = vpop.f32.mrb[0].mxu0
        %v5068 = vadd.f32 %v4437, %v5067
        %5069 = vdwg.mxu0
        %v5070 = vmax.f32 %v4521, 0.0
        %v5071 = vmax.f32 %v4523, 0.0
        %v5072 = vmax.f32 %v4598, 0.0
        %v5073 = vmax.f32 %v4600, 0.0
        %v5074 = vmax.f32 %v4675, 0.0
        %v5075 = vmax.f32 %v4677, 0.0
        %v5076 = vmax.f32 %v4752, 0.0
        %v5077 = vmax.f32 %v4754, 0.0
        %v5078 = vmax.f32 %v4829, 0.0
        %v5079 = vmax.f32 %v4831, 0.0
        %v5080 = vmax.f32 %v4906, 0.0
        %v5081 = vmax.f32 %v4908, 0.0
        %v5082 = vmax.f32 %v4983, 0.0
        %v5083 = vmax.f32 %v4985, 0.0
        %v5084 = vmax.f32 %v5060, 0.0
        %v5085 = vmax.f32 %v5062, 0.0
        %v5086 = vmax.f32 %v4527, 0.0
        %v5087 = vmax.f32 %v4529, 0.0
        %v5088 = vmax.f32 %v4604, 0.0
        %v5089 = vmax.f32 %v4606, 0.0
        %v5090 = vmax.f32 %v4681, 0.0
        %v5091 = vmax.f32 %v4683, 0.0
        %v5092 = vmax.f32 %v4758, 0.0
        %v5093 = vmax.f32 %v4760, 0.0
        %v5094 = vmax.f32 %v4835, 0.0
        %v5095 = vmax.f32 %v4837, 0.0
        %v5096 = vmax.f32 %v4912, 0.0
        %v5097 = vmax.f32 %v4914, 0.0
        %v5098 = vmax.f32 %v4989, 0.0
        %v5099 = vmax.f32 %v4991, 0.0
        %v5100 = vmax.f32 %v5066, 0.0
        %v5101 = vmax.f32 %v5068, 0.0
        %v5102 = vld [vmem:[%s882] sm:$0xff]
        %v5103 = vld [vmem:[%s882 + $0x8] sm:$0xff]
        %v5104 = vld [vmem:[%s882 + $0x10] sm:$0xff]
        %v5105 = vld [vmem:[%s882 + $0x18] sm:$0xff]
        %v5106 = vld [vmem:[%s882 + $0x20] sm:$0xff]
        %v5107 = vld [vmem:[%s882 + $0x28] sm:$0xff]
        %v5108 = vld [vmem:[%s882 + $0x30] sm:$0xff]
        %v5109 = vld [vmem:[%s882 + $0x38] sm:$0xff]
        %v5110 = vld [vmem:[%s882 + $0x40] sm:$0xff]
        %v5111 = vld [vmem:[%s882 + $0x48] sm:$0xff]
        %v5112 = vld [vmem:[%s882 + $0x50] sm:$0xff]
        %v5113 = vld [vmem:[%s882 + $0x58] sm:$0xff]
        %v5114 = vld [vmem:[%s882 + $0x60] sm:$0xff]
        %v5115 = vld [vmem:[%s882 + $0x68] sm:$0xff]
        %v5116 = vld [vmem:[%s882 + $0x70] sm:$0xff]
        %v5117 = vld [vmem:[%s882 + $0x78] sm:$0xff]
        %v5118 = vld [vmem:[%s882 + $0x80] sm:$0xff]
        %v5119 = vld [vmem:[%s882 + $0x88] sm:$0xff]
        %v5120 = vld [vmem:[%s882 + $0x90] sm:$0xff]
        %v5121 = vld [vmem:[%s882 + $0x98] sm:$0xff]
        %v5122 = vld [vmem:[%s882 + $0xa0] sm:$0xff]
        %v5123 = vld [vmem:[%s882 + $0xa8] sm:$0xff]
        %v5124 = vld [vmem:[%s882 + $0xb0] sm:$0xff]
        %v5125 = vld [vmem:[%s882 + $0xb8] sm:$0xff]
        %v5126 = vld [vmem:[%s882 + $0xc0] sm:$0xff]
        %v5127 = vld [vmem:[%s882 + $0xc8] sm:$0xff]
        %v5128 = vld [vmem:[%s882 + $0xd0] sm:$0xff]
        %v5129 = vld [vmem:[%s882 + $0xd8] sm:$0xff]
        %v5130 = vld [vmem:[%s882 + $0xe0] sm:$0xff]
        %v5131 = vld [vmem:[%s882 + $0xe8] sm:$0xff]
        %v5132 = vld [vmem:[%s882 + $0xf0] sm:$0xff]
        %v5133 = vld [vmem:[%s882 + $0xf8] sm:$0xff]
        %v5134 = vld [vmem:[%s882 + $0x100] sm:$0xff]
        %v5135 = vld [vmem:[%s882 + $0x108] sm:$0xff]
        %v5136 = vld [vmem:[%s882 + $0x110] sm:$0xff]
        %v5137 = vld [vmem:[%s882 + $0x118] sm:$0xff]
        %v5138 = vld [vmem:[%s882 + $0x120] sm:$0xff]
        %v5139 = vld [vmem:[%s882 + $0x128] sm:$0xff]
        %v5140 = vld [vmem:[%s882 + $0x130] sm:$0xff]
        %v5141 = vld [vmem:[%s882 + $0x138] sm:$0xff]
        %v5142 = vld [vmem:[%s882 + $0x140] sm:$0xff]
        %v5143 = vld [vmem:[%s882 + $0x148] sm:$0xff]
        %v5144 = vld [vmem:[%s882 + $0x150] sm:$0xff]
        %v5145 = vld [vmem:[%s882 + $0x158] sm:$0xff]
        %v5146 = vld [vmem:[%s882 + $0x160] sm:$0xff]
        %v5147 = vld [vmem:[%s882 + $0x168] sm:$0xff]
        %v5148 = vld [vmem:[%s882 + $0x170] sm:$0xff]
        %v5149 = vld [vmem:[%s882 + $0x178] sm:$0xff]
        %v5150 = vld [vmem:[%s882 + $0x180] sm:$0xff]
        %v5151 = vld [vmem:[%s882 + $0x188] sm:$0xff]
        %v5152 = vld [vmem:[%s882 + $0x190] sm:$0xff]
        %v5153 = vld [vmem:[%s882 + $0x198] sm:$0xff]
        %v5154 = vld [vmem:[%s882 + $0x1a0] sm:$0xff]
        %v5155 = vld [vmem:[%s882 + $0x1a8] sm:$0xff]
        %v5156 = vld [vmem:[%s882 + $0x1b0] sm:$0xff]
        %v5157 = vld [vmem:[%s882 + $0x1b8] sm:$0xff]
        %v5158 = vld [vmem:[%s882 + $0x1c0] sm:$0xff]
        %v5159 = vld [vmem:[%s882 + $0x1c8] sm:$0xff]
        %v5160 = vld [vmem:[%s882 + $0x1d0] sm:$0xff]
        %v5161 = vld [vmem:[%s882 + $0x1d8] sm:$0xff]
        %v5162 = vld [vmem:[%s882 + $0x1e0] sm:$0xff]
        %v5163 = vld [vmem:[%s882 + $0x1e8] sm:$0xff]
        %v5164 = vld [vmem:[%s882 + $0x1f0] sm:$0xff]
        %v5165 = vld [vmem:[%s882 + $0x1f8] sm:$0xff]
        %v5166 = vld [vmem:[%s882 + $0x200] sm:$0xff]
        %v5167 = vld [vmem:[%s882 + $0x208] sm:$0xff]
        %v5168 = vld [vmem:[%s882 + $0x210] sm:$0xff]
        %v5169 = vld [vmem:[%s882 + $0x218] sm:$0xff]
        %v5170 = vld [vmem:[%s882 + $0x220] sm:$0xff]
        %v5171 = vld [vmem:[%s882 + $0x228] sm:$0xff]
        %v5172 = vld [vmem:[%s882 + $0x230] sm:$0xff]
        %v5173 = vld [vmem:[%s882 + $0x238] sm:$0xff]
        %v5174 = vld [vmem:[%s882 + $0x240] sm:$0xff]
        %v5175 = vld [vmem:[%s882 + $0x248] sm:$0xff]
        %v5176 = vld [vmem:[%s882 + $0x250] sm:$0xff]
        %v5177 = vld [vmem:[%s882 + $0x258] sm:$0xff]
        %v5178 = vld [vmem:[%s882 + $0x260] sm:$0xff]
        %v5179 = vld [vmem:[%s882 + $0x268] sm:$0xff]
        %v5180 = vld [vmem:[%s882 + $0x270] sm:$0xff]
        %v5181 = vld [vmem:[%s882 + $0x278] sm:$0xff]
        %v5182 = vld [vmem:[%s882 + $0x280] sm:$0xff]
        %v5183 = vld [vmem:[%s882 + $0x288] sm:$0xff]
        %v5184 = vld [vmem:[%s882 + $0x290] sm:$0xff]
        %v5185 = vld [vmem:[%s882 + $0x298] sm:$0xff]
        %v5186 = vld [vmem:[%s882 + $0x2a0] sm:$0xff]
        %v5187 = vld [vmem:[%s882 + $0x2a8] sm:$0xff]
        %v5188 = vld [vmem:[%s882 + $0x2b0] sm:$0xff]
        %v5189 = vld [vmem:[%s882 + $0x2b8] sm:$0xff]
        %v5190 = vld [vmem:[%s882 + $0x2c0] sm:$0xff]
        %v5191 = vld [vmem:[%s882 + $0x2c8] sm:$0xff]
        %v5192 = vld [vmem:[%s882 + $0x2d0] sm:$0xff]
        %v5193 = vld [vmem:[%s882 + $0x2d8] sm:$0xff]
        %v5194 = vld [vmem:[%s882 + $0x2e0] sm:$0xff]
        %v5195 = vld [vmem:[%s882 + $0x2e8] sm:$0xff]
        %v5196 = vld [vmem:[%s882 + $0x2f0] sm:$0xff]
        %v5197 = vld [vmem:[%s882 + $0x2f8] sm:$0xff]
        %v5198 = vld [vmem:[%s882 + $0x300] sm:$0xff]
        %v5199 = vld [vmem:[%s882 + $0x308] sm:$0xff]
        %v5200 = vld [vmem:[%s882 + $0x310] sm:$0xff]
        %v5201 = vld [vmem:[%s882 + $0x318] sm:$0xff]
        %v5202 = vld [vmem:[%s882 + $0x320] sm:$0xff]
        %v5203 = vld [vmem:[%s882 + $0x328] sm:$0xff]
        %v5204 = vld [vmem:[%s882 + $0x330] sm:$0xff]
        %v5205 = vld [vmem:[%s882 + $0x338] sm:$0xff]
        %v5206 = vld [vmem:[%s882 + $0x340] sm:$0xff]
        %v5207 = vld [vmem:[%s882 + $0x348] sm:$0xff]
        %v5208 = vld [vmem:[%s882 + $0x350] sm:$0xff]
        %v5209 = vld [vmem:[%s882 + $0x358] sm:$0xff]
        %v5210 = vld [vmem:[%s882 + $0x360] sm:$0xff]
        %v5211 = vld [vmem:[%s882 + $0x368] sm:$0xff]
        %v5212 = vld [vmem:[%s882 + $0x370] sm:$0xff]
        %v5213 = vld [vmem:[%s882 + $0x378] sm:$0xff]
        %v5214 = vld [vmem:[%s882 + $0x380] sm:$0xff]
        %v5215 = vld [vmem:[%s882 + $0x388] sm:$0xff]
        %v5216 = vld [vmem:[%s882 + $0x390] sm:$0xff]
        %v5217 = vld [vmem:[%s882 + $0x398] sm:$0xff]
        %v5218 = vld [vmem:[%s882 + $0x3a0] sm:$0xff]
        %v5219 = vld [vmem:[%s882 + $0x3a8] sm:$0xff]
        %v5220 = vld [vmem:[%s882 + $0x3b0] sm:$0xff]
        %v5221 = vld [vmem:[%s882 + $0x3b8] sm:$0xff]
        %v5222 = vld [vmem:[%s882 + $0x3c0] sm:$0xff]
        %v5223 = vld [vmem:[%s882 + $0x3c8] sm:$0xff]
        %v5224 = vld [vmem:[%s882 + $0x3d0] sm:$0xff]
        %v5225 = vld [vmem:[%s882 + $0x3d8] sm:$0xff]
        %v5226 = vld [vmem:[%s882 + $0x3e0] sm:$0xff]
        %v5227 = vld [vmem:[%s882 + $0x3e8] sm:$0xff]
        %v5228 = vld [vmem:[%s882 + $0x3f0] sm:$0xff]
        %v5229 = vld [vmem:[%s882 + $0x3f8] sm:$0xff]
        %v5230 = vld [vmem:[%s882 + $0x400] sm:$0xff]
        %v5231 = vld [vmem:[%s882 + $0x408] sm:$0xff]
        %v5232 = vld [vmem:[%s882 + $0x410] sm:$0xff]
        %v5233 = vld [vmem:[%s882 + $0x418] sm:$0xff]
        %v5234 = vld [vmem:[%s882 + $0x420] sm:$0xff]
        %v5235 = vld [vmem:[%s882 + $0x428] sm:$0xff]
        %v5236 = vld [vmem:[%s882 + $0x430] sm:$0xff]
        %v5237 = vld [vmem:[%s882 + $0x438] sm:$0xff]
        %v5238 = vld [vmem:[%s882 + $0x440] sm:$0xff]
        %v5239 = vld [vmem:[%s882 + $0x448] sm:$0xff]
        %v5240 = vld [vmem:[%s882 + $0x450] sm:$0xff]
        %v5241 = vld [vmem:[%s882 + $0x458] sm:$0xff]
        %v5242 = vld [vmem:[%s882 + $0x460] sm:$0xff]
        %v5243 = vld [vmem:[%s882 + $0x468] sm:$0xff]
        %v5244 = vld [vmem:[%s882 + $0x470] sm:$0xff]
        %v5245 = vld [vmem:[%s882 + $0x478] sm:$0xff]
        %v5246 = vld [vmem:[%s882 + $0x480] sm:$0xff]
        %v5247 = vld [vmem:[%s882 + $0x488] sm:$0xff]
        %v5248 = vld [vmem:[%s882 + $0x490] sm:$0xff]
        %v5249 = vld [vmem:[%s882 + $0x498] sm:$0xff]
        %v5250 = vld [vmem:[%s882 + $0x4a0] sm:$0xff]
        %v5251 = vld [vmem:[%s882 + $0x4a8] sm:$0xff]
        %v5252 = vld [vmem:[%s882 + $0x4b0] sm:$0xff]
        %v5253 = vld [vmem:[%s882 + $0x4b8] sm:$0xff]
        %v5254 = vld [vmem:[%s882 + $0x4c0] sm:$0xff]
        %v5255 = vld [vmem:[%s882 + $0x4c8] sm:$0xff]
        %v5256 = vld [vmem:[%s882 + $0x4d0] sm:$0xff]
        %v5257 = vld [vmem:[%s882 + $0x4d8] sm:$0xff]
        %v5258 = vld [vmem:[%s882 + $0x4e0] sm:$0xff]
        %v5259 = vld [vmem:[%s882 + $0x4e8] sm:$0xff]
        %v5260 = vld [vmem:[%s882 + $0x4f0] sm:$0xff]
        %v5261 = vld [vmem:[%s882 + $0x4f8] sm:$0xff]
        %v5262 = vld [vmem:[%s882 + $0x500] sm:$0xff]
        %v5263 = vld [vmem:[%s882 + $0x508] sm:$0xff]
        %v5264 = vld [vmem:[%s882 + $0x510] sm:$0xff]
        %v5265 = vld [vmem:[%s882 + $0x518] sm:$0xff]
        %v5266 = vld [vmem:[%s882 + $0x520] sm:$0xff]
        %v5267 = vld [vmem:[%s882 + $0x528] sm:$0xff]
        %v5268 = vld [vmem:[%s882 + $0x530] sm:$0xff]
        %v5269 = vld [vmem:[%s882 + $0x538] sm:$0xff]
        %v5270 = vld [vmem:[%s882 + $0x540] sm:$0xff]
        %v5271 = vld [vmem:[%s882 + $0x548] sm:$0xff]
        %v5272 = vld [vmem:[%s882 + $0x550] sm:$0xff]
        %v5273 = vld [vmem:[%s882 + $0x558] sm:$0xff]
        %v5274 = vld [vmem:[%s882 + $0x560] sm:$0xff]
        %v5275 = vld [vmem:[%s882 + $0x568] sm:$0xff]
        %v5276 = vld [vmem:[%s882 + $0x570] sm:$0xff]
        %v5277 = vld [vmem:[%s882 + $0x578] sm:$0xff]
        %v5278 = vld [vmem:[%s882 + $0x580] sm:$0xff]
        %v5279 = vld [vmem:[%s882 + $0x588] sm:$0xff]
        %v5280 = vld [vmem:[%s882 + $0x590] sm:$0xff]
        %v5281 = vld [vmem:[%s882 + $0x598] sm:$0xff]
        %v5282 = vld [vmem:[%s882 + $0x5a0] sm:$0xff]
        %v5283 = vld [vmem:[%s882 + $0x5a8] sm:$0xff]
        %v5284 = vld [vmem:[%s882 + $0x5b0] sm:$0xff]
        %v5285 = vld [vmem:[%s882 + $0x5b8] sm:$0xff]
        %v5286 = vld [vmem:[%s882 + $0x5c0] sm:$0xff]
        %v5287 = vld [vmem:[%s882 + $0x5c8] sm:$0xff]
        %v5288 = vld [vmem:[%s882 + $0x5d0] sm:$0xff]
        %v5289 = vld [vmem:[%s882 + $0x5d8] sm:$0xff]
        %v5290 = vld [vmem:[%s882 + $0x5e0] sm:$0xff]
        %v5291 = vld [vmem:[%s882 + $0x5e8] sm:$0xff]
        %v5292 = vld [vmem:[%s882 + $0x5f0] sm:$0xff]
        %v5293 = vld [vmem:[%s882 + $0x5f8] sm:$0xff]
        %v5294 = vld [vmem:[%s882 + $0x600] sm:$0xff]
        %v5295 = vld [vmem:[%s882 + $0x608] sm:$0xff]
        %v5296 = vld [vmem:[%s882 + $0x610] sm:$0xff]
        %v5297 = vld [vmem:[%s882 + $0x618] sm:$0xff]
        %v5298 = vld [vmem:[%s882 + $0x620] sm:$0xff]
        %v5299 = vld [vmem:[%s882 + $0x628] sm:$0xff]
        %v5300 = vld [vmem:[%s882 + $0x630] sm:$0xff]
        %v5301 = vld [vmem:[%s882 + $0x638] sm:$0xff]
        %v5302 = vld [vmem:[%s882 + $0x640] sm:$0xff]
        %v5303 = vld [vmem:[%s882 + $0x648] sm:$0xff]
        %v5304 = vld [vmem:[%s882 + $0x650] sm:$0xff]
        %v5305 = vld [vmem:[%s882 + $0x658] sm:$0xff]
        %v5306 = vld [vmem:[%s882 + $0x660] sm:$0xff]
        %v5307 = vld [vmem:[%s882 + $0x668] sm:$0xff]
        %v5308 = vld [vmem:[%s882 + $0x670] sm:$0xff]
        %v5309 = vld [vmem:[%s882 + $0x678] sm:$0xff]
        %v5310 = vld [vmem:[%s882 + $0x680] sm:$0xff]
        %v5311 = vld [vmem:[%s882 + $0x688] sm:$0xff]
        %v5312 = vld [vmem:[%s882 + $0x690] sm:$0xff]
        %v5313 = vld [vmem:[%s882 + $0x698] sm:$0xff]
        %v5314 = vld [vmem:[%s882 + $0x6a0] sm:$0xff]
        %v5315 = vld [vmem:[%s882 + $0x6a8] sm:$0xff]
        %v5316 = vld [vmem:[%s882 + $0x6b0] sm:$0xff]
        %v5317 = vld [vmem:[%s882 + $0x6b8] sm:$0xff]
        %v5318 = vld [vmem:[%s882 + $0x6c0] sm:$0xff]
        %v5319 = vld [vmem:[%s882 + $0x6c8] sm:$0xff]
        %v5320 = vld [vmem:[%s882 + $0x6d0] sm:$0xff]
        %v5321 = vld [vmem:[%s882 + $0x6d8] sm:$0xff]
        %v5322 = vld [vmem:[%s882 + $0x6e0] sm:$0xff]
        %v5323 = vld [vmem:[%s882 + $0x6e8] sm:$0xff]
        %v5324 = vld [vmem:[%s882 + $0x6f0] sm:$0xff]
        %v5325 = vld [vmem:[%s882 + $0x6f8] sm:$0xff]
        %v5326 = vld [vmem:[%s882 + $0x700] sm:$0xff]
        %v5327 = vld [vmem:[%s882 + $0x708] sm:$0xff]
        %v5328 = vld [vmem:[%s882 + $0x710] sm:$0xff]
        %v5329 = vld [vmem:[%s882 + $0x718] sm:$0xff]
        %v5330 = vld [vmem:[%s882 + $0x720] sm:$0xff]
        %v5331 = vld [vmem:[%s882 + $0x728] sm:$0xff]
        %v5332 = vld [vmem:[%s882 + $0x730] sm:$0xff]
        %v5333 = vld [vmem:[%s882 + $0x738] sm:$0xff]
        %v5334 = vld [vmem:[%s882 + $0x740] sm:$0xff]
        %v5335 = vld [vmem:[%s882 + $0x748] sm:$0xff]
        %v5336 = vld [vmem:[%s882 + $0x750] sm:$0xff]
        %v5337 = vld [vmem:[%s882 + $0x758] sm:$0xff]
        %v5338 = vld [vmem:[%s882 + $0x760] sm:$0xff]
        %v5339 = vld [vmem:[%s882 + $0x768] sm:$0xff]
        %v5340 = vld [vmem:[%s882 + $0x770] sm:$0xff]
        %v5341 = vld [vmem:[%s882 + $0x778] sm:$0xff]
        %v5342 = vld [vmem:[%s882 + $0x780] sm:$0xff]
        %v5343 = vld [vmem:[%s882 + $0x788] sm:$0xff]
        %v5344 = vld [vmem:[%s882 + $0x790] sm:$0xff]
        %v5345 = vld [vmem:[%s882 + $0x798] sm:$0xff]
        %v5346 = vld [vmem:[%s882 + $0x7a0] sm:$0xff]
        %v5347 = vld [vmem:[%s882 + $0x7a8] sm:$0xff]
        %v5348 = vld [vmem:[%s882 + $0x7b0] sm:$0xff]
        %v5349 = vld [vmem:[%s882 + $0x7b8] sm:$0xff]
        %v5350 = vld [vmem:[%s882 + $0x7c0] sm:$0xff]
        %v5351 = vld [vmem:[%s882 + $0x7c8] sm:$0xff]
        %v5352 = vld [vmem:[%s882 + $0x7d0] sm:$0xff]
        %v5353 = vld [vmem:[%s882 + $0x7d8] sm:$0xff]
        %v5354 = vld [vmem:[%s882 + $0x7e0] sm:$0xff]
        %v5355 = vld [vmem:[%s882 + $0x7e8] sm:$0xff]
        %v5356 = vld [vmem:[%s882 + $0x7f0] sm:$0xff]
        %v5357 = vld [vmem:[%s882 + $0x7f8] sm:$0xff]
        %v5358 = vld [vmem:[%s890] sm:$0x1]
        %v5360 = vlaneseq
        %v5361 = vshrl.u32 %v5360, 7
        %v5362 = vsub.s32 0, %v5361
        %v5363 = vrot.slane %v5358, %v5362
        %5365 = vmatprep.subr.mxu0 0.0
        %5366 = vmatpush1.msra.mxu0 %v5102
        %5367 = vmatprep.subr.mxu0 0.0
        %5368 = vmatpush1.msra.mxu0 %v5103
        %5369 = vmatprep.subr.mxu0 0.0
        %5370 = vmatpush1.msra.mxu0 %v5104
        %5371 = vmatprep.subr.mxu0 0.0
        %5372 = vmatpush1.msra.mxu0 %v5105
        %5373 = vmatprep.subr.mxu0 0.0
        %5374 = vmatpush1.msra.mxu0 %v5106
        %5375 = vmatprep.subr.mxu0 0.0
        %5376 = vmatpush1.msra.mxu0 %v5107
        %5377 = vmatprep.subr.mxu0 0.0
        %5378 = vmatpush1.msra.mxu0 %v5108
        %5379 = vmatprep.subr.mxu0 0.0
        %5380 = vmatpush1.msra.mxu0 %v5109
        %5381 = vmatprep.subr.mxu0 0.0
        %5382 = vmatpush1.msra.mxu0 %v5110
        %5383 = vmatprep.subr.mxu0 0.0
        %5384 = vmatpush1.msra.mxu0 %v5111
        %5385 = vmatprep.subr.mxu0 0.0
        %5386 = vmatpush1.msra.mxu0 %v5112
        %5387 = vmatprep.subr.mxu0 0.0
        %5388 = vmatpush1.msra.mxu0 %v5113
        %5389 = vmatprep.subr.mxu0 0.0
        %5390 = vmatpush1.msra.mxu0 %v5114
        %5391 = vmatprep.subr.mxu0 0.0
        %5392 = vmatpush1.msra.mxu0 %v5115
        %5393 = vmatprep.subr.mxu0 0.0
        %5394 = vmatpush1.msra.mxu0 %v5116
        %5395 = vmatprep.subr.mxu0 0.0
        %5396 = vmatpush1.msra.mxu0 %v5117
        %5397 = vmatprep.subr.mxu0 0.0
        %5398 = vmatpush1.msra.mxu0 %v5118
        %5399 = vmatprep.subr.mxu0 0.0
        %5400 = vmatpush1.msra.mxu0 %v5119
        %5401 = vmatprep.subr.mxu0 0.0
        %5402 = vmatpush1.msra.mxu0 %v5120
        %5403 = vmatprep.subr.mxu0 0.0
        %5404 = vmatpush1.msra.mxu0 %v5121
        %5405 = vmatprep.subr.mxu0 0.0
        %5406 = vmatpush1.msra.mxu0 %v5122
        %5407 = vmatprep.subr.mxu0 0.0
        %5408 = vmatpush1.msra.mxu0 %v5123
        %5409 = vmatprep.subr.mxu0 0.0
        %5410 = vmatpush1.msra.mxu0 %v5124
        %5411 = vmatprep.subr.mxu0 0.0
        %5412 = vmatpush1.msra.mxu0 %v5125
        %5413 = vmatprep.subr.mxu0 0.0
        %5414 = vmatpush1.msra.mxu0 %v5126
        %5415 = vmatprep.subr.mxu0 0.0
        %5416 = vmatpush1.msra.mxu0 %v5127
        %5417 = vmatprep.subr.mxu0 0.0
        %5418 = vmatpush1.msra.mxu0 %v5128
        %5419 = vmatprep.subr.mxu0 0.0
        %5420 = vmatpush1.msra.mxu0 %v5129
        %5421 = vmatprep.subr.mxu0 0.0
        %5422 = vmatpush1.msra.mxu0 %v5130
        %5423 = vmatprep.subr.mxu0 0.0
        %5424 = vmatpush1.msra.mxu0 %v5131
        %5425 = vmatprep.subr.mxu0 0.0
        %5426 = vmatpush1.msra.mxu0 %v5132
        %5427 = vmatprep.subr.mxu0 0.0
        %5428 = vmatpush1.msra.mxu0 %v5133
        %5429 = vmatprep.mubr.f32.mxu0 %v5071
        %5430 = vmatmul.mubr.f32.gmra.mrb[0].mxu0 %v5070
        %v5431 = vpop.f32.mrb[0].mxu0
        %v5432 = vadd.f32 %v5363, %v5431
        %v5433 = vpop.f32.mrb[0].mxu0
        %5434 = vmatprep.mubr.f32.mxu0 %v5087
        %5435 = vmatmul.mubr.f32.gmra.mrb[0].mxu0 %v5086
        %v5436 = vpop.f32.mrb[0].mxu0
        %v5437 = vadd.f32 %v5363, %v5436
        %v5438 = vpop.f32.mrb[0].mxu0
        %5439 = vdwg.mxu0
        %5440 = vmatprep.subr.mxu0 0.0
        %5441 = vmatpush1.msra.mxu0 %v5134
        %5442 = vmatprep.subr.mxu0 0.0
        %5443 = vmatpush1.msra.mxu0 %v5135
        %5444 = vmatprep.subr.mxu0 0.0
        %5445 = vmatpush1.msra.mxu0 %v5136
        %5446 = vmatprep.subr.mxu0 0.0
        %5447 = vmatpush1.msra.mxu0 %v5137
        %5448 = vmatprep.subr.mxu0 0.0
        %5449 = vmatpush1.msra.mxu0 %v5138
        %5450 = vmatprep.subr.mxu0 0.0
        %5451 = vmatpush1.msra.mxu0 %v5139
        %5452 = vmatprep.subr.mxu0 0.0
        %5453 = vmatpush1.msra.mxu0 %v5140
        %5454 = vmatprep.subr.mxu0 0.0
        %5455 = vmatpush1.msra.mxu0 %v5141
        %5456 = vmatprep.subr.mxu0 0.0
        %5457 = vmatpush1.msra.mxu0 %v5142
        %5458 = vmatprep.subr.mxu0 0.0
        %5459 = vmatpush1.msra.mxu0 %v5143
        %5460 = vmatprep.subr.mxu0 0.0
        %5461 = vmatpush1.msra.mxu0 %v5144
        %5462 = vmatprep.subr.mxu0 0.0
        %5463 = vmatpush1.msra.mxu0 %v5145
        %5464 = vmatprep.subr.mxu0 0.0
        %5465 = vmatpush1.msra.mxu0 %v5146
        %5466 = vmatprep.subr.mxu0 0.0
        %5467 = vmatpush1.msra.mxu0 %v5147
        %5468 = vmatprep.subr.mxu0 0.0
        %5469 = vmatpush1.msra.mxu0 %v5148
        %5470 = vmatprep.subr.mxu0 0.0
        %5471 = vmatpush1.msra.mxu0 %v5149
        %5472 = vmatprep.subr.mxu0 0.0
        %5473 = vmatpush1.msra.mxu0 %v5150
        %5474 = vmatprep.subr.mxu0 0.0
        %5475 = vmatpush1.msra.mxu0 %v5151
        %5476 = vmatprep.subr.mxu0 0.0
        %5477 = vmatpush1.msra.mxu0 %v5152
        %5478 = vmatprep.subr.mxu0 0.0
        %5479 = vmatpush1.msra.mxu0 %v5153
        %5480 = vmatprep.subr.mxu0 0.0
        %5481 = vmatpush1.msra.mxu0 %v5154
        %5482 = vmatprep.subr.mxu0 0.0
        %5483 = vmatpush1.msra.mxu0 %v5155
        %5484 = vmatprep.subr.mxu0 0.0
        %5485 = vmatpush1.msra.mxu0 %v5156
        %5486 = vmatprep.subr.mxu0 0.0
        %5487 = vmatpush1.msra.mxu0 %v5157
        %5488 = vmatprep.subr.mxu0 0.0
        %5489 = vmatpush1.msra.mxu0 %v5158
        %5490 = vmatprep.subr.mxu0 0.0
        %5491 = vmatpush1.msra.mxu0 %v5159
        %5492 = vmatprep.subr.mxu0 0.0
        %5493 = vmatpush1.msra.mxu0 %v5160
        %5494 = vmatprep.subr.mxu0 0.0
        %5495 = vmatpush1.msra.mxu0 %v5161
        %5496 = vmatprep.subr.mxu0 0.0
        %5497 = vmatpush1.msra.mxu0 %v5162
        %5498 = vmatprep.subr.mxu0 0.0
        %5499 = vmatpush1.msra.mxu0 %v5163
        %5500 = vmatprep.subr.mxu0 0.0
        %5501 = vmatpush1.msra.mxu0 %v5164
        %5502 = vmatprep.subr.mxu0 0.0
        %5503 = vmatpush1.msra.mxu0 %v5165
        %5504 = vmatprep.mubr.f32.mxu0 %v5073
        %5505 = vmatmul.mubr.f32.gmra.mrb[0].mxu0 %v5072
        %v5506 = vpop.f32.mrb[0].mxu0
        %v5507 = vadd.f32 %v5432, %v5506
        %v5508 = vpop.f32.mrb[0].mxu0
        %5509 = vmatprep.mubr.f32.mxu0 %v5089
        %5510 = vmatmul.mubr.f32.gmra.mrb[0].mxu0 %v5088
        %v5511 = vpop.f32.mrb[0].mxu0
        %v5512 = vadd.f32 %v5437, %v5511
        %v5513 = vpop.f32.mrb[0].mxu0
        %5514 = vdwg.mxu0
        %5515 = vmatprep.subr.mxu0 0.0
        %5516 = vmatpush1.msra.mxu0 %v5166
        %5517 = vmatprep.subr.mxu0 0.0
        %5518 = vmatpush1.msra.mxu0 %v5167
        %5519 = vmatprep.subr.mxu0 0.0
        %5520 = vmatpush1.msra.mxu0 %v5168
        %5521 = vmatprep.subr.mxu0 0.0
        %5522 = vmatpush1.msra.mxu0 %v5169
        %5523 = vmatprep.subr.mxu0 0.0
        %5524 = vmatpush1.msra.mxu0 %v5170
        %5525 = vmatprep.subr.mxu0 0.0
        %5526 = vmatpush1.msra.mxu0 %v5171
        %5527 = vmatprep.subr.mxu0 0.0
        %5528 = vmatpush1.msra.mxu0 %v5172
        %5529 = vmatprep.subr.mxu0 0.0
        %5530 = vmatpush1.msra.mxu0 %v5173
        %5531 = vmatprep.subr.mxu0 0.0
        %5532 = vmatpush1.msra.mxu0 %v5174
        %5533 = vmatprep.subr.mxu0 0.0
        %5534 = vmatpush1.msra.mxu0 %v5175
        %5535 = vmatprep.subr.mxu0 0.0
        %5536 = vmatpush1.msra.mxu0 %v5176
        %5537 = vmatprep.subr.mxu0 0.0
        %5538 = vmatpush1.msra.mxu0 %v5177
        %5539 = vmatprep.subr.mxu0 0.0
        %5540 = vmatpush1.msra.mxu0 %v5178
        %5541 = vmatprep.subr.mxu0 0.0
        %5542 = vmatpush1.msra.mxu0 %v5179
        %5543 = vmatprep.subr.mxu0 0.0
        %5544 = vmatpush1.msra.mxu0 %v5180
        %5545 = vmatprep.subr.mxu0 0.0
        %5546 = vmatpush1.msra.mxu0 %v5181
        %5547 = vmatprep.subr.mxu0 0.0
        %5548 = vmatpush1.msra.mxu0 %v5182
        %5549 = vmatprep.subr.mxu0 0.0
        %5550 = vmatpush1.msra.mxu0 %v5183
        %5551 = vmatprep.subr.mxu0 0.0
        %5552 = vmatpush1.msra.mxu0 %v5184
        %5553 = vmatprep.subr.mxu0 0.0
        %5554 = vmatpush1.msra.mxu0 %v5185
        %5555 = vmatprep.subr.mxu0 0.0
        %5556 = vmatpush1.msra.mxu0 %v5186
        %5557 = vmatprep.subr.mxu0 0.0
        %5558 = vmatpush1.msra.mxu0 %v5187
        %5559 = vmatprep.subr.mxu0 0.0
        %5560 = vmatpush1.msra.mxu0 %v5188
        %5561 = vmatprep.subr.mxu0 0.0
        %5562 = vmatpush1.msra.mxu0 %v5189
        %5563 = vmatprep.subr.mxu0 0.0
        %5564 = vmatpush1.msra.mxu0 %v5190
        %5565 = vmatprep.subr.mxu0 0.0
        %5566 = vmatpush1.msra.mxu0 %v5191
        %5567 = vmatprep.subr.mxu0 0.0
        %5568 = vmatpush1.msra.mxu0 %v5192
        %5569 = vmatprep.subr.mxu0 0.0
        %5570 = vmatpush1.msra.mxu0 %v5193
        %5571 = vmatprep.subr.mxu0 0.0
        %5572 = vmatpush1.msra.mxu0 %v5194
        %5573 = vmatprep.subr.mxu0 0.0
        %5574 = vmatpush1.msra.mxu0 %v5195
        %5575 = vmatprep.subr.mxu0 0.0
        %5576 = vmatpush1.msra.mxu0 %v5196
        %5577 = vmatprep.subr.mxu0 0.0
        %5578 = vmatpush1.msra.mxu0 %v5197
        %5579 = vmatprep.mubr.f32.mxu0 %v5075
        %5580 = vmatmul.mubr.f32.gmra.mrb[0].mxu0 %v5074
        %v5581 = vpop.f32.mrb[0].mxu0
        %v5582 = vadd.f32 %v5507, %v5581
        %v5583 = vpop.f32.mrb[0].mxu0
        %5584 = vmatprep.mubr.f32.mxu0 %v5091
        %5585 = vmatmul.mubr.f32.gmra.mrb[0].mxu0 %v5090
        %v5586 = vpop.f32.mrb[0].mxu0
        %v5587 = vadd.f32 %v5512, %v5586
        %v5588 = vpop.f32.mrb[0].mxu0
        %5589 = vdwg.mxu0
        %5590 = vmatprep.subr.mxu0 0.0
        %5591 = vmatpush1.msra.mxu0 %v5198
        %5592 = vmatprep.subr.mxu0 0.0
        %5593 = vmatpush1.msra.mxu0 %v5199
        %5594 = vmatprep.subr.mxu0 0.0
        %5595 = vmatpush1.msra.mxu0 %v5200
        %5596 = vmatprep.subr.mxu0 0.0
        %5597 = vmatpush1.msra.mxu0 %v5201
        %5598 = vmatprep.subr.mxu0 0.0
        %5599 = vmatpush1.msra.mxu0 %v5202
        %5600 = vmatprep.subr.mxu0 0.0
        %5601 = vmatpush1.msra.mxu0 %v5203
        %5602 = vmatprep.subr.mxu0 0.0
        %5603 = vmatpush1.msra.mxu0 %v5204
        %5604 = vmatprep.subr.mxu0 0.0
        %5605 = vmatpush1.msra.mxu0 %v5205
        %5606 = vmatprep.subr.mxu0 0.0
        %5607 = vmatpush1.msra.mxu0 %v5206
        %5608 = vmatprep.subr.mxu0 0.0
        %5609 = vmatpush1.msra.mxu0 %v5207
        %5610 = vmatprep.subr.mxu0 0.0
        %5611 = vmatpush1.msra.mxu0 %v5208
        %5612 = vmatprep.subr.mxu0 0.0
        %5613 = vmatpush1.msra.mxu0 %v5209
        %5614 = vmatprep.subr.mxu0 0.0
        %5615 = vmatpush1.msra.mxu0 %v5210
        %5616 = vmatprep.subr.mxu0 0.0
        %5617 = vmatpush1.msra.mxu0 %v5211
        %5618 = vmatprep.subr.mxu0 0.0
        %5619 = vmatpush1.msra.mxu0 %v5212
        %5620 = vmatprep.subr.mxu0 0.0
        %5621 = vmatpush1.msra.mxu0 %v5213
        %5622 = vmatprep.subr.mxu0 0.0
        %5623 = vmatpush1.msra.mxu0 %v5214
        %5624 = vmatprep.subr.mxu0 0.0
        %5625 = vmatpush1.msra.mxu0 %v5215
        %5626 = vmatprep.subr.mxu0 0.0
        %5627 = vmatpush1.msra.mxu0 %v5216
        %5628 = vmatprep.subr.mxu0 0.0
        %5629 = vmatpush1.msra.mxu0 %v5217
        %5630 = vmatprep.subr.mxu0 0.0
        %5631 = vmatpush1.msra.mxu0 %v5218
        %5632 = vmatprep.subr.mxu0 0.0
        %5633 = vmatpush1.msra.mxu0 %v5219
        %5634 = vmatprep.subr.mxu0 0.0
        %5635 = vmatpush1.msra.mxu0 %v5220
        %5636 = vmatprep.subr.mxu0 0.0
        %5637 = vmatpush1.msra.mxu0 %v5221
        %5638 = vmatprep.subr.mxu0 0.0
        %5639 = vmatpush1.msra.mxu0 %v5222
        %5640 = vmatprep.subr.mxu0 0.0
        %5641 = vmatpush1.msra.mxu0 %v5223
        %5642 = vmatprep.subr.mxu0 0.0
        %5643 = vmatpush1.msra.mxu0 %v5224
        %5644 = vmatprep.subr.mxu0 0.0
        %5645 = vmatpush1.msra.mxu0 %v5225
        %5646 = vmatprep.subr.mxu0 0.0
        %5647 = vmatpush1.msra.mxu0 %v5226
        %5648 = vmatprep.subr.mxu0 0.0
        %5649 = vmatpush1.msra.mxu0 %v5227
        %5650 = vmatprep.subr.mxu0 0.0
        %5651 = vmatpush1.msra.mxu0 %v5228
        %5652 = vmatprep.subr.mxu0 0.0
        %5653 = vmatpush1.msra.mxu0 %v5229
        %5654 = vmatprep.mubr.f32.mxu0 %v5077
        %5655 = vmatmul.mubr.f32.gmra.mrb[0].mxu0 %v5076
        %v5656 = vpop.f32.mrb[0].mxu0
        %v5657 = vadd.f32 %v5582, %v5656
        %v5658 = vpop.f32.mrb[0].mxu0
        %5659 = vmatprep.mubr.f32.mxu0 %v5093
        %5660 = vmatmul.mubr.f32.gmra.mrb[0].mxu0 %v5092
        %v5661 = vpop.f32.mrb[0].mxu0
        %v5662 = vadd.f32 %v5587, %v5661
        %v5663 = vpop.f32.mrb[0].mxu0
        %5664 = vdwg.mxu0
        %5665 = vmatprep.subr.mxu0 0.0
        %5666 = vmatpush1.msra.mxu0 %v5230
        %5667 = vmatprep.subr.mxu0 0.0
        %5668 = vmatpush1.msra.mxu0 %v5231
        %5669 = vmatprep.subr.mxu0 0.0
        %5670 = vmatpush1.msra.mxu0 %v5232
        %5671 = vmatprep.subr.mxu0 0.0
        %5672 = vmatpush1.msra.mxu0 %v5233
        %5673 = vmatprep.subr.mxu0 0.0
        %5674 = vmatpush1.msra.mxu0 %v5234
        %5675 = vmatprep.subr.mxu0 0.0
        %5676 = vmatpush1.msra.mxu0 %v5235
        %5677 = vmatprep.subr.mxu0 0.0
        %5678 = vmatpush1.msra.mxu0 %v5236
        %5679 = vmatprep.subr.mxu0 0.0
        %5680 = vmatpush1.msra.mxu0 %v5237
        %5681 = vmatprep.subr.mxu0 0.0
        %5682 = vmatpush1.msra.mxu0 %v5238
        %5683 = vmatprep.subr.mxu0 0.0
        %5684 = vmatpush1.msra.mxu0 %v5239
        %5685 = vmatprep.subr.mxu0 0.0
        %5686 = vmatpush1.msra.mxu0 %v5240
        %5687 = vmatprep.subr.mxu0 0.0
        %5688 = vmatpush1.msra.mxu0 %v5241
        %5689 = vmatprep.subr.mxu0 0.0
        %5690 = vmatpush1.msra.mxu0 %v5242
        %5691 = vmatprep.subr.mxu0 0.0
        %5692 = vmatpush1.msra.mxu0 %v5243
        %5693 = vmatprep.subr.mxu0 0.0
        %5694 = vmatpush1.msra.mxu0 %v5244
        %5695 = vmatprep.subr.mxu0 0.0
        %5696 = vmatpush1.msra.mxu0 %v5245
        %5697 = vmatprep.subr.mxu0 0.0
        %5698 = vmatpush1.msra.mxu0 %v5246
        %5699 = vmatprep.subr.mxu0 0.0
        %5700 = vmatpush1.msra.mxu0 %v5247
        %5701 = vmatprep.subr.mxu0 0.0
        %5702 = vmatpush1.msra.mxu0 %v5248
        %5703 = vmatprep.subr.mxu0 0.0
        %5704 = vmatpush1.msra.mxu0 %v5249
        %5705 = vmatprep.subr.mxu0 0.0
        %5706 = vmatpush1.msra.mxu0 %v5250
        %5707 = vmatprep.subr.mxu0 0.0
        %5708 = vmatpush1.msra.mxu0 %v5251
        %5709 = vmatprep.subr.mxu0 0.0
        %5710 = vmatpush1.msra.mxu0 %v5252
        %5711 = vmatprep.subr.mxu0 0.0
        %5712 = vmatpush1.msra.mxu0 %v5253
        %5713 = vmatprep.subr.mxu0 0.0
        %5714 = vmatpush1.msra.mxu0 %v5254
        %5715 = vmatprep.subr.mxu0 0.0
        %5716 = vmatpush1.msra.mxu0 %v5255
        %5717 = vmatprep.subr.mxu0 0.0
        %5718 = vmatpush1.msra.mxu0 %v5256
        %5719 = vmatprep.subr.mxu0 0.0
        %5720 = vmatpush1.msra.mxu0 %v5257
        %5721 = vmatprep.subr.mxu0 0.0
        %5722 = vmatpush1.msra.mxu0 %v5258
        %5723 = vmatprep.subr.mxu0 0.0
        %5724 = vmatpush1.msra.mxu0 %v5259
        %5725 = vmatprep.subr.mxu0 0.0
        %5726 = vmatpush1.msra.mxu0 %v5260
        %5727 = vmatprep.subr.mxu0 0.0
        %5728 = vmatpush1.msra.mxu0 %v5261
        %5729 = vmatprep.mubr.f32.mxu0 %v5079
        %5730 = vmatmul.mubr.f32.gmra.mrb[0].mxu0 %v5078
        %v5731 = vpop.f32.mrb[0].mxu0
        %v5732 = vadd.f32 %v5657, %v5731
        %v5733 = vpop.f32.mrb[0].mxu0
        %5734 = vmatprep.mubr.f32.mxu0 %v5095
        %5735 = vmatmul.mubr.f32.gmra.mrb[0].mxu0 %v5094
        %v5736 = vpop.f32.mrb[0].mxu0
        %v5737 = vadd.f32 %v5662, %v5736
        %v5738 = vpop.f32.mrb[0].mxu0
        %5739 = vdwg.mxu0
        %5740 = vmatprep.subr.mxu0 0.0
        %5741 = vmatpush1.msra.mxu0 %v5262
        %5742 = vmatprep.subr.mxu0 0.0
        %5743 = vmatpush1.msra.mxu0 %v5263
        %5744 = vmatprep.subr.mxu0 0.0
        %5745 = vmatpush1.msra.mxu0 %v5264
        %5746 = vmatprep.subr.mxu0 0.0
        %5747 = vmatpush1.msra.mxu0 %v5265
        %5748 = vmatprep.subr.mxu0 0.0
        %5749 = vmatpush1.msra.mxu0 %v5266
        %5750 = vmatprep.subr.mxu0 0.0
        %5751 = vmatpush1.msra.mxu0 %v5267
        %5752 = vmatprep.subr.mxu0 0.0
        %5753 = vmatpush1.msra.mxu0 %v5268
        %5754 = vmatprep.subr.mxu0 0.0
        %5755 = vmatpush1.msra.mxu0 %v5269
        %5756 = vmatprep.subr.mxu0 0.0
        %5757 = vmatpush1.msra.mxu0 %v5270
        %5758 = vmatprep.subr.mxu0 0.0
        %5759 = vmatpush1.msra.mxu0 %v5271
        %5760 = vmatprep.subr.mxu0 0.0
        %5761 = vmatpush1.msra.mxu0 %v5272
        %5762 = vmatprep.subr.mxu0 0.0
        %5763 = vmatpush1.msra.mxu0 %v5273
        %5764 = vmatprep.subr.mxu0 0.0
        %5765 = vmatpush1.msra.mxu0 %v5274
        %5766 = vmatprep.subr.mxu0 0.0
        %5767 = vmatpush1.msra.mxu0 %v5275
        %5768 = vmatprep.subr.mxu0 0.0
        %5769 = vmatpush1.msra.mxu0 %v5276
        %5770 = vmatprep.subr.mxu0 0.0
        %5771 = vmatpush1.msra.mxu0 %v5277
        %5772 = vmatprep.subr.mxu0 0.0
        %5773 = vmatpush1.msra.mxu0 %v5278
        %5774 = vmatprep.subr.mxu0 0.0
        %5775 = vmatpush1.msra.mxu0 %v5279
        %5776 = vmatprep.subr.mxu0 0.0
        %5777 = vmatpush1.msra.mxu0 %v5280
        %5778 = vmatprep.subr.mxu0 0.0
        %5779 = vmatpush1.msra.mxu0 %v5281
        %5780 = vmatprep.subr.mxu0 0.0
        %5781 = vmatpush1.msra.mxu0 %v5282
        %5782 = vmatprep.subr.mxu0 0.0
        %5783 = vmatpush1.msra.mxu0 %v5283
        %5784 = vmatprep.subr.mxu0 0.0
        %5785 = vmatpush1.msra.mxu0 %v5284
        %5786 = vmatprep.subr.mxu0 0.0
        %5787 = vmatpush1.msra.mxu0 %v5285
        %5788 = vmatprep.subr.mxu0 0.0
        %5789 = vmatpush1.msra.mxu0 %v5286
        %5790 = vmatprep.subr.mxu0 0.0
        %5791 = vmatpush1.msra.mxu0 %v5287
        %5792 = vmatprep.subr.mxu0 0.0
        %5793 = vmatpush1.msra.mxu0 %v5288
        %5794 = vmatprep.subr.mxu0 0.0
        %5795 = vmatpush1.msra.mxu0 %v5289
        %5796 = vmatprep.subr.mxu0 0.0
        %5797 = vmatpush1.msra.mxu0 %v5290
        %5798 = vmatprep.subr.mxu0 0.0
        %5799 = vmatpush1.msra.mxu0 %v5291
        %5800 = vmatprep.subr.mxu0 0.0
        %5801 = vmatpush1.msra.mxu0 %v5292
        %5802 = vmatprep.subr.mxu0 0.0
        %5803 = vmatpush1.msra.mxu0 %v5293
        %5804 = vmatprep.mubr.f32.mxu0 %v5081
        %5805 = vmatmul.mubr.f32.gmra.mrb[0].mxu0 %v5080
        %v5806 = vpop.f32.mrb[0].mxu0
        %v5807 = vadd.f32 %v5732, %v5806
        %v5808 = vpop.f32.mrb[0].mxu0
        %5809 = vmatprep.mubr.f32.mxu0 %v5097
        %5810 = vmatmul.mubr.f32.gmra.mrb[0].mxu0 %v5096
        %v5811 = vpop.f32.mrb[0].mxu0
        %v5812 = vadd.f32 %v5737, %v5811
        %v5813 = vpop.f32.mrb[0].mxu0
        %5814 = vdwg.mxu0
        %5815 = vmatprep.subr.mxu0 0.0
        %5816 = vmatpush1.msra.mxu0 %v5294
        %5817 = vmatprep.subr.mxu0 0.0
        %5818 = vmatpush1.msra.mxu0 %v5295
        %5819 = vmatprep.subr.mxu0 0.0
        %5820 = vmatpush1.msra.mxu0 %v5296
        %5821 = vmatprep.subr.mxu0 0.0
        %5822 = vmatpush1.msra.mxu0 %v5297
        %5823 = vmatprep.subr.mxu0 0.0
        %5824 = vmatpush1.msra.mxu0 %v5298
        %5825 = vmatprep.subr.mxu0 0.0
        %5826 = vmatpush1.msra.mxu0 %v5299
        %5827 = vmatprep.subr.mxu0 0.0
        %5828 = vmatpush1.msra.mxu0 %v5300
        %5829 = vmatprep.subr.mxu0 0.0
        %5830 = vmatpush1.msra.mxu0 %v5301
        %5831 = vmatprep.subr.mxu0 0.0
        %5832 = vmatpush1.msra.mxu0 %v5302
        %5833 = vmatprep.subr.mxu0 0.0
        %5834 = vmatpush1.msra.mxu0 %v5303
        %5835 = vmatprep.subr.mxu0 0.0
        %5836 = vmatpush1.msra.mxu0 %v5304
        %5837 = vmatprep.subr.mxu0 0.0
        %5838 = vmatpush1.msra.mxu0 %v5305
        %5839 = vmatprep.subr.mxu0 0.0
        %5840 = vmatpush1.msra.mxu0 %v5306
        %5841 = vmatprep.subr.mxu0 0.0
        %5842 = vmatpush1.msra.mxu0 %v5307
        %5843 = vmatprep.subr.mxu0 0.0
        %5844 = vmatpush1.msra.mxu0 %v5308
        %5845 = vmatprep.subr.mxu0 0.0
        %5846 = vmatpush1.msra.mxu0 %v5309
        %5847 = vmatprep.subr.mxu0 0.0
        %5848 = vmatpush1.msra.mxu0 %v5310
        %5849 = vmatprep.subr.mxu0 0.0
        %5850 = vmatpush1.msra.mxu0 %v5311
        %5851 = vmatprep.subr.mxu0 0.0
        %5852 = vmatpush1.msra.mxu0 %v5312
        %5853 = vmatprep.subr.mxu0 0.0
        %5854 = vmatpush1.msra.mxu0 %v5313
        %5855 = vmatprep.subr.mxu0 0.0
        %5856 = vmatpush1.msra.mxu0 %v5314
        %5857 = vmatprep.subr.mxu0 0.0
        %5858 = vmatpush1.msra.mxu0 %v5315
        %5859 = vmatprep.subr.mxu0 0.0
        %5860 = vmatpush1.msra.mxu0 %v5316
        %5861 = vmatprep.subr.mxu0 0.0
        %5862 = vmatpush1.msra.mxu0 %v5317
        %5863 = vmatprep.subr.mxu0 0.0
        %5864 = vmatpush1.msra.mxu0 %v5318
        %5865 = vmatprep.subr.mxu0 0.0
        %5866 = vmatpush1.msra.mxu0 %v5319
        %5867 = vmatprep.subr.mxu0 0.0
        %5868 = vmatpush1.msra.mxu0 %v5320
        %5869 = vmatprep.subr.mxu0 0.0
        %5870 = vmatpush1.msra.mxu0 %v5321
        %5871 = vmatprep.subr.mxu0 0.0
        %5872 = vmatpush1.msra.mxu0 %v5322
        %5873 = vmatprep.subr.mxu0 0.0
        %5874 = vmatpush1.msra.mxu0 %v5323
        %5875 = vmatprep.subr.mxu0 0.0
        %5876 = vmatpush1.msra.mxu0 %v5324
        %5877 = vmatprep.subr.mxu0 0.0
        %5878 = vmatpush1.msra.mxu0 %v5325
        %5879 = vmatprep.mubr.f32.mxu0 %v5083
        %5880 = vmatmul.mubr.f32.gmra.mrb[0].mxu0 %v5082
        %v5881 = vpop.f32.mrb[0].mxu0
        %v5882 = vadd.f32 %v5807, %v5881
        %v5883 = vpop.f32.mrb[0].mxu0
        %5884 = vmatprep.mubr.f32.mxu0 %v5099
        %5885 = vmatmul.mubr.f32.gmra.mrb[0].mxu0 %v5098
        %v5886 = vpop.f32.mrb[0].mxu0
        %v5887 = vadd.f32 %v5812, %v5886
        %v5888 = vpop.f32.mrb[0].mxu0
        %5889 = vdwg.mxu0
        %5890 = vmatprep.subr.mxu0 0.0
        %5891 = vmatpush1.msra.mxu0 %v5326
        %5892 = vmatprep.subr.mxu0 0.0
        %5893 = vmatpush1.msra.mxu0 %v5327
        %5894 = vmatprep.subr.mxu0 0.0
        %5895 = vmatpush1.msra.mxu0 %v5328
        %5896 = vmatprep.subr.mxu0 0.0
        %5897 = vmatpush1.msra.mxu0 %v5329
        %5898 = vmatprep.subr.mxu0 0.0
        %5899 = vmatpush1.msra.mxu0 %v5330
        %5900 = vmatprep.subr.mxu0 0.0
        %5901 = vmatpush1.msra.mxu0 %v5331
        %5902 = vmatprep.subr.mxu0 0.0
        %5903 = vmatpush1.msra.mxu0 %v5332
        %5904 = vmatprep.subr.mxu0 0.0
        %5905 = vmatpush1.msra.mxu0 %v5333
        %5906 = vmatprep.subr.mxu0 0.0
        %5907 = vmatpush1.msra.mxu0 %v5334
        %5908 = vmatprep.subr.mxu0 0.0
        %5909 = vmatpush1.msra.mxu0 %v5335
        %5910 = vmatprep.subr.mxu0 0.0
        %5911 = vmatpush1.msra.mxu0 %v5336
        %5912 = vmatprep.subr.mxu0 0.0
        %5913 = vmatpush1.msra.mxu0 %v5337
        %5914 = vmatprep.subr.mxu0 0.0
        %5915 = vmatpush1.msra.mxu0 %v5338
        %5916 = vmatprep.subr.mxu0 0.0
        %5917 = vmatpush1.msra.mxu0 %v5339
        %5918 = vmatprep.subr.mxu0 0.0
        %5919 = vmatpush1.msra.mxu0 %v5340
        %5920 = vmatprep.subr.mxu0 0.0
        %5921 = vmatpush1.msra.mxu0 %v5341
        %5922 = vmatprep.subr.mxu0 0.0
        %5923 = vmatpush1.msra.mxu0 %v5342
        %5924 = vmatprep.subr.mxu0 0.0
        %5925 = vmatpush1.msra.mxu0 %v5343
        %5926 = vmatprep.subr.mxu0 0.0
        %5927 = vmatpush1.msra.mxu0 %v5344
        %5928 = vmatprep.subr.mxu0 0.0
        %5929 = vmatpush1.msra.mxu0 %v5345
        %5930 = vmatprep.subr.mxu0 0.0
        %5931 = vmatpush1.msra.mxu0 %v5346
        %5932 = vmatprep.subr.mxu0 0.0
        %5933 = vmatpush1.msra.mxu0 %v5347
        %5934 = vmatprep.subr.mxu0 0.0
        %5935 = vmatpush1.msra.mxu0 %v5348
        %5936 = vmatprep.subr.mxu0 0.0
        %5937 = vmatpush1.msra.mxu0 %v5349
        %5938 = vmatprep.subr.mxu0 0.0
        %5939 = vmatpush1.msra.mxu0 %v5350
        %5940 = vmatprep.subr.mxu0 0.0
        %5941 = vmatpush1.msra.mxu0 %v5351
        %5942 = vmatprep.subr.mxu0 0.0
        %5943 = vmatpush1.msra.mxu0 %v5352
        %5944 = vmatprep.subr.mxu0 0.0
        %5945 = vmatpush1.msra.mxu0 %v5353
        %5946 = vmatprep.subr.mxu0 0.0
        %5947 = vmatpush1.msra.mxu0 %v5354
        %5948 = vmatprep.subr.mxu0 0.0
        %5949 = vmatpush1.msra.mxu0 %v5355
        %5950 = vmatprep.subr.mxu0 0.0
        %5951 = vmatpush1.msra.mxu0 %v5356
        %5952 = vmatprep.subr.mxu0 0.0
        %5953 = vmatpush1.msra.mxu0 %v5357
        %5954 = vmatprep.mubr.f32.mxu0 %v5085
        %5955 = vmatmul.mubr.f32.gmra.mrb[0].mxu0 %v5084
        %v5956 = vpop.f32.mrb[0].mxu0
        %v5957 = vadd.f32 %v5882, %v5956
        %v5958 = vpop.f32.mrb[0].mxu0
        %5959 = vmatprep.mubr.f32.mxu0 %v5101
        %5960 = vmatmul.mubr.f32.gmra.mrb[0].mxu0 %v5100
        %v5961 = vpop.f32.mrb[0].mxu0
        %v5962 = vadd.f32 %v5887, %v5961
        %v5963 = vpop.f32.mrb[0].mxu0
        %5964 = vdwg.mxu0
        %v5965 = vadd.f32 %v4112, %v5957
        %v5966 = vadd.f32 %v4113, %v5962
        %v5967 = vld [vmem:[%s898] sm:$0x1]
        %v5968 = vld [vmem:[%s906] sm:$0x1]
        %5969 = vadd.xlane.f32.xlu0 %v5965
        %v5970 = vpop.xlane.xlu0 %5969
        %5971 = vadd.xlane.f32.xlu0 %v5966
        %v5972 = vpop.xlane.xlu0 %5971
        %v5973 = vmul.f32 %v5970, %v4079
        %v5974 = vmul.f32 %v5972, %v4079
        %v5975 = vsub.f32 %v5965, %v5973
        %v5976 = vsub.f32 %v5966, %v5974
        %v5977 = vmul.f32 %v5975, %v5975
        %v5978 = vmul.f32 %v5976, %v5976
        %5979 = vadd.xlane.f32.xlu0 %v5977
        %v5980 = vpop.xlane.xlu0 %5979
        %5981 = vadd.xlane.f32.xlu0 %v5978
        %v5982 = vpop.xlane.xlu0 %5981
        %v5983 = vmul.f32 %v5980, %v4079
        %v5984 = vmul.f32 %v5982, %v4079
        %v5985 = vadd.f32 %v5983, 1e-05
        %v5986 = vadd.f32 %v5984, 1e-05
        %v5987 = vrsqrt.pop %v5985
        %v5988 = vrsqrt.pop %v5986
        %v5989 = vmul.f32 %v5975, %v5987
        %v5990 = vmul.f32 %v5976, %v5988
        %v5992 = vlaneseq
        %v5993 = vshrl.u32 %v5992, 7
        %v5994 = vsub.s32 0, %v5993
        %v5995 = vrot.slane %v5967, %v5994
        %v5997 = vmul.f32 %v5989, %v5995
        %v5998 = vmul.f32 %v5990, %v5995
        %v6000 = vlaneseq
        %v6001 = vshrl.u32 %v6000, 7
        %v6002 = vsub.s32 0, %v6001
        %v6003 = vrot.slane %v5968, %v6002
        %v6005 = vadd.f32 %v5997, %v6003
        %v6006 = vadd.f32 %v5998, %v6003
        %6007 = vst [vmem:[#allocation2] sm:$0xff] %v6005
        %6008 = vst [vmem:[#allocation2 + $0x8] sm:$0xff] %v6006
        %p6009 = scmp.eq.s32.totalorder %s51, 1
        // Predicated region
        $region161: #{forward.1} parent=91 // pred_check
          %p6010 = pneg %p6009
        $region162: #{forward.1} parent=91 // pred_check_branch
          %6012 = sbr.rel (%p6010) target = $region164
        $region163: #{forward.1} parent=91 // pred_region
          %v6013 = vrot.slane %v6005, 4
          %v6014 = vadd.f32 %v6005, %v6013
          %v6015 = vrot.slane %v6014, 2
          %v6016 = vadd.f32 %v6014, %v6015
          %v6017 = vrot.slane %v6016, 1
          %v6018 = vadd.f32 %v6016, %v6017
          %v6019 = vrcp.pop 8.0
          %v6020 = vmul.f32 %v6018, %v6019
          %v6021 = vrot.slane %v6006, 4
          %v6022 = vadd.f32 %v6006, %v6021
          %v6023 = vrot.slane %v6022, 2
          %v6024 = vadd.f32 %v6022, %v6023
          %v6025 = vrot.slane %v6024, 1
          %v6026 = vadd.f32 %v6024, %v6025
          %v6027 = vmul.f32 %v6026, %v6019
          %vm6028 = vcmask 1040384
          %v6029 = vsel %vm6028, %v6020, %v6027
          %v6030 = vld [vmem:[#allocation24] sm:$0x1]
          %v6031 = vld [vmem:[#allocation26] sm:$0x1]
          %vm6032 = vcmask 1041408
          %v6033 = vsel %vm6032, %v6029, 0.0
          %6034 = vadd.xlane.f32.xlu0 %v6033
          %v6035 = vpop.xlane.xlu0 %6034
          %v6036 = vmul.f32 %v6035, %v4079
          %v6037 = vsub.f32 %v6029, %v6036
          %v6038 = vmul.f32 %v6037, %v6037
          %v6039 = vsel %vm6032, %v6038, 0.0
          %6040 = vadd.xlane.f32.xlu0 %v6039
          %v6041 = vpop.xlane.xlu0 %6040
          %v6042 = vmul.f32 %v6041, %v4079
          %v6043 = vadd.f32 %v6042, 1e-05
          %v6044 = vrsqrt.pop %v6043
          %v6045 = vmul.f32 %v6037, %v6044
          %v6047 = vlaneseq
          %v6048 = vshrl.u32 %v6047, 7
          %v6049 = vsub.s32 0, %v6048
          %v6050 = vrot.slane %v6030, %v6049
          %v6052 = vmul.f32 %v6045, %v6050
          %v6054 = vlaneseq
          %v6055 = vshrl.u32 %v6054, 7
          %v6056 = vsub.s32 0, %v6055
          %v6057 = vrot.slane %v6031, %v6056
          %v6059 = vadd.f32 %v6052, %v6057
          %v6060 = vld [vmem:[%s16] sm:$0xff]
          %v6061 = vld [vmem:[%s16 + $0x8] sm:$0xff]
          %v6062 = vld [vmem:[%s16 + $0x10] sm:$0xff]
          %v6063 = vld [vmem:[%s16 + $0x18] sm:$0xff]
          %v6064 = vld [vmem:[%s16 + $0x20] sm:$0xff]
          %v6065 = vld [vmem:[%s16 + $0x28] sm:$0xff]
          %v6066 = vld [vmem:[%s16 + $0x30] sm:$0xff]
          %v6067 = vld [vmem:[%s16 + $0x38] sm:$0xff]
          %v6068 = vld [vmem:[%s16 + $0x40] sm:$0xff]
          %v6069 = vld [vmem:[%s16 + $0x48] sm:$0xff]
          %v6070 = vld [vmem:[%s16 + $0x50] sm:$0xff]
          %v6071 = vld [vmem:[%s16 + $0x58] sm:$0xff]
          %v6072 = vld [vmem:[%s16 + $0x60] sm:$0xff]
          %v6073 = vld [vmem:[%s16 + $0x68] sm:$0xff]
          %v6074 = vld [vmem:[%s16 + $0x70] sm:$0xff]
          %v6075 = vld [vmem:[%s16 + $0x78] sm:$0xff]
          %v6076 = vld [vmem:[#allocation27] sm:$0x1]
          %v6078 = vlaneseq
          %v6079 = vshrl.u32 %v6078, 7
          %v6080 = vsub.s32 0, %v6079
          %v6081 = vrot.slane %v6076, %v6080
          %6083 = vmatprep.subr.mxu0 0.0
          %6084 = vmatpush1.msra.mxu0 %v6060
          %6085 = vmatprep.subr.mxu0 0.0
          %6086 = vmatpush1.msra.mxu0 %v6061
          %6087 = vmatprep.subr.mxu0 0.0
          %6088 = vmatpush1.msra.mxu0 %v6062
          %6089 = vmatprep.subr.mxu0 0.0
          %6090 = vmatpush1.msra.mxu0 %v6063
          %6091 = vmatprep.subr.mxu0 0.0
          %6092 = vmatpush1.msra.mxu0 %v6064
          %6093 = vmatprep.subr.mxu0 0.0
          %6094 = vmatpush1.msra.mxu0 %v6065
          %6095 = vmatprep.subr.mxu0 0.0
          %6096 = vmatpush1.msra.mxu0 %v6066
          %6097 = vmatprep.subr.mxu0 0.0
          %6098 = vmatpush1.msra.mxu0 %v6067
          %6099 = vmatprep.subr.mxu0 0.0
          %6100 = vmatpush1.msra.mxu0 %v6068
          %6101 = vmatprep.subr.mxu0 0.0
          %6102 = vmatpush1.msra.mxu0 %v6069
          %6103 = vmatprep.subr.mxu0 0.0
          %6104 = vmatpush1.msra.mxu0 %v6070
          %6105 = vmatprep.subr.mxu0 0.0
          %6106 = vmatpush1.msra.mxu0 %v6071
          %6107 = vmatprep.subr.mxu0 0.0
          %6108 = vmatpush1.msra.mxu0 %v6072
          %6109 = vmatprep.subr.mxu0 0.0
          %6110 = vmatpush1.msra.mxu0 %v6073
          %6111 = vmatprep.subr.mxu0 0.0
          %6112 = vmatpush1.msra.mxu0 %v6074
          %6113 = vmatprep.subr.mxu0 0.0
          %6114 = vmatpush1.msra.mxu0 %v6075
          %6115 = vmatprep.subr.mxu0 0.0
          %6116 = vmatpush1.msra.mxu0 0.0
          %6117 = vmatprep.subr.mxu0 0.0
          %6118 = vmatpush1.msra.mxu0 0.0
          %6119 = vmatprep.subr.mxu0 0.0
          %6120 = vmatpush1.msra.mxu0 0.0
          %6121 = vmatprep.subr.mxu0 0.0
          %6122 = vmatpush1.msra.mxu0 0.0
          %6123 = vmatprep.subr.mxu0 0.0
          %6124 = vmatpush1.msra.mxu0 0.0
          %6125 = vmatprep.subr.mxu0 0.0
          %6126 = vmatpush1.msra.mxu0 0.0
          %6127 = vmatprep.subr.mxu0 0.0
          %6128 = vmatpush1.msra.mxu0 0.0
          %6129 = vmatprep.subr.mxu0 0.0
          %6130 = vmatpush1.msra.mxu0 0.0
          %6131 = vmatprep.subr.mxu0 0.0
          %6132 = vmatpush1.msra.mxu0 0.0
          %6133 = vmatprep.subr.mxu0 0.0
          %6134 = vmatpush1.msra.mxu0 0.0
          %6135 = vmatprep.subr.mxu0 0.0
          %6136 = vmatpush1.msra.mxu0 0.0
          %6137 = vmatprep.subr.mxu0 0.0
          %6138 = vmatpush1.msra.mxu0 0.0
          %6139 = vmatprep.subr.mxu0 0.0
          %6140 = vmatpush1.msra.mxu0 0.0
          %6141 = vmatprep.subr.mxu0 0.0
          %6142 = vmatpush1.msra.mxu0 0.0
          %6143 = vmatprep.subr.mxu0 0.0
          %6144 = vmatpush1.msra.mxu0 0.0
          %6145 = vmatprep.subr.mxu0 0.0
          %6146 = vmatpush1.msra.mxu0 0.0
          %6147 = vmatprep.mubr.f32.mxu0 0.0
          %6148 = vmatmul.mubr.f32.gmra.mrb[0].mxu0 %v6059
          %v6149 = vpop.f32.mrb[0].mxu0
          %v6150 = vadd.f32 %v6081, %v6149
          %v6151 = vpop.f32.mrb[0].mxu0
          %6152 = vdwg.mxu0
          %vm6153 = vcmask 9216
          %6154 = vst.msk [vmem:[#allocation29] sm:$0x3] %vm6153, %v6150
        $region164: #{forward.1} parent=91 // pred_fallthru
          _
        // Predicated region
        $region165: #{forward.1} parent=91 // pred_check
          %p6155 = pneg %p502
        $region166: #{forward.1} parent=91 // pred_check_branch
          %6157 = sbr.rel (%p6155) target = $region168
        $region167: #{forward.1} parent=91 // pred_region
          %s6159 = ssub.s32 32, 32
          %6160 = vsyncadd [#allocation5], %s6159
          %s6162 = sshll.u32 [#allocation29], 4
          %s6163 = int_to_ptr.vmem [resolvable:$true] %s6162
          %6165 = dma.vmem_to_hbm [thread:$0]  %s6163, 32, %s18, [#allocation5]
        $region168: #{forward.1} parent=91 // pred_fallthru
          _
        // Predicated region
        $region169: #{forward.1} parent=91 // pred_check
          %p6166 = pneg %p502
        $region170: #{forward.1} parent=91 // pred_check_branch
          %6168 = sbr.rel (%p6166) target = $region172
        $region171: #{forward.1} parent=91 // pred_region
          %6169 = dma.done [#allocation5], 32
        $region172: #{forward.1} parent=91 // pred_fallthru
          _
      $region92: #{forward.1} parent=5 // pred_fallthru
        _
      %p6170 = scmp.le.s32.totalorder 2, %s46
      // Predicated region
      $region173: #{forward.1} parent=5 // pred_check
        %p6171 = pneg %p6170
      $region174: #{forward.1} parent=5 // pred_check_branch
        %6173 = sbr.rel (%p6171) target = $region176
      $region175: #{forward.1} parent=5 // pred_region
        %s6174 = ssub.s32 %s46, 2
      $region176: #{forward.1} parent=5 // pred_fallthru
        _
    $region6: #{forward.1} parent=1 // loop_footer
      %s50 = sadd.s32 1, %s46
    $region7: #{forward.1} parent=1 // loop_footer_branch
      %45 = sbr.rel target = $region3
    $region8: #{forward.1} parent=1 // loop_exit
      _
    %6175 = vsyncpa [#allocation4], 1
    %s6176 = scalar_lea.sflag [#allocation4], 1
    %6177 = vsyncpa %s6176, 1
    %6178 = vsyncpa [#allocation7], 1
    %s6179 = scalar_lea.sflag [#allocation7], 1
    %6180 = vsyncpa %s6179, 1
    %6181 = vsyncpa [#allocation10], 1
    %s6182 = scalar_lea.sflag [#allocation10], 1
    %6183 = vsyncpa %s6182, 1
    %6184 = vsyncpa [#allocation13], 1
    %s6185 = scalar_lea.sflag [#allocation13], 1
    %6186 = vsyncpa %s6185, 1
    %6187 = vsyncpa [#allocation16], 1
    %s6188 = scalar_lea.sflag [#allocation16], 1
    %6189 = vsyncpa %s6188, 1
    %6190 = vsyncpa [#allocation19], 1
    %s6191 = scalar_lea.sflag [#allocation19], 1
    %6192 = vsyncpa %s6191, 1
    %6193 = vsyncpa [#allocation22], 1
    %s6194 = scalar_lea.sflag [#allocation22], 1
    %6195 = vsyncpa %s6194, 1
    %6196 = vsyncpa [#allocation25], 1
    %6197 = vsyncpa [#allocation28], 1
    %6198 = vsyncpa [#allocation5], 1
    %s6199 = scalar_lea.sflag [#allocation5], 1
    %6200 = vsyncpa %s6199, 1

</llo_original>
